<compile_context>
chip_gen: v7x
topology: tpu7x:2x2x1
jax: 0.10.0
libtpu: 0.0.40
codegen_flags: <defaults>
</compile_context>

<pallas_src>
import functools

import jax
import jax.numpy as jnp
from jax import lax
from jax.experimental import pallas as pl
from jax.experimental.pallas import tpu as pltpu

NEG_SLOPE = 0.2
C = 128                  # channels
K1 = 15                  # conv1 kernel size
K2 = 41                  # conv2 kernel size
GROUPS = 4
PAD1 = 7                 # conv1 "same" padding
PAD2 = 20                # conv2 padding
N_PAIR = (K2 + 1) // 2   # 21 paired (even, odd) conv2 taps
HALO = 32                # extra conv1 rows per tile (>= (K2-1)//2 = 20, multiple of 16)
CH = 128                 # rows per in-register f32 accumulator chunk (16 vregs)
TILE_OUT = 512           # max conv2 output rows per grid step (multiple of CH)


def _round_up(x, m):
    return (x + m - 1) // m * m


def _leaky(x):
    return jnp.where(x > 0, x, NEG_SLOPE * x)


def _disc_kernel(xt_ref, w1_ref, w2_ref, b2_ref, out_ref, h1_ref, *, TO, H):
    """One (batch, output-time-tile) grid step.

    xt_ref : (H, 32)       bf16  im2col of the raw padded signal; cols 0..14 / 16..30 are the 15
                                 conv1 taps of the even / odd stride-2 parity, cols 15 / 31 are
                                 validity indicators (fold conv1 bias + conv2 zero padding).
    w1_ref : (32, 256)     bf16  two block-diagonal copies of the conv1 weight; rows 15/31 = bias.
    w2_ref : (21, 256,128) bf16  paired conv2 taps: rows 0..127 = tap k=2m, rows 128..255 = k=2m+1
                                 (block-diagonal dense grouped weight; odd tap of m=20 is zero).
    b2_ref : (1, 128)      f32
    out_ref: (128, TO)     f32   channel-major conv2 output of this tile (already NCL).
    h1_ref : (H, 256)      bf16  scratch: conv1 activations, even parity in lanes 0..127, odd above.
    """
    # ---- conv1 (1 -> 128, k=15) + LeakyReLU, both parities per K=32 matmul, stored once as bf16.
    for r0 in range(0, H, CH):
        rows = min(CH, H - r0)
        h = jnp.dot(xt_ref[r0:r0 + rows, :], w1_ref[...],
                    preferred_element_type=jnp.float32)
        h1_ref[r0:r0 + rows, :] = _leaky(h).astype(jnp.bfloat16)

    # ---- conv2 (grouped 128 -> 128, k=41, stride 2) directly at stride 2: output row o uses
    # h1_even[o + m] (lanes 0..127) for tap k=2m and h1_odd[o + m] (lanes 128..255) for k=2m+1,
    # so each paired tap is one (CH, 256) @ (256, 128) MXU dot with f32 accumulation.
    for c0 in range(0, TO, CH):
        acc = jnp.zeros((CH, C), jnp.float32)
        for m in range(N_PAIR):
            acc = acc + jnp.dot(h1_ref[c0 + m:c0 + m + CH, :], w2_ref[m],
                                preferred_element_type=jnp.float32)
        y = _leaky(acc + b2_ref[...])
        out_ref[:, c0:c0 + CH] = y.T          # channel-major write (128x128 XLU transpose)


def _prep_params(W1, b1, W2, b2):
    """Reshape PyTorch-shaped params into kernel layout (bf16 weights, f32 conv2 bias)."""
    # conv1: (16, 128) with the 15 taps in rows 0..14 and the bias in row 15; duplicated
    # block-diagonally to (32, 256) so one matmul produces both stride-2 parities.
    w1_ext = jnp.zeros((K1 + 1, C), jnp.float32)
    w1_ext = w1_ext.at[:K1, :].set(jnp.transpose(W1[:, 0, :], (1, 0)))
    w1_ext = w1_ext.at[K1, :].set(b1)
    w1c = jnp.zeros((2 * (K1 + 1), 2 * C), jnp.float32)
    w1c = w1c.at[:K1 + 1, :C].set(w1_ext)
    w1c = w1c.at[K1 + 1:, C:].set(w1_ext)

    # conv2: expand grouped weight (128, 32, 41) -> block-diagonal dense [k, c_in, c_out],
    # then pair even/odd taps along c_in into K=256 operands (zero-pad the missing 21st odd
    # tap) and cast to bf16 for the MXU (f32 accumulation happens in-kernel).
    wt = jnp.transpose(W2, (2, 1, 0))                              # (41, 32, 128)
    ci = jnp.arange(C)
    w2full = wt[:, ci % (C // GROUPS), :]                          # (41, 128, 128)
    mask = (ci[:, None] // (C // GROUPS)) == (ci[None, :] // (C // GROUPS))
    w2d = w2full * mask[None, :, :].astype(jnp.float32)
    w2e = w2d[0::2]                                                # taps 0,2,...,40
    w2o = jnp.concatenate([w2d[1::2], jnp.zeros((1, C, C), jnp.float32)], axis=0)
    w2pair = jnp.concatenate([w2e, w2o], axis=1)                   # (21, 256, 128)
    return (w1c.astype(jnp.bfloat16), w2pair.astype(jnp.bfloat16),
            b2[None, :].astype(jnp.float32))


def _build_im2col(xs, tp, n_tiles, TO):
    """Per-tile, haloed, stride-2 de-interleaved 32-wide im2col of the raw padded signal.

    Row r of tile t corresponds to conv1 output times te = 2*(t*TO + r) - PAD2 (cols 0..15,
    even parity) and te + 1 (cols 16..31, odd parity).  Tap columns hold xs[te + k - PAD1]
    (zero outside the sequence); the indicator columns are 1.0 iff te lies in [0, tp) -- they
    apply conv2's zero padding and carry the conv1 bias through the matmul.  Built from
    strided `lax.slice`s only (no gather); overlapping tile windows are static slices.
    """
    B = xs.shape[0]
    H = TO + HALO
    L = (n_tiles - 1) * TO + H                   # number of distinct (haloed) rows
    left = PAD2 + PAD1                            # 27: makes every slice start non-negative
    right = max(0, 2 * L + K1 - left - tp)
    xs_pad = jnp.pad(xs, ((0, 0), (left, right)))

    j = jnp.arange(L)
    valid_e = ((2 * j - PAD2 >= 0) & (2 * j - PAD2 < tp)).astype(xs.dtype)
    valid_o = ((2 * j - PAD2 + 1 >= 0) & (2 * j - PAD2 + 1 < tp)).astype(xs.dtype)

    cols = []
    for k in range(K1):                           # even parity: padded index 2*j + k
        cols.append(lax.slice(xs_pad, (0, k), (B, k + 2 * L), (1, 2)) * valid_e[None, :])
    cols.append(jnp.broadcast_to(valid_e[None, :], (B, L)))
    for k in range(K1):                           # odd parity: padded index 2*j + k + 1
        cols.append(lax.slice(xs_pad, (0, k + 1), (B, k + 1 + 2 * L), (1, 2)) * valid_o[None, :])
    cols.append(jnp.broadcast_to(valid_o[None, :], (B, L)))
    flat = jnp.stack(cols, axis=-1).astype(jnp.bfloat16)           # (B, L, 32)

    tiles = [lax.slice(flat, (0, t * TO, 0), (B, t * TO + H, 2 * (K1 + 1)))
             for t in range(n_tiles)]
    return jnp.stack(tiles, axis=1)                                 # (B, n_tiles, H, 32)


def _period_branch(x, params, period):
    # x: (B, 1, T) float32 (PyTorch NCL).  Returns (B, 128, ceil(tp/2)) float32 (NCL).
    B, _, T = x.shape
    pad = (-T) % period
    tp = T + pad
    t_out = (tp + 1) // 2                        # stride-2 conv2 output length
    xs = jnp.pad(x[:, 0, :].astype(jnp.float32), ((0, 0), (0, pad)))   # (B, tp)

    TO = min(TILE_OUT, _round_up(t_out, CH))     # output rows per grid step (multiple of 128)
    n_tiles = pl.cdiv(t_out, TO)
    H = TO + HALO

    xt = _build_im2col(xs, tp, n_tiles, TO)
    w1c, w2pair, b2r = params

    kernel = functools.partial(_disc_kernel, TO=TO, H=H)
    out = pl.pallas_call(
        kernel,
        out_shape=jax.ShapeDtypeStruct((B, C, n_tiles * TO), jnp.float32),
        grid=(B, n_tiles),
        in_specs=[
            pl.BlockSpec((None, None, H, 2 * (K1 + 1)), lambda b, t: (b, t, 0, 0)),
            pl.BlockSpec((2 * (K1 + 1), 2 * C), lambda b, t: (0, 0)),
            pl.BlockSpec((N_PAIR, 2 * C, C), lambda b, t: (0, 0, 0)),
            pl.BlockSpec((1, C), lambda b, t: (0, 0)),
        ],
        out_specs=pl.BlockSpec((None, C, TO), lambda b, t: (b, 0, t)),
        scratch_shapes=[pltpu.VMEM((H, 2 * C), jnp.bfloat16)],
        compiler_params=pltpu.CompilerParams(
            dimension_semantics=("parallel", "parallel"),
            vmem_limit_bytes=32 * 1024 * 1024),
    )(xt, w1c, w2pair, b2r)

    # Output is already channel-major (NCL); only drop the output-time tile padding
    # (cheap contiguous last-dim slice; no transpose pass).
    return out[:, :, :t_out]


def discriminator_forward(x, param_list, periods):
    return [_period_branch(x, _prep_params(*param_list[i]), p)
            for i, p in enumerate(periods)]


def reference_forward(x, param_list, periods):
    """Pure-JAX reference matching PyTorch Conv1d semantics."""
    outs = []
    for (W1, b1, W2, b2), p in zip(param_list, periods):
        B, _, T = x.shape
        pad = (-T) % p
        xp = jnp.pad(x, ((0, 0), (0, 0), (0, pad)))
        h = lax.conv_general_dilated(xp, W1, (1,), [(PAD1, PAD1)],
                                     dimension_numbers=("NCH", "OIH", "NCH"),
                                     preferred_element_type=jnp.float32)
        h = h + b1[None, :, None]
        h = jnp.where(h > 0, h, NEG_SLOPE * h)
        h2 = lax.conv_general_dilated(h, W2, (2,), [(PAD2, PAD2)],
                                      dimension_numbers=("NCH", "OIH", "NCH"),
                                      feature_group_count=GROUPS,
                                      preferred_element_type=jnp.float32)
        h2 = h2 + b2[None, :, None]
        outs.append(jnp.where(h2 > 0, h2, NEG_SLOPE * h2))
    return outs


if __name__ == "__main__":
    periods = [2, 3, 5, 7, 11]

    key = jax.random.PRNGKey(0)

    # deterministic synthetic parameters (PyTorch shapes)
    param_list = []
    for _ in periods:
        key, k1, k2, k3, k4 = jax.random.split(key, 5)
        W1 = jax.random.normal(k1, (C, 1, K1), jnp.float32) * 0.1             # Conv1d(1,128,15)
        b1 = jax.random.normal(k2, (C,), jnp.float32) * 0.1
        W2 = jax.random.normal(k3, (C, C // GROUPS, K2), jnp.float32) * 0.05  # Conv1d(128,128,41,g=4)
        b2 = jax.random.normal(k4, (C,), jnp.float32) * 0.1
        param_list.append((W1, b1, W2, b2))

    ok = True
    # small single-tile case + a longer case exercising the multi-tile / halo / partial-tile paths
    for (B, T) in [(2, 16), (2, 1153)]:
        key, kx = jax.random.split(key)
        x = jax.random.normal(kx, (B, 1, T), jnp.float32)
        outs = jax.block_until_ready(discriminator_forward(x, param_list, periods))
        refs = jax.block_until_ready(reference_forward(x, param_list, periods))
        for o, r in zip(outs, refs):
            if o.shape != r.shape:
                ok = False
            elif not bool(jnp.allclose(o, r, atol=5e-2, rtol=5e-2)):
                ok = False

    if ok:
        print("KERNEL_OK")
    else:
        raise SystemExit("kernel/reference mismatch")
</pallas_src>

<mosaic_0001>
module attributes {stable_mosaic.version = 11 : i64} {
  func.func @_disc_kernel(%arg0: i32, %arg1: i32, %arg2: memref<1x1x160x32xbf16, #tpu.memory_space<vmem>>, %arg3: memref<32x256xbf16, #tpu.memory_space<vmem>>, %arg4: memref<21x256x128xbf16, #tpu.memory_space<vmem>>, %arg5: memref<1x128xf32, #tpu.memory_space<vmem>>, %arg6: memref<1x128x128xf32, #tpu.memory_space<vmem>>, %arg7: memref<160x256xbf16, #tpu.memory_space<vmem>>) attributes {dimension_semantics = [#tpu.dimension_semantics<parallel>, #tpu.dimension_semantics<parallel>], iteration_bounds = array<i64: 2, 1>, scalar_prefetch = 0 : i64, scratch_operands = 1 : i64, tpu.core_type = #tpu.core_type<tc>, window_params = [{transform_indices = @transform_0, window_bounds = array<i64: 1, 1, 160, 32>}, {pipeline_mode = #tpu.pipeline_mode<synchronous>, transform_indices = @transform_1, window_bounds = array<i64: 32, 256>}, {pipeline_mode = #tpu.pipeline_mode<synchronous>, transform_indices = @transform_2, window_bounds = array<i64: 21, 256, 128>}, {pipeline_mode = #tpu.pipeline_mode<synchronous>, transform_indices = @transform_3, window_bounds = array<i64: 1, 128>}, {transform_indices = @transform_4, window_bounds = array<i64: 1, 128, 128>}]} {
    %c0 = arith.constant 0 : index
    %c0_0 = arith.constant 0 : index
    %c0_1 = arith.constant 0 : index
    %c0_2 = arith.constant 0 : index
    %0 = vector.load %arg2[%c0, %c0_0, %c0_1, %c0_2] : memref<1x1x160x32xbf16, #tpu.memory_space<vmem>>, vector<1x1x128x32xbf16>
    %1 = vector.shape_cast %0 : vector<1x1x128x32xbf16> to vector<128x32xbf16>
    %c0_3 = arith.constant 0 : index
    %c0_4 = arith.constant 0 : index
    %2 = vector.load %arg3[%c0_3, %c0_4] : memref<32x256xbf16, #tpu.memory_space<vmem>>, vector<32x256xbf16>
    %cst = arith.constant dense<0.000000e+00> : vector<128x256xf32>
    %3 = tpu.matmul %1, %2, %cst {dimension_numbers = #tpu.dot_dimension_numbers<[1], [0], [0], [1], [0, 0, 1, 1], [], []>} : vector<128x32xbf16>, vector<32x256xbf16>, vector<128x256xf32> -> vector<128x256xf32>
    %cst_5 = arith.constant 0.000000e+00 : f32
    %4 = vector.broadcast %cst_5 : f32 to vector<128x256xf32>
    %5 = arith.cmpf ogt, %3, %4 : vector<128x256xf32>
    %cst_6 = arith.constant 2.000000e-01 : f32
    %6 = vector.broadcast %cst_6 : f32 to vector<128x256xf32>
    %7 = arith.mulf %6, %3 : vector<128x256xf32>
    %8 = arith.select %5, %3, %7 : vector<128x256xi1>, vector<128x256xf32>
    %9 = arith.truncf %8 : vector<128x256xf32> to vector<128x256xbf16>
    %c0_7 = arith.constant 0 : index
    %c0_8 = arith.constant 0 : index
    %10 = vector.load %arg7[%c0_7, %c0_8] : memref<160x256xbf16, #tpu.memory_space<vmem>>, vector<128x256xbf16>
    tpu.vector_store %arg7[%c0_7, %c0_8], %9 {strides = array<i32>} : memref<160x256xbf16, #tpu.memory_space<vmem>>, vector<128x256xbf16>,
    %c0_9 = arith.constant 0 : index
    %c0_10 = arith.constant 0 : index
    %c128 = arith.constant 128 : index
    %c0_11 = arith.constant 0 : index
    %11 = vector.load %arg2[%c0_9, %c0_10, %c128, %c0_11] : memref<1x1x160x32xbf16, #tpu.memory_space<vmem>>, vector<1x1x32x32xbf16>
    %12 = vector.shape_cast %11 : vector<1x1x32x32xbf16> to vector<32x32xbf16>
    %c0_12 = arith.constant 0 : index
    %c0_13 = arith.constant 0 : index
    %13 = vector.load %arg3[%c0_12, %c0_13] : memref<32x256xbf16, #tpu.memory_space<vmem>>, vector<32x256xbf16>
    %cst_14 = arith.constant dense<0.000000e+00> : vector<32x256xf32>
    %14 = tpu.matmul %12, %13, %cst_14 {dimension_numbers = #tpu.dot_dimension_numbers<[1], [0], [0], [1], [0, 0, 1, 1], [], []>} : vector<32x32xbf16>, vector<32x256xbf16>, vector<32x256xf32> -> vector<32x256xf32>
    %cst_15 = arith.constant 0.000000e+00 : f32
    %15 = vector.broadcast %cst_15 : f32 to vector<32x256xf32>
    %16 = arith.cmpf ogt, %14, %15 : vector<32x256xf32>
    %cst_16 = arith.constant 2.000000e-01 : f32
    %17 = vector.broadcast %cst_16 : f32 to vector<32x256xf32>
    %18 = arith.mulf %17, %14 : vector<32x256xf32>
    %19 = arith.select %16, %14, %18 : vector<32x256xi1>, vector<32x256xf32>
    %20 = arith.truncf %19 : vector<32x256xf32> to vector<32x256xbf16>
    %c128_17 = arith.constant 128 : index
    %c0_18 = arith.constant 0 : index
    %21 = vector.load %arg7[%c128_17, %c0_18] : memref<160x256xbf16, #tpu.memory_space<vmem>>, vector<32x256xbf16>
    tpu.vector_store %arg7[%c128_17, %c0_18], %20 {strides = array<i32>} : memref<160x256xbf16, #tpu.memory_space<vmem>>, vector<32x256xbf16>,
    %cst_19 = arith.constant 0.000000e+00 : f32
    %22 = vector.broadcast %cst_19 : f32 to vector<128x128xf32>
    %c0_20 = arith.constant 0 : index
    %c0_21 = arith.constant 0 : index
    %23 = vector.load %arg7[%c0_20, %c0_21] : memref<160x256xbf16, #tpu.memory_space<vmem>>, vector<128x256xbf16>
    %c0_22 = arith.constant 0 : index
    %c0_23 = arith.constant 0 : index
    %c0_24 = arith.constant 0 : index
    %24 = vector.load %arg4[%c0_22, %c0_23, %c0_24] : memref<21x256x128xbf16, #tpu.memory_space<vmem>>, vector<1x256x128xbf16>
    %25 = vector.shape_cast %24 : vector<1x256x128xbf16> to vector<256x128xbf16>
    %cst_25 = arith.constant dense<0.000000e+00> : vector<128x128xf32>
    %26 = tpu.matmul %23, %25, %cst_25 {dimension_numbers = #tpu.dot_dimension_numbers<[1], [0], [0], [1], [0, 0, 1, 1], [], []>} : vector<128x256xbf16>, vector<256x128xbf16>, vector<128x128xf32> -> vector<128x128xf32>
    %27 = arith.addf %22, %26 : vector<128x128xf32>
    %c1 = arith.constant 1 : index
    %c0_26 = arith.constant 0 : index
    %28 = vector.load %arg7[%c1, %c0_26] : memref<160x256xbf16, #tpu.memory_space<vmem>>, vector<128x256xbf16>
    %c1_27 = arith.constant 1 : index
    %c0_28 = arith.constant 0 : index
    %c0_29 = arith.constant 0 : index
    %29 = vector.load %arg4[%c1_27, %c0_28, %c0_29] : memref<21x256x128xbf16, #tpu.memory_space<vmem>>, vector<1x256x128xbf16>
    %30 = vector.shape_cast %29 : vector<1x256x128xbf16> to vector<256x128xbf16>
    %cst_30 = arith.constant dense<0.000000e+00> : vector<128x128xf32>
    %31 = tpu.matmul %28, %30, %cst_30 {dimension_numbers = #tpu.dot_dimension_numbers<[1], [0], [0], [1], [0, 0, 1, 1], [], []>} : vector<128x256xbf16>, vector<256x128xbf16>, vector<128x128xf32> -> vector<128x128xf32>
    %32 = arith.addf %27, %31 : vector<128x128xf32>
    %c2 = arith.constant 2 : index
    %c0_31 = arith.constant 0 : index
    %33 = vector.load %arg7[%c2, %c0_31] : memref<160x256xbf16, #tpu.memory_space<vmem>>, vector<128x256xbf16>
    %c2_32 = arith.constant 2 : index
    %c0_33 = arith.constant 0 : index
    %c0_34 = arith.constant 0 : index
    %34 = vector.load %arg4[%c2_32, %c0_33, %c0_34] : memref<21x256x128xbf16, #tpu.memory_space<vmem>>, vector<1x256x128xbf16>
    %35 = vector.shape_cast %34 : vector<1x256x128xbf16> to vector<256x128xbf16>
    %cst_35 = arith.constant dense<0.000000e+00> : vector<128x128xf32>
    %36 = tpu.matmul %33, %35, %cst_35 {dimension_numbers = #tpu.dot_dimension_numbers<[1], [0], [0], [1], [0, 0, 1, 1], [], []>} : vector<128x256xbf16>, vector<256x128xbf16>, vector<128x128xf32> -> vector<128x128xf32>
    %37 = arith.addf %32, %36 : vector<128x128xf32>
    %c3 = arith.constant 3 : index
    %c0_36 = arith.constant 0 : index
    %38 = vector.load %arg7[%c3, %c0_36] : memref<160x256xbf16, #tpu.memory_space<vmem>>, vector<128x256xbf16>
    %c3_37 = arith.constant 3 : index
    %c0_38 = arith.constant 0 : index
    %c0_39 = arith.constant 0 : index
    %39 = vector.load %arg4[%c3_37, %c0_38, %c0_39] : memref<21x256x128xbf16, #tpu.memory_space<vmem>>, vector<1x256x128xbf16>
    %40 = vector.shape_cast %39 : vector<1x256x128xbf16> to vector<256x128xbf16>
    %cst_40 = arith.constant dense<0.000000e+00> : vector<128x128xf32>
    %41 = tpu.matmul %38, %40, %cst_40 {dimension_numbers = #tpu.dot_dimension_numbers<[1], [0], [0], [1], [0, 0, 1, 1], [], []>} : vector<128x256xbf16>, vector<256x128xbf16>, vector<128x128xf32> -> vector<128x128xf32>
    %42 = arith.addf %37, %41 : vector<128x128xf32>
    %c4 = arith.constant 4 : index
    %c0_41 = arith.constant 0 : index
    %43 = vector.load %arg7[%c4, %c0_41] : memref<160x256xbf16, #tpu.memory_space<vmem>>, vector<128x256xbf16>
    %c4_42 = arith.constant 4 : index
    %c0_43 = arith.constant 0 : index
    %c0_44 = arith.constant 0 : index
    %44 = vector.load %arg4[%c4_42, %c0_43, %c0_44] : memref<21x256x128xbf16, #tpu.memory_space<vmem>>, vector<1x256x128xbf16>
    %45 = vector.shape_cast %44 : vector<1x256x128xbf16> to vector<256x128xbf16>
    %cst_45 = arith.constant dense<0.000000e+00> : vector<128x128xf32>
    %46 = tpu.matmul %43, %45, %cst_45 {dimension_numbers = #tpu.dot_dimension_numbers<[1], [0], [0], [1], [0, 0, 1, 1], [], []>} : vector<128x256xbf16>, vector<256x128xbf16>, vector<128x128xf32> -> vector<128x128xf32>
    %47 = arith.addf %42, %46 : vector<128x128xf32>
    %c5 = arith.constant 5 : index
    %c0_46 = arith.constant 0 : index
    %48 = vector.load %arg7[%c5, %c0_46] : memref<160x256xbf16, #tpu.memory_space<vmem>>, vector<128x256xbf16>
    %c5_47 = arith.constant 5 : index
    %c0_48 = arith.constant 0 : index
    %c0_49 = arith.constant 0 : index
    %49 = vector.load %arg4[%c5_47, %c0_48, %c0_49] : memref<21x256x128xbf16, #tpu.memory_space<vmem>>, vector<1x256x128xbf16>
    %50 = vector.shape_cast %49 : vector<1x256x128xbf16> to vector<256x128xbf16>
    %cst_50 = arith.constant dense<0.000000e+00> : vector<128x128xf32>
    %51 = tpu.matmul %48, %50, %cst_50 {dimension_numbers = #tpu.dot_dimension_numbers<[1], [0], [0], [1], [0, 0, 1, 1], [], []>} : vector<128x256xbf16>, vector<256x128xbf16>, vector<128x128xf32> -> vector<128x128xf32>
    %52 = arith.addf %47, %51 : vector<128x128xf32>
    %c6 = arith.constant 6 : index
    %c0_51 = arith.constant 0 : index
    %53 = vector.load %arg7[%c6, %c0_51] : memref<160x256xbf16, #tpu.memory_space<vmem>>, vector<128x256xbf16>
    %c6_52 = arith.constant 6 : index
    %c0_53 = arith.constant 0 : index
    %c0_54 = arith.constant 0 : index
    %54 = vector.load %arg4[%c6_52, %c0_53, %c0_54] : memref<21x256x128xbf16, #tpu.memory_space<vmem>>, vector<1x256x128xbf16>
    %55 = vector.shape_cast %54 : vector<1x256x128xbf16> to vector<256x128xbf16>
    %cst_55 = arith.constant dense<0.000000e+00> : vector<128x128xf32>
    %56 = tpu.matmul %53, %55, %cst_55 {dimension_numbers = #tpu.dot_dimension_numbers<[1], [0], [0], [1], [0, 0, 1, 1], [], []>} : vector<128x256xbf16>, vector<256x128xbf16>, vector<128x128xf32> -> vector<128x128xf32>
    %57 = arith.addf %52, %56 : vector<128x128xf32>
    %c7 = arith.constant 7 : index
    %c0_56 = arith.constant 0 : index
    %58 = vector.load %arg7[%c7, %c0_56] : memref<160x256xbf16, #tpu.memory_space<vmem>>, vector<128x256xbf16>
    %c7_57 = arith.constant 7 : index
    %c0_58 = arith.constant 0 : index
    %c0_59 = arith.constant 0 : index
    %59 = vector.load %arg4[%c7_57, %c0_58, %c0_59] : memref<21x256x128xbf16, #tpu.memory_space<vmem>>, vector<1x256x128xbf16>
    %60 = vector.shape_cast %59 : vector<1x256x128xbf16> to vector<256x128xbf16>
    %cst_60 = arith.constant dense<0.000000e+00> : vector<128x128xf32>
    %61 = tpu.matmul %58, %60, %cst_60 {dimension_numbers = #tpu.dot_dimension_numbers<[1], [0], [0], [1], [0, 0, 1, 1], [], []>} : vector<128x256xbf16>, vector<256x128xbf16>, vector<128x128xf32> -> vector<128x128xf32>
    %62 = arith.addf %57, %61 : vector<128x128xf32>
    %c8 = arith.constant 8 : index
    %c0_61 = arith.constant 0 : index
    %63 = vector.load %arg7[%c8, %c0_61] : memref<160x256xbf16, #tpu.memory_space<vmem>>, vector<128x256xbf16>
    %c8_62 = arith.constant 8 : index
    %c0_63 = arith.constant 0 : index
    %c0_64 = arith.constant 0 : index
    %64 = vector.load %arg4[%c8_62, %c0_63, %c0_64] : memref<21x256x128xbf16, #tpu.memory_space<vmem>>, vector<1x256x128xbf16>
    %65 = vector.shape_cast %64 : vector<1x256x128xbf16> to vector<256x128xbf16>
    %cst_65 = arith.constant dense<0.000000e+00> : vector<128x128xf32>
    %66 = tpu.matmul %63, %65, %cst_65 {dimension_numbers = #tpu.dot_dimension_numbers<[1], [0], [0], [1], [0, 0, 1, 1], [], []>} : vector<128x256xbf16>, vector<256x128xbf16>, vector<128x128xf32> -> vector<128x128xf32>
    %67 = arith.addf %62, %66 : vector<128x128xf32>
    %c9 = arith.constant 9 : index
    %c0_66 = arith.constant 0 : index
    %68 = vector.load %arg7[%c9, %c0_66] : memref<160x256xbf16, #tpu.memory_space<vmem>>, vector<128x256xbf16>
    %c9_67 = arith.constant 9 : index
    %c0_68 = arith.constant 0 : index
    %c0_69 = arith.constant 0 : index
    %69 = vector.load %arg4[%c9_67, %c0_68, %c0_69] : memref<21x256x128xbf16, #tpu.memory_space<vmem>>, vector<1x256x128xbf16>
    %70 = vector.shape_cast %69 : vector<1x256x128xbf16> to vector<256x128xbf16>
    %cst_70 = arith.constant dense<0.000000e+00> : vector<128x128xf32>
    %71 = tpu.matmul %68, %70, %cst_70 {dimension_numbers = #tpu.dot_dimension_numbers<[1], [0], [0], [1], [0, 0, 1, 1], [], []>} : vector<128x256xbf16>, vector<256x128xbf16>, vector<128x128xf32> -> vector<128x128xf32>
    %72 = arith.addf %67, %71 : vector<128x128xf32>
    %c10 = arith.constant 10 : index
    %c0_71 = arith.constant 0 : index
    %73 = vector.load %arg7[%c10, %c0_71] : memref<160x256xbf16, #tpu.memory_space<vmem>>, vector<128x256xbf16>
    %c10_72 = arith.constant 10 : index
    %c0_73 = arith.constant 0 : index
    %c0_74 = arith.constant 0 : index
    %74 = vector.load %arg4[%c10_72, %c0_73, %c0_74] : memref<21x256x128xbf16, #tpu.memory_space<vmem>>, vector<1x256x128xbf16>
    %75 = vector.shape_cast %74 : vector<1x256x128xbf16> to vector<256x128xbf16>
    %cst_75 = arith.constant dense<0.000000e+00> : vector<128x128xf32>
    %76 = tpu.matmul %73, %75, %cst_75 {dimension_numbers = #tpu.dot_dimension_numbers<[1], [0], [0], [1], [0, 0, 1, 1], [], []>} : vector<128x256xbf16>, vector<256x128xbf16>, vector<128x128xf32> -> vector<128x128xf32>
    %77 = arith.addf %72, %76 : vector<128x128xf32>
    %c11 = arith.constant 11 : index
    %c0_76 = arith.constant 0 : index
    %78 = vector.load %arg7[%c11, %c0_76] : memref<160x256xbf16, #tpu.memory_space<vmem>>, vector<128x256xbf16>
    %c11_77 = arith.constant 11 : index
    %c0_78 = arith.constant 0 : index
    %c0_79 = arith.constant 0 : index
    %79 = vector.load %arg4[%c11_77, %c0_78, %c0_79] : memref<21x256x128xbf16, #tpu.memory_space<vmem>>, vector<1x256x128xbf16>
    %80 = vector.shape_cast %79 : vector<1x256x128xbf16> to vector<256x128xbf16>
    %cst_80 = arith.constant dense<0.000000e+00> : vector<128x128xf32>
    %81 = tpu.matmul %78, %80, %cst_80 {dimension_numbers = #tpu.dot_dimension_numbers<[1], [0], [0], [1], [0, 0, 1, 1], [], []>} : vector<128x256xbf16>, vector<256x128xbf16>, vector<128x128xf32> -> vector<128x128xf32>
    %82 = arith.addf %77, %81 : vector<128x128xf32>
    %c12 = arith.constant 12 : index
    %c0_81 = arith.constant 0 : index
    %83 = vector.load %arg7[%c12, %c0_81] : memref<160x256xbf16, #tpu.memory_space<vmem>>, vector<128x256xbf16>
    %c12_82 = arith.constant 12 : index
    %c0_83 = arith.constant 0 : index
    %c0_84 = arith.constant 0 : index
    %84 = vector.load %arg4[%c12_82, %c0_83, %c0_84] : memref<21x256x128xbf16, #tpu.memory_space<vmem>>, vector<1x256x128xbf16>
    %85 = vector.shape_cast %84 : vector<1x256x128xbf16> to vector<256x128xbf16>
    %cst_85 = arith.constant dense<0.000000e+00> : vector<128x128xf32>
    %86 = tpu.matmul %83, %85, %cst_85 {dimension_numbers = #tpu.dot_dimension_numbers<[1], [0], [0], [1], [0, 0, 1, 1], [], []>} : vector<128x256xbf16>, vector<256x128xbf16>, vector<128x128xf32> -> vector<128x128xf32>
    %87 = arith.addf %82, %86 : vector<128x128xf32>
    %c13 = arith.constant 13 : index
    %c0_86 = arith.constant 0 : index
    %88 = vector.load %arg7[%c13, %c0_86] : memref<160x256xbf16, #tpu.memory_space<vmem>>, vector<128x256xbf16>
    %c13_87 = arith.constant 13 : index
    %c0_88 = arith.constant 0 : index
    %c0_89 = arith.constant 0 : index
    %89 = vector.load %arg4[%c13_87, %c0_88, %c0_89] : memref<21x256x128xbf16, #tpu.memory_space<vmem>>, vector<1x256x128xbf16>
    %90 = vector.shape_cast %89 : vector<1x256x128xbf16> to vector<256x128xbf16>
    %cst_90 = arith.constant dense<0.000000e+00> : vector<128x128xf32>
    %91 = tpu.matmul %88, %90, %cst_90 {dimension_numbers = #tpu.dot_dimension_numbers<[1], [0], [0], [1], [0, 0, 1, 1], [], []>} : vector<128x256xbf16>, vector<256x128xbf16>, vector<128x128xf32> -> vector<128x128xf32>
    %92 = arith.addf %87, %91 : vector<128x128xf32>
    %c14 = arith.constant 14 : index
    %c0_91 = arith.constant 0 : index
    %93 = vector.load %arg7[%c14, %c0_91] : memref<160x256xbf16, #tpu.memory_space<vmem>>, vector<128x256xbf16>
    %c14_92 = arith.constant 14 : index
    %c0_93 = arith.constant 0 : index
    %c0_94 = arith.constant 0 : index
    %94 = vector.load %arg4[%c14_92, %c0_93, %c0_94] : memref<21x256x128xbf16, #tpu.memory_space<vmem>>, vector<1x256x128xbf16>
    %95 = vector.shape_cast %94 : vector<1x256x128xbf16> to vector<256x128xbf16>
    %cst_95 = arith.constant dense<0.000000e+00> : vector<128x128xf32>
    %96 = tpu.matmul %93, %95, %cst_95 {dimension_numbers = #tpu.dot_dimension_numbers<[1], [0], [0], [1], [0, 0, 1, 1], [], []>} : vector<128x256xbf16>, vector<256x128xbf16>, vector<128x128xf32> -> vector<128x128xf32>
    %97 = arith.addf %92, %96 : vector<128x128xf32>
    %c15 = arith.constant 15 : index
    %c0_96 = arith.constant 0 : index
    %98 = vector.load %arg7[%c15, %c0_96] : memref<160x256xbf16, #tpu.memory_space<vmem>>, vector<128x256xbf16>
    %c15_97 = arith.constant 15 : index
    %c0_98 = arith.constant 0 : index
    %c0_99 = arith.constant 0 : index
    %99 = vector.load %arg4[%c15_97, %c0_98, %c0_99] : memref<21x256x128xbf16, #tpu.memory_space<vmem>>, vector<1x256x128xbf16>
    %100 = vector.shape_cast %99 : vector<1x256x128xbf16> to vector<256x128xbf16>
    %cst_100 = arith.constant dense<0.000000e+00> : vector<128x128xf32>
    %101 = tpu.matmul %98, %100, %cst_100 {dimension_numbers = #tpu.dot_dimension_numbers<[1], [0], [0], [1], [0, 0, 1, 1], [], []>} : vector<128x256xbf16>, vector<256x128xbf16>, vector<128x128xf32> -> vector<128x128xf32>
    %102 = arith.addf %97, %101 : vector<128x128xf32>
    %c16 = arith.constant 16 : index
    %c0_101 = arith.constant 0 : index
    %103 = vector.load %arg7[%c16, %c0_101] : memref<160x256xbf16, #tpu.memory_space<vmem>>, vector<128x256xbf16>
    %c16_102 = arith.constant 16 : index
    %c0_103 = arith.constant 0 : index
    %c0_104 = arith.constant 0 : index
    %104 = vector.load %arg4[%c16_102, %c0_103, %c0_104] : memref<21x256x128xbf16, #tpu.memory_space<vmem>>, vector<1x256x128xbf16>
    %105 = vector.shape_cast %104 : vector<1x256x128xbf16> to vector<256x128xbf16>
    %cst_105 = arith.constant dense<0.000000e+00> : vector<128x128xf32>
    %106 = tpu.matmul %103, %105, %cst_105 {dimension_numbers = #tpu.dot_dimension_numbers<[1], [0], [0], [1], [0, 0, 1, 1], [], []>} : vector<128x256xbf16>, vector<256x128xbf16>, vector<128x128xf32> -> vector<128x128xf32>
    %107 = arith.addf %102, %106 : vector<128x128xf32>
    %c17 = arith.constant 17 : index
    %c0_106 = arith.constant 0 : index
    %108 = vector.load %arg7[%c17, %c0_106] : memref<160x256xbf16, #tpu.memory_space<vmem>>, vector<128x256xbf16>
    %c17_107 = arith.constant 17 : index
    %c0_108 = arith.constant 0 : index
    %c0_109 = arith.constant 0 : index
    %109 = vector.load %arg4[%c17_107, %c0_108, %c0_109] : memref<21x256x128xbf16, #tpu.memory_space<vmem>>, vector<1x256x128xbf16>
    %110 = vector.shape_cast %109 : vector<1x256x128xbf16> to vector<256x128xbf16>
    %cst_110 = arith.constant dense<0.000000e+00> : vector<128x128xf32>
    %111 = tpu.matmul %108, %110, %cst_110 {dimension_numbers = #tpu.dot_dimension_numbers<[1], [0], [0], [1], [0, 0, 1, 1], [], []>} : vector<128x256xbf16>, vector<256x128xbf16>, vector<128x128xf32> -> vector<128x128xf32>
    %112 = arith.addf %107, %111 : vector<128x128xf32>
    %c18 = arith.constant 18 : index
    %c0_111 = arith.constant 0 : index
    %113 = vector.load %arg7[%c18, %c0_111] : memref<160x256xbf16, #tpu.memory_space<vmem>>, vector<128x256xbf16>
    %c18_112 = arith.constant 18 : index
    %c0_113 = arith.constant 0 : index
    %c0_114 = arith.constant 0 : index
    %114 = vector.load %arg4[%c18_112, %c0_113, %c0_114] : memref<21x256x128xbf16, #tpu.memory_space<vmem>>, vector<1x256x128xbf16>
    %115 = vector.shape_cast %114 : vector<1x256x128xbf16> to vector<256x128xbf16>
    %cst_115 = arith.constant dense<0.000000e+00> : vector<128x128xf32>
    %116 = tpu.matmul %113, %115, %cst_115 {dimension_numbers = #tpu.dot_dimension_numbers<[1], [0], [0], [1], [0, 0, 1, 1], [], []>} : vector<128x256xbf16>, vector<256x128xbf16>, vector<128x128xf32> -> vector<128x128xf32>
    %117 = arith.addf %112, %116 : vector<128x128xf32>
    %c19 = arith.constant 19 : index
    %c0_116 = arith.constant 0 : index
    %118 = vector.load %arg7[%c19, %c0_116] : memref<160x256xbf16, #tpu.memory_space<vmem>>, vector<128x256xbf16>
    %c19_117 = arith.constant 19 : index
    %c0_118 = arith.constant 0 : index
    %c0_119 = arith.constant 0 : index
    %119 = vector.load %arg4[%c19_117, %c0_118, %c0_119] : memref<21x256x128xbf16, #tpu.memory_space<vmem>>, vector<1x256x128xbf16>
    %120 = vector.shape_cast %119 : vector<1x256x128xbf16> to vector<256x128xbf16>
    %cst_120 = arith.constant dense<0.000000e+00> : vector<128x128xf32>
    %121 = tpu.matmul %118, %120, %cst_120 {dimension_numbers = #tpu.dot_dimension_numbers<[1], [0], [0], [1], [0, 0, 1, 1], [], []>} : vector<128x256xbf16>, vector<256x128xbf16>, vector<128x128xf32> -> vector<128x128xf32>
    %122 = arith.addf %117, %121 : vector<128x128xf32>
    %c20 = arith.constant 20 : index
    %c0_121 = arith.constant 0 : index
    %123 = vector.load %arg7[%c20, %c0_121] : memref<160x256xbf16, #tpu.memory_space<vmem>>, vector<128x256xbf16>
    %c20_122 = arith.constant 20 : index
    %c0_123 = arith.constant 0 : index
    %c0_124 = arith.constant 0 : index
    %124 = vector.load %arg4[%c20_122, %c0_123, %c0_124] : memref<21x256x128xbf16, #tpu.memory_space<vmem>>, vector<1x256x128xbf16>
    %125 = vector.shape_cast %124 : vector<1x256x128xbf16> to vector<256x128xbf16>
    %cst_125 = arith.constant dense<0.000000e+00> : vector<128x128xf32>
    %126 = tpu.matmul %123, %125, %cst_125 {dimension_numbers = #tpu.dot_dimension_numbers<[1], [0], [0], [1], [0, 0, 1, 1], [], []>} : vector<128x256xbf16>, vector<256x128xbf16>, vector<128x128xf32> -> vector<128x128xf32>
    %127 = arith.addf %122, %126 : vector<128x128xf32>
    %c0_126 = arith.constant 0 : index
    %c0_127 = arith.constant 0 : index
    %128 = vector.load %arg5[%c0_126, %c0_127] : memref<1x128xf32, #tpu.memory_space<vmem>>, vector<1x128xf32>
    %129 = vector.broadcast %128 : vector<1x128xf32> to vector<128x128xf32>
    %130 = arith.addf %127, %129 : vector<128x128xf32>
    %cst_128 = arith.constant 0.000000e+00 : f32
    %131 = vector.broadcast %cst_128 : f32 to vector<128x128xf32>
    %132 = arith.cmpf ogt, %130, %131 : vector<128x128xf32>
    %cst_129 = arith.constant 2.000000e-01 : f32
    %133 = vector.broadcast %cst_129 : f32 to vector<128x128xf32>
    %134 = arith.mulf %133, %130 : vector<128x128xf32>
    %135 = arith.select %132, %130, %134 : vector<128x128xi1>, vector<128x128xf32>
    %136 = tpu.transpose %135, [1, 0] : vector<128x128xf32> -> vector<128x128xf32>
    %c0_130 = arith.constant 0 : index
    %c0_131 = arith.constant 0 : index
    %c0_132 = arith.constant 0 : index
    %137 = vector.load %arg6[%c0_130, %c0_131, %c0_132] : memref<1x128x128xf32, #tpu.memory_space<vmem>>, vector<1x128x128xf32>
    %138 = vector.shape_cast %137 : vector<1x128x128xf32> to vector<128x128xf32>
    %139 = vector.shape_cast %136 : vector<128x128xf32> to vector<1x128x128xf32>
    tpu.vector_store %arg6[%c0_130, %c0_131, %c0_132], %139 {strides = array<i32>} : memref<1x128x128xf32, #tpu.memory_space<vmem>>, vector<1x128x128xf32>,
    return
  }
  func.func @transform_0(%arg0: i32, %arg1: i32) -> (i32, i32, i32, i32) {
    %c0_i32 = arith.constant 0 : i32
    %c0_i32_0 = arith.constant 0 : i32
    %c0_i32_1 = arith.constant 0 : i32
    return %arg0, %arg1, %c0_i32, %c0_i32_0 : i32, i32, i32, i32
  }
  func.func @transform_1(%arg0: i32, %arg1: i32) -> (i32, i32) {
    %c0_i32 = arith.constant 0 : i32
    %c0_i32_0 = arith.constant 0 : i32
    %c0_i32_1 = arith.constant 0 : i32
    return %c0_i32, %c0_i32_0 : i32, i32
  }
  func.func @transform_2(%arg0: i32, %arg1: i32) -> (i32, i32, i32) {
    %c0_i32 = arith.constant 0 : i32
    %c0_i32_0 = arith.constant 0 : i32
    %c0_i32_1 = arith.constant 0 : i32
    %c0_i32_2 = arith.constant 0 : i32
    return %c0_i32, %c0_i32_0, %c0_i32_1 : i32, i32, i32
  }
  func.func @transform_3(%arg0: i32, %arg1: i32) -> (i32, i32) {
    %c0_i32 = arith.constant 0 : i32
    %c0_i32_0 = arith.constant 0 : i32
    %c0_i32_1 = arith.constant 0 : i32
    return %c0_i32, %c0_i32_0 : i32, i32
  }
  func.func @transform_4(%arg0: i32, %arg1: i32) -> (i32, i32, i32) {
    %c0_i32 = arith.constant 0 : i32
    %c0_i32_0 = arith.constant 0 : i32
    return %arg0, %c0_i32, %arg1 : i32, i32, i32
  }
}

</mosaic_0001>

<llo_original>
// kernel: tpu_custom_call.1
$region0: #{tpu_custom_call.1}
  #allocation0 [shape = 'u32[]', space=smem, size = 0x4, offset = 0x4, fixed_abs, tag = 'smem constant byte address 0x4 - core index']
  #allocation1 [shape = 'u32[144,128]{1,0:T(1,128)}', space=vmem, size = 0x12000, scoped, tag = 'internal scratch']
  #allocation2 [shape = 'bf16[160,256]{1,0:T(16,128)(2,1)}', space=vmem, size = 0x14000, scoped, tag = 'scratch operand']
  %s0 = inlined_call_operand.vmem [shape: bf16[2,1,160,32], index: 0, kind: input, shape index: {}]
  %s1 = inlined_call_operand.hbm [shape: bf16[32,256], index: 1, kind: input, shape index: {}]
  %s2 = inlined_call_operand.hbm [shape: bf16[21,256,128], index: 2, kind: input, shape index: {}]
  %s3 = inlined_call_operand.hbm [shape: f32[1,128], index: 3, kind: input, shape index: {}]
  %s4 = inlined_call_operand.hbm [shape: f32[2,128,128], index: 4, kind: output, shape index: {}]
  %s5 = sld [smem:[#allocation0]]
  $region61: #{tpu_custom_call.1} parent=0
    _
  %s7 = ssub.s32 1, %s5
  %s8 = scalar_select 0, %s7, %s5
  $region1: #{tpu_custom_call.1} parent=0
    #allocation3 [shape = 'u8[16384]{0}', space=vmem, size = 0x4000, scoped, tag = 'input window, operand 1, single buffered']
    #allocation4 [shape = 's32[2]{0}', space=sflag, size = 0x8, scoped, tag = 'scoped memory for tpu_custom_call.1']
    #allocation5 [shape = 's32[2]{0}', space=sflag, size = 0x8, scoped, tag = 'scoped memory for tpu_custom_call.1']
    #allocation6 [shape = 'u8[1376256]{0}', space=vmem, size = 0x150000, scoped, tag = 'input window, operand 2, single buffered']
    #allocation7 [shape = 's32[1]{0}', space=sflag, size = 0x4, scoped, tag = 'scoped memory for tpu_custom_call.1']
    #allocation8 [shape = 'u8[512]{0}', space=vmem, size = 0x400, scoped, tag = 'input window, operand 3, single buffered']
    #allocation9 [shape = 'u8[131072]{0}', space=vmem, size = 0x20000, scoped, tag = 'output window, operand 0']
    %9 = vsyncpa [#allocation4], 0
    %10 = vsyncpa [#allocation7], 0
    %11 = vsyncpa [#allocation5], 0
    %s12 = scalar_lea.sflag [#allocation5], 1
    %13 = vsyncpa %s12, 0
    loop: start=0, step=1, limit=4
    $region2: #{tpu_custom_call.1} parent=1 // loop_pre_header
      _
    $region3: #{tpu_custom_call.1} parent=1 // loop_header
      %s15 = sphi 0, %s19
      %p16 = scmp.ge.s32.totalorder %s15, 4
      %s22 = sphi 0, %s34
      %s23 = sphi 0, %s30
      %s24 = sphi 0, %s22
      %s25 = sphi 0, %s23
      %s26 = sphi 0, %s24
      %s27 = sphi 0, %s25
      %s39 = sphi 0, %s41
      %s42 = sphi 0, %s39
      %s43 = sphi 0, %s42
      %s59 = sphi 0, %s43
      %s63 = sphi 0, %s63
      %s65 = sphi 0, %s63
      %s66 = sphi 0, %s65
      %s80 = sphi 0, %s66
      %s84 = sphi 0, %s84
      %s86 = sphi 0, %s84
      %s87 = sphi 0, %s86
      %s101 = sphi 0, %s87
      %s105 = sphi 0, %s105
      %s107 = sphi 0, %s105
      %s108 = sphi 0, %s107
      %s122 = sphi 0, %s108
      %s130 = sphi 0, %s132
      %s133 = sphi 0, %s130
      %s134 = sphi 0, %s133
      %s150 = sphi 0, %s134
    $region4: #{tpu_custom_call.1} parent=1 // loop_header_branch
      %18 = sbr.rel (%p16) target = $region8
    $region5: #{tpu_custom_call.1} parent=1 // loop_body
      %s20 = ssub.s32 %s15, 1
      %s21 = ssub.s32 %s15, 2
      %s28 = sadd.s32 1, %s23
      %p29 = scmp.ge.s32.totalorder %s28, 1
      %s30 = scalar_select %p29, 0, %s28
      %s31 = sadd.s32 1, %s22
      %s32 = scalar_select %p29, %s31, %s22
      %p33 = scmp.ge.s32.totalorder %s32, 2
      %s34 = scalar_select %p33, 0, %s32
      %s35 = ssub.s32 %s22, %s34
      %s36 = ssub.s32 %s23, %s30
      %s37 = sor.u32 %s35, %s36
      %p38 = scmp.eq.s32.totalorder %s37, 0
      %s40 = sadd.s32 %s39, 1
      %s41 = scalar_select %p38, %s39, %s40
      %p44 = pneg %p38
      %p45 = scmp.eq.s32.totalorder %s15, 1
      %p46 = por %p44, %p45
      %p47 = scmp.ne.s32.totalorder %s39, %s42
      %p48 = scmp.eq.s32.totalorder %s15, 0
      %p49 = por %p47, %p48
      %p50 = scmp.ne.s32.totalorder %s39, %s42
      %p51 = scmp.eq.s32.totalorder %s20, 1
      %p52 = por %p50, %p51
      %p53 = scmp.ne.s32.totalorder %s42, %s43
      %p54 = scmp.eq.s32.totalorder %s20, 0
      %p55 = por %p53, %p54
      %p56 = scmp.ne.s32.totalorder %s42, %s43
      %p57 = scmp.eq.s32.totalorder %s21, 1
      %p58 = por %p56, %p57
      %p60 = scmp.ne.s32.totalorder %s43, %s59
      %p61 = scmp.eq.s32.totalorder %s21, 0
      %p62 = por %p60, %p61
      %s64 = sadd.s32 %s63, 1
      %p67 = scmp.eq.s32.totalorder %s15, 1
      %p68 = scmp.ne.s32.totalorder %s63, %s65
      %p69 = scmp.eq.s32.totalorder %s15, 0
      %p70 = por %p68, %p69
      %p71 = scmp.ne.s32.totalorder %s63, %s65
      %p72 = scmp.eq.s32.totalorder %s20, 1
      %p73 = por %p71, %p72
      %p74 = scmp.ne.s32.totalorder %s65, %s66
      %p75 = scmp.eq.s32.totalorder %s20, 0
      %p76 = por %p74, %p75
      %p77 = scmp.ne.s32.totalorder %s65, %s66
      %p78 = scmp.eq.s32.totalorder %s21, 1
      %p79 = por %p77, %p78
      %p81 = scmp.ne.s32.totalorder %s66, %s80
      %p82 = scmp.eq.s32.totalorder %s21, 0
      %p83 = por %p81, %p82
      %s85 = sadd.s32 %s84, 1
      %p88 = scmp.eq.s32.totalorder %s15, 1
      %p89 = scmp.ne.s32.totalorder %s84, %s86
      %p90 = scmp.eq.s32.totalorder %s15, 0
      %p91 = por %p89, %p90
      %p92 = scmp.ne.s32.totalorder %s84, %s86
      %p93 = scmp.eq.s32.totalorder %s20, 1
      %p94 = por %p92, %p93
      %p95 = scmp.ne.s32.totalorder %s86, %s87
      %p96 = scmp.eq.s32.totalorder %s20, 0
      %p97 = por %p95, %p96
      %p98 = scmp.ne.s32.totalorder %s86, %s87
      %p99 = scmp.eq.s32.totalorder %s21, 1
      %p100 = por %p98, %p99
      %p102 = scmp.ne.s32.totalorder %s87, %s101
      %p103 = scmp.eq.s32.totalorder %s21, 0
      %p104 = por %p102, %p103
      %s106 = sadd.s32 %s105, 1
      %p109 = scmp.eq.s32.totalorder %s15, 1
      %p110 = scmp.ne.s32.totalorder %s105, %s107
      %p111 = scmp.eq.s32.totalorder %s15, 0
      %p112 = por %p110, %p111
      %p113 = scmp.ne.s32.totalorder %s105, %s107
      %p114 = scmp.eq.s32.totalorder %s20, 1
      %p115 = por %p113, %p114
      %p116 = scmp.ne.s32.totalorder %s107, %s108
      %p117 = scmp.eq.s32.totalorder %s20, 0
      %p118 = por %p116, %p117
      %p119 = scmp.ne.s32.totalorder %s107, %s108
      %p120 = scmp.eq.s32.totalorder %s21, 1
      %p121 = por %p119, %p120
      %p123 = scmp.ne.s32.totalorder %s108, %s122
      %p124 = scmp.eq.s32.totalorder %s21, 0
      %p125 = por %p123, %p124
      %s126 = ssub.s32 %s22, %s34
      %s127 = ssub.s32 %s23, %s30
      %s128 = sor.u32 %s126, %s127
      %p129 = scmp.eq.s32.totalorder %s128, 0
      %s131 = sadd.s32 %s130, 1
      %s132 = scalar_select %p129, %s130, %s131
      %p135 = pneg %p129
      %p136 = scmp.eq.s32.totalorder %s15, 1
      %p137 = por %p135, %p136
      %p138 = scmp.ne.s32.totalorder %s130, %s133
      %p139 = scmp.eq.s32.totalorder %s15, 0
      %p140 = por %p138, %p139
      %p141 = scmp.ne.s32.totalorder %s130, %s133
      %p142 = scmp.eq.s32.totalorder %s20, 1
      %p143 = por %p141, %p142
      %p144 = scmp.ne.s32.totalorder %s133, %s134
      %p145 = scmp.eq.s32.totalorder %s20, 0
      %p146 = por %p144, %p145
      %p147 = scmp.ne.s32.totalorder %s133, %s134
      %p148 = scmp.eq.s32.totalorder %s21, 1
      %p149 = por %p147, %p148
      %p151 = scmp.ne.s32.totalorder %s134, %s150
      %p152 = scmp.eq.s32.totalorder %s21, 0
      %p153 = por %p151, %p152
      %p154 = scmp.le.s32.totalorder 1, %s15
      %p155 = scmp.lt.s32.totalorder %s15, 3
      %p156 = pnand %p154, %p155
      %p157 = pneg %p156
      // Predicated region
      $region9: #{tpu_custom_call.1} parent=5 // pred_check
        _
      $region10: #{tpu_custom_call.1} parent=5 // pred_check_branch
        %159 = sbr.rel (%p156) target = $region12
      $region11: #{tpu_custom_call.1} parent=5 // pred_region
        %s160 = ssub.s32 %s15, 1
        // Predicated region
        $region13: #{tpu_custom_call.1} parent=11 // pred_check
          %p161 = pneg %p76
        $region14: #{tpu_custom_call.1} parent=11 // pred_check_branch
          %163 = sbr.rel (%p161) target = $region16
        $region15: #{tpu_custom_call.1} parent=11 // pred_region
          %s165 = ssub.s32 512, 512
          %166 = vsyncadd [#allocation4], %s165
          %s167 = sshll.u32 [#allocation3], 4
          %s168 = int_to_ptr.vmem [resolvable:$true] %s167
          %173 = dma.hbm_to_vmem [thread:$0]  %s1, 512, %s168, [#allocation4], 128, 128, 8
        $region16: #{tpu_custom_call.1} parent=11 // pred_fallthru
          _
        // Predicated region
        $region17: #{tpu_custom_call.1} parent=11 // pred_check
          %p174 = pneg %p97
        $region18: #{tpu_custom_call.1} parent=11 // pred_check_branch
          %176 = sbr.rel (%p174) target = $region20
        $region19: #{tpu_custom_call.1} parent=11 // pred_region
          %s178 = ssub.s32 43008, 43008
          %179 = vsyncadd [#allocation7], %s178
          %s180 = sshll.u32 [#allocation6], 4
          %s181 = int_to_ptr.vmem [resolvable:$true] %s180
          %186 = dma.hbm_to_vmem [thread:$0]  %s2, 43008, %s181, [#allocation7], 64, 64, 4
        $region20: #{tpu_custom_call.1} parent=11 // pred_fallthru
          _
        // Predicated region
        $region21: #{tpu_custom_call.1} parent=11 // pred_check
          %p187 = pneg %p118
        $region22: #{tpu_custom_call.1} parent=11 // pred_check_branch
          %189 = sbr.rel (%p187) target = $region24
        $region23: #{tpu_custom_call.1} parent=11 // pred_region
          %s191 = ssub.s32 16, 16
          %192 = vsyncadd [#allocation7], %s191
          %s194 = sshll.u32 [#allocation8], 4
          %s195 = int_to_ptr.vmem [resolvable:$true] %s194
          %197 = dma.hbm_to_vmem [thread:$0]  %s3, 16, %s195, [#allocation7]
        $region24: #{tpu_custom_call.1} parent=11 // pred_fallthru
          _
      $region12: #{tpu_custom_call.1} parent=5 // pred_fallthru
        _
      %p198 = scmp.lt.s32.totalorder %s15, 2
      // Predicated region
      $region25: #{tpu_custom_call.1} parent=5 // pred_check
        %p199 = pneg %p198
      $region26: #{tpu_custom_call.1} parent=5 // pred_check_branch
        %201 = sbr.rel (%p199) target = $region28
      $region27: #{tpu_custom_call.1} parent=5 // pred_region
        // Predicated region
        $region29: #{tpu_custom_call.1} parent=27 // pred_check
          %p202 = pneg %p49
        $region30: #{tpu_custom_call.1} parent=27 // pred_check_branch
          %204 = sbr.rel (%p202) target = $region32
        $region31: #{tpu_custom_call.1} parent=27 // pred_region
          %p205 = scmp.lt.s32.totalorder %s22, 1
          %s206 = scalar_select %p205, %s22, 1
          %p207 = scmp.lt.s32.totalorder %s23, 0
          %s208 = scalar_select %p207, %s23, 0
          %s209 = smul.addr %s208, 20
          %s210 = smul.addr %s206, 20
          %s211 = sadd.s32 %s209, %s210
          %s212 = smul.addr %s211, 4
          %s213 = scalar_lea.vmem %s0, %s212
        $region32: #{tpu_custom_call.1} parent=27 // pred_fallthru
          _
      $region28: #{tpu_custom_call.1} parent=5 // pred_fallthru
        _
      %p214 = scmp.le.s32.totalorder 1, %s15
      %p215 = scmp.lt.s32.totalorder %s15, 3
      %p216 = pnand %p214, %p215
      %p217 = pneg %p216
      // Predicated region
      $region33: #{tpu_custom_call.1} parent=5 // pred_check
        _
      $region34: #{tpu_custom_call.1} parent=5 // pred_check_branch
        %219 = sbr.rel (%p216) target = $region36
      $region35: #{tpu_custom_call.1} parent=5 // pred_region
        %s220 = ssub.s32 %s15, 1
        // Predicated region
        $region37: #{tpu_custom_call.1} parent=35 // pred_check
          %p221 = pneg %p76
        $region38: #{tpu_custom_call.1} parent=35 // pred_check_branch
          %223 = sbr.rel (%p221) target = $region40
        $region39: #{tpu_custom_call.1} parent=35 // pred_region
          %224 = dma.done [#allocation4], 512
        $region40: #{tpu_custom_call.1} parent=35 // pred_fallthru
          _
        // Predicated region
        $region41: #{tpu_custom_call.1} parent=35 // pred_check
          %p225 = pneg %p97
        $region42: #{tpu_custom_call.1} parent=35 // pred_check_branch
          %227 = sbr.rel (%p225) target = $region44
        $region43: #{tpu_custom_call.1} parent=35 // pred_region
          %228 = dma.done [#allocation7], 43008
        $region44: #{tpu_custom_call.1} parent=35 // pred_fallthru
          _
        // Predicated region
        $region45: #{tpu_custom_call.1} parent=35 // pred_check
          %p229 = pneg %p118
        $region46: #{tpu_custom_call.1} parent=35 // pred_check_branch
          %231 = sbr.rel (%p229) target = $region48
        $region47: #{tpu_custom_call.1} parent=35 // pred_region
          %232 = dma.done [#allocation7], 16
        $region48: #{tpu_custom_call.1} parent=35 // pred_fallthru
          _
        %p233 = scmp.lt.s32.totalorder %s24, 1
        %s234 = scalar_select %p233, %s24, 1
        %p235 = scmp.lt.s32.totalorder %s25, 0
        %s236 = scalar_select %p235, %s25, 0
        %s237 = smul.addr %s236, 20
        %s238 = smul.addr %s234, 20
        %s239 = sadd.s32 %s237, %s238
        %s240 = smul.addr %s239, 4
        %s241 = scalar_lea.vmem %s0, %s240
        %p242 = pneg %p55
        %p243 = pneg %p52
        %p244 = pneg %p76
        %p245 = pneg %p73
        %p246 = pneg %p97
        %p247 = pneg %p94
        %p248 = pneg %p118
        %p249 = pneg %p115
        %p250 = pneg %p146
        %p251 = pneg %p143
        %s252 = sand.u32 %s133, 1
        %s253 = scalar_lea.sflag [#allocation5], %s252
        %s254 = sand.u32 %s133, 1
        %s255 = smul.addr %s254, 128
        %s256 = scalar_lea.vmem [#allocation9], %s255
        %p257 = scmp.lt.s32.totalorder %s24, 1
        %s258 = scalar_select %p257, %s24, 1
        %p259 = scmp.lt.s32.totalorder %s25, 0
        %s260 = scalar_select %p259, %s25, 0
        %s261 = smul.addr %s260, 20
        %s262 = smul.addr %s258, 20
        %s263 = sadd.s32 %s261, %s262
        %s264 = smul.addr %s263, 4
        %s265 = scalar_lea.vmem %s0, %s264
        %v267 = vld [vmem:[%s265] sm:$0xf]
        %v268 = vld [vmem:[%s265 + $0x4] sm:$0xf]
        %v269 = vld [vmem:[%s265 + $0x8] sm:$0xf]
        %v270 = vld [vmem:[%s265 + $0xc] sm:$0xf]
        %v271 = vld [vmem:[%s265 + $0x10] sm:$0xf]
        %v272 = vld [vmem:[%s265 + $0x14] sm:$0xf]
        %v273 = vld [vmem:[%s265 + $0x18] sm:$0xf]
        %v274 = vld [vmem:[%s265 + $0x1c] sm:$0xf]
        %v275 = vld [vmem:[%s265 + $0x20] sm:$0xf]
        %v276 = vld [vmem:[%s265 + $0x24] sm:$0xf]
        %v277 = vld [vmem:[%s265 + $0x28] sm:$0xf]
        %v278 = vld [vmem:[%s265 + $0x2c] sm:$0xf]
        %v279 = vld [vmem:[%s265 + $0x30] sm:$0xf]
        %v280 = vld [vmem:[%s265 + $0x34] sm:$0xf]
        %v281 = vld [vmem:[%s265 + $0x38] sm:$0xf]
        %v282 = vld [vmem:[%s265 + $0x3c] sm:$0xf]
        %v283 = vld [vmem:[#allocation3] sm:$0xff]
        %v284 = vld [vmem:[#allocation3 + $0x8] sm:$0xff]
        %v285 = vld [vmem:[#allocation3 + $0x10] sm:$0xff]
        %v286 = vld [vmem:[#allocation3 + $0x18] sm:$0xff]
        %v303 = vunpack.c.l.b16 %v267
        %v304 = vunpack.c.l.b16 %v268
        %v305 = vunpack.c.l.b16 %v269
        %v306 = vunpack.c.l.b16 %v270
        %v307 = vunpack.c.l.b16 %v271
        %v308 = vunpack.c.l.b16 %v272
        %v309 = vunpack.c.l.b16 %v273
        %v310 = vunpack.c.l.b16 %v274
        %v311 = vunpack.c.l.b16 %v275
        %v312 = vunpack.c.l.b16 %v276
        %v313 = vunpack.c.l.b16 %v277
        %v314 = vunpack.c.l.b16 %v278
        %v315 = vunpack.c.l.b16 %v279
        %v316 = vunpack.c.l.b16 %v280
        %v317 = vunpack.c.l.b16 %v281
        %v318 = vunpack.c.l.b16 %v282
        %v319 = vpack.c.b16 %v304, %v303
        %v320 = vpack.c.b16 %v306, %v305
        %v321 = vpack.c.b16 %v308, %v307
        %v322 = vpack.c.b16 %v310, %v309
        %v323 = vpack.c.b16 %v312, %v311
        %v324 = vpack.c.b16 %v314, %v313
        %v325 = vpack.c.b16 %v316, %v315
        %v326 = vpack.c.b16 %v318, %v317
        %v331 = vunpack.c.l.b16 %v283
        %v332 = vunpack.c.h.b16 %v283
        %v333 = vunpack.c.l.b16 %v284
        %v334 = vunpack.c.h.b16 %v284
        %v335 = vunpack.c.l.b16 %v285
        %v336 = vunpack.c.h.b16 %v285
        %v337 = vunpack.c.l.b16 %v286
        %v338 = vunpack.c.h.b16 %v286
        %v339 = vpack.c.b16 %v333, %v331
        %v340 = vpack.c.b16 %v334, %v332
        %v341 = vpack.c.b16 %v337, %v335
        %v342 = vpack.c.b16 %v338, %v336
        %vm347 = vcmask 261120
        %v349 = vsel %vm347, %v319, 0
        %v352 = vsel %vm347, %v320, 0
        %v355 = vsel %vm347, %v321, 0
        %v358 = vsel %vm347, %v322, 0
        %v361 = vsel %vm347, %v323, 0
        %v364 = vsel %vm347, %v324, 0
        %v367 = vsel %vm347, %v325, 0
        %v370 = vsel %vm347, %v326, 0
        %372 = vmatprep.subr.bf16.mxu0 %v340
        %373 = vmatpush1.bf16.msra.mxu0 %v339
        %374 = vmatprep.subr.bf16.mxu0 %v342
        %375 = vmatpush1.bf16.msra.mxu0 %v341
        %376 = vmatprep.subr.bf16.mxu0 0
        %377 = vmatpush1.bf16.msra.mxu0 0
        %378 = vmatprep.subr.bf16.mxu0 0
        %379 = vmatpush1.bf16.msra.mxu0 0
        %380 = vmatprep.subr.bf16.mxu0 0
        %381 = vmatpush1.bf16.msra.mxu0 0
        %382 = vmatprep.subr.bf16.mxu0 0
        %383 = vmatpush1.bf16.msra.mxu0 0
        %384 = vmatprep.subr.bf16.mxu0 0
        %385 = vmatpush1.bf16.msra.mxu0 0
        %386 = vmatprep.subr.bf16.mxu0 0
        %387 = vmatpush1.bf16.msra.mxu0 0
        %388 = vmatprep.subr.bf16.mxu0 0
        %389 = vmatpush1.bf16.msra.mxu0 0
        %390 = vmatprep.subr.bf16.mxu0 0
        %391 = vmatpush1.bf16.msra.mxu0 0
        %392 = vmatprep.subr.bf16.mxu0 0
        %393 = vmatpush1.bf16.msra.mxu0 0
        %394 = vmatprep.subr.bf16.mxu0 0
        %395 = vmatpush1.bf16.msra.mxu0 0
        %396 = vmatprep.subr.bf16.mxu0 0
        %397 = vmatpush1.bf16.msra.mxu0 0
        %398 = vmatprep.subr.bf16.mxu0 0
        %399 = vmatpush1.bf16.msra.mxu0 0
        %400 = vmatprep.subr.bf16.mxu0 0
        %401 = vmatpush1.bf16.msra.mxu0 0
        %402 = vmatprep.subr.bf16.mxu0 0
        %403 = vmatpush1.bf16.msra.mxu0 0
        %404 = vmatprep.mubr.bf16.mxu0 0
        %405 = vmatmul.mubr.bf16.gmra.mrb[0].mxu0 %v349
        %v406 = vpop.f32.mrb[0].mxu0
        %v407 = vadd.f32 0.0, %v406
        %v408 = vpop.f32.mrb[0].mxu0
        %v409 = vadd.f32 0.0, %v408
        %v410 = vpop.f32.mrb[0].mxu0
        %v411 = vadd.f32 0.0, %v410
        %v412 = vpop.f32.mrb[0].mxu0
        %v413 = vadd.f32 0.0, %v412
        %414 = vmatprep.mubr.bf16.mxu0 0
        %415 = vmatmul.mubr.bf16.gmra.mrb[0].mxu0 %v352
        %v416 = vpop.f32.mrb[0].mxu0
        %v417 = vadd.f32 0.0, %v416
        %v418 = vpop.f32.mrb[0].mxu0
        %v419 = vadd.f32 0.0, %v418
        %v420 = vpop.f32.mrb[0].mxu0
        %v421 = vadd.f32 0.0, %v420
        %v422 = vpop.f32.mrb[0].mxu0
        %v423 = vadd.f32 0.0, %v422
        %424 = vmatprep.mubr.bf16.mxu0 0
        %425 = vmatmul.mubr.bf16.gmra.mrb[0].mxu0 %v355
        %v426 = vpop.f32.mrb[0].mxu0
        %v427 = vadd.f32 0.0, %v426
        %v428 = vpop.f32.mrb[0].mxu0
        %v429 = vadd.f32 0.0, %v428
        %v430 = vpop.f32.mrb[0].mxu0
        %v431 = vadd.f32 0.0, %v430
        %v432 = vpop.f32.mrb[0].mxu0
        %v433 = vadd.f32 0.0, %v432
        %434 = vmatprep.mubr.bf16.mxu0 0
        %435 = vmatmul.mubr.bf16.gmra.mrb[0].mxu0 %v358
        %v436 = vpop.f32.mrb[0].mxu0
        %v437 = vadd.f32 0.0, %v436
        %v438 = vpop.f32.mrb[0].mxu0
        %v439 = vadd.f32 0.0, %v438
        %v440 = vpop.f32.mrb[0].mxu0
        %v441 = vadd.f32 0.0, %v440
        %v442 = vpop.f32.mrb[0].mxu0
        %v443 = vadd.f32 0.0, %v442
        %444 = vmatprep.mubr.bf16.mxu0 0
        %445 = vmatmul.mubr.bf16.gmra.mrb[0].mxu0 %v361
        %v446 = vpop.f32.mrb[0].mxu0
        %v447 = vadd.f32 0.0, %v446
        %v448 = vpop.f32.mrb[0].mxu0
        %v449 = vadd.f32 0.0, %v448
        %v450 = vpop.f32.mrb[0].mxu0
        %v451 = vadd.f32 0.0, %v450
        %v452 = vpop.f32.mrb[0].mxu0
        %v453 = vadd.f32 0.0, %v452
        %454 = vmatprep.mubr.bf16.mxu0 0
        %455 = vmatmul.mubr.bf16.gmra.mrb[0].mxu0 %v364
        %v456 = vpop.f32.mrb[0].mxu0
        %v457 = vadd.f32 0.0, %v456
        %v458 = vpop.f32.mrb[0].mxu0
        %v459 = vadd.f32 0.0, %v458
        %v460 = vpop.f32.mrb[0].mxu0
        %v461 = vadd.f32 0.0, %v460
        %v462 = vpop.f32.mrb[0].mxu0
        %v463 = vadd.f32 0.0, %v462
        %464 = vmatprep.mubr.bf16.mxu0 0
        %465 = vmatmul.mubr.bf16.gmra.mrb[0].mxu0 %v367
        %v466 = vpop.f32.mrb[0].mxu0
        %v467 = vadd.f32 0.0, %v466
        %v468 = vpop.f32.mrb[0].mxu0
        %v469 = vadd.f32 0.0, %v468
        %v470 = vpop.f32.mrb[0].mxu0
        %v471 = vadd.f32 0.0, %v470
        %v472 = vpop.f32.mrb[0].mxu0
        %v473 = vadd.f32 0.0, %v472
        %474 = vmatprep.mubr.bf16.mxu0 0
        %475 = vmatmul.mubr.bf16.gmra.mrb[0].mxu0 %v370
        %v476 = vpop.f32.mrb[0].mxu0
        %v477 = vadd.f32 0.0, %v476
        %v478 = vpop.f32.mrb[0].mxu0
        %v479 = vadd.f32 0.0, %v478
        %v480 = vpop.f32.mrb[0].mxu0
        %v481 = vadd.f32 0.0, %v480
        %v482 = vpop.f32.mrb[0].mxu0
        %v483 = vadd.f32 0.0, %v482
        %484 = vdwg.mxu0
        %vm485 = vcmp.gt.f32.partialorder %v407, 0.0
        %vm486 = vcmp.gt.f32.partialorder %v409, 0.0
        %vm487 = vcmp.gt.f32.partialorder %v411, 0.0
        %vm488 = vcmp.gt.f32.partialorder %v413, 0.0
        %vm489 = vcmp.gt.f32.partialorder %v417, 0.0
        %vm490 = vcmp.gt.f32.partialorder %v419, 0.0
        %vm491 = vcmp.gt.f32.partialorder %v421, 0.0
        %vm492 = vcmp.gt.f32.partialorder %v423, 0.0
        %vm493 = vcmp.gt.f32.partialorder %v427, 0.0
        %vm494 = vcmp.gt.f32.partialorder %v429, 0.0
        %vm495 = vcmp.gt.f32.partialorder %v431, 0.0
        %vm496 = vcmp.gt.f32.partialorder %v433, 0.0
        %vm497 = vcmp.gt.f32.partialorder %v437, 0.0
        %vm498 = vcmp.gt.f32.partialorder %v439, 0.0
        %vm499 = vcmp.gt.f32.partialorder %v441, 0.0
        %vm500 = vcmp.gt.f32.partialorder %v443, 0.0
        %vm501 = vcmp.gt.f32.partialorder %v447, 0.0
        %vm502 = vcmp.gt.f32.partialorder %v449, 0.0
        %vm503 = vcmp.gt.f32.partialorder %v451, 0.0
        %vm504 = vcmp.gt.f32.partialorder %v453, 0.0
        %vm505 = vcmp.gt.f32.partialorder %v457, 0.0
        %vm506 = vcmp.gt.f32.partialorder %v459, 0.0
        %vm507 = vcmp.gt.f32.partialorder %v461, 0.0
        %vm508 = vcmp.gt.f32.partialorder %v463, 0.0
        %vm509 = vcmp.gt.f32.partialorder %v467, 0.0
        %vm510 = vcmp.gt.f32.partialorder %v469, 0.0
        %vm511 = vcmp.gt.f32.partialorder %v471, 0.0
        %vm512 = vcmp.gt.f32.partialorder %v473, 0.0
        %vm513 = vcmp.gt.f32.partialorder %v477, 0.0
        %vm514 = vcmp.gt.f32.partialorder %v479, 0.0
        %vm515 = vcmp.gt.f32.partialorder %v481, 0.0
        %vm516 = vcmp.gt.f32.partialorder %v483, 0.0
        %v517 = vmul.f32 %v407, 0.2
        %v518 = vmul.f32 %v409, 0.2
        %v519 = vmul.f32 %v411, 0.2
        %v520 = vmul.f32 %v413, 0.2
        %v521 = vmul.f32 %v417, 0.2
        %v522 = vmul.f32 %v419, 0.2
        %v523 = vmul.f32 %v421, 0.2
        %v524 = vmul.f32 %v423, 0.2
        %v525 = vmul.f32 %v427, 0.2
        %v526 = vmul.f32 %v429, 0.2
        %v527 = vmul.f32 %v431, 0.2
        %v528 = vmul.f32 %v433, 0.2
        %v529 = vmul.f32 %v437, 0.2
        %v530 = vmul.f32 %v439, 0.2
        %v531 = vmul.f32 %v441, 0.2
        %v532 = vmul.f32 %v443, 0.2
        %v533 = vmul.f32 %v447, 0.2
        %v534 = vmul.f32 %v449, 0.2
        %v535 = vmul.f32 %v451, 0.2
        %v536 = vmul.f32 %v453, 0.2
        %v537 = vmul.f32 %v457, 0.2
        %v538 = vmul.f32 %v459, 0.2
        %v539 = vmul.f32 %v461, 0.2
        %v540 = vmul.f32 %v463, 0.2
        %v541 = vmul.f32 %v467, 0.2
        %v542 = vmul.f32 %v469, 0.2
        %v543 = vmul.f32 %v471, 0.2
        %v544 = vmul.f32 %v473, 0.2
        %v545 = vmul.f32 %v477, 0.2
        %v546 = vmul.f32 %v479, 0.2
        %v547 = vmul.f32 %v481, 0.2
        %v548 = vmul.f32 %v483, 0.2
        %v549 = vsel %vm485, %v407, %v517
        %v550 = vsel %vm486, %v409, %v518
        %v551 = vsel %vm487, %v411, %v519
        %v552 = vsel %vm488, %v413, %v520
        %v553 = vsel %vm489, %v417, %v521
        %v554 = vsel %vm490, %v419, %v522
        %v555 = vsel %vm491, %v421, %v523
        %v556 = vsel %vm492, %v423, %v524
        %v557 = vsel %vm493, %v427, %v525
        %v558 = vsel %vm494, %v429, %v526
        %v559 = vsel %vm495, %v431, %v527
        %v560 = vsel %vm496, %v433, %v528
        %v561 = vsel %vm497, %v437, %v529
        %v562 = vsel %vm498, %v439, %v530
        %v563 = vsel %vm499, %v441, %v531
        %v564 = vsel %vm500, %v443, %v532
        %v565 = vsel %vm501, %v447, %v533
        %v566 = vsel %vm502, %v449, %v534
        %v567 = vsel %vm503, %v451, %v535
        %v568 = vsel %vm504, %v453, %v536
        %v569 = vsel %vm505, %v457, %v537
        %v570 = vsel %vm506, %v459, %v538
        %v571 = vsel %vm507, %v461, %v539
        %v572 = vsel %vm508, %v463, %v540
        %v573 = vsel %vm509, %v467, %v541
        %v574 = vsel %vm510, %v469, %v542
        %v575 = vsel %vm511, %v471, %v543
        %v576 = vsel %vm512, %v473, %v544
        %v577 = vsel %vm513, %v477, %v545
        %v578 = vsel %vm514, %v479, %v546
        %v579 = vsel %vm515, %v481, %v547
        %v580 = vsel %vm516, %v483, %v548
        %v581 = vpack.c.bf16 %v551, %v549
        %v582 = vpack.c.bf16 %v552, %v550
        %v583 = vpack.c.bf16 %v555, %v553
        %v584 = vpack.c.bf16 %v556, %v554
        %v585 = vpack.c.bf16 %v559, %v557
        %v586 = vpack.c.bf16 %v560, %v558
        %v587 = vpack.c.bf16 %v563, %v561
        %v588 = vpack.c.bf16 %v564, %v562
        %v589 = vpack.c.bf16 %v567, %v565
        %v590 = vpack.c.bf16 %v568, %v566
        %v591 = vpack.c.bf16 %v571, %v569
        %v592 = vpack.c.bf16 %v572, %v570
        %v593 = vpack.c.bf16 %v575, %v573
        %v594 = vpack.c.bf16 %v576, %v574
        %v595 = vpack.c.bf16 %v579, %v577
        %v596 = vpack.c.bf16 %v580, %v578
        %597 = vst [vmem:[#allocation2] sm:$0xff] %v581
        %598 = vst [vmem:[#allocation2 + $0x8] sm:$0xff] %v582
        %599 = vst [vmem:[#allocation2 + $0x10] sm:$0xff] %v583
        %600 = vst [vmem:[#allocation2 + $0x18] sm:$0xff] %v584
        %601 = vst [vmem:[#allocation2 + $0x20] sm:$0xff] %v585
        %602 = vst [vmem:[#allocation2 + $0x28] sm:$0xff] %v586
        %603 = vst [vmem:[#allocation2 + $0x30] sm:$0xff] %v587
        %604 = vst [vmem:[#allocation2 + $0x38] sm:$0xff] %v588
        %605 = vst [vmem:[#allocation2 + $0x40] sm:$0xff] %v589
        %606 = vst [vmem:[#allocation2 + $0x48] sm:$0xff] %v590
        %607 = vst [vmem:[#allocation2 + $0x50] sm:$0xff] %v591
        %608 = vst [vmem:[#allocation2 + $0x58] sm:$0xff] %v592
        %609 = vst [vmem:[#allocation2 + $0x60] sm:$0xff] %v593
        %610 = vst [vmem:[#allocation2 + $0x68] sm:$0xff] %v594
        %611 = vst [vmem:[#allocation2 + $0x70] sm:$0xff] %v595
        %612 = vst [vmem:[#allocation2 + $0x78] sm:$0xff] %v596
        %v613 = vld [vmem:[%s265 + $0x40] sm:$0xf]
        %v614 = vld [vmem:[%s265 + $0x44] sm:$0xf]
        %v615 = vld [vmem:[%s265 + $0x48] sm:$0xf]
        %v616 = vld [vmem:[%s265 + $0x4c] sm:$0xf]
        %v617 = vld [vmem:[#allocation3] sm:$0xff]
        %v618 = vld [vmem:[#allocation3 + $0x8] sm:$0xff]
        %v619 = vld [vmem:[#allocation3 + $0x10] sm:$0xff]
        %v620 = vld [vmem:[#allocation3 + $0x18] sm:$0xff]
        %v625 = vunpack.c.l.b16 %v613
        %v626 = vunpack.c.l.b16 %v614
        %v627 = vunpack.c.l.b16 %v615
        %v628 = vunpack.c.l.b16 %v616
        %v629 = vpack.c.b16 %v626, %v625
        %v630 = vpack.c.b16 %v628, %v627
        %v635 = vunpack.c.l.b16 %v617
        %v636 = vunpack.c.h.b16 %v617
        %v637 = vunpack.c.l.b16 %v618
        %v638 = vunpack.c.h.b16 %v618
        %v639 = vunpack.c.l.b16 %v619
        %v640 = vunpack.c.h.b16 %v619
        %v641 = vunpack.c.l.b16 %v620
        %v642 = vunpack.c.h.b16 %v620
        %v643 = vpack.c.b16 %v637, %v635
        %v644 = vpack.c.b16 %v638, %v636
        %v645 = vpack.c.b16 %v641, %v639
        %v646 = vpack.c.b16 %v642, %v640
        %v652 = vsel %vm347, %v629, 0
        %v655 = vsel %vm347, %v630, 0
        %657 = vmatprep.subr.bf16.mxu0 %v644
        %658 = vmatpush1.bf16.msra.mxu0 %v643
        %659 = vmatprep.subr.bf16.mxu0 %v646
        %660 = vmatpush1.bf16.msra.mxu0 %v645
        %661 = vmatprep.subr.bf16.mxu0 0
        %662 = vmatpush1.bf16.msra.mxu0 0
        %663 = vmatprep.subr.bf16.mxu0 0
        %664 = vmatpush1.bf16.msra.mxu0 0
        %665 = vmatprep.subr.bf16.mxu0 0
        %666 = vmatpush1.bf16.msra.mxu0 0
        %667 = vmatprep.subr.bf16.mxu0 0
        %668 = vmatpush1.bf16.msra.mxu0 0
        %669 = vmatprep.subr.bf16.mxu0 0
        %670 = vmatpush1.bf16.msra.mxu0 0
        %671 = vmatprep.subr.bf16.mxu0 0
        %672 = vmatpush1.bf16.msra.mxu0 0
        %673 = vmatprep.subr.bf16.mxu0 0
        %674 = vmatpush1.bf16.msra.mxu0 0
        %675 = vmatprep.subr.bf16.mxu0 0
        %676 = vmatpush1.bf16.msra.mxu0 0
        %677 = vmatprep.subr.bf16.mxu0 0
        %678 = vmatpush1.bf16.msra.mxu0 0
        %679 = vmatprep.subr.bf16.mxu0 0
        %680 = vmatpush1.bf16.msra.mxu0 0
        %681 = vmatprep.subr.bf16.mxu0 0
        %682 = vmatpush1.bf16.msra.mxu0 0
        %683 = vmatprep.subr.bf16.mxu0 0
        %684 = vmatpush1.bf16.msra.mxu0 0
        %685 = vmatprep.subr.bf16.mxu0 0
        %686 = vmatpush1.bf16.msra.mxu0 0
        %687 = vmatprep.subr.bf16.mxu0 0
        %688 = vmatpush1.bf16.msra.mxu0 0
        %689 = vmatprep.mubr.bf16.mxu0 0
        %690 = vmatmul.mubr.bf16.gmra.mrb[0].mxu0 %v652
        %v691 = vpop.f32.mrb[0].mxu0
        %v692 = vadd.f32 0.0, %v691
        %v693 = vpop.f32.mrb[0].mxu0
        %v694 = vadd.f32 0.0, %v693
        %v695 = vpop.f32.mrb[0].mxu0
        %v696 = vadd.f32 0.0, %v695
        %v697 = vpop.f32.mrb[0].mxu0
        %v698 = vadd.f32 0.0, %v697
        %699 = vmatprep.mubr.bf16.mxu0 0
        %700 = vmatmul.mubr.bf16.gmra.mrb[0].mxu0 %v655
        %v701 = vpop.f32.mrb[0].mxu0
        %v702 = vadd.f32 0.0, %v701
        %v703 = vpop.f32.mrb[0].mxu0
        %v704 = vadd.f32 0.0, %v703
        %v705 = vpop.f32.mrb[0].mxu0
        %v706 = vadd.f32 0.0, %v705
        %v707 = vpop.f32.mrb[0].mxu0
        %v708 = vadd.f32 0.0, %v707
        %709 = vdwg.mxu0
        %vm710 = vcmp.gt.f32.partialorder %v692, 0.0
        %vm711 = vcmp.gt.f32.partialorder %v694, 0.0
        %vm712 = vcmp.gt.f32.partialorder %v696, 0.0
        %vm713 = vcmp.gt.f32.partialorder %v698, 0.0
        %vm714 = vcmp.gt.f32.partialorder %v702, 0.0
        %vm715 = vcmp.gt.f32.partialorder %v704, 0.0
        %vm716 = vcmp.gt.f32.partialorder %v706, 0.0
        %vm717 = vcmp.gt.f32.partialorder %v708, 0.0
        %v718 = vmul.f32 %v692, 0.2
        %v719 = vmul.f32 %v694, 0.2
        %v720 = vmul.f32 %v696, 0.2
        %v721 = vmul.f32 %v698, 0.2
        %v722 = vmul.f32 %v702, 0.2
        %v723 = vmul.f32 %v704, 0.2
        %v724 = vmul.f32 %v706, 0.2
        %v725 = vmul.f32 %v708, 0.2
        %v726 = vsel %vm710, %v692, %v718
        %v727 = vsel %vm711, %v694, %v719
        %v728 = vsel %vm712, %v696, %v720
        %v729 = vsel %vm713, %v698, %v721
        %v730 = vsel %vm714, %v702, %v722
        %v731 = vsel %vm715, %v704, %v723
        %v732 = vsel %vm716, %v706, %v724
        %v733 = vsel %vm717, %v708, %v725
        %v734 = vpack.c.bf16 %v728, %v726
        %v735 = vpack.c.bf16 %v729, %v727
        %v736 = vpack.c.bf16 %v732, %v730
        %v737 = vpack.c.bf16 %v733, %v731
        %738 = vst [vmem:[#allocation2 + $0x80] sm:$0xff] %v734
        %739 = vst [vmem:[#allocation2 + $0x88] sm:$0xff] %v735
        %740 = vst [vmem:[#allocation2 + $0x90] sm:$0xff] %v736
        %741 = vst [vmem:[#allocation2 + $0x98] sm:$0xff] %v737
        %v742 = vld [vmem:[#allocation2] sm:$0xff]
        %v743 = vld [vmem:[#allocation2 + $0x8] sm:$0xff]
        %v744 = vld [vmem:[#allocation2 + $0x10] sm:$0xff]
        %v745 = vld [vmem:[#allocation2 + $0x18] sm:$0xff]
        %v746 = vld [vmem:[#allocation2 + $0x20] sm:$0xff]
        %v747 = vld [vmem:[#allocation2 + $0x28] sm:$0xff]
        %v748 = vld [vmem:[#allocation2 + $0x30] sm:$0xff]
        %v749 = vld [vmem:[#allocation2 + $0x38] sm:$0xff]
        %v750 = vld [vmem:[#allocation2 + $0x40] sm:$0xff]
        %v751 = vld [vmem:[#allocation2 + $0x48] sm:$0xff]
        %v752 = vld [vmem:[#allocation2 + $0x50] sm:$0xff]
        %v753 = vld [vmem:[#allocation2 + $0x58] sm:$0xff]
        %v754 = vld [vmem:[#allocation2 + $0x60] sm:$0xff]
        %v755 = vld [vmem:[#allocation2 + $0x68] sm:$0xff]
        %v756 = vld [vmem:[#allocation2 + $0x70] sm:$0xff]
        %v757 = vld [vmem:[#allocation2 + $0x78] sm:$0xff]
        %v758 = vld [vmem:[#allocation6] sm:$0xf]
        %v759 = vld [vmem:[#allocation6 + $0x4] sm:$0xf]
        %v760 = vld [vmem:[#allocation6 + $0x8] sm:$0xf]
        %v761 = vld [vmem:[#allocation6 + $0xc] sm:$0xf]
        %v762 = vld [vmem:[#allocation6 + $0x10] sm:$0xf]
        %v763 = vld [vmem:[#allocation6 + $0x14] sm:$0xf]
        %v764 = vld [vmem:[#allocation6 + $0x18] sm:$0xf]
        %v765 = vld [vmem:[#allocation6 + $0x1c] sm:$0xf]
        %v766 = vld [vmem:[#allocation6 + $0x20] sm:$0xf]
        %v767 = vld [vmem:[#allocation6 + $0x24] sm:$0xf]
        %v768 = vld [vmem:[#allocation6 + $0x28] sm:$0xf]
        %v769 = vld [vmem:[#allocation6 + $0x2c] sm:$0xf]
        %v770 = vld [vmem:[#allocation6 + $0x30] sm:$0xf]
        %v771 = vld [vmem:[#allocation6 + $0x34] sm:$0xf]
        %v772 = vld [vmem:[#allocation6 + $0x38] sm:$0xf]
        %v773 = vld [vmem:[#allocation6 + $0x3c] sm:$0xf]
        %v774 = vld [vmem:[#allocation6 + $0x40] sm:$0xf]
        %v775 = vld [vmem:[#allocation6 + $0x44] sm:$0xf]
        %v776 = vld [vmem:[#allocation6 + $0x48] sm:$0xf]
        %v777 = vld [vmem:[#allocation6 + $0x4c] sm:$0xf]
        %v778 = vld [vmem:[#allocation6 + $0x50] sm:$0xf]
        %v779 = vld [vmem:[#allocation6 + $0x54] sm:$0xf]
        %v780 = vld [vmem:[#allocation6 + $0x58] sm:$0xf]
        %v781 = vld [vmem:[#allocation6 + $0x5c] sm:$0xf]
        %v782 = vld [vmem:[#allocation6 + $0x60] sm:$0xf]
        %v783 = vld [vmem:[#allocation6 + $0x64] sm:$0xf]
        %v784 = vld [vmem:[#allocation6 + $0x68] sm:$0xf]
        %v785 = vld [vmem:[#allocation6 + $0x6c] sm:$0xf]
        %v786 = vld [vmem:[#allocation6 + $0x70] sm:$0xf]
        %v787 = vld [vmem:[#allocation6 + $0x74] sm:$0xf]
        %v788 = vld [vmem:[#allocation6 + $0x78] sm:$0xf]
        %v789 = vld [vmem:[#allocation6 + $0x7c] sm:$0xf]
        %v790 = vld [vmem:[#allocation2 + $0x80] sm:$0x1]
        %v791 = vld [vmem:[#allocation2 + $0x88] sm:$0x1]
        %s792 = scalar_lea.vmem [#allocation6], 128
        %v793 = vld [vmem:[%s792] sm:$0xf]
        %v794 = vld [vmem:[%s792 + $0x4] sm:$0xf]
        %v795 = vld [vmem:[%s792 + $0x8] sm:$0xf]
        %v796 = vld [vmem:[%s792 + $0xc] sm:$0xf]
        %v797 = vld [vmem:[%s792 + $0x10] sm:$0xf]
        %v798 = vld [vmem:[%s792 + $0x14] sm:$0xf]
        %v799 = vld [vmem:[%s792 + $0x18] sm:$0xf]
        %v800 = vld [vmem:[%s792 + $0x1c] sm:$0xf]
        %v801 = vld [vmem:[%s792 + $0x20] sm:$0xf]
        %v802 = vld [vmem:[%s792 + $0x24] sm:$0xf]
        %v803 = vld [vmem:[%s792 + $0x28] sm:$0xf]
        %v804 = vld [vmem:[%s792 + $0x2c] sm:$0xf]
        %v805 = vld [vmem:[%s792 + $0x30] sm:$0xf]
        %v806 = vld [vmem:[%s792 + $0x34] sm:$0xf]
        %v807 = vld [vmem:[%s792 + $0x38] sm:$0xf]
        %v808 = vld [vmem:[%s792 + $0x3c] sm:$0xf]
        %v809 = vld [vmem:[%s792 + $0x40] sm:$0xf]
        %v810 = vld [vmem:[%s792 + $0x44] sm:$0xf]
        %v811 = vld [vmem:[%s792 + $0x48] sm:$0xf]
        %v812 = vld [vmem:[%s792 + $0x4c] sm:$0xf]
        %v813 = vld [vmem:[%s792 + $0x50] sm:$0xf]
        %v814 = vld [vmem:[%s792 + $0x54] sm:$0xf]
        %v815 = vld [vmem:[%s792 + $0x58] sm:$0xf]
        %v816 = vld [vmem:[%s792 + $0x5c] sm:$0xf]
        %v817 = vld [vmem:[%s792 + $0x60] sm:$0xf]
        %v818 = vld [vmem:[%s792 + $0x64] sm:$0xf]
        %v819 = vld [vmem:[%s792 + $0x68] sm:$0xf]
        %v820 = vld [vmem:[%s792 + $0x6c] sm:$0xf]
        %v821 = vld [vmem:[%s792 + $0x70] sm:$0xf]
        %v822 = vld [vmem:[%s792 + $0x74] sm:$0xf]
        %v823 = vld [vmem:[%s792 + $0x78] sm:$0xf]
        %v824 = vld [vmem:[%s792 + $0x7c] sm:$0xf]
        %vm825 = vsmask.f32 7424
        %v827 = vshrl.u32 %v742, 16
        %v829 = vshll.u32 %v742, 16
        %v831 = vrot.slane %v829, 1
        %v832 = vor.u32 %v827, %v831
        %v834 = vshll.u32 %v744, 16
        %v836 = vrot.slane %v834, 1
        %v837 = vsel %vm825, %v832, %v836
        %v839 = vshrl.u32 %v743, 16
        %v841 = vshll.u32 %v743, 16
        %v843 = vrot.slane %v841, 1
        %v844 = vor.u32 %v839, %v843
        %v846 = vshll.u32 %v745, 16
        %v848 = vrot.slane %v846, 1
        %v849 = vsel %vm825, %v844, %v848
        %v850 = vshrl.u32 %v744, 16
        %v852 = vor.u32 %v850, %v836
        %v854 = vshll.u32 %v746, 16
        %v856 = vrot.slane %v854, 1
        %v857 = vsel %vm825, %v852, %v856
        %v858 = vshrl.u32 %v745, 16
        %v860 = vor.u32 %v858, %v848
        %v862 = vshll.u32 %v747, 16
        %v864 = vrot.slane %v862, 1
        %v865 = vsel %vm825, %v860, %v864
        %v866 = vshrl.u32 %v746, 16
        %v868 = vor.u32 %v866, %v856
        %v870 = vshll.u32 %v748, 16
        %v872 = vrot.slane %v870, 1
        %v873 = vsel %vm825, %v868, %v872
        %v874 = vshrl.u32 %v747, 16
        %v876 = vor.u32 %v874, %v864
        %v878 = vshll.u32 %v749, 16
        %v880 = vrot.slane %v878, 1
        %v881 = vsel %vm825, %v876, %v880
        %v882 = vshrl.u32 %v748, 16
        %v884 = vor.u32 %v882, %v872
        %v886 = vshll.u32 %v750, 16
        %v888 = vrot.slane %v886, 1
        %v889 = vsel %vm825, %v884, %v888
        %v890 = vshrl.u32 %v749, 16
        %v892 = vor.u32 %v890, %v880
        %v894 = vshll.u32 %v751, 16
        %v896 = vrot.slane %v894, 1
        %v897 = vsel %vm825, %v892, %v896
        %v898 = vshrl.u32 %v750, 16
        %v900 = vor.u32 %v898, %v888
        %v902 = vshll.u32 %v752, 16
        %v904 = vrot.slane %v902, 1
        %v905 = vsel %vm825, %v900, %v904
        %v906 = vshrl.u32 %v751, 16
        %v908 = vor.u32 %v906, %v896
        %v910 = vshll.u32 %v753, 16
        %v912 = vrot.slane %v910, 1
        %v913 = vsel %vm825, %v908, %v912
        %v914 = vshrl.u32 %v752, 16
        %v916 = vor.u32 %v914, %v904
        %v918 = vshll.u32 %v754, 16
        %v920 = vrot.slane %v918, 1
        %v921 = vsel %vm825, %v916, %v920
        %v922 = vshrl.u32 %v753, 16
        %v924 = vor.u32 %v922, %v912
        %v926 = vshll.u32 %v755, 16
        %v928 = vrot.slane %v926, 1
        %v929 = vsel %vm825, %v924, %v928
        %v930 = vshrl.u32 %v754, 16
        %v932 = vor.u32 %v930, %v920
        %v934 = vshll.u32 %v756, 16
        %v936 = vrot.slane %v934, 1
        %v937 = vsel %vm825, %v932, %v936
        %v938 = vshrl.u32 %v755, 16
        %v940 = vor.u32 %v938, %v928
        %v942 = vshll.u32 %v757, 16
        %v944 = vrot.slane %v942, 1
        %v945 = vsel %vm825, %v940, %v944
        %v946 = vshrl.u32 %v756, 16
        %v948 = vor.u32 %v946, %v936
        %v950 = vshll.u32 %v790, 16
        %v952 = vrot.slane %v950, 1
        %v953 = vsel %vm825, %v948, %v952
        %v954 = vshrl.u32 %v757, 16
        %v956 = vor.u32 %v954, %v944
        %v958 = vshll.u32 %v791, 16
        %v960 = vrot.slane %v958, 1
        %v961 = vsel %vm825, %v956, %v960
        %v1010 = vunpack.c.l.b16 %v793
        %v1011 = vunpack.c.l.b16 %v794
        %v1012 = vunpack.c.l.b16 %v795
        %v1013 = vunpack.c.l.b16 %v796
        %v1014 = vunpack.c.l.b16 %v797
        %v1015 = vunpack.c.l.b16 %v798
        %v1016 = vunpack.c.l.b16 %v799
        %v1017 = vunpack.c.l.b16 %v800
        %v1018 = vunpack.c.l.b16 %v801
        %v1019 = vunpack.c.l.b16 %v802
        %v1020 = vunpack.c.l.b16 %v803
        %v1021 = vunpack.c.l.b16 %v804
        %v1022 = vunpack.c.l.b16 %v805
        %v1023 = vunpack.c.l.b16 %v806
        %v1024 = vunpack.c.l.b16 %v807
        %v1025 = vunpack.c.l.b16 %v808
        %v1026 = vunpack.c.l.b16 %v809
        %v1027 = vunpack.c.l.b16 %v810
        %v1028 = vunpack.c.l.b16 %v811
        %v1029 = vunpack.c.l.b16 %v812
        %v1030 = vunpack.c.l.b16 %v813
        %v1031 = vunpack.c.l.b16 %v814
        %v1032 = vunpack.c.l.b16 %v815
        %v1033 = vunpack.c.l.b16 %v816
        %v1034 = vunpack.c.l.b16 %v817
        %v1035 = vunpack.c.l.b16 %v818
        %v1036 = vunpack.c.l.b16 %v819
        %v1037 = vunpack.c.l.b16 %v820
        %v1038 = vunpack.c.l.b16 %v821
        %v1039 = vunpack.c.l.b16 %v822
        %v1040 = vunpack.c.l.b16 %v823
        %v1041 = vunpack.c.l.b16 %v824
        %v1042 = vpack.c.b16 %v1011, %v1010
        %v1043 = vpack.c.b16 %v1013, %v1012
        %v1044 = vpack.c.b16 %v1015, %v1014
        %v1045 = vpack.c.b16 %v1017, %v1016
        %v1046 = vpack.c.b16 %v1019, %v1018
        %v1047 = vpack.c.b16 %v1021, %v1020
        %v1048 = vpack.c.b16 %v1023, %v1022
        %v1049 = vpack.c.b16 %v1025, %v1024
        %v1050 = vpack.c.b16 %v1027, %v1026
        %v1051 = vpack.c.b16 %v1029, %v1028
        %v1052 = vpack.c.b16 %v1031, %v1030
        %v1053 = vpack.c.b16 %v1033, %v1032
        %v1054 = vpack.c.b16 %v1035, %v1034
        %v1055 = vpack.c.b16 %v1037, %v1036
        %v1056 = vpack.c.b16 %v1039, %v1038
        %v1057 = vpack.c.b16 %v1041, %v1040
        %1074 = vmatprep.subr.bf16.mxu0 0
        %1075 = vmatpush1.bf16.msra.mxu0 %v1042
        %1076 = vmatprep.subr.bf16.mxu0 0
        %1077 = vmatpush1.bf16.msra.mxu0 %v1043
        %1078 = vmatprep.subr.bf16.mxu0 0
        %1079 = vmatpush1.bf16.msra.mxu0 %v1044
        %1080 = vmatprep.subr.bf16.mxu0 0
        %1081 = vmatpush1.bf16.msra.mxu0 %v1045
        %1082 = vmatprep.subr.bf16.mxu0 0
        %1083 = vmatpush1.bf16.msra.mxu0 %v1046
        %1084 = vmatprep.subr.bf16.mxu0 0
        %1085 = vmatpush1.bf16.msra.mxu0 %v1047
        %1086 = vmatprep.subr.bf16.mxu0 0
        %1087 = vmatpush1.bf16.msra.mxu0 %v1048
        %1088 = vmatprep.subr.bf16.mxu0 0
        %1089 = vmatpush1.bf16.msra.mxu0 %v1049
        %1090 = vmatprep.subr.bf16.mxu0 0
        %1091 = vmatpush1.bf16.msra.mxu0 %v1050
        %1092 = vmatprep.subr.bf16.mxu0 0
        %1093 = vmatpush1.bf16.msra.mxu0 %v1051
        %1094 = vmatprep.subr.bf16.mxu0 0
        %1095 = vmatpush1.bf16.msra.mxu0 %v1052
        %1096 = vmatprep.subr.bf16.mxu0 0
        %1097 = vmatpush1.bf16.msra.mxu0 %v1053
        %1098 = vmatprep.subr.bf16.mxu0 0
        %1099 = vmatpush1.bf16.msra.mxu0 %v1054
        %1100 = vmatprep.subr.bf16.mxu0 0
        %1101 = vmatpush1.bf16.msra.mxu0 %v1055
        %1102 = vmatprep.subr.bf16.mxu0 0
        %1103 = vmatpush1.bf16.msra.mxu0 %v1056
        %1104 = vmatprep.subr.bf16.mxu0 0
        %1105 = vmatpush1.bf16.msra.mxu0 %v1057
        %1106 = vmatprep.mubr.bf16.mxu0 %v849
        %1107 = vmatmul.mubr.bf16.gmra.mrb[0].mxu0 %v837
        %v1108 = vpop.f32.mrb[0].mxu0
        %v1109 = vadd.f32 0.0, %v1108
        %v1110 = vpop.f32.mrb[0].mxu0
        %v1111 = vpop.f32.mrb[0].mxu0
        %v1112 = vadd.f32 0.0, %v1111
        %v1113 = vpop.f32.mrb[0].mxu0
        %1114 = vmatprep.mubr.bf16.mxu0 %v865
        %1115 = vmatmul.mubr.bf16.gmra.mrb[0].mxu0 %v857
        %v1116 = vpop.f32.mrb[0].mxu0
        %v1117 = vadd.f32 0.0, %v1116
        %v1118 = vpop.f32.mrb[0].mxu0
        %v1119 = vpop.f32.mrb[0].mxu0
        %v1120 = vadd.f32 0.0, %v1119
        %v1121 = vpop.f32.mrb[0].mxu0
        %1122 = vmatprep.mubr.bf16.mxu0 %v881
        %1123 = vmatmul.mubr.bf16.gmra.mrb[0].mxu0 %v873
        %v1124 = vpop.f32.mrb[0].mxu0
        %v1125 = vadd.f32 0.0, %v1124
        %v1126 = vpop.f32.mrb[0].mxu0
        %v1127 = vpop.f32.mrb[0].mxu0
        %v1128 = vadd.f32 0.0, %v1127
        %v1129 = vpop.f32.mrb[0].mxu0
        %1130 = vmatprep.mubr.bf16.mxu0 %v897
        %1131 = vmatmul.mubr.bf16.gmra.mrb[0].mxu0 %v889
        %v1132 = vpop.f32.mrb[0].mxu0
        %v1133 = vadd.f32 0.0, %v1132
        %v1134 = vpop.f32.mrb[0].mxu0
        %v1135 = vpop.f32.mrb[0].mxu0
        %v1136 = vadd.f32 0.0, %v1135
        %v1137 = vpop.f32.mrb[0].mxu0
        %1138 = vmatprep.mubr.bf16.mxu0 %v913
        %1139 = vmatmul.mubr.bf16.gmra.mrb[0].mxu0 %v905
        %v1140 = vpop.f32.mrb[0].mxu0
        %v1141 = vadd.f32 0.0, %v1140
        %v1142 = vpop.f32.mrb[0].mxu0
        %v1143 = vpop.f32.mrb[0].mxu0
        %v1144 = vadd.f32 0.0, %v1143
        %v1145 = vpop.f32.mrb[0].mxu0
        %1146 = vmatprep.mubr.bf16.mxu0 %v929
        %1147 = vmatmul.mubr.bf16.gmra.mrb[0].mxu0 %v921
        %v1148 = vpop.f32.mrb[0].mxu0
        %v1149 = vadd.f32 0.0, %v1148
        %v1150 = vpop.f32.mrb[0].mxu0
        %v1151 = vpop.f32.mrb[0].mxu0
        %v1152 = vadd.f32 0.0, %v1151
        %v1153 = vpop.f32.mrb[0].mxu0
        %1154 = vmatprep.mubr.bf16.mxu0 %v945
        %1155 = vmatmul.mubr.bf16.gmra.mrb[0].mxu0 %v937
        %v1156 = vpop.f32.mrb[0].mxu0
        %v1157 = vadd.f32 0.0, %v1156
        %v1158 = vpop.f32.mrb[0].mxu0
        %v1159 = vpop.f32.mrb[0].mxu0
        %v1160 = vadd.f32 0.0, %v1159
        %v1161 = vpop.f32.mrb[0].mxu0
        %1162 = vmatprep.mubr.bf16.mxu0 %v961
        %1163 = vmatmul.mubr.bf16.gmra.mrb[0].mxu0 %v953
        %v1164 = vpop.f32.mrb[0].mxu0
        %v1165 = vadd.f32 0.0, %v1164
        %v1166 = vpop.f32.mrb[0].mxu0
        %v1167 = vpop.f32.mrb[0].mxu0
        %v1168 = vadd.f32 0.0, %v1167
        %v1169 = vpop.f32.mrb[0].mxu0
        %1170 = vdwg.mxu0
        %v1203 = vunpack.c.l.b16 %v758
        %v1204 = vunpack.c.l.b16 %v759
        %v1205 = vunpack.c.l.b16 %v760
        %v1206 = vunpack.c.l.b16 %v761
        %v1207 = vunpack.c.l.b16 %v762
        %v1208 = vunpack.c.l.b16 %v763
        %v1209 = vunpack.c.l.b16 %v764
        %v1210 = vunpack.c.l.b16 %v765
        %v1211 = vunpack.c.l.b16 %v766
        %v1212 = vunpack.c.l.b16 %v767
        %v1213 = vunpack.c.l.b16 %v768
        %v1214 = vunpack.c.l.b16 %v769
        %v1215 = vunpack.c.l.b16 %v770
        %v1216 = vunpack.c.l.b16 %v771
        %v1217 = vunpack.c.l.b16 %v772
        %v1218 = vunpack.c.l.b16 %v773
        %v1219 = vunpack.c.l.b16 %v774
        %v1220 = vunpack.c.l.b16 %v775
        %v1221 = vunpack.c.l.b16 %v776
        %v1222 = vunpack.c.l.b16 %v777
        %v1223 = vunpack.c.l.b16 %v778
        %v1224 = vunpack.c.l.b16 %v779
        %v1225 = vunpack.c.l.b16 %v780
        %v1226 = vunpack.c.l.b16 %v781
        %v1227 = vunpack.c.l.b16 %v782
        %v1228 = vunpack.c.l.b16 %v783
        %v1229 = vunpack.c.l.b16 %v784
        %v1230 = vunpack.c.l.b16 %v785
        %v1231 = vunpack.c.l.b16 %v786
        %v1232 = vunpack.c.l.b16 %v787
        %v1233 = vunpack.c.l.b16 %v788
        %v1234 = vunpack.c.l.b16 %v789
        %v1235 = vpack.c.b16 %v1204, %v1203
        %v1236 = vpack.c.b16 %v1206, %v1205
        %v1237 = vpack.c.b16 %v1208, %v1207
        %v1238 = vpack.c.b16 %v1210, %v1209
        %v1239 = vpack.c.b16 %v1212, %v1211
        %v1240 = vpack.c.b16 %v1214, %v1213
        %v1241 = vpack.c.b16 %v1216, %v1215
        %v1242 = vpack.c.b16 %v1218, %v1217
        %v1243 = vpack.c.b16 %v1220, %v1219
        %v1244 = vpack.c.b16 %v1222, %v1221
        %v1245 = vpack.c.b16 %v1224, %v1223
        %v1246 = vpack.c.b16 %v1226, %v1225
        %v1247 = vpack.c.b16 %v1228, %v1227
        %v1248 = vpack.c.b16 %v1230, %v1229
        %v1249 = vpack.c.b16 %v1232, %v1231
        %v1250 = vpack.c.b16 %v1234, %v1233
        %1267 = vmatprep.subr.bf16.mxu0 0
        %1268 = vmatpush1.bf16.msra.mxu0 %v1235
        %1269 = vmatprep.subr.bf16.mxu0 0
        %1270 = vmatpush1.bf16.msra.mxu0 %v1236
        %1271 = vmatprep.subr.bf16.mxu0 0
        %1272 = vmatpush1.bf16.msra.mxu0 %v1237
        %1273 = vmatprep.subr.bf16.mxu0 0
        %1274 = vmatpush1.bf16.msra.mxu0 %v1238
        %1275 = vmatprep.subr.bf16.mxu0 0
        %1276 = vmatpush1.bf16.msra.mxu0 %v1239
        %1277 = vmatprep.subr.bf16.mxu0 0
        %1278 = vmatpush1.bf16.msra.mxu0 %v1240
        %1279 = vmatprep.subr.bf16.mxu0 0
        %1280 = vmatpush1.bf16.msra.mxu0 %v1241
        %1281 = vmatprep.subr.bf16.mxu0 0
        %1282 = vmatpush1.bf16.msra.mxu0 %v1242
        %1283 = vmatprep.subr.bf16.mxu0 0
        %1284 = vmatpush1.bf16.msra.mxu0 %v1243
        %1285 = vmatprep.subr.bf16.mxu0 0
        %1286 = vmatpush1.bf16.msra.mxu0 %v1244
        %1287 = vmatprep.subr.bf16.mxu0 0
        %1288 = vmatpush1.bf16.msra.mxu0 %v1245
        %1289 = vmatprep.subr.bf16.mxu0 0
        %1290 = vmatpush1.bf16.msra.mxu0 %v1246
        %1291 = vmatprep.subr.bf16.mxu0 0
        %1292 = vmatpush1.bf16.msra.mxu0 %v1247
        %1293 = vmatprep.subr.bf16.mxu0 0
        %1294 = vmatpush1.bf16.msra.mxu0 %v1248
        %1295 = vmatprep.subr.bf16.mxu0 0
        %1296 = vmatpush1.bf16.msra.mxu0 %v1249
        %1297 = vmatprep.subr.bf16.mxu0 0
        %1298 = vmatpush1.bf16.msra.mxu0 %v1250
        %1299 = vmatprep.mubr.bf16.mxu0 %v743
        %1300 = vmatmul.mubr.bf16.gmra.mrb[0].mxu0 %v742
        %v1301 = vpop.f32.mrb[0].mxu0
        %v1302 = vadd.f32 %v1109, %v1301
        %v1303 = vpop.f32.mrb[0].mxu0
        %v1304 = vpop.f32.mrb[0].mxu0
        %v1305 = vadd.f32 %v1112, %v1304
        %v1306 = vpop.f32.mrb[0].mxu0
        %1307 = vmatprep.mubr.bf16.mxu0 %v745
        %1308 = vmatmul.mubr.bf16.gmra.mrb[0].mxu0 %v744
        %v1309 = vpop.f32.mrb[0].mxu0
        %v1310 = vadd.f32 %v1117, %v1309
        %v1311 = vpop.f32.mrb[0].mxu0
        %v1312 = vpop.f32.mrb[0].mxu0
        %v1313 = vadd.f32 %v1120, %v1312
        %v1314 = vpop.f32.mrb[0].mxu0
        %1315 = vmatprep.mubr.bf16.mxu0 %v747
        %1316 = vmatmul.mubr.bf16.gmra.mrb[0].mxu0 %v746
        %v1317 = vpop.f32.mrb[0].mxu0
        %v1318 = vadd.f32 %v1125, %v1317
        %v1319 = vpop.f32.mrb[0].mxu0
        %v1320 = vpop.f32.mrb[0].mxu0
        %v1321 = vadd.f32 %v1128, %v1320
        %v1322 = vpop.f32.mrb[0].mxu0
        %1323 = vmatprep.mubr.bf16.mxu0 %v749
        %1324 = vmatmul.mubr.bf16.gmra.mrb[0].mxu0 %v748
        %v1325 = vpop.f32.mrb[0].mxu0
        %v1326 = vadd.f32 %v1133, %v1325
        %v1327 = vpop.f32.mrb[0].mxu0
        %v1328 = vpop.f32.mrb[0].mxu0
        %v1329 = vadd.f32 %v1136, %v1328
        %v1330 = vpop.f32.mrb[0].mxu0
        %1331 = vmatprep.mubr.bf16.mxu0 %v751
        %1332 = vmatmul.mubr.bf16.gmra.mrb[0].mxu0 %v750
        %v1333 = vpop.f32.mrb[0].mxu0
        %v1334 = vadd.f32 %v1141, %v1333
        %v1335 = vpop.f32.mrb[0].mxu0
        %v1336 = vpop.f32.mrb[0].mxu0
        %v1337 = vadd.f32 %v1144, %v1336
        %v1338 = vpop.f32.mrb[0].mxu0
        %1339 = vmatprep.mubr.bf16.mxu0 %v753
        %1340 = vmatmul.mubr.bf16.gmra.mrb[0].mxu0 %v752
        %v1341 = vpop.f32.mrb[0].mxu0
        %v1342 = vadd.f32 %v1149, %v1341
        %v1343 = vpop.f32.mrb[0].mxu0
        %v1344 = vpop.f32.mrb[0].mxu0
        %v1345 = vadd.f32 %v1152, %v1344
        %v1346 = vpop.f32.mrb[0].mxu0
        %1347 = vmatprep.mubr.bf16.mxu0 %v755
        %1348 = vmatmul.mubr.bf16.gmra.mrb[0].mxu0 %v754
        %v1349 = vpop.f32.mrb[0].mxu0
        %v1350 = vadd.f32 %v1157, %v1349
        %v1351 = vpop.f32.mrb[0].mxu0
        %v1352 = vpop.f32.mrb[0].mxu0
        %v1353 = vadd.f32 %v1160, %v1352
        %v1354 = vpop.f32.mrb[0].mxu0
        %1355 = vmatprep.mubr.bf16.mxu0 %v757
        %1356 = vmatmul.mubr.bf16.gmra.mrb[0].mxu0 %v756
        %v1357 = vpop.f32.mrb[0].mxu0
        %v1358 = vadd.f32 %v1165, %v1357
        %v1359 = vpop.f32.mrb[0].mxu0
        %v1360 = vpop.f32.mrb[0].mxu0
        %v1361 = vadd.f32 %v1168, %v1360
        %v1362 = vpop.f32.mrb[0].mxu0
        %1363 = vdwg.mxu0
        %v1364 = vld [vmem:[#allocation2] sm:$0xfe]
        %v1365 = vld [vmem:[#allocation2 + $0x8] sm:$0xfe]
        %s1366 = scalar_lea.vmem [#allocation6], 256
        %v1367 = vld [vmem:[%s1366] sm:$0xf]
        %v1368 = vld [vmem:[%s1366 + $0x4] sm:$0xf]
        %v1369 = vld [vmem:[%s1366 + $0x8] sm:$0xf]
        %v1370 = vld [vmem:[%s1366 + $0xc] sm:$0xf]
        %v1371 = vld [vmem:[%s1366 + $0x10] sm:$0xf]
        %v1372 = vld [vmem:[%s1366 + $0x14] sm:$0xf]
        %v1373 = vld [vmem:[%s1366 + $0x18] sm:$0xf]
        %v1374 = vld [vmem:[%s1366 + $0x1c] sm:$0xf]
        %v1375 = vld [vmem:[%s1366 + $0x20] sm:$0xf]
        %v1376 = vld [vmem:[%s1366 + $0x24] sm:$0xf]
        %v1377 = vld [vmem:[%s1366 + $0x28] sm:$0xf]
        %v1378 = vld [vmem:[%s1366 + $0x2c] sm:$0xf]
        %v1379 = vld [vmem:[%s1366 + $0x30] sm:$0xf]
        %v1380 = vld [vmem:[%s1366 + $0x34] sm:$0xf]
        %v1381 = vld [vmem:[%s1366 + $0x38] sm:$0xf]
        %v1382 = vld [vmem:[%s1366 + $0x3c] sm:$0xf]
        %v1383 = vld [vmem:[%s1366 + $0x40] sm:$0xf]
        %v1384 = vld [vmem:[%s1366 + $0x44] sm:$0xf]
        %v1385 = vld [vmem:[%s1366 + $0x48] sm:$0xf]
        %v1386 = vld [vmem:[%s1366 + $0x4c] sm:$0xf]
        %v1387 = vld [vmem:[%s1366 + $0x50] sm:$0xf]
        %v1388 = vld [vmem:[%s1366 + $0x54] sm:$0xf]
        %v1389 = vld [vmem:[%s1366 + $0x58] sm:$0xf]
        %v1390 = vld [vmem:[%s1366 + $0x5c] sm:$0xf]
        %v1391 = vld [vmem:[%s1366 + $0x60] sm:$0xf]
        %v1392 = vld [vmem:[%s1366 + $0x64] sm:$0xf]
        %v1393 = vld [vmem:[%s1366 + $0x68] sm:$0xf]
        %v1394 = vld [vmem:[%s1366 + $0x6c] sm:$0xf]
        %v1395 = vld [vmem:[%s1366 + $0x70] sm:$0xf]
        %v1396 = vld [vmem:[%s1366 + $0x74] sm:$0xf]
        %v1397 = vld [vmem:[%s1366 + $0x78] sm:$0xf]
        %v1398 = vld [vmem:[%s1366 + $0x7c] sm:$0xf]
        %vm1417 = vcmask 1046528
        %v1418 = vrot.slane %v1364, 1
        %v1419 = vrot.slane %v744, 1
        %v1420 = vsel %vm1417, %v1418, %v1419
        %v1421 = vrot.slane %v1365, 1
        %v1422 = vrot.slane %v745, 1
        %v1423 = vsel %vm1417, %v1421, %v1422
        %v1424 = vrot.slane %v746, 1
        %v1425 = vsel %vm1417, %v1419, %v1424
        %v1426 = vrot.slane %v747, 1
        %v1427 = vsel %vm1417, %v1422, %v1426
        %v1428 = vrot.slane %v748, 1
        %v1429 = vsel %vm1417, %v1424, %v1428
        %v1430 = vrot.slane %v749, 1
        %v1431 = vsel %vm1417, %v1426, %v1430
        %v1432 = vrot.slane %v750, 1
        %v1433 = vsel %vm1417, %v1428, %v1432
        %v1434 = vrot.slane %v751, 1
        %v1435 = vsel %vm1417, %v1430, %v1434
        %v1436 = vrot.slane %v752, 1
        %v1437 = vsel %vm1417, %v1432, %v1436
        %v1438 = vrot.slane %v753, 1
        %v1439 = vsel %vm1417, %v1434, %v1438
        %v1440 = vrot.slane %v754, 1
        %v1441 = vsel %vm1417, %v1436, %v1440
        %v1442 = vrot.slane %v755, 1
        %v1443 = vsel %vm1417, %v1438, %v1442
        %v1444 = vrot.slane %v756, 1
        %v1445 = vsel %vm1417, %v1440, %v1444
        %v1446 = vrot.slane %v757, 1
        %v1447 = vsel %vm1417, %v1442, %v1446
        %v1448 = vrot.slane %v790, 1
        %v1449 = vsel %vm1417, %v1444, %v1448
        %v1450 = vrot.slane %v791, 1
        %v1451 = vsel %vm1417, %v1446, %v1450
        %v1500 = vunpack.c.l.b16 %v1367
        %v1501 = vunpack.c.l.b16 %v1368
        %v1502 = vunpack.c.l.b16 %v1369
        %v1503 = vunpack.c.l.b16 %v1370
        %v1504 = vunpack.c.l.b16 %v1371
        %v1505 = vunpack.c.l.b16 %v1372
        %v1506 = vunpack.c.l.b16 %v1373
        %v1507 = vunpack.c.l.b16 %v1374
        %v1508 = vunpack.c.l.b16 %v1375
        %v1509 = vunpack.c.l.b16 %v1376
        %v1510 = vunpack.c.l.b16 %v1377
        %v1511 = vunpack.c.l.b16 %v1378
        %v1512 = vunpack.c.l.b16 %v1379
        %v1513 = vunpack.c.l.b16 %v1380
        %v1514 = vunpack.c.l.b16 %v1381
        %v1515 = vunpack.c.l.b16 %v1382
        %v1516 = vunpack.c.l.b16 %v1383
        %v1517 = vunpack.c.l.b16 %v1384
        %v1518 = vunpack.c.l.b16 %v1385
        %v1519 = vunpack.c.l.b16 %v1386
        %v1520 = vunpack.c.l.b16 %v1387
        %v1521 = vunpack.c.l.b16 %v1388
        %v1522 = vunpack.c.l.b16 %v1389
        %v1523 = vunpack.c.l.b16 %v1390
        %v1524 = vunpack.c.l.b16 %v1391
        %v1525 = vunpack.c.l.b16 %v1392
        %v1526 = vunpack.c.l.b16 %v1393
        %v1527 = vunpack.c.l.b16 %v1394
        %v1528 = vunpack.c.l.b16 %v1395
        %v1529 = vunpack.c.l.b16 %v1396
        %v1530 = vunpack.c.l.b16 %v1397
        %v1531 = vunpack.c.l.b16 %v1398
        %v1532 = vpack.c.b16 %v1501, %v1500
        %v1533 = vpack.c.b16 %v1503, %v1502
        %v1534 = vpack.c.b16 %v1505, %v1504
        %v1535 = vpack.c.b16 %v1507, %v1506
        %v1536 = vpack.c.b16 %v1509, %v1508
        %v1537 = vpack.c.b16 %v1511, %v1510
        %v1538 = vpack.c.b16 %v1513, %v1512
        %v1539 = vpack.c.b16 %v1515, %v1514
        %v1540 = vpack.c.b16 %v1517, %v1516
        %v1541 = vpack.c.b16 %v1519, %v1518
        %v1542 = vpack.c.b16 %v1521, %v1520
        %v1543 = vpack.c.b16 %v1523, %v1522
        %v1544 = vpack.c.b16 %v1525, %v1524
        %v1545 = vpack.c.b16 %v1527, %v1526
        %v1546 = vpack.c.b16 %v1529, %v1528
        %v1547 = vpack.c.b16 %v1531, %v1530
        %1564 = vmatprep.subr.bf16.mxu0 0
        %1565 = vmatpush1.bf16.msra.mxu0 %v1532
        %1566 = vmatprep.subr.bf16.mxu0 0
        %1567 = vmatpush1.bf16.msra.mxu0 %v1533
        %1568 = vmatprep.subr.bf16.mxu0 0
        %1569 = vmatpush1.bf16.msra.mxu0 %v1534
        %1570 = vmatprep.subr.bf16.mxu0 0
        %1571 = vmatpush1.bf16.msra.mxu0 %v1535
        %1572 = vmatprep.subr.bf16.mxu0 0
        %1573 = vmatpush1.bf16.msra.mxu0 %v1536
        %1574 = vmatprep.subr.bf16.mxu0 0
        %1575 = vmatpush1.bf16.msra.mxu0 %v1537
        %1576 = vmatprep.subr.bf16.mxu0 0
        %1577 = vmatpush1.bf16.msra.mxu0 %v1538
        %1578 = vmatprep.subr.bf16.mxu0 0
        %1579 = vmatpush1.bf16.msra.mxu0 %v1539
        %1580 = vmatprep.subr.bf16.mxu0 0
        %1581 = vmatpush1.bf16.msra.mxu0 %v1540
        %1582 = vmatprep.subr.bf16.mxu0 0
        %1583 = vmatpush1.bf16.msra.mxu0 %v1541
        %1584 = vmatprep.subr.bf16.mxu0 0
        %1585 = vmatpush1.bf16.msra.mxu0 %v1542
        %1586 = vmatprep.subr.bf16.mxu0 0
        %1587 = vmatpush1.bf16.msra.mxu0 %v1543
        %1588 = vmatprep.subr.bf16.mxu0 0
        %1589 = vmatpush1.bf16.msra.mxu0 %v1544
        %1590 = vmatprep.subr.bf16.mxu0 0
        %1591 = vmatpush1.bf16.msra.mxu0 %v1545
        %1592 = vmatprep.subr.bf16.mxu0 0
        %1593 = vmatpush1.bf16.msra.mxu0 %v1546
        %1594 = vmatprep.subr.bf16.mxu0 0
        %1595 = vmatpush1.bf16.msra.mxu0 %v1547
        %1596 = vmatprep.mubr.bf16.mxu0 %v1423
        %1597 = vmatmul.mubr.bf16.gmra.mrb[0].mxu0 %v1420
        %v1598 = vpop.f32.mrb[0].mxu0
        %v1599 = vadd.f32 0.0, %v1598
        %v1600 = vpop.f32.mrb[0].mxu0
        %v1601 = vpop.f32.mrb[0].mxu0
        %v1602 = vadd.f32 0.0, %v1601
        %v1603 = vpop.f32.mrb[0].mxu0
        %1604 = vmatprep.mubr.bf16.mxu0 %v1427
        %1605 = vmatmul.mubr.bf16.gmra.mrb[0].mxu0 %v1425
        %v1606 = vpop.f32.mrb[0].mxu0
        %v1607 = vadd.f32 0.0, %v1606
        %v1608 = vpop.f32.mrb[0].mxu0
        %v1609 = vpop.f32.mrb[0].mxu0
        %v1610 = vadd.f32 0.0, %v1609
        %v1611 = vpop.f32.mrb[0].mxu0
        %1612 = vmatprep.mubr.bf16.mxu0 %v1431
        %1613 = vmatmul.mubr.bf16.gmra.mrb[0].mxu0 %v1429
        %v1614 = vpop.f32.mrb[0].mxu0
        %v1615 = vadd.f32 0.0, %v1614
        %v1616 = vpop.f32.mrb[0].mxu0
        %v1617 = vpop.f32.mrb[0].mxu0
        %v1618 = vadd.f32 0.0, %v1617
        %v1619 = vpop.f32.mrb[0].mxu0
        %1620 = vmatprep.mubr.bf16.mxu0 %v1435
        %1621 = vmatmul.mubr.bf16.gmra.mrb[0].mxu0 %v1433
        %v1622 = vpop.f32.mrb[0].mxu0
        %v1623 = vadd.f32 0.0, %v1622
        %v1624 = vpop.f32.mrb[0].mxu0
        %v1625 = vpop.f32.mrb[0].mxu0
        %v1626 = vadd.f32 0.0, %v1625
        %v1627 = vpop.f32.mrb[0].mxu0
        %1628 = vmatprep.mubr.bf16.mxu0 %v1439
        %1629 = vmatmul.mubr.bf16.gmra.mrb[0].mxu0 %v1437
        %v1630 = vpop.f32.mrb[0].mxu0
        %v1631 = vadd.f32 0.0, %v1630
        %v1632 = vpop.f32.mrb[0].mxu0
        %v1633 = vpop.f32.mrb[0].mxu0
        %v1634 = vadd.f32 0.0, %v1633
        %v1635 = vpop.f32.mrb[0].mxu0
        %1636 = vmatprep.mubr.bf16.mxu0 %v1443
        %1637 = vmatmul.mubr.bf16.gmra.mrb[0].mxu0 %v1441
        %v1638 = vpop.f32.mrb[0].mxu0
        %v1639 = vadd.f32 0.0, %v1638
        %v1640 = vpop.f32.mrb[0].mxu0
        %v1641 = vpop.f32.mrb[0].mxu0
        %v1642 = vadd.f32 0.0, %v1641
        %v1643 = vpop.f32.mrb[0].mxu0
        %1644 = vmatprep.mubr.bf16.mxu0 %v1447
        %1645 = vmatmul.mubr.bf16.gmra.mrb[0].mxu0 %v1445
        %v1646 = vpop.f32.mrb[0].mxu0
        %v1647 = vadd.f32 0.0, %v1646
        %v1648 = vpop.f32.mrb[0].mxu0
        %v1649 = vpop.f32.mrb[0].mxu0
        %v1650 = vadd.f32 0.0, %v1649
        %v1651 = vpop.f32.mrb[0].mxu0
        %1652 = vmatprep.mubr.bf16.mxu0 %v1451
        %1653 = vmatmul.mubr.bf16.gmra.mrb[0].mxu0 %v1449
        %v1654 = vpop.f32.mrb[0].mxu0
        %v1655 = vadd.f32 0.0, %v1654
        %v1656 = vpop.f32.mrb[0].mxu0
        %v1657 = vpop.f32.mrb[0].mxu0
        %v1658 = vadd.f32 0.0, %v1657
        %v1659 = vpop.f32.mrb[0].mxu0
        %1660 = vdwg.mxu0
        %v1661 = vadd.f32 %v1302, %v1599
        %v1662 = vadd.f32 %v1305, %v1602
        %v1663 = vadd.f32 %v1310, %v1607
        %v1664 = vadd.f32 %v1313, %v1610
        %v1665 = vadd.f32 %v1318, %v1615
        %v1666 = vadd.f32 %v1321, %v1618
        %v1667 = vadd.f32 %v1326, %v1623
        %v1668 = vadd.f32 %v1329, %v1626
        %v1669 = vadd.f32 %v1334, %v1631
        %v1670 = vadd.f32 %v1337, %v1634
        %v1671 = vadd.f32 %v1342, %v1639
        %v1672 = vadd.f32 %v1345, %v1642
        %v1673 = vadd.f32 %v1350, %v1647
        %v1674 = vadd.f32 %v1353, %v1650
        %v1675 = vadd.f32 %v1358, %v1655
        %v1676 = vadd.f32 %v1361, %v1658
        %v1677 = vld [vmem:[#allocation2 + $0x80] sm:$0x3]
        %v1678 = vld [vmem:[#allocation2 + $0x88] sm:$0x3]
        %s1679 = scalar_lea.vmem [#allocation6], 384
        %v1680 = vld [vmem:[%s1679] sm:$0xf]
        %v1681 = vld [vmem:[%s1679 + $0x4] sm:$0xf]
        %v1682 = vld [vmem:[%s1679 + $0x8] sm:$0xf]
        %v1683 = vld [vmem:[%s1679 + $0xc] sm:$0xf]
        %v1684 = vld [vmem:[%s1679 + $0x10] sm:$0xf]
        %v1685 = vld [vmem:[%s1679 + $0x14] sm:$0xf]
        %v1686 = vld [vmem:[%s1679 + $0x18] sm:$0xf]
        %v1687 = vld [vmem:[%s1679 + $0x1c] sm:$0xf]
        %v1688 = vld [vmem:[%s1679 + $0x20] sm:$0xf]
        %v1689 = vld [vmem:[%s1679 + $0x24] sm:$0xf]
        %v1690 = vld [vmem:[%s1679 + $0x28] sm:$0xf]
        %v1691 = vld [vmem:[%s1679 + $0x2c] sm:$0xf]
        %v1692 = vld [vmem:[%s1679 + $0x30] sm:$0xf]
        %v1693 = vld [vmem:[%s1679 + $0x34] sm:$0xf]
        %v1694 = vld [vmem:[%s1679 + $0x38] sm:$0xf]
        %v1695 = vld [vmem:[%s1679 + $0x3c] sm:$0xf]
        %v1696 = vld [vmem:[%s1679 + $0x40] sm:$0xf]
        %v1697 = vld [vmem:[%s1679 + $0x44] sm:$0xf]
        %v1698 = vld [vmem:[%s1679 + $0x48] sm:$0xf]
        %v1699 = vld [vmem:[%s1679 + $0x4c] sm:$0xf]
        %v1700 = vld [vmem:[%s1679 + $0x50] sm:$0xf]
        %v1701 = vld [vmem:[%s1679 + $0x54] sm:$0xf]
        %v1702 = vld [vmem:[%s1679 + $0x58] sm:$0xf]
        %v1703 = vld [vmem:[%s1679 + $0x5c] sm:$0xf]
        %v1704 = vld [vmem:[%s1679 + $0x60] sm:$0xf]
        %v1705 = vld [vmem:[%s1679 + $0x64] sm:$0xf]
        %v1706 = vld [vmem:[%s1679 + $0x68] sm:$0xf]
        %v1707 = vld [vmem:[%s1679 + $0x6c] sm:$0xf]
        %v1708 = vld [vmem:[%s1679 + $0x70] sm:$0xf]
        %v1709 = vld [vmem:[%s1679 + $0x74] sm:$0xf]
        %v1710 = vld [vmem:[%s1679 + $0x78] sm:$0xf]
        %v1711 = vld [vmem:[%s1679 + $0x7c] sm:$0xf]
        %vm1712 = vsmask.f32 6400
        %v1714 = vshrl.u32 %v1364, 16
        %v1716 = vrot.slane %v1714, 1
        %v1717 = vshll.u32 %v1364, 16
        %v1719 = vrot.slane %v1717, 2
        %v1720 = vor.u32 %v1716, %v1719
        %v1721 = vrot.slane %v850, 1
        %v1722 = vrot.slane %v834, 2
        %v1723 = vor.u32 %v1721, %v1722
        %v1724 = vsel %vm1712, %v1720, %v1723
        %v1726 = vshrl.u32 %v1365, 16
        %v1728 = vrot.slane %v1726, 1
        %v1729 = vshll.u32 %v1365, 16
        %v1731 = vrot.slane %v1729, 2
        %v1732 = vor.u32 %v1728, %v1731
        %v1733 = vrot.slane %v858, 1
        %v1734 = vrot.slane %v846, 2
        %v1735 = vor.u32 %v1733, %v1734
        %v1736 = vsel %vm1712, %v1732, %v1735
        %v1737 = vrot.slane %v866, 1
        %v1738 = vrot.slane %v854, 2
        %v1739 = vor.u32 %v1737, %v1738
        %v1740 = vsel %vm1712, %v1723, %v1739
        %v1741 = vrot.slane %v874, 1
        %v1742 = vrot.slane %v862, 2
        %v1743 = vor.u32 %v1741, %v1742
        %v1744 = vsel %vm1712, %v1735, %v1743
        %v1745 = vrot.slane %v882, 1
        %v1746 = vrot.slane %v870, 2
        %v1747 = vor.u32 %v1745, %v1746
        %v1748 = vsel %vm1712, %v1739, %v1747
        %v1749 = vrot.slane %v890, 1
        %v1750 = vrot.slane %v878, 2
        %v1751 = vor.u32 %v1749, %v1750
        %v1752 = vsel %vm1712, %v1743, %v1751
        %v1753 = vrot.slane %v898, 1
        %v1754 = vrot.slane %v886, 2
        %v1755 = vor.u32 %v1753, %v1754
        %v1756 = vsel %vm1712, %v1747, %v1755
        %v1757 = vrot.slane %v906, 1
        %v1758 = vrot.slane %v894, 2
        %v1759 = vor.u32 %v1757, %v1758
        %v1760 = vsel %vm1712, %v1751, %v1759
        %v1761 = vrot.slane %v914, 1
        %v1762 = vrot.slane %v902, 2
        %v1763 = vor.u32 %v1761, %v1762
        %v1764 = vsel %vm1712, %v1755, %v1763
        %v1765 = vrot.slane %v922, 1
        %v1766 = vrot.slane %v910, 2
        %v1767 = vor.u32 %v1765, %v1766
        %v1768 = vsel %vm1712, %v1759, %v1767
        %v1769 = vrot.slane %v930, 1
        %v1770 = vrot.slane %v918, 2
        %v1771 = vor.u32 %v1769, %v1770
        %v1772 = vsel %vm1712, %v1763, %v1771
        %v1773 = vrot.slane %v938, 1
        %v1774 = vrot.slane %v926, 2
        %v1775 = vor.u32 %v1773, %v1774
        %v1776 = vsel %vm1712, %v1767, %v1775
        %v1777 = vrot.slane %v946, 1
        %v1778 = vrot.slane %v934, 2
        %v1779 = vor.u32 %v1777, %v1778
        %v1780 = vsel %vm1712, %v1771, %v1779
        %v1781 = vrot.slane %v954, 1
        %v1782 = vrot.slane %v942, 2
        %v1783 = vor.u32 %v1781, %v1782
        %v1784 = vsel %vm1712, %v1775, %v1783
        %v1786 = vshrl.u32 %v1677, 16
        %v1788 = vrot.slane %v1786, 1
        %v1789 = vshll.u32 %v1677, 16
        %v1791 = vrot.slane %v1789, 2
        %v1792 = vor.u32 %v1788, %v1791
        %v1793 = vsel %vm1712, %v1779, %v1792
        %v1795 = vshrl.u32 %v1678, 16
        %v1797 = vrot.slane %v1795, 1
        %v1798 = vshll.u32 %v1678, 16
        %v1800 = vrot.slane %v1798, 2
        %v1801 = vor.u32 %v1797, %v1800
        %v1802 = vsel %vm1712, %v1783, %v1801
        %v1851 = vunpack.c.l.b16 %v1680
        %v1852 = vunpack.c.l.b16 %v1681
        %v1853 = vunpack.c.l.b16 %v1682
        %v1854 = vunpack.c.l.b16 %v1683
        %v1855 = vunpack.c.l.b16 %v1684
        %v1856 = vunpack.c.l.b16 %v1685
        %v1857 = vunpack.c.l.b16 %v1686
        %v1858 = vunpack.c.l.b16 %v1687
        %v1859 = vunpack.c.l.b16 %v1688
        %v1860 = vunpack.c.l.b16 %v1689
        %v1861 = vunpack.c.l.b16 %v1690
        %v1862 = vunpack.c.l.b16 %v1691
        %v1863 = vunpack.c.l.b16 %v1692
        %v1864 = vunpack.c.l.b16 %v1693
        %v1865 = vunpack.c.l.b16 %v1694
        %v1866 = vunpack.c.l.b16 %v1695
        %v1867 = vunpack.c.l.b16 %v1696
        %v1868 = vunpack.c.l.b16 %v1697
        %v1869 = vunpack.c.l.b16 %v1698
        %v1870 = vunpack.c.l.b16 %v1699
        %v1871 = vunpack.c.l.b16 %v1700
        %v1872 = vunpack.c.l.b16 %v1701
        %v1873 = vunpack.c.l.b16 %v1702
        %v1874 = vunpack.c.l.b16 %v1703
        %v1875 = vunpack.c.l.b16 %v1704
        %v1876 = vunpack.c.l.b16 %v1705
        %v1877 = vunpack.c.l.b16 %v1706
        %v1878 = vunpack.c.l.b16 %v1707
        %v1879 = vunpack.c.l.b16 %v1708
        %v1880 = vunpack.c.l.b16 %v1709
        %v1881 = vunpack.c.l.b16 %v1710
        %v1882 = vunpack.c.l.b16 %v1711
        %v1883 = vpack.c.b16 %v1852, %v1851
        %v1884 = vpack.c.b16 %v1854, %v1853
        %v1885 = vpack.c.b16 %v1856, %v1855
        %v1886 = vpack.c.b16 %v1858, %v1857
        %v1887 = vpack.c.b16 %v1860, %v1859
        %v1888 = vpack.c.b16 %v1862, %v1861
        %v1889 = vpack.c.b16 %v1864, %v1863
        %v1890 = vpack.c.b16 %v1866, %v1865
        %v1891 = vpack.c.b16 %v1868, %v1867
        %v1892 = vpack.c.b16 %v1870, %v1869
        %v1893 = vpack.c.b16 %v1872, %v1871
        %v1894 = vpack.c.b16 %v1874, %v1873
        %v1895 = vpack.c.b16 %v1876, %v1875
        %v1896 = vpack.c.b16 %v1878, %v1877
        %v1897 = vpack.c.b16 %v1880, %v1879
        %v1898 = vpack.c.b16 %v1882, %v1881
        %1915 = vmatprep.subr.bf16.mxu0 0
        %1916 = vmatpush1.bf16.msra.mxu0 %v1883
        %1917 = vmatprep.subr.bf16.mxu0 0
        %1918 = vmatpush1.bf16.msra.mxu0 %v1884
        %1919 = vmatprep.subr.bf16.mxu0 0
        %1920 = vmatpush1.bf16.msra.mxu0 %v1885
        %1921 = vmatprep.subr.bf16.mxu0 0
        %1922 = vmatpush1.bf16.msra.mxu0 %v1886
        %1923 = vmatprep.subr.bf16.mxu0 0
        %1924 = vmatpush1.bf16.msra.mxu0 %v1887
        %1925 = vmatprep.subr.bf16.mxu0 0
        %1926 = vmatpush1.bf16.msra.mxu0 %v1888
        %1927 = vmatprep.subr.bf16.mxu0 0
        %1928 = vmatpush1.bf16.msra.mxu0 %v1889
        %1929 = vmatprep.subr.bf16.mxu0 0
        %1930 = vmatpush1.bf16.msra.mxu0 %v1890
        %1931 = vmatprep.subr.bf16.mxu0 0
        %1932 = vmatpush1.bf16.msra.mxu0 %v1891
        %1933 = vmatprep.subr.bf16.mxu0 0
        %1934 = vmatpush1.bf16.msra.mxu0 %v1892
        %1935 = vmatprep.subr.bf16.mxu0 0
        %1936 = vmatpush1.bf16.msra.mxu0 %v1893
        %1937 = vmatprep.subr.bf16.mxu0 0
        %1938 = vmatpush1.bf16.msra.mxu0 %v1894
        %1939 = vmatprep.subr.bf16.mxu0 0
        %1940 = vmatpush1.bf16.msra.mxu0 %v1895
        %1941 = vmatprep.subr.bf16.mxu0 0
        %1942 = vmatpush1.bf16.msra.mxu0 %v1896
        %1943 = vmatprep.subr.bf16.mxu0 0
        %1944 = vmatpush1.bf16.msra.mxu0 %v1897
        %1945 = vmatprep.subr.bf16.mxu0 0
        %1946 = vmatpush1.bf16.msra.mxu0 %v1898
        %1947 = vmatprep.mubr.bf16.mxu0 %v1736
        %1948 = vmatmul.mubr.bf16.gmra.mrb[0].mxu0 %v1724
        %v1949 = vpop.f32.mrb[0].mxu0
        %v1950 = vadd.f32 0.0, %v1949
        %v1951 = vpop.f32.mrb[0].mxu0
        %v1952 = vpop.f32.mrb[0].mxu0
        %v1953 = vadd.f32 0.0, %v1952
        %v1954 = vpop.f32.mrb[0].mxu0
        %1955 = vmatprep.mubr.bf16.mxu0 %v1744
        %1956 = vmatmul.mubr.bf16.gmra.mrb[0].mxu0 %v1740
        %v1957 = vpop.f32.mrb[0].mxu0
        %v1958 = vadd.f32 0.0, %v1957
        %v1959 = vpop.f32.mrb[0].mxu0
        %v1960 = vpop.f32.mrb[0].mxu0
        %v1961 = vadd.f32 0.0, %v1960
        %v1962 = vpop.f32.mrb[0].mxu0
        %1963 = vmatprep.mubr.bf16.mxu0 %v1752
        %1964 = vmatmul.mubr.bf16.gmra.mrb[0].mxu0 %v1748
        %v1965 = vpop.f32.mrb[0].mxu0
        %v1966 = vadd.f32 0.0, %v1965
        %v1967 = vpop.f32.mrb[0].mxu0
        %v1968 = vpop.f32.mrb[0].mxu0
        %v1969 = vadd.f32 0.0, %v1968
        %v1970 = vpop.f32.mrb[0].mxu0
        %1971 = vmatprep.mubr.bf16.mxu0 %v1760
        %1972 = vmatmul.mubr.bf16.gmra.mrb[0].mxu0 %v1756
        %v1973 = vpop.f32.mrb[0].mxu0
        %v1974 = vadd.f32 0.0, %v1973
        %v1975 = vpop.f32.mrb[0].mxu0
        %v1976 = vpop.f32.mrb[0].mxu0
        %v1977 = vadd.f32 0.0, %v1976
        %v1978 = vpop.f32.mrb[0].mxu0
        %1979 = vmatprep.mubr.bf16.mxu0 %v1768
        %1980 = vmatmul.mubr.bf16.gmra.mrb[0].mxu0 %v1764
        %v1981 = vpop.f32.mrb[0].mxu0
        %v1982 = vadd.f32 0.0, %v1981
        %v1983 = vpop.f32.mrb[0].mxu0
        %v1984 = vpop.f32.mrb[0].mxu0
        %v1985 = vadd.f32 0.0, %v1984
        %v1986 = vpop.f32.mrb[0].mxu0
        %1987 = vmatprep.mubr.bf16.mxu0 %v1776
        %1988 = vmatmul.mubr.bf16.gmra.mrb[0].mxu0 %v1772
        %v1989 = vpop.f32.mrb[0].mxu0
        %v1990 = vadd.f32 0.0, %v1989
        %v1991 = vpop.f32.mrb[0].mxu0
        %v1992 = vpop.f32.mrb[0].mxu0
        %v1993 = vadd.f32 0.0, %v1992
        %v1994 = vpop.f32.mrb[0].mxu0
        %1995 = vmatprep.mubr.bf16.mxu0 %v1784
        %1996 = vmatmul.mubr.bf16.gmra.mrb[0].mxu0 %v1780
        %v1997 = vpop.f32.mrb[0].mxu0
        %v1998 = vadd.f32 0.0, %v1997
        %v1999 = vpop.f32.mrb[0].mxu0
        %v2000 = vpop.f32.mrb[0].mxu0
        %v2001 = vadd.f32 0.0, %v2000
        %v2002 = vpop.f32.mrb[0].mxu0
        %2003 = vmatprep.mubr.bf16.mxu0 %v1802
        %2004 = vmatmul.mubr.bf16.gmra.mrb[0].mxu0 %v1793
        %v2005 = vpop.f32.mrb[0].mxu0
        %v2006 = vadd.f32 0.0, %v2005
        %v2007 = vpop.f32.mrb[0].mxu0
        %v2008 = vpop.f32.mrb[0].mxu0
        %v2009 = vadd.f32 0.0, %v2008
        %v2010 = vpop.f32.mrb[0].mxu0
        %2011 = vdwg.mxu0
        %v2012 = vadd.f32 %v1661, %v1950
        %v2013 = vadd.f32 %v1662, %v1953
        %v2014 = vadd.f32 %v1663, %v1958
        %v2015 = vadd.f32 %v1664, %v1961
        %v2016 = vadd.f32 %v1665, %v1966
        %v2017 = vadd.f32 %v1666, %v1969
        %v2018 = vadd.f32 %v1667, %v1974
        %v2019 = vadd.f32 %v1668, %v1977
        %v2020 = vadd.f32 %v1669, %v1982
        %v2021 = vadd.f32 %v1670, %v1985
        %v2022 = vadd.f32 %v1671, %v1990
        %v2023 = vadd.f32 %v1672, %v1993
        %v2024 = vadd.f32 %v1673, %v1998
        %v2025 = vadd.f32 %v1674, %v2001
        %v2026 = vadd.f32 %v1675, %v2006
        %v2027 = vadd.f32 %v1676, %v2009
        %v2028 = vld [vmem:[#allocation2] sm:$0xfc]
        %v2029 = vld [vmem:[#allocation2 + $0x8] sm:$0xfc]
        %s2030 = scalar_lea.vmem [#allocation6], 512
        %v2031 = vld [vmem:[%s2030] sm:$0xf]
        %v2032 = vld [vmem:[%s2030 + $0x4] sm:$0xf]
        %v2033 = vld [vmem:[%s2030 + $0x8] sm:$0xf]
        %v2034 = vld [vmem:[%s2030 + $0xc] sm:$0xf]
        %v2035 = vld [vmem:[%s2030 + $0x10] sm:$0xf]
        %v2036 = vld [vmem:[%s2030 + $0x14] sm:$0xf]
        %v2037 = vld [vmem:[%s2030 + $0x18] sm:$0xf]
        %v2038 = vld [vmem:[%s2030 + $0x1c] sm:$0xf]
        %v2039 = vld [vmem:[%s2030 + $0x20] sm:$0xf]
        %v2040 = vld [vmem:[%s2030 + $0x24] sm:$0xf]
        %v2041 = vld [vmem:[%s2030 + $0x28] sm:$0xf]
        %v2042 = vld [vmem:[%s2030 + $0x2c] sm:$0xf]
        %v2043 = vld [vmem:[%s2030 + $0x30] sm:$0xf]
        %v2044 = vld [vmem:[%s2030 + $0x34] sm:$0xf]
        %v2045 = vld [vmem:[%s2030 + $0x38] sm:$0xf]
        %v2046 = vld [vmem:[%s2030 + $0x3c] sm:$0xf]
        %v2047 = vld [vmem:[%s2030 + $0x40] sm:$0xf]
        %v2048 = vld [vmem:[%s2030 + $0x44] sm:$0xf]
        %v2049 = vld [vmem:[%s2030 + $0x48] sm:$0xf]
        %v2050 = vld [vmem:[%s2030 + $0x4c] sm:$0xf]
        %v2051 = vld [vmem:[%s2030 + $0x50] sm:$0xf]
        %v2052 = vld [vmem:[%s2030 + $0x54] sm:$0xf]
        %v2053 = vld [vmem:[%s2030 + $0x58] sm:$0xf]
        %v2054 = vld [vmem:[%s2030 + $0x5c] sm:$0xf]
        %v2055 = vld [vmem:[%s2030 + $0x60] sm:$0xf]
        %v2056 = vld [vmem:[%s2030 + $0x64] sm:$0xf]
        %v2057 = vld [vmem:[%s2030 + $0x68] sm:$0xf]
        %v2058 = vld [vmem:[%s2030 + $0x6c] sm:$0xf]
        %v2059 = vld [vmem:[%s2030 + $0x70] sm:$0xf]
        %v2060 = vld [vmem:[%s2030 + $0x74] sm:$0xf]
        %v2061 = vld [vmem:[%s2030 + $0x78] sm:$0xf]
        %v2062 = vld [vmem:[%s2030 + $0x7c] sm:$0xf]
        %vm2067 = vcmask 1045504
        %v2068 = vrot.slane %v2028, 2
        %v2069 = vrot.slane %v744, 2
        %v2070 = vsel %vm2067, %v2068, %v2069
        %v2071 = vrot.slane %v2029, 2
        %v2072 = vrot.slane %v745, 2
        %v2073 = vsel %vm2067, %v2071, %v2072
        %v2074 = vrot.slane %v746, 2
        %v2075 = vsel %vm2067, %v2069, %v2074
        %v2076 = vrot.slane %v747, 2
        %v2077 = vsel %vm2067, %v2072, %v2076
        %v2078 = vrot.slane %v748, 2
        %v2079 = vsel %vm2067, %v2074, %v2078
        %v2080 = vrot.slane %v749, 2
        %v2081 = vsel %vm2067, %v2076, %v2080
        %v2082 = vrot.slane %v750, 2
        %v2083 = vsel %vm2067, %v2078, %v2082
        %v2084 = vrot.slane %v751, 2
        %v2085 = vsel %vm2067, %v2080, %v2084
        %v2086 = vrot.slane %v752, 2
        %v2087 = vsel %vm2067, %v2082, %v2086
        %v2088 = vrot.slane %v753, 2
        %v2089 = vsel %vm2067, %v2084, %v2088
        %v2090 = vrot.slane %v754, 2
        %v2091 = vsel %vm2067, %v2086, %v2090
        %v2092 = vrot.slane %v755, 2
        %v2093 = vsel %vm2067, %v2088, %v2092
        %v2094 = vrot.slane %v756, 2
        %v2095 = vsel %vm2067, %v2090, %v2094
        %v2096 = vrot.slane %v757, 2
        %v2097 = vsel %vm2067, %v2092, %v2096
        %v2098 = vrot.slane %v1677, 2
        %v2099 = vsel %vm2067, %v2094, %v2098
        %v2100 = vrot.slane %v1678, 2
        %v2101 = vsel %vm2067, %v2096, %v2100
        %v2150 = vunpack.c.l.b16 %v2031
        %v2151 = vunpack.c.l.b16 %v2032
        %v2152 = vunpack.c.l.b16 %v2033
        %v2153 = vunpack.c.l.b16 %v2034
        %v2154 = vunpack.c.l.b16 %v2035
        %v2155 = vunpack.c.l.b16 %v2036
        %v2156 = vunpack.c.l.b16 %v2037
        %v2157 = vunpack.c.l.b16 %v2038
        %v2158 = vunpack.c.l.b16 %v2039
        %v2159 = vunpack.c.l.b16 %v2040
        %v2160 = vunpack.c.l.b16 %v2041
        %v2161 = vunpack.c.l.b16 %v2042
        %v2162 = vunpack.c.l.b16 %v2043
        %v2163 = vunpack.c.l.b16 %v2044
        %v2164 = vunpack.c.l.b16 %v2045
        %v2165 = vunpack.c.l.b16 %v2046
        %v2166 = vunpack.c.l.b16 %v2047
        %v2167 = vunpack.c.l.b16 %v2048
        %v2168 = vunpack.c.l.b16 %v2049
        %v2169 = vunpack.c.l.b16 %v2050
        %v2170 = vunpack.c.l.b16 %v2051
        %v2171 = vunpack.c.l.b16 %v2052
        %v2172 = vunpack.c.l.b16 %v2053
        %v2173 = vunpack.c.l.b16 %v2054
        %v2174 = vunpack.c.l.b16 %v2055
        %v2175 = vunpack.c.l.b16 %v2056
        %v2176 = vunpack.c.l.b16 %v2057
        %v2177 = vunpack.c.l.b16 %v2058
        %v2178 = vunpack.c.l.b16 %v2059
        %v2179 = vunpack.c.l.b16 %v2060
        %v2180 = vunpack.c.l.b16 %v2061
        %v2181 = vunpack.c.l.b16 %v2062
        %v2182 = vpack.c.b16 %v2151, %v2150
        %v2183 = vpack.c.b16 %v2153, %v2152
        %v2184 = vpack.c.b16 %v2155, %v2154
        %v2185 = vpack.c.b16 %v2157, %v2156
        %v2186 = vpack.c.b16 %v2159, %v2158
        %v2187 = vpack.c.b16 %v2161, %v2160
        %v2188 = vpack.c.b16 %v2163, %v2162
        %v2189 = vpack.c.b16 %v2165, %v2164
        %v2190 = vpack.c.b16 %v2167, %v2166
        %v2191 = vpack.c.b16 %v2169, %v2168
        %v2192 = vpack.c.b16 %v2171, %v2170
        %v2193 = vpack.c.b16 %v2173, %v2172
        %v2194 = vpack.c.b16 %v2175, %v2174
        %v2195 = vpack.c.b16 %v2177, %v2176
        %v2196 = vpack.c.b16 %v2179, %v2178
        %v2197 = vpack.c.b16 %v2181, %v2180
        %2214 = vmatprep.subr.bf16.mxu0 0
        %2215 = vmatpush1.bf16.msra.mxu0 %v2182
        %2216 = vmatprep.subr.bf16.mxu0 0
        %2217 = vmatpush1.bf16.msra.mxu0 %v2183
        %2218 = vmatprep.subr.bf16.mxu0 0
        %2219 = vmatpush1.bf16.msra.mxu0 %v2184
        %2220 = vmatprep.subr.bf16.mxu0 0
        %2221 = vmatpush1.bf16.msra.mxu0 %v2185
        %2222 = vmatprep.subr.bf16.mxu0 0
        %2223 = vmatpush1.bf16.msra.mxu0 %v2186
        %2224 = vmatprep.subr.bf16.mxu0 0
        %2225 = vmatpush1.bf16.msra.mxu0 %v2187
        %2226 = vmatprep.subr.bf16.mxu0 0
        %2227 = vmatpush1.bf16.msra.mxu0 %v2188
        %2228 = vmatprep.subr.bf16.mxu0 0
        %2229 = vmatpush1.bf16.msra.mxu0 %v2189
        %2230 = vmatprep.subr.bf16.mxu0 0
        %2231 = vmatpush1.bf16.msra.mxu0 %v2190
        %2232 = vmatprep.subr.bf16.mxu0 0
        %2233 = vmatpush1.bf16.msra.mxu0 %v2191
        %2234 = vmatprep.subr.bf16.mxu0 0
        %2235 = vmatpush1.bf16.msra.mxu0 %v2192
        %2236 = vmatprep.subr.bf16.mxu0 0
        %2237 = vmatpush1.bf16.msra.mxu0 %v2193
        %2238 = vmatprep.subr.bf16.mxu0 0
        %2239 = vmatpush1.bf16.msra.mxu0 %v2194
        %2240 = vmatprep.subr.bf16.mxu0 0
        %2241 = vmatpush1.bf16.msra.mxu0 %v2195
        %2242 = vmatprep.subr.bf16.mxu0 0
        %2243 = vmatpush1.bf16.msra.mxu0 %v2196
        %2244 = vmatprep.subr.bf16.mxu0 0
        %2245 = vmatpush1.bf16.msra.mxu0 %v2197
        %2246 = vmatprep.mubr.bf16.mxu0 %v2073
        %2247 = vmatmul.mubr.bf16.gmra.mrb[0].mxu0 %v2070
        %v2248 = vpop.f32.mrb[0].mxu0
        %v2249 = vadd.f32 0.0, %v2248
        %v2250 = vpop.f32.mrb[0].mxu0
        %v2251 = vpop.f32.mrb[0].mxu0
        %v2252 = vadd.f32 0.0, %v2251
        %v2253 = vpop.f32.mrb[0].mxu0
        %2254 = vmatprep.mubr.bf16.mxu0 %v2077
        %2255 = vmatmul.mubr.bf16.gmra.mrb[0].mxu0 %v2075
        %v2256 = vpop.f32.mrb[0].mxu0
        %v2257 = vadd.f32 0.0, %v2256
        %v2258 = vpop.f32.mrb[0].mxu0
        %v2259 = vpop.f32.mrb[0].mxu0
        %v2260 = vadd.f32 0.0, %v2259
        %v2261 = vpop.f32.mrb[0].mxu0
        %2262 = vmatprep.mubr.bf16.mxu0 %v2081
        %2263 = vmatmul.mubr.bf16.gmra.mrb[0].mxu0 %v2079
        %v2264 = vpop.f32.mrb[0].mxu0
        %v2265 = vadd.f32 0.0, %v2264
        %v2266 = vpop.f32.mrb[0].mxu0
        %v2267 = vpop.f32.mrb[0].mxu0
        %v2268 = vadd.f32 0.0, %v2267
        %v2269 = vpop.f32.mrb[0].mxu0
        %2270 = vmatprep.mubr.bf16.mxu0 %v2085
        %2271 = vmatmul.mubr.bf16.gmra.mrb[0].mxu0 %v2083
        %v2272 = vpop.f32.mrb[0].mxu0
        %v2273 = vadd.f32 0.0, %v2272
        %v2274 = vpop.f32.mrb[0].mxu0
        %v2275 = vpop.f32.mrb[0].mxu0
        %v2276 = vadd.f32 0.0, %v2275
        %v2277 = vpop.f32.mrb[0].mxu0
        %2278 = vmatprep.mubr.bf16.mxu0 %v2089
        %2279 = vmatmul.mubr.bf16.gmra.mrb[0].mxu0 %v2087
        %v2280 = vpop.f32.mrb[0].mxu0
        %v2281 = vadd.f32 0.0, %v2280
        %v2282 = vpop.f32.mrb[0].mxu0
        %v2283 = vpop.f32.mrb[0].mxu0
        %v2284 = vadd.f32 0.0, %v2283
        %v2285 = vpop.f32.mrb[0].mxu0
        %2286 = vmatprep.mubr.bf16.mxu0 %v2093
        %2287 = vmatmul.mubr.bf16.gmra.mrb[0].mxu0 %v2091
        %v2288 = vpop.f32.mrb[0].mxu0
        %v2289 = vadd.f32 0.0, %v2288
        %v2290 = vpop.f32.mrb[0].mxu0
        %v2291 = vpop.f32.mrb[0].mxu0
        %v2292 = vadd.f32 0.0, %v2291
        %v2293 = vpop.f32.mrb[0].mxu0
        %2294 = vmatprep.mubr.bf16.mxu0 %v2097
        %2295 = vmatmul.mubr.bf16.gmra.mrb[0].mxu0 %v2095
        %v2296 = vpop.f32.mrb[0].mxu0
        %v2297 = vadd.f32 0.0, %v2296
        %v2298 = vpop.f32.mrb[0].mxu0
        %v2299 = vpop.f32.mrb[0].mxu0
        %v2300 = vadd.f32 0.0, %v2299
        %v2301 = vpop.f32.mrb[0].mxu0
        %2302 = vmatprep.mubr.bf16.mxu0 %v2101
        %2303 = vmatmul.mubr.bf16.gmra.mrb[0].mxu0 %v2099
        %v2304 = vpop.f32.mrb[0].mxu0
        %v2305 = vadd.f32 0.0, %v2304
        %v2306 = vpop.f32.mrb[0].mxu0
        %v2307 = vpop.f32.mrb[0].mxu0
        %v2308 = vadd.f32 0.0, %v2307
        %v2309 = vpop.f32.mrb[0].mxu0
        %2310 = vdwg.mxu0
        %v2311 = vadd.f32 %v2012, %v2249
        %v2312 = vadd.f32 %v2013, %v2252
        %v2313 = vadd.f32 %v2014, %v2257
        %v2314 = vadd.f32 %v2015, %v2260
        %v2315 = vadd.f32 %v2016, %v2265
        %v2316 = vadd.f32 %v2017, %v2268
        %v2317 = vadd.f32 %v2018, %v2273
        %v2318 = vadd.f32 %v2019, %v2276
        %v2319 = vadd.f32 %v2020, %v2281
        %v2320 = vadd.f32 %v2021, %v2284
        %v2321 = vadd.f32 %v2022, %v2289
        %v2322 = vadd.f32 %v2023, %v2292
        %v2323 = vadd.f32 %v2024, %v2297
        %v2324 = vadd.f32 %v2025, %v2300
        %v2325 = vadd.f32 %v2026, %v2305
        %v2326 = vadd.f32 %v2027, %v2308
        %v2327 = vld [vmem:[#allocation2 + $0x80] sm:$0x7]
        %v2328 = vld [vmem:[#allocation2 + $0x88] sm:$0x7]
        %s2329 = scalar_lea.vmem [#allocation6], 640
        %v2330 = vld [vmem:[%s2329] sm:$0xf]
        %v2331 = vld [vmem:[%s2329 + $0x4] sm:$0xf]
        %v2332 = vld [vmem:[%s2329 + $0x8] sm:$0xf]
        %v2333 = vld [vmem:[%s2329 + $0xc] sm:$0xf]
        %v2334 = vld [vmem:[%s2329 + $0x10] sm:$0xf]
        %v2335 = vld [vmem:[%s2329 + $0x14] sm:$0xf]
        %v2336 = vld [vmem:[%s2329 + $0x18] sm:$0xf]
        %v2337 = vld [vmem:[%s2329 + $0x1c] sm:$0xf]
        %v2338 = vld [vmem:[%s2329 + $0x20] sm:$0xf]
        %v2339 = vld [vmem:[%s2329 + $0x24] sm:$0xf]
        %v2340 = vld [vmem:[%s2329 + $0x28] sm:$0xf]
        %v2341 = vld [vmem:[%s2329 + $0x2c] sm:$0xf]
        %v2342 = vld [vmem:[%s2329 + $0x30] sm:$0xf]
        %v2343 = vld [vmem:[%s2329 + $0x34] sm:$0xf]
        %v2344 = vld [vmem:[%s2329 + $0x38] sm:$0xf]
        %v2345 = vld [vmem:[%s2329 + $0x3c] sm:$0xf]
        %v2346 = vld [vmem:[%s2329 + $0x40] sm:$0xf]
        %v2347 = vld [vmem:[%s2329 + $0x44] sm:$0xf]
        %v2348 = vld [vmem:[%s2329 + $0x48] sm:$0xf]
        %v2349 = vld [vmem:[%s2329 + $0x4c] sm:$0xf]
        %v2350 = vld [vmem:[%s2329 + $0x50] sm:$0xf]
        %v2351 = vld [vmem:[%s2329 + $0x54] sm:$0xf]
        %v2352 = vld [vmem:[%s2329 + $0x58] sm:$0xf]
        %v2353 = vld [vmem:[%s2329 + $0x5c] sm:$0xf]
        %v2354 = vld [vmem:[%s2329 + $0x60] sm:$0xf]
        %v2355 = vld [vmem:[%s2329 + $0x64] sm:$0xf]
        %v2356 = vld [vmem:[%s2329 + $0x68] sm:$0xf]
        %v2357 = vld [vmem:[%s2329 + $0x6c] sm:$0xf]
        %v2358 = vld [vmem:[%s2329 + $0x70] sm:$0xf]
        %v2359 = vld [vmem:[%s2329 + $0x74] sm:$0xf]
        %v2360 = vld [vmem:[%s2329 + $0x78] sm:$0xf]
        %v2361 = vld [vmem:[%s2329 + $0x7c] sm:$0xf]
        %vm2362 = vsmask.f32 5376
        %v2364 = vshrl.u32 %v2028, 16
        %v2366 = vrot.slane %v2364, 2
        %v2367 = vshll.u32 %v2028, 16
        %v2369 = vrot.slane %v2367, 3
        %v2370 = vor.u32 %v2366, %v2369
        %v2371 = vrot.slane %v850, 2
        %v2372 = vrot.slane %v834, 3
        %v2373 = vor.u32 %v2371, %v2372
        %v2374 = vsel %vm2362, %v2370, %v2373
        %v2376 = vshrl.u32 %v2029, 16
        %v2378 = vrot.slane %v2376, 2
        %v2379 = vshll.u32 %v2029, 16
        %v2381 = vrot.slane %v2379, 3
        %v2382 = vor.u32 %v2378, %v2381
        %v2383 = vrot.slane %v858, 2
        %v2384 = vrot.slane %v846, 3
        %v2385 = vor.u32 %v2383, %v2384
        %v2386 = vsel %vm2362, %v2382, %v2385
        %v2387 = vrot.slane %v866, 2
        %v2388 = vrot.slane %v854, 3
        %v2389 = vor.u32 %v2387, %v2388
        %v2390 = vsel %vm2362, %v2373, %v2389
        %v2391 = vrot.slane %v874, 2
        %v2392 = vrot.slane %v862, 3
        %v2393 = vor.u32 %v2391, %v2392
        %v2394 = vsel %vm2362, %v2385, %v2393
        %v2395 = vrot.slane %v882, 2
        %v2396 = vrot.slane %v870, 3
        %v2397 = vor.u32 %v2395, %v2396
        %v2398 = vsel %vm2362, %v2389, %v2397
        %v2399 = vrot.slane %v890, 2
        %v2400 = vrot.slane %v878, 3
        %v2401 = vor.u32 %v2399, %v2400
        %v2402 = vsel %vm2362, %v2393, %v2401
        %v2403 = vrot.slane %v898, 2
        %v2404 = vrot.slane %v886, 3
        %v2405 = vor.u32 %v2403, %v2404
        %v2406 = vsel %vm2362, %v2397, %v2405
        %v2407 = vrot.slane %v906, 2
        %v2408 = vrot.slane %v894, 3
        %v2409 = vor.u32 %v2407, %v2408
        %v2410 = vsel %vm2362, %v2401, %v2409
        %v2411 = vrot.slane %v914, 2
        %v2412 = vrot.slane %v902, 3
        %v2413 = vor.u32 %v2411, %v2412
        %v2414 = vsel %vm2362, %v2405, %v2413
        %v2415 = vrot.slane %v922, 2
        %v2416 = vrot.slane %v910, 3
        %v2417 = vor.u32 %v2415, %v2416
        %v2418 = vsel %vm2362, %v2409, %v2417
        %v2419 = vrot.slane %v930, 2
        %v2420 = vrot.slane %v918, 3
        %v2421 = vor.u32 %v2419, %v2420
        %v2422 = vsel %vm2362, %v2413, %v2421
        %v2423 = vrot.slane %v938, 2
        %v2424 = vrot.slane %v926, 3
        %v2425 = vor.u32 %v2423, %v2424
        %v2426 = vsel %vm2362, %v2417, %v2425
        %v2427 = vrot.slane %v946, 2
        %v2428 = vrot.slane %v934, 3
        %v2429 = vor.u32 %v2427, %v2428
        %v2430 = vsel %vm2362, %v2421, %v2429
        %v2431 = vrot.slane %v954, 2
        %v2432 = vrot.slane %v942, 3
        %v2433 = vor.u32 %v2431, %v2432
        %v2434 = vsel %vm2362, %v2425, %v2433
        %v2436 = vshrl.u32 %v2327, 16
        %v2438 = vrot.slane %v2436, 2
        %v2439 = vshll.u32 %v2327, 16
        %v2441 = vrot.slane %v2439, 3
        %v2442 = vor.u32 %v2438, %v2441
        %v2443 = vsel %vm2362, %v2429, %v2442
        %v2445 = vshrl.u32 %v2328, 16
        %v2447 = vrot.slane %v2445, 2
        %v2448 = vshll.u32 %v2328, 16
        %v2450 = vrot.slane %v2448, 3
        %v2451 = vor.u32 %v2447, %v2450
        %v2452 = vsel %vm2362, %v2433, %v2451
        %v2501 = vunpack.c.l.b16 %v2330
        %v2502 = vunpack.c.l.b16 %v2331
        %v2503 = vunpack.c.l.b16 %v2332
        %v2504 = vunpack.c.l.b16 %v2333
        %v2505 = vunpack.c.l.b16 %v2334
        %v2506 = vunpack.c.l.b16 %v2335
        %v2507 = vunpack.c.l.b16 %v2336
        %v2508 = vunpack.c.l.b16 %v2337
        %v2509 = vunpack.c.l.b16 %v2338
        %v2510 = vunpack.c.l.b16 %v2339
        %v2511 = vunpack.c.l.b16 %v2340
        %v2512 = vunpack.c.l.b16 %v2341
        %v2513 = vunpack.c.l.b16 %v2342
        %v2514 = vunpack.c.l.b16 %v2343
        %v2515 = vunpack.c.l.b16 %v2344
        %v2516 = vunpack.c.l.b16 %v2345
        %v2517 = vunpack.c.l.b16 %v2346
        %v2518 = vunpack.c.l.b16 %v2347
        %v2519 = vunpack.c.l.b16 %v2348
        %v2520 = vunpack.c.l.b16 %v2349
        %v2521 = vunpack.c.l.b16 %v2350
        %v2522 = vunpack.c.l.b16 %v2351
        %v2523 = vunpack.c.l.b16 %v2352
        %v2524 = vunpack.c.l.b16 %v2353
        %v2525 = vunpack.c.l.b16 %v2354
        %v2526 = vunpack.c.l.b16 %v2355
        %v2527 = vunpack.c.l.b16 %v2356
        %v2528 = vunpack.c.l.b16 %v2357
        %v2529 = vunpack.c.l.b16 %v2358
        %v2530 = vunpack.c.l.b16 %v2359
        %v2531 = vunpack.c.l.b16 %v2360
        %v2532 = vunpack.c.l.b16 %v2361
        %v2533 = vpack.c.b16 %v2502, %v2501
        %v2534 = vpack.c.b16 %v2504, %v2503
        %v2535 = vpack.c.b16 %v2506, %v2505
        %v2536 = vpack.c.b16 %v2508, %v2507
        %v2537 = vpack.c.b16 %v2510, %v2509
        %v2538 = vpack.c.b16 %v2512, %v2511
        %v2539 = vpack.c.b16 %v2514, %v2513
        %v2540 = vpack.c.b16 %v2516, %v2515
        %v2541 = vpack.c.b16 %v2518, %v2517
        %v2542 = vpack.c.b16 %v2520, %v2519
        %v2543 = vpack.c.b16 %v2522, %v2521
        %v2544 = vpack.c.b16 %v2524, %v2523
        %v2545 = vpack.c.b16 %v2526, %v2525
        %v2546 = vpack.c.b16 %v2528, %v2527
        %v2547 = vpack.c.b16 %v2530, %v2529
        %v2548 = vpack.c.b16 %v2532, %v2531
        %2565 = vmatprep.subr.bf16.mxu0 0
        %2566 = vmatpush1.bf16.msra.mxu0 %v2533
        %2567 = vmatprep.subr.bf16.mxu0 0
        %2568 = vmatpush1.bf16.msra.mxu0 %v2534
        %2569 = vmatprep.subr.bf16.mxu0 0
        %2570 = vmatpush1.bf16.msra.mxu0 %v2535
        %2571 = vmatprep.subr.bf16.mxu0 0
        %2572 = vmatpush1.bf16.msra.mxu0 %v2536
        %2573 = vmatprep.subr.bf16.mxu0 0
        %2574 = vmatpush1.bf16.msra.mxu0 %v2537
        %2575 = vmatprep.subr.bf16.mxu0 0
        %2576 = vmatpush1.bf16.msra.mxu0 %v2538
        %2577 = vmatprep.subr.bf16.mxu0 0
        %2578 = vmatpush1.bf16.msra.mxu0 %v2539
        %2579 = vmatprep.subr.bf16.mxu0 0
        %2580 = vmatpush1.bf16.msra.mxu0 %v2540
        %2581 = vmatprep.subr.bf16.mxu0 0
        %2582 = vmatpush1.bf16.msra.mxu0 %v2541
        %2583 = vmatprep.subr.bf16.mxu0 0
        %2584 = vmatpush1.bf16.msra.mxu0 %v2542
        %2585 = vmatprep.subr.bf16.mxu0 0
        %2586 = vmatpush1.bf16.msra.mxu0 %v2543
        %2587 = vmatprep.subr.bf16.mxu0 0
        %2588 = vmatpush1.bf16.msra.mxu0 %v2544
        %2589 = vmatprep.subr.bf16.mxu0 0
        %2590 = vmatpush1.bf16.msra.mxu0 %v2545
        %2591 = vmatprep.subr.bf16.mxu0 0
        %2592 = vmatpush1.bf16.msra.mxu0 %v2546
        %2593 = vmatprep.subr.bf16.mxu0 0
        %2594 = vmatpush1.bf16.msra.mxu0 %v2547
        %2595 = vmatprep.subr.bf16.mxu0 0
        %2596 = vmatpush1.bf16.msra.mxu0 %v2548
        %2597 = vmatprep.mubr.bf16.mxu0 %v2386
        %2598 = vmatmul.mubr.bf16.gmra.mrb[0].mxu0 %v2374
        %v2599 = vpop.f32.mrb[0].mxu0
        %v2600 = vadd.f32 0.0, %v2599
        %v2601 = vpop.f32.mrb[0].mxu0
        %v2602 = vpop.f32.mrb[0].mxu0
        %v2603 = vadd.f32 0.0, %v2602
        %v2604 = vpop.f32.mrb[0].mxu0
        %2605 = vmatprep.mubr.bf16.mxu0 %v2394
        %2606 = vmatmul.mubr.bf16.gmra.mrb[0].mxu0 %v2390
        %v2607 = vpop.f32.mrb[0].mxu0
        %v2608 = vadd.f32 0.0, %v2607
        %v2609 = vpop.f32.mrb[0].mxu0
        %v2610 = vpop.f32.mrb[0].mxu0
        %v2611 = vadd.f32 0.0, %v2610
        %v2612 = vpop.f32.mrb[0].mxu0
        %2613 = vmatprep.mubr.bf16.mxu0 %v2402
        %2614 = vmatmul.mubr.bf16.gmra.mrb[0].mxu0 %v2398
        %v2615 = vpop.f32.mrb[0].mxu0
        %v2616 = vadd.f32 0.0, %v2615
        %v2617 = vpop.f32.mrb[0].mxu0
        %v2618 = vpop.f32.mrb[0].mxu0
        %v2619 = vadd.f32 0.0, %v2618
        %v2620 = vpop.f32.mrb[0].mxu0
        %2621 = vmatprep.mubr.bf16.mxu0 %v2410
        %2622 = vmatmul.mubr.bf16.gmra.mrb[0].mxu0 %v2406
        %v2623 = vpop.f32.mrb[0].mxu0
        %v2624 = vadd.f32 0.0, %v2623
        %v2625 = vpop.f32.mrb[0].mxu0
        %v2626 = vpop.f32.mrb[0].mxu0
        %v2627 = vadd.f32 0.0, %v2626
        %v2628 = vpop.f32.mrb[0].mxu0
        %2629 = vmatprep.mubr.bf16.mxu0 %v2418
        %2630 = vmatmul.mubr.bf16.gmra.mrb[0].mxu0 %v2414
        %v2631 = vpop.f32.mrb[0].mxu0
        %v2632 = vadd.f32 0.0, %v2631
        %v2633 = vpop.f32.mrb[0].mxu0
        %v2634 = vpop.f32.mrb[0].mxu0
        %v2635 = vadd.f32 0.0, %v2634
        %v2636 = vpop.f32.mrb[0].mxu0
        %2637 = vmatprep.mubr.bf16.mxu0 %v2426
        %2638 = vmatmul.mubr.bf16.gmra.mrb[0].mxu0 %v2422
        %v2639 = vpop.f32.mrb[0].mxu0
        %v2640 = vadd.f32 0.0, %v2639
        %v2641 = vpop.f32.mrb[0].mxu0
        %v2642 = vpop.f32.mrb[0].mxu0
        %v2643 = vadd.f32 0.0, %v2642
        %v2644 = vpop.f32.mrb[0].mxu0
        %2645 = vmatprep.mubr.bf16.mxu0 %v2434
        %2646 = vmatmul.mubr.bf16.gmra.mrb[0].mxu0 %v2430
        %v2647 = vpop.f32.mrb[0].mxu0
        %v2648 = vadd.f32 0.0, %v2647
        %v2649 = vpop.f32.mrb[0].mxu0
        %v2650 = vpop.f32.mrb[0].mxu0
        %v2651 = vadd.f32 0.0, %v2650
        %v2652 = vpop.f32.mrb[0].mxu0
        %2653 = vmatprep.mubr.bf16.mxu0 %v2452
        %2654 = vmatmul.mubr.bf16.gmra.mrb[0].mxu0 %v2443
        %v2655 = vpop.f32.mrb[0].mxu0
        %v2656 = vadd.f32 0.0, %v2655
        %v2657 = vpop.f32.mrb[0].mxu0
        %v2658 = vpop.f32.mrb[0].mxu0
        %v2659 = vadd.f32 0.0, %v2658
        %v2660 = vpop.f32.mrb[0].mxu0
        %2661 = vdwg.mxu0
        %v2662 = vadd.f32 %v2311, %v2600
        %v2663 = vadd.f32 %v2312, %v2603
        %v2664 = vadd.f32 %v2313, %v2608
        %v2665 = vadd.f32 %v2314, %v2611
        %v2666 = vadd.f32 %v2315, %v2616
        %v2667 = vadd.f32 %v2316, %v2619
        %v2668 = vadd.f32 %v2317, %v2624
        %v2669 = vadd.f32 %v2318, %v2627
        %v2670 = vadd.f32 %v2319, %v2632
        %v2671 = vadd.f32 %v2320, %v2635
        %v2672 = vadd.f32 %v2321, %v2640
        %v2673 = vadd.f32 %v2322, %v2643
        %v2674 = vadd.f32 %v2323, %v2648
        %v2675 = vadd.f32 %v2324, %v2651
        %v2676 = vadd.f32 %v2325, %v2656
        %v2677 = vadd.f32 %v2326, %v2659
        %v2678 = vld [vmem:[#allocation2] sm:$0xf8]
        %v2679 = vld [vmem:[#allocation2 + $0x8] sm:$0xf8]
        %s2680 = scalar_lea.vmem [#allocation6], 768
        %v2681 = vld [vmem:[%s2680] sm:$0xf]
        %v2682 = vld [vmem:[%s2680 + $0x4] sm:$0xf]
        %v2683 = vld [vmem:[%s2680 + $0x8] sm:$0xf]
        %v2684 = vld [vmem:[%s2680 + $0xc] sm:$0xf]
        %v2685 = vld [vmem:[%s2680 + $0x10] sm:$0xf]
        %v2686 = vld [vmem:[%s2680 + $0x14] sm:$0xf]
        %v2687 = vld [vmem:[%s2680 + $0x18] sm:$0xf]
        %v2688 = vld [vmem:[%s2680 + $0x1c] sm:$0xf]
        %v2689 = vld [vmem:[%s2680 + $0x20] sm:$0xf]
        %v2690 = vld [vmem:[%s2680 + $0x24] sm:$0xf]
        %v2691 = vld [vmem:[%s2680 + $0x28] sm:$0xf]
        %v2692 = vld [vmem:[%s2680 + $0x2c] sm:$0xf]
        %v2693 = vld [vmem:[%s2680 + $0x30] sm:$0xf]
        %v2694 = vld [vmem:[%s2680 + $0x34] sm:$0xf]
        %v2695 = vld [vmem:[%s2680 + $0x38] sm:$0xf]
        %v2696 = vld [vmem:[%s2680 + $0x3c] sm:$0xf]
        %v2697 = vld [vmem:[%s2680 + $0x40] sm:$0xf]
        %v2698 = vld [vmem:[%s2680 + $0x44] sm:$0xf]
        %v2699 = vld [vmem:[%s2680 + $0x48] sm:$0xf]
        %v2700 = vld [vmem:[%s2680 + $0x4c] sm:$0xf]
        %v2701 = vld [vmem:[%s2680 + $0x50] sm:$0xf]
        %v2702 = vld [vmem:[%s2680 + $0x54] sm:$0xf]
        %v2703 = vld [vmem:[%s2680 + $0x58] sm:$0xf]
        %v2704 = vld [vmem:[%s2680 + $0x5c] sm:$0xf]
        %v2705 = vld [vmem:[%s2680 + $0x60] sm:$0xf]
        %v2706 = vld [vmem:[%s2680 + $0x64] sm:$0xf]
        %v2707 = vld [vmem:[%s2680 + $0x68] sm:$0xf]
        %v2708 = vld [vmem:[%s2680 + $0x6c] sm:$0xf]
        %v2709 = vld [vmem:[%s2680 + $0x70] sm:$0xf]
        %v2710 = vld [vmem:[%s2680 + $0x74] sm:$0xf]
        %v2711 = vld [vmem:[%s2680 + $0x78] sm:$0xf]
        %v2712 = vld [vmem:[%s2680 + $0x7c] sm:$0xf]
        %vm2717 = vcmask 1044480
        %v2718 = vrot.slane %v2678, 3
        %v2719 = vrot.slane %v744, 3
        %v2720 = vsel %vm2717, %v2718, %v2719
        %v2721 = vrot.slane %v2679, 3
        %v2722 = vrot.slane %v745, 3
        %v2723 = vsel %vm2717, %v2721, %v2722
        %v2724 = vrot.slane %v746, 3
        %v2725 = vsel %vm2717, %v2719, %v2724
        %v2726 = vrot.slane %v747, 3
        %v2727 = vsel %vm2717, %v2722, %v2726
        %v2728 = vrot.slane %v748, 3
        %v2729 = vsel %vm2717, %v2724, %v2728
        %v2730 = vrot.slane %v749, 3
        %v2731 = vsel %vm2717, %v2726, %v2730
        %v2732 = vrot.slane %v750, 3
        %v2733 = vsel %vm2717, %v2728, %v2732
        %v2734 = vrot.slane %v751, 3
        %v2735 = vsel %vm2717, %v2730, %v2734
        %v2736 = vrot.slane %v752, 3
        %v2737 = vsel %vm2717, %v2732, %v2736
        %v2738 = vrot.slane %v753, 3
        %v2739 = vsel %vm2717, %v2734, %v2738
        %v2740 = vrot.slane %v754, 3
        %v2741 = vsel %vm2717, %v2736, %v2740
        %v2742 = vrot.slane %v755, 3
        %v2743 = vsel %vm2717, %v2738, %v2742
        %v2744 = vrot.slane %v756, 3
        %v2745 = vsel %vm2717, %v2740, %v2744
        %v2746 = vrot.slane %v757, 3
        %v2747 = vsel %vm2717, %v2742, %v2746
        %v2748 = vrot.slane %v2327, 3
        %v2749 = vsel %vm2717, %v2744, %v2748
        %v2750 = vrot.slane %v2328, 3
        %v2751 = vsel %vm2717, %v2746, %v2750
        %v2800 = vunpack.c.l.b16 %v2681
        %v2801 = vunpack.c.l.b16 %v2682
        %v2802 = vunpack.c.l.b16 %v2683
        %v2803 = vunpack.c.l.b16 %v2684
        %v2804 = vunpack.c.l.b16 %v2685
        %v2805 = vunpack.c.l.b16 %v2686
        %v2806 = vunpack.c.l.b16 %v2687
        %v2807 = vunpack.c.l.b16 %v2688
        %v2808 = vunpack.c.l.b16 %v2689
        %v2809 = vunpack.c.l.b16 %v2690
        %v2810 = vunpack.c.l.b16 %v2691
        %v2811 = vunpack.c.l.b16 %v2692
        %v2812 = vunpack.c.l.b16 %v2693
        %v2813 = vunpack.c.l.b16 %v2694
        %v2814 = vunpack.c.l.b16 %v2695
        %v2815 = vunpack.c.l.b16 %v2696
        %v2816 = vunpack.c.l.b16 %v2697
        %v2817 = vunpack.c.l.b16 %v2698
        %v2818 = vunpack.c.l.b16 %v2699
        %v2819 = vunpack.c.l.b16 %v2700
        %v2820 = vunpack.c.l.b16 %v2701
        %v2821 = vunpack.c.l.b16 %v2702
        %v2822 = vunpack.c.l.b16 %v2703
        %v2823 = vunpack.c.l.b16 %v2704
        %v2824 = vunpack.c.l.b16 %v2705
        %v2825 = vunpack.c.l.b16 %v2706
        %v2826 = vunpack.c.l.b16 %v2707
        %v2827 = vunpack.c.l.b16 %v2708
        %v2828 = vunpack.c.l.b16 %v2709
        %v2829 = vunpack.c.l.b16 %v2710
        %v2830 = vunpack.c.l.b16 %v2711
        %v2831 = vunpack.c.l.b16 %v2712
        %v2832 = vpack.c.b16 %v2801, %v2800
        %v2833 = vpack.c.b16 %v2803, %v2802
        %v2834 = vpack.c.b16 %v2805, %v2804
        %v2835 = vpack.c.b16 %v2807, %v2806
        %v2836 = vpack.c.b16 %v2809, %v2808
        %v2837 = vpack.c.b16 %v2811, %v2810
        %v2838 = vpack.c.b16 %v2813, %v2812
        %v2839 = vpack.c.b16 %v2815, %v2814
        %v2840 = vpack.c.b16 %v2817, %v2816
        %v2841 = vpack.c.b16 %v2819, %v2818
        %v2842 = vpack.c.b16 %v2821, %v2820
        %v2843 = vpack.c.b16 %v2823, %v2822
        %v2844 = vpack.c.b16 %v2825, %v2824
        %v2845 = vpack.c.b16 %v2827, %v2826
        %v2846 = vpack.c.b16 %v2829, %v2828
        %v2847 = vpack.c.b16 %v2831, %v2830
        %2864 = vmatprep.subr.bf16.mxu0 0
        %2865 = vmatpush1.bf16.msra.mxu0 %v2832
        %2866 = vmatprep.subr.bf16.mxu0 0
        %2867 = vmatpush1.bf16.msra.mxu0 %v2833
        %2868 = vmatprep.subr.bf16.mxu0 0
        %2869 = vmatpush1.bf16.msra.mxu0 %v2834
        %2870 = vmatprep.subr.bf16.mxu0 0
        %2871 = vmatpush1.bf16.msra.mxu0 %v2835
        %2872 = vmatprep.subr.bf16.mxu0 0
        %2873 = vmatpush1.bf16.msra.mxu0 %v2836
        %2874 = vmatprep.subr.bf16.mxu0 0
        %2875 = vmatpush1.bf16.msra.mxu0 %v2837
        %2876 = vmatprep.subr.bf16.mxu0 0
        %2877 = vmatpush1.bf16.msra.mxu0 %v2838
        %2878 = vmatprep.subr.bf16.mxu0 0
        %2879 = vmatpush1.bf16.msra.mxu0 %v2839
        %2880 = vmatprep.subr.bf16.mxu0 0
        %2881 = vmatpush1.bf16.msra.mxu0 %v2840
        %2882 = vmatprep.subr.bf16.mxu0 0
        %2883 = vmatpush1.bf16.msra.mxu0 %v2841
        %2884 = vmatprep.subr.bf16.mxu0 0
        %2885 = vmatpush1.bf16.msra.mxu0 %v2842
        %2886 = vmatprep.subr.bf16.mxu0 0
        %2887 = vmatpush1.bf16.msra.mxu0 %v2843
        %2888 = vmatprep.subr.bf16.mxu0 0
        %2889 = vmatpush1.bf16.msra.mxu0 %v2844
        %2890 = vmatprep.subr.bf16.mxu0 0
        %2891 = vmatpush1.bf16.msra.mxu0 %v2845
        %2892 = vmatprep.subr.bf16.mxu0 0
        %2893 = vmatpush1.bf16.msra.mxu0 %v2846
        %2894 = vmatprep.subr.bf16.mxu0 0
        %2895 = vmatpush1.bf16.msra.mxu0 %v2847
        %2896 = vmatprep.mubr.bf16.mxu0 %v2723
        %2897 = vmatmul.mubr.bf16.gmra.mrb[0].mxu0 %v2720
        %v2898 = vpop.f32.mrb[0].mxu0
        %v2899 = vadd.f32 0.0, %v2898
        %v2900 = vpop.f32.mrb[0].mxu0
        %v2901 = vpop.f32.mrb[0].mxu0
        %v2902 = vadd.f32 0.0, %v2901
        %v2903 = vpop.f32.mrb[0].mxu0
        %2904 = vmatprep.mubr.bf16.mxu0 %v2727
        %2905 = vmatmul.mubr.bf16.gmra.mrb[0].mxu0 %v2725
        %v2906 = vpop.f32.mrb[0].mxu0
        %v2907 = vadd.f32 0.0, %v2906
        %v2908 = vpop.f32.mrb[0].mxu0
        %v2909 = vpop.f32.mrb[0].mxu0
        %v2910 = vadd.f32 0.0, %v2909
        %v2911 = vpop.f32.mrb[0].mxu0
        %2912 = vmatprep.mubr.bf16.mxu0 %v2731
        %2913 = vmatmul.mubr.bf16.gmra.mrb[0].mxu0 %v2729
        %v2914 = vpop.f32.mrb[0].mxu0
        %v2915 = vadd.f32 0.0, %v2914
        %v2916 = vpop.f32.mrb[0].mxu0
        %v2917 = vpop.f32.mrb[0].mxu0
        %v2918 = vadd.f32 0.0, %v2917
        %v2919 = vpop.f32.mrb[0].mxu0
        %2920 = vmatprep.mubr.bf16.mxu0 %v2735
        %2921 = vmatmul.mubr.bf16.gmra.mrb[0].mxu0 %v2733
        %v2922 = vpop.f32.mrb[0].mxu0
        %v2923 = vadd.f32 0.0, %v2922
        %v2924 = vpop.f32.mrb[0].mxu0
        %v2925 = vpop.f32.mrb[0].mxu0
        %v2926 = vadd.f32 0.0, %v2925
        %v2927 = vpop.f32.mrb[0].mxu0
        %2928 = vmatprep.mubr.bf16.mxu0 %v2739
        %2929 = vmatmul.mubr.bf16.gmra.mrb[0].mxu0 %v2737
        %v2930 = vpop.f32.mrb[0].mxu0
        %v2931 = vadd.f32 0.0, %v2930
        %v2932 = vpop.f32.mrb[0].mxu0
        %v2933 = vpop.f32.mrb[0].mxu0
        %v2934 = vadd.f32 0.0, %v2933
        %v2935 = vpop.f32.mrb[0].mxu0
        %2936 = vmatprep.mubr.bf16.mxu0 %v2743
        %2937 = vmatmul.mubr.bf16.gmra.mrb[0].mxu0 %v2741
        %v2938 = vpop.f32.mrb[0].mxu0
        %v2939 = vadd.f32 0.0, %v2938
        %v2940 = vpop.f32.mrb[0].mxu0
        %v2941 = vpop.f32.mrb[0].mxu0
        %v2942 = vadd.f32 0.0, %v2941
        %v2943 = vpop.f32.mrb[0].mxu0
        %2944 = vmatprep.mubr.bf16.mxu0 %v2747
        %2945 = vmatmul.mubr.bf16.gmra.mrb[0].mxu0 %v2745
        %v2946 = vpop.f32.mrb[0].mxu0
        %v2947 = vadd.f32 0.0, %v2946
        %v2948 = vpop.f32.mrb[0].mxu0
        %v2949 = vpop.f32.mrb[0].mxu0
        %v2950 = vadd.f32 0.0, %v2949
        %v2951 = vpop.f32.mrb[0].mxu0
        %2952 = vmatprep.mubr.bf16.mxu0 %v2751
        %2953 = vmatmul.mubr.bf16.gmra.mrb[0].mxu0 %v2749
        %v2954 = vpop.f32.mrb[0].mxu0
        %v2955 = vadd.f32 0.0, %v2954
        %v2956 = vpop.f32.mrb[0].mxu0
        %v2957 = vpop.f32.mrb[0].mxu0
        %v2958 = vadd.f32 0.0, %v2957
        %v2959 = vpop.f32.mrb[0].mxu0
        %2960 = vdwg.mxu0
        %v2961 = vadd.f32 %v2662, %v2899
        %v2962 = vadd.f32 %v2663, %v2902
        %v2963 = vadd.f32 %v2664, %v2907
        %v2964 = vadd.f32 %v2665, %v2910
        %v2965 = vadd.f32 %v2666, %v2915
        %v2966 = vadd.f32 %v2667, %v2918
        %v2967 = vadd.f32 %v2668, %v2923
        %v2968 = vadd.f32 %v2669, %v2926
        %v2969 = vadd.f32 %v2670, %v2931
        %v2970 = vadd.f32 %v2671, %v2934
        %v2971 = vadd.f32 %v2672, %v2939
        %v2972 = vadd.f32 %v2673, %v2942
        %v2973 = vadd.f32 %v2674, %v2947
        %v2974 = vadd.f32 %v2675, %v2950
        %v2975 = vadd.f32 %v2676, %v2955
        %v2976 = vadd.f32 %v2677, %v2958
        %v2977 = vld [vmem:[#allocation2 + $0x80] sm:$0xf]
        %v2978 = vld [vmem:[#allocation2 + $0x88] sm:$0xf]
        %s2979 = scalar_lea.vmem [#allocation6], 896
        %v2980 = vld [vmem:[%s2979] sm:$0xf]
        %v2981 = vld [vmem:[%s2979 + $0x4] sm:$0xf]
        %v2982 = vld [vmem:[%s2979 + $0x8] sm:$0xf]
        %v2983 = vld [vmem:[%s2979 + $0xc] sm:$0xf]
        %v2984 = vld [vmem:[%s2979 + $0x10] sm:$0xf]
        %v2985 = vld [vmem:[%s2979 + $0x14] sm:$0xf]
        %v2986 = vld [vmem:[%s2979 + $0x18] sm:$0xf]
        %v2987 = vld [vmem:[%s2979 + $0x1c] sm:$0xf]
        %v2988 = vld [vmem:[%s2979 + $0x20] sm:$0xf]
        %v2989 = vld [vmem:[%s2979 + $0x24] sm:$0xf]
        %v2990 = vld [vmem:[%s2979 + $0x28] sm:$0xf]
        %v2991 = vld [vmem:[%s2979 + $0x2c] sm:$0xf]
        %v2992 = vld [vmem:[%s2979 + $0x30] sm:$0xf]
        %v2993 = vld [vmem:[%s2979 + $0x34] sm:$0xf]
        %v2994 = vld [vmem:[%s2979 + $0x38] sm:$0xf]
        %v2995 = vld [vmem:[%s2979 + $0x3c] sm:$0xf]
        %v2996 = vld [vmem:[%s2979 + $0x40] sm:$0xf]
        %v2997 = vld [vmem:[%s2979 + $0x44] sm:$0xf]
        %v2998 = vld [vmem:[%s2979 + $0x48] sm:$0xf]
        %v2999 = vld [vmem:[%s2979 + $0x4c] sm:$0xf]
        %v3000 = vld [vmem:[%s2979 + $0x50] sm:$0xf]
        %v3001 = vld [vmem:[%s2979 + $0x54] sm:$0xf]
        %v3002 = vld [vmem:[%s2979 + $0x58] sm:$0xf]
        %v3003 = vld [vmem:[%s2979 + $0x5c] sm:$0xf]
        %v3004 = vld [vmem:[%s2979 + $0x60] sm:$0xf]
        %v3005 = vld [vmem:[%s2979 + $0x64] sm:$0xf]
        %v3006 = vld [vmem:[%s2979 + $0x68] sm:$0xf]
        %v3007 = vld [vmem:[%s2979 + $0x6c] sm:$0xf]
        %v3008 = vld [vmem:[%s2979 + $0x70] sm:$0xf]
        %v3009 = vld [vmem:[%s2979 + $0x74] sm:$0xf]
        %v3010 = vld [vmem:[%s2979 + $0x78] sm:$0xf]
        %v3011 = vld [vmem:[%s2979 + $0x7c] sm:$0xf]
        %vm3012 = vsmask.f32 4352
        %v3014 = vshrl.u32 %v2678, 16
        %v3016 = vrot.slane %v3014, 3
        %v3017 = vshll.u32 %v2678, 16
        %v3019 = vrot.slane %v3017, 4
        %v3020 = vor.u32 %v3016, %v3019
        %v3021 = vrot.slane %v850, 3
        %v3022 = vrot.slane %v834, 4
        %v3023 = vor.u32 %v3021, %v3022
        %v3024 = vsel %vm3012, %v3020, %v3023
        %v3026 = vshrl.u32 %v2679, 16
        %v3028 = vrot.slane %v3026, 3
        %v3029 = vshll.u32 %v2679, 16
        %v3031 = vrot.slane %v3029, 4
        %v3032 = vor.u32 %v3028, %v3031
        %v3033 = vrot.slane %v858, 3
        %v3034 = vrot.slane %v846, 4
        %v3035 = vor.u32 %v3033, %v3034
        %v3036 = vsel %vm3012, %v3032, %v3035
        %v3037 = vrot.slane %v866, 3
        %v3038 = vrot.slane %v854, 4
        %v3039 = vor.u32 %v3037, %v3038
        %v3040 = vsel %vm3012, %v3023, %v3039
        %v3041 = vrot.slane %v874, 3
        %v3042 = vrot.slane %v862, 4
        %v3043 = vor.u32 %v3041, %v3042
        %v3044 = vsel %vm3012, %v3035, %v3043
        %v3045 = vrot.slane %v882, 3
        %v3046 = vrot.slane %v870, 4
        %v3047 = vor.u32 %v3045, %v3046
        %v3048 = vsel %vm3012, %v3039, %v3047
        %v3049 = vrot.slane %v890, 3
        %v3050 = vrot.slane %v878, 4
        %v3051 = vor.u32 %v3049, %v3050
        %v3052 = vsel %vm3012, %v3043, %v3051
        %v3053 = vrot.slane %v898, 3
        %v3054 = vrot.slane %v886, 4
        %v3055 = vor.u32 %v3053, %v3054
        %v3056 = vsel %vm3012, %v3047, %v3055
        %v3057 = vrot.slane %v906, 3
        %v3058 = vrot.slane %v894, 4
        %v3059 = vor.u32 %v3057, %v3058
        %v3060 = vsel %vm3012, %v3051, %v3059
        %v3061 = vrot.slane %v914, 3
        %v3062 = vrot.slane %v902, 4
        %v3063 = vor.u32 %v3061, %v3062
        %v3064 = vsel %vm3012, %v3055, %v3063
        %v3065 = vrot.slane %v922, 3
        %v3066 = vrot.slane %v910, 4
        %v3067 = vor.u32 %v3065, %v3066
        %v3068 = vsel %vm3012, %v3059, %v3067
        %v3069 = vrot.slane %v930, 3
        %v3070 = vrot.slane %v918, 4
        %v3071 = vor.u32 %v3069, %v3070
        %v3072 = vsel %vm3012, %v3063, %v3071
        %v3073 = vrot.slane %v938, 3
        %v3074 = vrot.slane %v926, 4
        %v3075 = vor.u32 %v3073, %v3074
        %v3076 = vsel %vm3012, %v3067, %v3075
        %v3077 = vrot.slane %v946, 3
        %v3078 = vrot.slane %v934, 4
        %v3079 = vor.u32 %v3077, %v3078
        %v3080 = vsel %vm3012, %v3071, %v3079
        %v3081 = vrot.slane %v954, 3
        %v3082 = vrot.slane %v942, 4
        %v3083 = vor.u32 %v3081, %v3082
        %v3084 = vsel %vm3012, %v3075, %v3083
        %v3086 = vshrl.u32 %v2977, 16
        %v3088 = vrot.slane %v3086, 3
        %v3089 = vshll.u32 %v2977, 16
        %v3091 = vrot.slane %v3089, 4
        %v3092 = vor.u32 %v3088, %v3091
        %v3093 = vsel %vm3012, %v3079, %v3092
        %v3095 = vshrl.u32 %v2978, 16
        %v3097 = vrot.slane %v3095, 3
        %v3098 = vshll.u32 %v2978, 16
        %v3100 = vrot.slane %v3098, 4
        %v3101 = vor.u32 %v3097, %v3100
        %v3102 = vsel %vm3012, %v3083, %v3101
        %v3151 = vunpack.c.l.b16 %v2980
        %v3152 = vunpack.c.l.b16 %v2981
        %v3153 = vunpack.c.l.b16 %v2982
        %v3154 = vunpack.c.l.b16 %v2983
        %v3155 = vunpack.c.l.b16 %v2984
        %v3156 = vunpack.c.l.b16 %v2985
        %v3157 = vunpack.c.l.b16 %v2986
        %v3158 = vunpack.c.l.b16 %v2987
        %v3159 = vunpack.c.l.b16 %v2988
        %v3160 = vunpack.c.l.b16 %v2989
        %v3161 = vunpack.c.l.b16 %v2990
        %v3162 = vunpack.c.l.b16 %v2991
        %v3163 = vunpack.c.l.b16 %v2992
        %v3164 = vunpack.c.l.b16 %v2993
        %v3165 = vunpack.c.l.b16 %v2994
        %v3166 = vunpack.c.l.b16 %v2995
        %v3167 = vunpack.c.l.b16 %v2996
        %v3168 = vunpack.c.l.b16 %v2997
        %v3169 = vunpack.c.l.b16 %v2998
        %v3170 = vunpack.c.l.b16 %v2999
        %v3171 = vunpack.c.l.b16 %v3000
        %v3172 = vunpack.c.l.b16 %v3001
        %v3173 = vunpack.c.l.b16 %v3002
        %v3174 = vunpack.c.l.b16 %v3003
        %v3175 = vunpack.c.l.b16 %v3004
        %v3176 = vunpack.c.l.b16 %v3005
        %v3177 = vunpack.c.l.b16 %v3006
        %v3178 = vunpack.c.l.b16 %v3007
        %v3179 = vunpack.c.l.b16 %v3008
        %v3180 = vunpack.c.l.b16 %v3009
        %v3181 = vunpack.c.l.b16 %v3010
        %v3182 = vunpack.c.l.b16 %v3011
        %v3183 = vpack.c.b16 %v3152, %v3151
        %v3184 = vpack.c.b16 %v3154, %v3153
        %v3185 = vpack.c.b16 %v3156, %v3155
        %v3186 = vpack.c.b16 %v3158, %v3157
        %v3187 = vpack.c.b16 %v3160, %v3159
        %v3188 = vpack.c.b16 %v3162, %v3161
        %v3189 = vpack.c.b16 %v3164, %v3163
        %v3190 = vpack.c.b16 %v3166, %v3165
        %v3191 = vpack.c.b16 %v3168, %v3167
        %v3192 = vpack.c.b16 %v3170, %v3169
        %v3193 = vpack.c.b16 %v3172, %v3171
        %v3194 = vpack.c.b16 %v3174, %v3173
        %v3195 = vpack.c.b16 %v3176, %v3175
        %v3196 = vpack.c.b16 %v3178, %v3177
        %v3197 = vpack.c.b16 %v3180, %v3179
        %v3198 = vpack.c.b16 %v3182, %v3181
        %3215 = vmatprep.subr.bf16.mxu0 0
        %3216 = vmatpush1.bf16.msra.mxu0 %v3183
        %3217 = vmatprep.subr.bf16.mxu0 0
        %3218 = vmatpush1.bf16.msra.mxu0 %v3184
        %3219 = vmatprep.subr.bf16.mxu0 0
        %3220 = vmatpush1.bf16.msra.mxu0 %v3185
        %3221 = vmatprep.subr.bf16.mxu0 0
        %3222 = vmatpush1.bf16.msra.mxu0 %v3186
        %3223 = vmatprep.subr.bf16.mxu0 0
        %3224 = vmatpush1.bf16.msra.mxu0 %v3187
        %3225 = vmatprep.subr.bf16.mxu0 0
        %3226 = vmatpush1.bf16.msra.mxu0 %v3188
        %3227 = vmatprep.subr.bf16.mxu0 0
        %3228 = vmatpush1.bf16.msra.mxu0 %v3189
        %3229 = vmatprep.subr.bf16.mxu0 0
        %3230 = vmatpush1.bf16.msra.mxu0 %v3190
        %3231 = vmatprep.subr.bf16.mxu0 0
        %3232 = vmatpush1.bf16.msra.mxu0 %v3191
        %3233 = vmatprep.subr.bf16.mxu0 0
        %3234 = vmatpush1.bf16.msra.mxu0 %v3192
        %3235 = vmatprep.subr.bf16.mxu0 0
        %3236 = vmatpush1.bf16.msra.mxu0 %v3193
        %3237 = vmatprep.subr.bf16.mxu0 0
        %3238 = vmatpush1.bf16.msra.mxu0 %v3194
        %3239 = vmatprep.subr.bf16.mxu0 0
        %3240 = vmatpush1.bf16.msra.mxu0 %v3195
        %3241 = vmatprep.subr.bf16.mxu0 0
        %3242 = vmatpush1.bf16.msra.mxu0 %v3196
        %3243 = vmatprep.subr.bf16.mxu0 0
        %3244 = vmatpush1.bf16.msra.mxu0 %v3197
        %3245 = vmatprep.subr.bf16.mxu0 0
        %3246 = vmatpush1.bf16.msra.mxu0 %v3198
        %3247 = vmatprep.mubr.bf16.mxu0 %v3036
        %3248 = vmatmul.mubr.bf16.gmra.mrb[0].mxu0 %v3024
        %v3249 = vpop.f32.mrb[0].mxu0
        %v3250 = vadd.f32 0.0, %v3249
        %v3251 = vpop.f32.mrb[0].mxu0
        %v3252 = vpop.f32.mrb[0].mxu0
        %v3253 = vadd.f32 0.0, %v3252
        %v3254 = vpop.f32.mrb[0].mxu0
        %3255 = vmatprep.mubr.bf16.mxu0 %v3044
        %3256 = vmatmul.mubr.bf16.gmra.mrb[0].mxu0 %v3040
        %v3257 = vpop.f32.mrb[0].mxu0
        %v3258 = vadd.f32 0.0, %v3257
        %v3259 = vpop.f32.mrb[0].mxu0
        %v3260 = vpop.f32.mrb[0].mxu0
        %v3261 = vadd.f32 0.0, %v3260
        %v3262 = vpop.f32.mrb[0].mxu0
        %3263 = vmatprep.mubr.bf16.mxu0 %v3052
        %3264 = vmatmul.mubr.bf16.gmra.mrb[0].mxu0 %v3048
        %v3265 = vpop.f32.mrb[0].mxu0
        %v3266 = vadd.f32 0.0, %v3265
        %v3267 = vpop.f32.mrb[0].mxu0
        %v3268 = vpop.f32.mrb[0].mxu0
        %v3269 = vadd.f32 0.0, %v3268
        %v3270 = vpop.f32.mrb[0].mxu0
        %3271 = vmatprep.mubr.bf16.mxu0 %v3060
        %3272 = vmatmul.mubr.bf16.gmra.mrb[0].mxu0 %v3056
        %v3273 = vpop.f32.mrb[0].mxu0
        %v3274 = vadd.f32 0.0, %v3273
        %v3275 = vpop.f32.mrb[0].mxu0
        %v3276 = vpop.f32.mrb[0].mxu0
        %v3277 = vadd.f32 0.0, %v3276
        %v3278 = vpop.f32.mrb[0].mxu0
        %3279 = vmatprep.mubr.bf16.mxu0 %v3068
        %3280 = vmatmul.mubr.bf16.gmra.mrb[0].mxu0 %v3064
        %v3281 = vpop.f32.mrb[0].mxu0
        %v3282 = vadd.f32 0.0, %v3281
        %v3283 = vpop.f32.mrb[0].mxu0
        %v3284 = vpop.f32.mrb[0].mxu0
        %v3285 = vadd.f32 0.0, %v3284
        %v3286 = vpop.f32.mrb[0].mxu0
        %3287 = vmatprep.mubr.bf16.mxu0 %v3076
        %3288 = vmatmul.mubr.bf16.gmra.mrb[0].mxu0 %v3072
        %v3289 = vpop.f32.mrb[0].mxu0
        %v3290 = vadd.f32 0.0, %v3289
        %v3291 = vpop.f32.mrb[0].mxu0
        %v3292 = vpop.f32.mrb[0].mxu0
        %v3293 = vadd.f32 0.0, %v3292
        %v3294 = vpop.f32.mrb[0].mxu0
        %3295 = vmatprep.mubr.bf16.mxu0 %v3084
        %3296 = vmatmul.mubr.bf16.gmra.mrb[0].mxu0 %v3080
        %v3297 = vpop.f32.mrb[0].mxu0
        %v3298 = vadd.f32 0.0, %v3297
        %v3299 = vpop.f32.mrb[0].mxu0
        %v3300 = vpop.f32.mrb[0].mxu0
        %v3301 = vadd.f32 0.0, %v3300
        %v3302 = vpop.f32.mrb[0].mxu0
        %3303 = vmatprep.mubr.bf16.mxu0 %v3102
        %3304 = vmatmul.mubr.bf16.gmra.mrb[0].mxu0 %v3093
        %v3305 = vpop.f32.mrb[0].mxu0
        %v3306 = vadd.f32 0.0, %v3305
        %v3307 = vpop.f32.mrb[0].mxu0
        %v3308 = vpop.f32.mrb[0].mxu0
        %v3309 = vadd.f32 0.0, %v3308
        %v3310 = vpop.f32.mrb[0].mxu0
        %3311 = vdwg.mxu0
        %v3312 = vadd.f32 %v2961, %v3250
        %v3313 = vadd.f32 %v2962, %v3253
        %v3314 = vadd.f32 %v2963, %v3258
        %v3315 = vadd.f32 %v2964, %v3261
        %v3316 = vadd.f32 %v2965, %v3266
        %v3317 = vadd.f32 %v2966, %v3269
        %v3318 = vadd.f32 %v2967, %v3274
        %v3319 = vadd.f32 %v2968, %v3277
        %v3320 = vadd.f32 %v2969, %v3282
        %v3321 = vadd.f32 %v2970, %v3285
        %v3322 = vadd.f32 %v2971, %v3290
        %v3323 = vadd.f32 %v2972, %v3293
        %v3324 = vadd.f32 %v2973, %v3298
        %v3325 = vadd.f32 %v2974, %v3301
        %v3326 = vadd.f32 %v2975, %v3306
        %v3327 = vadd.f32 %v2976, %v3309
        %v3328 = vld [vmem:[#allocation2] sm:$0xf0]
        %v3329 = vld [vmem:[#allocation2 + $0x8] sm:$0xf0]
        %s3330 = scalar_lea.vmem [#allocation6], 1024
        %v3331 = vld [vmem:[%s3330] sm:$0xf]
        %v3332 = vld [vmem:[%s3330 + $0x4] sm:$0xf]
        %v3333 = vld [vmem:[%s3330 + $0x8] sm:$0xf]
        %v3334 = vld [vmem:[%s3330 + $0xc] sm:$0xf]
        %v3335 = vld [vmem:[%s3330 + $0x10] sm:$0xf]
        %v3336 = vld [vmem:[%s3330 + $0x14] sm:$0xf]
        %v3337 = vld [vmem:[%s3330 + $0x18] sm:$0xf]
        %v3338 = vld [vmem:[%s3330 + $0x1c] sm:$0xf]
        %v3339 = vld [vmem:[%s3330 + $0x20] sm:$0xf]
        %v3340 = vld [vmem:[%s3330 + $0x24] sm:$0xf]
        %v3341 = vld [vmem:[%s3330 + $0x28] sm:$0xf]
        %v3342 = vld [vmem:[%s3330 + $0x2c] sm:$0xf]
        %v3343 = vld [vmem:[%s3330 + $0x30] sm:$0xf]
        %v3344 = vld [vmem:[%s3330 + $0x34] sm:$0xf]
        %v3345 = vld [vmem:[%s3330 + $0x38] sm:$0xf]
        %v3346 = vld [vmem:[%s3330 + $0x3c] sm:$0xf]
        %v3347 = vld [vmem:[%s3330 + $0x40] sm:$0xf]
        %v3348 = vld [vmem:[%s3330 + $0x44] sm:$0xf]
        %v3349 = vld [vmem:[%s3330 + $0x48] sm:$0xf]
        %v3350 = vld [vmem:[%s3330 + $0x4c] sm:$0xf]
        %v3351 = vld [vmem:[%s3330 + $0x50] sm:$0xf]
        %v3352 = vld [vmem:[%s3330 + $0x54] sm:$0xf]
        %v3353 = vld [vmem:[%s3330 + $0x58] sm:$0xf]
        %v3354 = vld [vmem:[%s3330 + $0x5c] sm:$0xf]
        %v3355 = vld [vmem:[%s3330 + $0x60] sm:$0xf]
        %v3356 = vld [vmem:[%s3330 + $0x64] sm:$0xf]
        %v3357 = vld [vmem:[%s3330 + $0x68] sm:$0xf]
        %v3358 = vld [vmem:[%s3330 + $0x6c] sm:$0xf]
        %v3359 = vld [vmem:[%s3330 + $0x70] sm:$0xf]
        %v3360 = vld [vmem:[%s3330 + $0x74] sm:$0xf]
        %v3361 = vld [vmem:[%s3330 + $0x78] sm:$0xf]
        %v3362 = vld [vmem:[%s3330 + $0x7c] sm:$0xf]
        %vm3367 = vcmask 1043456
        %v3368 = vrot.slane %v3328, 4
        %v3369 = vrot.slane %v744, 4
        %v3370 = vsel %vm3367, %v3368, %v3369
        %v3371 = vrot.slane %v3329, 4
        %v3372 = vrot.slane %v745, 4
        %v3373 = vsel %vm3367, %v3371, %v3372
        %v3374 = vrot.slane %v746, 4
        %v3375 = vsel %vm3367, %v3369, %v3374
        %v3376 = vrot.slane %v747, 4
        %v3377 = vsel %vm3367, %v3372, %v3376
        %v3378 = vrot.slane %v748, 4
        %v3379 = vsel %vm3367, %v3374, %v3378
        %v3380 = vrot.slane %v749, 4
        %v3381 = vsel %vm3367, %v3376, %v3380
        %v3382 = vrot.slane %v750, 4
        %v3383 = vsel %vm3367, %v3378, %v3382
        %v3384 = vrot.slane %v751, 4
        %v3385 = vsel %vm3367, %v3380, %v3384
        %v3386 = vrot.slane %v752, 4
        %v3387 = vsel %vm3367, %v3382, %v3386
        %v3388 = vrot.slane %v753, 4
        %v3389 = vsel %vm3367, %v3384, %v3388
        %v3390 = vrot.slane %v754, 4
        %v3391 = vsel %vm3367, %v3386, %v3390
        %v3392 = vrot.slane %v755, 4
        %v3393 = vsel %vm3367, %v3388, %v3392
        %v3394 = vrot.slane %v756, 4
        %v3395 = vsel %vm3367, %v3390, %v3394
        %v3396 = vrot.slane %v757, 4
        %v3397 = vsel %vm3367, %v3392, %v3396
        %v3398 = vrot.slane %v2977, 4
        %v3399 = vsel %vm3367, %v3394, %v3398
        %v3400 = vrot.slane %v2978, 4
        %v3401 = vsel %vm3367, %v3396, %v3400
        %v3450 = vunpack.c.l.b16 %v3331
        %v3451 = vunpack.c.l.b16 %v3332
        %v3452 = vunpack.c.l.b16 %v3333
        %v3453 = vunpack.c.l.b16 %v3334
        %v3454 = vunpack.c.l.b16 %v3335
        %v3455 = vunpack.c.l.b16 %v3336
        %v3456 = vunpack.c.l.b16 %v3337
        %v3457 = vunpack.c.l.b16 %v3338
        %v3458 = vunpack.c.l.b16 %v3339
        %v3459 = vunpack.c.l.b16 %v3340
        %v3460 = vunpack.c.l.b16 %v3341
        %v3461 = vunpack.c.l.b16 %v3342
        %v3462 = vunpack.c.l.b16 %v3343
        %v3463 = vunpack.c.l.b16 %v3344
        %v3464 = vunpack.c.l.b16 %v3345
        %v3465 = vunpack.c.l.b16 %v3346
        %v3466 = vunpack.c.l.b16 %v3347
        %v3467 = vunpack.c.l.b16 %v3348
        %v3468 = vunpack.c.l.b16 %v3349
        %v3469 = vunpack.c.l.b16 %v3350
        %v3470 = vunpack.c.l.b16 %v3351
        %v3471 = vunpack.c.l.b16 %v3352
        %v3472 = vunpack.c.l.b16 %v3353
        %v3473 = vunpack.c.l.b16 %v3354
        %v3474 = vunpack.c.l.b16 %v3355
        %v3475 = vunpack.c.l.b16 %v3356
        %v3476 = vunpack.c.l.b16 %v3357
        %v3477 = vunpack.c.l.b16 %v3358
        %v3478 = vunpack.c.l.b16 %v3359
        %v3479 = vunpack.c.l.b16 %v3360
        %v3480 = vunpack.c.l.b16 %v3361
        %v3481 = vunpack.c.l.b16 %v3362
        %v3482 = vpack.c.b16 %v3451, %v3450
        %v3483 = vpack.c.b16 %v3453, %v3452
        %v3484 = vpack.c.b16 %v3455, %v3454
        %v3485 = vpack.c.b16 %v3457, %v3456
        %v3486 = vpack.c.b16 %v3459, %v3458
        %v3487 = vpack.c.b16 %v3461, %v3460
        %v3488 = vpack.c.b16 %v3463, %v3462
        %v3489 = vpack.c.b16 %v3465, %v3464
        %v3490 = vpack.c.b16 %v3467, %v3466
        %v3491 = vpack.c.b16 %v3469, %v3468
        %v3492 = vpack.c.b16 %v3471, %v3470
        %v3493 = vpack.c.b16 %v3473, %v3472
        %v3494 = vpack.c.b16 %v3475, %v3474
        %v3495 = vpack.c.b16 %v3477, %v3476
        %v3496 = vpack.c.b16 %v3479, %v3478
        %v3497 = vpack.c.b16 %v3481, %v3480
        %3514 = vmatprep.subr.bf16.mxu0 0
        %3515 = vmatpush1.bf16.msra.mxu0 %v3482
        %3516 = vmatprep.subr.bf16.mxu0 0
        %3517 = vmatpush1.bf16.msra.mxu0 %v3483
        %3518 = vmatprep.subr.bf16.mxu0 0
        %3519 = vmatpush1.bf16.msra.mxu0 %v3484
        %3520 = vmatprep.subr.bf16.mxu0 0
        %3521 = vmatpush1.bf16.msra.mxu0 %v3485
        %3522 = vmatprep.subr.bf16.mxu0 0
        %3523 = vmatpush1.bf16.msra.mxu0 %v3486
        %3524 = vmatprep.subr.bf16.mxu0 0
        %3525 = vmatpush1.bf16.msra.mxu0 %v3487
        %3526 = vmatprep.subr.bf16.mxu0 0
        %3527 = vmatpush1.bf16.msra.mxu0 %v3488
        %3528 = vmatprep.subr.bf16.mxu0 0
        %3529 = vmatpush1.bf16.msra.mxu0 %v3489
        %3530 = vmatprep.subr.bf16.mxu0 0
        %3531 = vmatpush1.bf16.msra.mxu0 %v3490
        %3532 = vmatprep.subr.bf16.mxu0 0
        %3533 = vmatpush1.bf16.msra.mxu0 %v3491
        %3534 = vmatprep.subr.bf16.mxu0 0
        %3535 = vmatpush1.bf16.msra.mxu0 %v3492
        %3536 = vmatprep.subr.bf16.mxu0 0
        %3537 = vmatpush1.bf16.msra.mxu0 %v3493
        %3538 = vmatprep.subr.bf16.mxu0 0
        %3539 = vmatpush1.bf16.msra.mxu0 %v3494
        %3540 = vmatprep.subr.bf16.mxu0 0
        %3541 = vmatpush1.bf16.msra.mxu0 %v3495
        %3542 = vmatprep.subr.bf16.mxu0 0
        %3543 = vmatpush1.bf16.msra.mxu0 %v3496
        %3544 = vmatprep.subr.bf16.mxu0 0
        %3545 = vmatpush1.bf16.msra.mxu0 %v3497
        %3546 = vmatprep.mubr.bf16.mxu0 %v3373
        %3547 = vmatmul.mubr.bf16.gmra.mrb[0].mxu0 %v3370
        %v3548 = vpop.f32.mrb[0].mxu0
        %v3549 = vadd.f32 0.0, %v3548
        %v3550 = vpop.f32.mrb[0].mxu0
        %v3551 = vpop.f32.mrb[0].mxu0
        %v3552 = vadd.f32 0.0, %v3551
        %v3553 = vpop.f32.mrb[0].mxu0
        %3554 = vmatprep.mubr.bf16.mxu0 %v3377
        %3555 = vmatmul.mubr.bf16.gmra.mrb[0].mxu0 %v3375
        %v3556 = vpop.f32.mrb[0].mxu0
        %v3557 = vadd.f32 0.0, %v3556
        %v3558 = vpop.f32.mrb[0].mxu0
        %v3559 = vpop.f32.mrb[0].mxu0
        %v3560 = vadd.f32 0.0, %v3559
        %v3561 = vpop.f32.mrb[0].mxu0
        %3562 = vmatprep.mubr.bf16.mxu0 %v3381
        %3563 = vmatmul.mubr.bf16.gmra.mrb[0].mxu0 %v3379
        %v3564 = vpop.f32.mrb[0].mxu0
        %v3565 = vadd.f32 0.0, %v3564
        %v3566 = vpop.f32.mrb[0].mxu0
        %v3567 = vpop.f32.mrb[0].mxu0
        %v3568 = vadd.f32 0.0, %v3567
        %v3569 = vpop.f32.mrb[0].mxu0
        %3570 = vmatprep.mubr.bf16.mxu0 %v3385
        %3571 = vmatmul.mubr.bf16.gmra.mrb[0].mxu0 %v3383
        %v3572 = vpop.f32.mrb[0].mxu0
        %v3573 = vadd.f32 0.0, %v3572
        %v3574 = vpop.f32.mrb[0].mxu0
        %v3575 = vpop.f32.mrb[0].mxu0
        %v3576 = vadd.f32 0.0, %v3575
        %v3577 = vpop.f32.mrb[0].mxu0
        %3578 = vmatprep.mubr.bf16.mxu0 %v3389
        %3579 = vmatmul.mubr.bf16.gmra.mrb[0].mxu0 %v3387
        %v3580 = vpop.f32.mrb[0].mxu0
        %v3581 = vadd.f32 0.0, %v3580
        %v3582 = vpop.f32.mrb[0].mxu0
        %v3583 = vpop.f32.mrb[0].mxu0
        %v3584 = vadd.f32 0.0, %v3583
        %v3585 = vpop.f32.mrb[0].mxu0
        %3586 = vmatprep.mubr.bf16.mxu0 %v3393
        %3587 = vmatmul.mubr.bf16.gmra.mrb[0].mxu0 %v3391
        %v3588 = vpop.f32.mrb[0].mxu0
        %v3589 = vadd.f32 0.0, %v3588
        %v3590 = vpop.f32.mrb[0].mxu0
        %v3591 = vpop.f32.mrb[0].mxu0
        %v3592 = vadd.f32 0.0, %v3591
        %v3593 = vpop.f32.mrb[0].mxu0
        %3594 = vmatprep.mubr.bf16.mxu0 %v3397
        %3595 = vmatmul.mubr.bf16.gmra.mrb[0].mxu0 %v3395
        %v3596 = vpop.f32.mrb[0].mxu0
        %v3597 = vadd.f32 0.0, %v3596
        %v3598 = vpop.f32.mrb[0].mxu0
        %v3599 = vpop.f32.mrb[0].mxu0
        %v3600 = vadd.f32 0.0, %v3599
        %v3601 = vpop.f32.mrb[0].mxu0
        %3602 = vmatprep.mubr.bf16.mxu0 %v3401
        %3603 = vmatmul.mubr.bf16.gmra.mrb[0].mxu0 %v3399
        %v3604 = vpop.f32.mrb[0].mxu0
        %v3605 = vadd.f32 0.0, %v3604
        %v3606 = vpop.f32.mrb[0].mxu0
        %v3607 = vpop.f32.mrb[0].mxu0
        %v3608 = vadd.f32 0.0, %v3607
        %v3609 = vpop.f32.mrb[0].mxu0
        %3610 = vdwg.mxu0
        %v3611 = vadd.f32 %v3312, %v3549
        %v3612 = vadd.f32 %v3313, %v3552
        %v3613 = vadd.f32 %v3314, %v3557
        %v3614 = vadd.f32 %v3315, %v3560
        %v3615 = vadd.f32 %v3316, %v3565
        %v3616 = vadd.f32 %v3317, %v3568
        %v3617 = vadd.f32 %v3318, %v3573
        %v3618 = vadd.f32 %v3319, %v3576
        %v3619 = vadd.f32 %v3320, %v3581
        %v3620 = vadd.f32 %v3321, %v3584
        %v3621 = vadd.f32 %v3322, %v3589
        %v3622 = vadd.f32 %v3323, %v3592
        %v3623 = vadd.f32 %v3324, %v3597
        %v3624 = vadd.f32 %v3325, %v3600
        %v3625 = vadd.f32 %v3326, %v3605
        %v3626 = vadd.f32 %v3327, %v3608
        %v3627 = vld [vmem:[#allocation2 + $0x80] sm:$0x1f]
        %v3628 = vld [vmem:[#allocation2 + $0x88] sm:$0x1f]
        %s3629 = scalar_lea.vmem [#allocation6], 1152
        %v3630 = vld [vmem:[%s3629] sm:$0xf]
        %v3631 = vld [vmem:[%s3629 + $0x4] sm:$0xf]
        %v3632 = vld [vmem:[%s3629 + $0x8] sm:$0xf]
        %v3633 = vld [vmem:[%s3629 + $0xc] sm:$0xf]
        %v3634 = vld [vmem:[%s3629 + $0x10] sm:$0xf]
        %v3635 = vld [vmem:[%s3629 + $0x14] sm:$0xf]
        %v3636 = vld [vmem:[%s3629 + $0x18] sm:$0xf]
        %v3637 = vld [vmem:[%s3629 + $0x1c] sm:$0xf]
        %v3638 = vld [vmem:[%s3629 + $0x20] sm:$0xf]
        %v3639 = vld [vmem:[%s3629 + $0x24] sm:$0xf]
        %v3640 = vld [vmem:[%s3629 + $0x28] sm:$0xf]
        %v3641 = vld [vmem:[%s3629 + $0x2c] sm:$0xf]
        %v3642 = vld [vmem:[%s3629 + $0x30] sm:$0xf]
        %v3643 = vld [vmem:[%s3629 + $0x34] sm:$0xf]
        %v3644 = vld [vmem:[%s3629 + $0x38] sm:$0xf]
        %v3645 = vld [vmem:[%s3629 + $0x3c] sm:$0xf]
        %v3646 = vld [vmem:[%s3629 + $0x40] sm:$0xf]
        %v3647 = vld [vmem:[%s3629 + $0x44] sm:$0xf]
        %v3648 = vld [vmem:[%s3629 + $0x48] sm:$0xf]
        %v3649 = vld [vmem:[%s3629 + $0x4c] sm:$0xf]
        %v3650 = vld [vmem:[%s3629 + $0x50] sm:$0xf]
        %v3651 = vld [vmem:[%s3629 + $0x54] sm:$0xf]
        %v3652 = vld [vmem:[%s3629 + $0x58] sm:$0xf]
        %v3653 = vld [vmem:[%s3629 + $0x5c] sm:$0xf]
        %v3654 = vld [vmem:[%s3629 + $0x60] sm:$0xf]
        %v3655 = vld [vmem:[%s3629 + $0x64] sm:$0xf]
        %v3656 = vld [vmem:[%s3629 + $0x68] sm:$0xf]
        %v3657 = vld [vmem:[%s3629 + $0x6c] sm:$0xf]
        %v3658 = vld [vmem:[%s3629 + $0x70] sm:$0xf]
        %v3659 = vld [vmem:[%s3629 + $0x74] sm:$0xf]
        %v3660 = vld [vmem:[%s3629 + $0x78] sm:$0xf]
        %v3661 = vld [vmem:[%s3629 + $0x7c] sm:$0xf]
        %vm3662 = vsmask.f32 3328
        %v3664 = vshrl.u32 %v3328, 16
        %v3666 = vrot.slane %v3664, 4
        %v3667 = vshll.u32 %v3328, 16
        %v3669 = vrot.slane %v3667, 5
        %v3670 = vor.u32 %v3666, %v3669
        %v3671 = vrot.slane %v850, 4
        %v3672 = vrot.slane %v834, 5
        %v3673 = vor.u32 %v3671, %v3672
        %v3674 = vsel %vm3662, %v3670, %v3673
        %v3676 = vshrl.u32 %v3329, 16
        %v3678 = vrot.slane %v3676, 4
        %v3679 = vshll.u32 %v3329, 16
        %v3681 = vrot.slane %v3679, 5
        %v3682 = vor.u32 %v3678, %v3681
        %v3683 = vrot.slane %v858, 4
        %v3684 = vrot.slane %v846, 5
        %v3685 = vor.u32 %v3683, %v3684
        %v3686 = vsel %vm3662, %v3682, %v3685
        %v3687 = vrot.slane %v866, 4
        %v3688 = vrot.slane %v854, 5
        %v3689 = vor.u32 %v3687, %v3688
        %v3690 = vsel %vm3662, %v3673, %v3689
        %v3691 = vrot.slane %v874, 4
        %v3692 = vrot.slane %v862, 5
        %v3693 = vor.u32 %v3691, %v3692
        %v3694 = vsel %vm3662, %v3685, %v3693
        %v3695 = vrot.slane %v882, 4
        %v3696 = vrot.slane %v870, 5
        %v3697 = vor.u32 %v3695, %v3696
        %v3698 = vsel %vm3662, %v3689, %v3697
        %v3699 = vrot.slane %v890, 4
        %v3700 = vrot.slane %v878, 5
        %v3701 = vor.u32 %v3699, %v3700
        %v3702 = vsel %vm3662, %v3693, %v3701
        %v3703 = vrot.slane %v898, 4
        %v3704 = vrot.slane %v886, 5
        %v3705 = vor.u32 %v3703, %v3704
        %v3706 = vsel %vm3662, %v3697, %v3705
        %v3707 = vrot.slane %v906, 4
        %v3708 = vrot.slane %v894, 5
        %v3709 = vor.u32 %v3707, %v3708
        %v3710 = vsel %vm3662, %v3701, %v3709
        %v3711 = vrot.slane %v914, 4
        %v3712 = vrot.slane %v902, 5
        %v3713 = vor.u32 %v3711, %v3712
        %v3714 = vsel %vm3662, %v3705, %v3713
        %v3715 = vrot.slane %v922, 4
        %v3716 = vrot.slane %v910, 5
        %v3717 = vor.u32 %v3715, %v3716
        %v3718 = vsel %vm3662, %v3709, %v3717
        %v3719 = vrot.slane %v930, 4
        %v3720 = vrot.slane %v918, 5
        %v3721 = vor.u32 %v3719, %v3720
        %v3722 = vsel %vm3662, %v3713, %v3721
        %v3723 = vrot.slane %v938, 4
        %v3724 = vrot.slane %v926, 5
        %v3725 = vor.u32 %v3723, %v3724
        %v3726 = vsel %vm3662, %v3717, %v3725
        %v3727 = vrot.slane %v946, 4
        %v3728 = vrot.slane %v934, 5
        %v3729 = vor.u32 %v3727, %v3728
        %v3730 = vsel %vm3662, %v3721, %v3729
        %v3731 = vrot.slane %v954, 4
        %v3732 = vrot.slane %v942, 5
        %v3733 = vor.u32 %v3731, %v3732
        %v3734 = vsel %vm3662, %v3725, %v3733
        %v3736 = vshrl.u32 %v3627, 16
        %v3738 = vrot.slane %v3736, 4
        %v3739 = vshll.u32 %v3627, 16
        %v3741 = vrot.slane %v3739, 5
        %v3742 = vor.u32 %v3738, %v3741
        %v3743 = vsel %vm3662, %v3729, %v3742
        %v3745 = vshrl.u32 %v3628, 16
        %v3747 = vrot.slane %v3745, 4
        %v3748 = vshll.u32 %v3628, 16
        %v3750 = vrot.slane %v3748, 5
        %v3751 = vor.u32 %v3747, %v3750
        %v3752 = vsel %vm3662, %v3733, %v3751
        %v3801 = vunpack.c.l.b16 %v3630
        %v3802 = vunpack.c.l.b16 %v3631
        %v3803 = vunpack.c.l.b16 %v3632
        %v3804 = vunpack.c.l.b16 %v3633
        %v3805 = vunpack.c.l.b16 %v3634
        %v3806 = vunpack.c.l.b16 %v3635
        %v3807 = vunpack.c.l.b16 %v3636
        %v3808 = vunpack.c.l.b16 %v3637
        %v3809 = vunpack.c.l.b16 %v3638
        %v3810 = vunpack.c.l.b16 %v3639
        %v3811 = vunpack.c.l.b16 %v3640
        %v3812 = vunpack.c.l.b16 %v3641
        %v3813 = vunpack.c.l.b16 %v3642
        %v3814 = vunpack.c.l.b16 %v3643
        %v3815 = vunpack.c.l.b16 %v3644
        %v3816 = vunpack.c.l.b16 %v3645
        %v3817 = vunpack.c.l.b16 %v3646
        %v3818 = vunpack.c.l.b16 %v3647
        %v3819 = vunpack.c.l.b16 %v3648
        %v3820 = vunpack.c.l.b16 %v3649
        %v3821 = vunpack.c.l.b16 %v3650
        %v3822 = vunpack.c.l.b16 %v3651
        %v3823 = vunpack.c.l.b16 %v3652
        %v3824 = vunpack.c.l.b16 %v3653
        %v3825 = vunpack.c.l.b16 %v3654
        %v3826 = vunpack.c.l.b16 %v3655
        %v3827 = vunpack.c.l.b16 %v3656
        %v3828 = vunpack.c.l.b16 %v3657
        %v3829 = vunpack.c.l.b16 %v3658
        %v3830 = vunpack.c.l.b16 %v3659
        %v3831 = vunpack.c.l.b16 %v3660
        %v3832 = vunpack.c.l.b16 %v3661
        %v3833 = vpack.c.b16 %v3802, %v3801
        %v3834 = vpack.c.b16 %v3804, %v3803
        %v3835 = vpack.c.b16 %v3806, %v3805
        %v3836 = vpack.c.b16 %v3808, %v3807
        %v3837 = vpack.c.b16 %v3810, %v3809
        %v3838 = vpack.c.b16 %v3812, %v3811
        %v3839 = vpack.c.b16 %v3814, %v3813
        %v3840 = vpack.c.b16 %v3816, %v3815
        %v3841 = vpack.c.b16 %v3818, %v3817
        %v3842 = vpack.c.b16 %v3820, %v3819
        %v3843 = vpack.c.b16 %v3822, %v3821
        %v3844 = vpack.c.b16 %v3824, %v3823
        %v3845 = vpack.c.b16 %v3826, %v3825
        %v3846 = vpack.c.b16 %v3828, %v3827
        %v3847 = vpack.c.b16 %v3830, %v3829
        %v3848 = vpack.c.b16 %v3832, %v3831
        %3865 = vmatprep.subr.bf16.mxu0 0
        %3866 = vmatpush1.bf16.msra.mxu0 %v3833
        %3867 = vmatprep.subr.bf16.mxu0 0
        %3868 = vmatpush1.bf16.msra.mxu0 %v3834
        %3869 = vmatprep.subr.bf16.mxu0 0
        %3870 = vmatpush1.bf16.msra.mxu0 %v3835
        %3871 = vmatprep.subr.bf16.mxu0 0
        %3872 = vmatpush1.bf16.msra.mxu0 %v3836
        %3873 = vmatprep.subr.bf16.mxu0 0
        %3874 = vmatpush1.bf16.msra.mxu0 %v3837
        %3875 = vmatprep.subr.bf16.mxu0 0
        %3876 = vmatpush1.bf16.msra.mxu0 %v3838
        %3877 = vmatprep.subr.bf16.mxu0 0
        %3878 = vmatpush1.bf16.msra.mxu0 %v3839
        %3879 = vmatprep.subr.bf16.mxu0 0
        %3880 = vmatpush1.bf16.msra.mxu0 %v3840
        %3881 = vmatprep.subr.bf16.mxu0 0
        %3882 = vmatpush1.bf16.msra.mxu0 %v3841
        %3883 = vmatprep.subr.bf16.mxu0 0
        %3884 = vmatpush1.bf16.msra.mxu0 %v3842
        %3885 = vmatprep.subr.bf16.mxu0 0
        %3886 = vmatpush1.bf16.msra.mxu0 %v3843
        %3887 = vmatprep.subr.bf16.mxu0 0
        %3888 = vmatpush1.bf16.msra.mxu0 %v3844
        %3889 = vmatprep.subr.bf16.mxu0 0
        %3890 = vmatpush1.bf16.msra.mxu0 %v3845
        %3891 = vmatprep.subr.bf16.mxu0 0
        %3892 = vmatpush1.bf16.msra.mxu0 %v3846
        %3893 = vmatprep.subr.bf16.mxu0 0
        %3894 = vmatpush1.bf16.msra.mxu0 %v3847
        %3895 = vmatprep.subr.bf16.mxu0 0
        %3896 = vmatpush1.bf16.msra.mxu0 %v3848
        %3897 = vmatprep.mubr.bf16.mxu0 %v3686
        %3898 = vmatmul.mubr.bf16.gmra.mrb[0].mxu0 %v3674
        %v3899 = vpop.f32.mrb[0].mxu0
        %v3900 = vadd.f32 0.0, %v3899
        %v3901 = vpop.f32.mrb[0].mxu0
        %v3902 = vpop.f32.mrb[0].mxu0
        %v3903 = vadd.f32 0.0, %v3902
        %v3904 = vpop.f32.mrb[0].mxu0
        %3905 = vmatprep.mubr.bf16.mxu0 %v3694
        %3906 = vmatmul.mubr.bf16.gmra.mrb[0].mxu0 %v3690
        %v3907 = vpop.f32.mrb[0].mxu0
        %v3908 = vadd.f32 0.0, %v3907
        %v3909 = vpop.f32.mrb[0].mxu0
        %v3910 = vpop.f32.mrb[0].mxu0
        %v3911 = vadd.f32 0.0, %v3910
        %v3912 = vpop.f32.mrb[0].mxu0
        %3913 = vmatprep.mubr.bf16.mxu0 %v3702
        %3914 = vmatmul.mubr.bf16.gmra.mrb[0].mxu0 %v3698
        %v3915 = vpop.f32.mrb[0].mxu0
        %v3916 = vadd.f32 0.0, %v3915
        %v3917 = vpop.f32.mrb[0].mxu0
        %v3918 = vpop.f32.mrb[0].mxu0
        %v3919 = vadd.f32 0.0, %v3918
        %v3920 = vpop.f32.mrb[0].mxu0
        %3921 = vmatprep.mubr.bf16.mxu0 %v3710
        %3922 = vmatmul.mubr.bf16.gmra.mrb[0].mxu0 %v3706
        %v3923 = vpop.f32.mrb[0].mxu0
        %v3924 = vadd.f32 0.0, %v3923
        %v3925 = vpop.f32.mrb[0].mxu0
        %v3926 = vpop.f32.mrb[0].mxu0
        %v3927 = vadd.f32 0.0, %v3926
        %v3928 = vpop.f32.mrb[0].mxu0
        %3929 = vmatprep.mubr.bf16.mxu0 %v3718
        %3930 = vmatmul.mubr.bf16.gmra.mrb[0].mxu0 %v3714
        %v3931 = vpop.f32.mrb[0].mxu0
        %v3932 = vadd.f32 0.0, %v3931
        %v3933 = vpop.f32.mrb[0].mxu0
        %v3934 = vpop.f32.mrb[0].mxu0
        %v3935 = vadd.f32 0.0, %v3934
        %v3936 = vpop.f32.mrb[0].mxu0
        %3937 = vmatprep.mubr.bf16.mxu0 %v3726
        %3938 = vmatmul.mubr.bf16.gmra.mrb[0].mxu0 %v3722
        %v3939 = vpop.f32.mrb[0].mxu0
        %v3940 = vadd.f32 0.0, %v3939
        %v3941 = vpop.f32.mrb[0].mxu0
        %v3942 = vpop.f32.mrb[0].mxu0
        %v3943 = vadd.f32 0.0, %v3942
        %v3944 = vpop.f32.mrb[0].mxu0
        %3945 = vmatprep.mubr.bf16.mxu0 %v3734
        %3946 = vmatmul.mubr.bf16.gmra.mrb[0].mxu0 %v3730
        %v3947 = vpop.f32.mrb[0].mxu0
        %v3948 = vadd.f32 0.0, %v3947
        %v3949 = vpop.f32.mrb[0].mxu0
        %v3950 = vpop.f32.mrb[0].mxu0
        %v3951 = vadd.f32 0.0, %v3950
        %v3952 = vpop.f32.mrb[0].mxu0
        %3953 = vmatprep.mubr.bf16.mxu0 %v3752
        %3954 = vmatmul.mubr.bf16.gmra.mrb[0].mxu0 %v3743
        %v3955 = vpop.f32.mrb[0].mxu0
        %v3956 = vadd.f32 0.0, %v3955
        %v3957 = vpop.f32.mrb[0].mxu0
        %v3958 = vpop.f32.mrb[0].mxu0
        %v3959 = vadd.f32 0.0, %v3958
        %v3960 = vpop.f32.mrb[0].mxu0
        %3961 = vdwg.mxu0
        %v3962 = vadd.f32 %v3611, %v3900
        %v3963 = vadd.f32 %v3612, %v3903
        %v3964 = vadd.f32 %v3613, %v3908
        %v3965 = vadd.f32 %v3614, %v3911
        %v3966 = vadd.f32 %v3615, %v3916
        %v3967 = vadd.f32 %v3616, %v3919
        %v3968 = vadd.f32 %v3617, %v3924
        %v3969 = vadd.f32 %v3618, %v3927
        %v3970 = vadd.f32 %v3619, %v3932
        %v3971 = vadd.f32 %v3620, %v3935
        %v3972 = vadd.f32 %v3621, %v3940
        %v3973 = vadd.f32 %v3622, %v3943
        %v3974 = vadd.f32 %v3623, %v3948
        %v3975 = vadd.f32 %v3624, %v3951
        %v3976 = vadd.f32 %v3625, %v3956
        %v3977 = vadd.f32 %v3626, %v3959
        %v3978 = vld [vmem:[#allocation2] sm:$0xe0]
        %v3979 = vld [vmem:[#allocation2 + $0x8] sm:$0xe0]
        %s3980 = scalar_lea.vmem [#allocation6], 1280
        %v3981 = vld [vmem:[%s3980] sm:$0xf]
        %v3982 = vld [vmem:[%s3980 + $0x4] sm:$0xf]
        %v3983 = vld [vmem:[%s3980 + $0x8] sm:$0xf]
        %v3984 = vld [vmem:[%s3980 + $0xc] sm:$0xf]
        %v3985 = vld [vmem:[%s3980 + $0x10] sm:$0xf]
        %v3986 = vld [vmem:[%s3980 + $0x14] sm:$0xf]
        %v3987 = vld [vmem:[%s3980 + $0x18] sm:$0xf]
        %v3988 = vld [vmem:[%s3980 + $0x1c] sm:$0xf]
        %v3989 = vld [vmem:[%s3980 + $0x20] sm:$0xf]
        %v3990 = vld [vmem:[%s3980 + $0x24] sm:$0xf]
        %v3991 = vld [vmem:[%s3980 + $0x28] sm:$0xf]
        %v3992 = vld [vmem:[%s3980 + $0x2c] sm:$0xf]
        %v3993 = vld [vmem:[%s3980 + $0x30] sm:$0xf]
        %v3994 = vld [vmem:[%s3980 + $0x34] sm:$0xf]
        %v3995 = vld [vmem:[%s3980 + $0x38] sm:$0xf]
        %v3996 = vld [vmem:[%s3980 + $0x3c] sm:$0xf]
        %v3997 = vld [vmem:[%s3980 + $0x40] sm:$0xf]
        %v3998 = vld [vmem:[%s3980 + $0x44] sm:$0xf]
        %v3999 = vld [vmem:[%s3980 + $0x48] sm:$0xf]
        %v4000 = vld [vmem:[%s3980 + $0x4c] sm:$0xf]
        %v4001 = vld [vmem:[%s3980 + $0x50] sm:$0xf]
        %v4002 = vld [vmem:[%s3980 + $0x54] sm:$0xf]
        %v4003 = vld [vmem:[%s3980 + $0x58] sm:$0xf]
        %v4004 = vld [vmem:[%s3980 + $0x5c] sm:$0xf]
        %v4005 = vld [vmem:[%s3980 + $0x60] sm:$0xf]
        %v4006 = vld [vmem:[%s3980 + $0x64] sm:$0xf]
        %v4007 = vld [vmem:[%s3980 + $0x68] sm:$0xf]
        %v4008 = vld [vmem:[%s3980 + $0x6c] sm:$0xf]
        %v4009 = vld [vmem:[%s3980 + $0x70] sm:$0xf]
        %v4010 = vld [vmem:[%s3980 + $0x74] sm:$0xf]
        %v4011 = vld [vmem:[%s3980 + $0x78] sm:$0xf]
        %v4012 = vld [vmem:[%s3980 + $0x7c] sm:$0xf]
        %vm4017 = vcmask 1042432
        %v4018 = vrot.slane %v3978, 5
        %v4019 = vrot.slane %v744, 5
        %v4020 = vsel %vm4017, %v4018, %v4019
        %v4021 = vrot.slane %v3979, 5
        %v4022 = vrot.slane %v745, 5
        %v4023 = vsel %vm4017, %v4021, %v4022
        %v4024 = vrot.slane %v746, 5
        %v4025 = vsel %vm4017, %v4019, %v4024
        %v4026 = vrot.slane %v747, 5
        %v4027 = vsel %vm4017, %v4022, %v4026
        %v4028 = vrot.slane %v748, 5
        %v4029 = vsel %vm4017, %v4024, %v4028
        %v4030 = vrot.slane %v749, 5
        %v4031 = vsel %vm4017, %v4026, %v4030
        %v4032 = vrot.slane %v750, 5
        %v4033 = vsel %vm4017, %v4028, %v4032
        %v4034 = vrot.slane %v751, 5
        %v4035 = vsel %vm4017, %v4030, %v4034
        %v4036 = vrot.slane %v752, 5
        %v4037 = vsel %vm4017, %v4032, %v4036
        %v4038 = vrot.slane %v753, 5
        %v4039 = vsel %vm4017, %v4034, %v4038
        %v4040 = vrot.slane %v754, 5
        %v4041 = vsel %vm4017, %v4036, %v4040
        %v4042 = vrot.slane %v755, 5
        %v4043 = vsel %vm4017, %v4038, %v4042
        %v4044 = vrot.slane %v756, 5
        %v4045 = vsel %vm4017, %v4040, %v4044
        %v4046 = vrot.slane %v757, 5
        %v4047 = vsel %vm4017, %v4042, %v4046
        %v4048 = vrot.slane %v3627, 5
        %v4049 = vsel %vm4017, %v4044, %v4048
        %v4050 = vrot.slane %v3628, 5
        %v4051 = vsel %vm4017, %v4046, %v4050
        %v4100 = vunpack.c.l.b16 %v3981
        %v4101 = vunpack.c.l.b16 %v3982
        %v4102 = vunpack.c.l.b16 %v3983
        %v4103 = vunpack.c.l.b16 %v3984
        %v4104 = vunpack.c.l.b16 %v3985
        %v4105 = vunpack.c.l.b16 %v3986
        %v4106 = vunpack.c.l.b16 %v3987
        %v4107 = vunpack.c.l.b16 %v3988
        %v4108 = vunpack.c.l.b16 %v3989
        %v4109 = vunpack.c.l.b16 %v3990
        %v4110 = vunpack.c.l.b16 %v3991
        %v4111 = vunpack.c.l.b16 %v3992
        %v4112 = vunpack.c.l.b16 %v3993
        %v4113 = vunpack.c.l.b16 %v3994
        %v4114 = vunpack.c.l.b16 %v3995
        %v4115 = vunpack.c.l.b16 %v3996
        %v4116 = vunpack.c.l.b16 %v3997
        %v4117 = vunpack.c.l.b16 %v3998
        %v4118 = vunpack.c.l.b16 %v3999
        %v4119 = vunpack.c.l.b16 %v4000
        %v4120 = vunpack.c.l.b16 %v4001
        %v4121 = vunpack.c.l.b16 %v4002
        %v4122 = vunpack.c.l.b16 %v4003
        %v4123 = vunpack.c.l.b16 %v4004
        %v4124 = vunpack.c.l.b16 %v4005
        %v4125 = vunpack.c.l.b16 %v4006
        %v4126 = vunpack.c.l.b16 %v4007
        %v4127 = vunpack.c.l.b16 %v4008
        %v4128 = vunpack.c.l.b16 %v4009
        %v4129 = vunpack.c.l.b16 %v4010
        %v4130 = vunpack.c.l.b16 %v4011
        %v4131 = vunpack.c.l.b16 %v4012
        %v4132 = vpack.c.b16 %v4101, %v4100
        %v4133 = vpack.c.b16 %v4103, %v4102
        %v4134 = vpack.c.b16 %v4105, %v4104
        %v4135 = vpack.c.b16 %v4107, %v4106
        %v4136 = vpack.c.b16 %v4109, %v4108
        %v4137 = vpack.c.b16 %v4111, %v4110
        %v4138 = vpack.c.b16 %v4113, %v4112
        %v4139 = vpack.c.b16 %v4115, %v4114
        %v4140 = vpack.c.b16 %v4117, %v4116
        %v4141 = vpack.c.b16 %v4119, %v4118
        %v4142 = vpack.c.b16 %v4121, %v4120
        %v4143 = vpack.c.b16 %v4123, %v4122
        %v4144 = vpack.c.b16 %v4125, %v4124
        %v4145 = vpack.c.b16 %v4127, %v4126
        %v4146 = vpack.c.b16 %v4129, %v4128
        %v4147 = vpack.c.b16 %v4131, %v4130
        %4164 = vmatprep.subr.bf16.mxu0 0
        %4165 = vmatpush1.bf16.msra.mxu0 %v4132
        %4166 = vmatprep.subr.bf16.mxu0 0
        %4167 = vmatpush1.bf16.msra.mxu0 %v4133
        %4168 = vmatprep.subr.bf16.mxu0 0
        %4169 = vmatpush1.bf16.msra.mxu0 %v4134
        %4170 = vmatprep.subr.bf16.mxu0 0
        %4171 = vmatpush1.bf16.msra.mxu0 %v4135
        %4172 = vmatprep.subr.bf16.mxu0 0
        %4173 = vmatpush1.bf16.msra.mxu0 %v4136
        %4174 = vmatprep.subr.bf16.mxu0 0
        %4175 = vmatpush1.bf16.msra.mxu0 %v4137
        %4176 = vmatprep.subr.bf16.mxu0 0
        %4177 = vmatpush1.bf16.msra.mxu0 %v4138
        %4178 = vmatprep.subr.bf16.mxu0 0
        %4179 = vmatpush1.bf16.msra.mxu0 %v4139
        %4180 = vmatprep.subr.bf16.mxu0 0
        %4181 = vmatpush1.bf16.msra.mxu0 %v4140
        %4182 = vmatprep.subr.bf16.mxu0 0
        %4183 = vmatpush1.bf16.msra.mxu0 %v4141
        %4184 = vmatprep.subr.bf16.mxu0 0
        %4185 = vmatpush1.bf16.msra.mxu0 %v4142
        %4186 = vmatprep.subr.bf16.mxu0 0
        %4187 = vmatpush1.bf16.msra.mxu0 %v4143
        %4188 = vmatprep.subr.bf16.mxu0 0
        %4189 = vmatpush1.bf16.msra.mxu0 %v4144
        %4190 = vmatprep.subr.bf16.mxu0 0
        %4191 = vmatpush1.bf16.msra.mxu0 %v4145
        %4192 = vmatprep.subr.bf16.mxu0 0
        %4193 = vmatpush1.bf16.msra.mxu0 %v4146
        %4194 = vmatprep.subr.bf16.mxu0 0
        %4195 = vmatpush1.bf16.msra.mxu0 %v4147
        %4196 = vmatprep.mubr.bf16.mxu0 %v4023
        %4197 = vmatmul.mubr.bf16.gmra.mrb[0].mxu0 %v4020
        %v4198 = vpop.f32.mrb[0].mxu0
        %v4199 = vadd.f32 0.0, %v4198
        %v4200 = vpop.f32.mrb[0].mxu0
        %v4201 = vpop.f32.mrb[0].mxu0
        %v4202 = vadd.f32 0.0, %v4201
        %v4203 = vpop.f32.mrb[0].mxu0
        %4204 = vmatprep.mubr.bf16.mxu0 %v4027
        %4205 = vmatmul.mubr.bf16.gmra.mrb[0].mxu0 %v4025
        %v4206 = vpop.f32.mrb[0].mxu0
        %v4207 = vadd.f32 0.0, %v4206
        %v4208 = vpop.f32.mrb[0].mxu0
        %v4209 = vpop.f32.mrb[0].mxu0
        %v4210 = vadd.f32 0.0, %v4209
        %v4211 = vpop.f32.mrb[0].mxu0
        %4212 = vmatprep.mubr.bf16.mxu0 %v4031
        %4213 = vmatmul.mubr.bf16.gmra.mrb[0].mxu0 %v4029
        %v4214 = vpop.f32.mrb[0].mxu0
        %v4215 = vadd.f32 0.0, %v4214
        %v4216 = vpop.f32.mrb[0].mxu0
        %v4217 = vpop.f32.mrb[0].mxu0
        %v4218 = vadd.f32 0.0, %v4217
        %v4219 = vpop.f32.mrb[0].mxu0
        %4220 = vmatprep.mubr.bf16.mxu0 %v4035
        %4221 = vmatmul.mubr.bf16.gmra.mrb[0].mxu0 %v4033
        %v4222 = vpop.f32.mrb[0].mxu0
        %v4223 = vadd.f32 0.0, %v4222
        %v4224 = vpop.f32.mrb[0].mxu0
        %v4225 = vpop.f32.mrb[0].mxu0
        %v4226 = vadd.f32 0.0, %v4225
        %v4227 = vpop.f32.mrb[0].mxu0
        %4228 = vmatprep.mubr.bf16.mxu0 %v4039
        %4229 = vmatmul.mubr.bf16.gmra.mrb[0].mxu0 %v4037
        %v4230 = vpop.f32.mrb[0].mxu0
        %v4231 = vadd.f32 0.0, %v4230
        %v4232 = vpop.f32.mrb[0].mxu0
        %v4233 = vpop.f32.mrb[0].mxu0
        %v4234 = vadd.f32 0.0, %v4233
        %v4235 = vpop.f32.mrb[0].mxu0
        %4236 = vmatprep.mubr.bf16.mxu0 %v4043
        %4237 = vmatmul.mubr.bf16.gmra.mrb[0].mxu0 %v4041
        %v4238 = vpop.f32.mrb[0].mxu0
        %v4239 = vadd.f32 0.0, %v4238
        %v4240 = vpop.f32.mrb[0].mxu0
        %v4241 = vpop.f32.mrb[0].mxu0
        %v4242 = vadd.f32 0.0, %v4241
        %v4243 = vpop.f32.mrb[0].mxu0
        %4244 = vmatprep.mubr.bf16.mxu0 %v4047
        %4245 = vmatmul.mubr.bf16.gmra.mrb[0].mxu0 %v4045
        %v4246 = vpop.f32.mrb[0].mxu0
        %v4247 = vadd.f32 0.0, %v4246
        %v4248 = vpop.f32.mrb[0].mxu0
        %v4249 = vpop.f32.mrb[0].mxu0
        %v4250 = vadd.f32 0.0, %v4249
        %v4251 = vpop.f32.mrb[0].mxu0
        %4252 = vmatprep.mubr.bf16.mxu0 %v4051
        %4253 = vmatmul.mubr.bf16.gmra.mrb[0].mxu0 %v4049
        %v4254 = vpop.f32.mrb[0].mxu0
        %v4255 = vadd.f32 0.0, %v4254
        %v4256 = vpop.f32.mrb[0].mxu0
        %v4257 = vpop.f32.mrb[0].mxu0
        %v4258 = vadd.f32 0.0, %v4257
        %v4259 = vpop.f32.mrb[0].mxu0
        %4260 = vdwg.mxu0
        %v4261 = vadd.f32 %v3962, %v4199
        %v4262 = vadd.f32 %v3963, %v4202
        %v4263 = vadd.f32 %v3964, %v4207
        %v4264 = vadd.f32 %v3965, %v4210
        %v4265 = vadd.f32 %v3966, %v4215
        %v4266 = vadd.f32 %v3967, %v4218
        %v4267 = vadd.f32 %v3968, %v4223
        %v4268 = vadd.f32 %v3969, %v4226
        %v4269 = vadd.f32 %v3970, %v4231
        %v4270 = vadd.f32 %v3971, %v4234
        %v4271 = vadd.f32 %v3972, %v4239
        %v4272 = vadd.f32 %v3973, %v4242
        %v4273 = vadd.f32 %v3974, %v4247
        %v4274 = vadd.f32 %v3975, %v4250
        %v4275 = vadd.f32 %v3976, %v4255
        %v4276 = vadd.f32 %v3977, %v4258
        %v4277 = vld [vmem:[#allocation2 + $0x80] sm:$0x3f]
        %v4278 = vld [vmem:[#allocation2 + $0x88] sm:$0x3f]
        %s4279 = scalar_lea.vmem [#allocation6], 1408
        %v4280 = vld [vmem:[%s4279] sm:$0xf]
        %v4281 = vld [vmem:[%s4279 + $0x4] sm:$0xf]
        %v4282 = vld [vmem:[%s4279 + $0x8] sm:$0xf]
        %v4283 = vld [vmem:[%s4279 + $0xc] sm:$0xf]
        %v4284 = vld [vmem:[%s4279 + $0x10] sm:$0xf]
        %v4285 = vld [vmem:[%s4279 + $0x14] sm:$0xf]
        %v4286 = vld [vmem:[%s4279 + $0x18] sm:$0xf]
        %v4287 = vld [vmem:[%s4279 + $0x1c] sm:$0xf]
        %v4288 = vld [vmem:[%s4279 + $0x20] sm:$0xf]
        %v4289 = vld [vmem:[%s4279 + $0x24] sm:$0xf]
        %v4290 = vld [vmem:[%s4279 + $0x28] sm:$0xf]
        %v4291 = vld [vmem:[%s4279 + $0x2c] sm:$0xf]
        %v4292 = vld [vmem:[%s4279 + $0x30] sm:$0xf]
        %v4293 = vld [vmem:[%s4279 + $0x34] sm:$0xf]
        %v4294 = vld [vmem:[%s4279 + $0x38] sm:$0xf]
        %v4295 = vld [vmem:[%s4279 + $0x3c] sm:$0xf]
        %v4296 = vld [vmem:[%s4279 + $0x40] sm:$0xf]
        %v4297 = vld [vmem:[%s4279 + $0x44] sm:$0xf]
        %v4298 = vld [vmem:[%s4279 + $0x48] sm:$0xf]
        %v4299 = vld [vmem:[%s4279 + $0x4c] sm:$0xf]
        %v4300 = vld [vmem:[%s4279 + $0x50] sm:$0xf]
        %v4301 = vld [vmem:[%s4279 + $0x54] sm:$0xf]
        %v4302 = vld [vmem:[%s4279 + $0x58] sm:$0xf]
        %v4303 = vld [vmem:[%s4279 + $0x5c] sm:$0xf]
        %v4304 = vld [vmem:[%s4279 + $0x60] sm:$0xf]
        %v4305 = vld [vmem:[%s4279 + $0x64] sm:$0xf]
        %v4306 = vld [vmem:[%s4279 + $0x68] sm:$0xf]
        %v4307 = vld [vmem:[%s4279 + $0x6c] sm:$0xf]
        %v4308 = vld [vmem:[%s4279 + $0x70] sm:$0xf]
        %v4309 = vld [vmem:[%s4279 + $0x74] sm:$0xf]
        %v4310 = vld [vmem:[%s4279 + $0x78] sm:$0xf]
        %v4311 = vld [vmem:[%s4279 + $0x7c] sm:$0xf]
        %vm4312 = vsmask.f32 2304
        %v4314 = vshrl.u32 %v3978, 16
        %v4316 = vrot.slane %v4314, 5
        %v4317 = vshll.u32 %v3978, 16
        %v4319 = vrot.slane %v4317, 6
        %v4320 = vor.u32 %v4316, %v4319
        %v4321 = vrot.slane %v850, 5
        %v4322 = vrot.slane %v834, 6
        %v4323 = vor.u32 %v4321, %v4322
        %v4324 = vsel %vm4312, %v4320, %v4323
        %v4326 = vshrl.u32 %v3979, 16
        %v4328 = vrot.slane %v4326, 5
        %v4329 = vshll.u32 %v3979, 16
        %v4331 = vrot.slane %v4329, 6
        %v4332 = vor.u32 %v4328, %v4331
        %v4333 = vrot.slane %v858, 5
        %v4334 = vrot.slane %v846, 6
        %v4335 = vor.u32 %v4333, %v4334
        %v4336 = vsel %vm4312, %v4332, %v4335
        %v4337 = vrot.slane %v866, 5
        %v4338 = vrot.slane %v854, 6
        %v4339 = vor.u32 %v4337, %v4338
        %v4340 = vsel %vm4312, %v4323, %v4339
        %v4341 = vrot.slane %v874, 5
        %v4342 = vrot.slane %v862, 6
        %v4343 = vor.u32 %v4341, %v4342
        %v4344 = vsel %vm4312, %v4335, %v4343
        %v4345 = vrot.slane %v882, 5
        %v4346 = vrot.slane %v870, 6
        %v4347 = vor.u32 %v4345, %v4346
        %v4348 = vsel %vm4312, %v4339, %v4347
        %v4349 = vrot.slane %v890, 5
        %v4350 = vrot.slane %v878, 6
        %v4351 = vor.u32 %v4349, %v4350
        %v4352 = vsel %vm4312, %v4343, %v4351
        %v4353 = vrot.slane %v898, 5
        %v4354 = vrot.slane %v886, 6
        %v4355 = vor.u32 %v4353, %v4354
        %v4356 = vsel %vm4312, %v4347, %v4355
        %v4357 = vrot.slane %v906, 5
        %v4358 = vrot.slane %v894, 6
        %v4359 = vor.u32 %v4357, %v4358
        %v4360 = vsel %vm4312, %v4351, %v4359
        %v4361 = vrot.slane %v914, 5
        %v4362 = vrot.slane %v902, 6
        %v4363 = vor.u32 %v4361, %v4362
        %v4364 = vsel %vm4312, %v4355, %v4363
        %v4365 = vrot.slane %v922, 5
        %v4366 = vrot.slane %v910, 6
        %v4367 = vor.u32 %v4365, %v4366
        %v4368 = vsel %vm4312, %v4359, %v4367
        %v4369 = vrot.slane %v930, 5
        %v4370 = vrot.slane %v918, 6
        %v4371 = vor.u32 %v4369, %v4370
        %v4372 = vsel %vm4312, %v4363, %v4371
        %v4373 = vrot.slane %v938, 5
        %v4374 = vrot.slane %v926, 6
        %v4375 = vor.u32 %v4373, %v4374
        %v4376 = vsel %vm4312, %v4367, %v4375
        %v4377 = vrot.slane %v946, 5
        %v4378 = vrot.slane %v934, 6
        %v4379 = vor.u32 %v4377, %v4378
        %v4380 = vsel %vm4312, %v4371, %v4379
        %v4381 = vrot.slane %v954, 5
        %v4382 = vrot.slane %v942, 6
        %v4383 = vor.u32 %v4381, %v4382
        %v4384 = vsel %vm4312, %v4375, %v4383
        %v4386 = vshrl.u32 %v4277, 16
        %v4388 = vrot.slane %v4386, 5
        %v4389 = vshll.u32 %v4277, 16
        %v4391 = vrot.slane %v4389, 6
        %v4392 = vor.u32 %v4388, %v4391
        %v4393 = vsel %vm4312, %v4379, %v4392
        %v4395 = vshrl.u32 %v4278, 16
        %v4397 = vrot.slane %v4395, 5
        %v4398 = vshll.u32 %v4278, 16
        %v4400 = vrot.slane %v4398, 6
        %v4401 = vor.u32 %v4397, %v4400
        %v4402 = vsel %vm4312, %v4383, %v4401
        %v4451 = vunpack.c.l.b16 %v4280
        %v4452 = vunpack.c.l.b16 %v4281
        %v4453 = vunpack.c.l.b16 %v4282
        %v4454 = vunpack.c.l.b16 %v4283
        %v4455 = vunpack.c.l.b16 %v4284
        %v4456 = vunpack.c.l.b16 %v4285
        %v4457 = vunpack.c.l.b16 %v4286
        %v4458 = vunpack.c.l.b16 %v4287
        %v4459 = vunpack.c.l.b16 %v4288
        %v4460 = vunpack.c.l.b16 %v4289
        %v4461 = vunpack.c.l.b16 %v4290
        %v4462 = vunpack.c.l.b16 %v4291
        %v4463 = vunpack.c.l.b16 %v4292
        %v4464 = vunpack.c.l.b16 %v4293
        %v4465 = vunpack.c.l.b16 %v4294
        %v4466 = vunpack.c.l.b16 %v4295
        %v4467 = vunpack.c.l.b16 %v4296
        %v4468 = vunpack.c.l.b16 %v4297
        %v4469 = vunpack.c.l.b16 %v4298
        %v4470 = vunpack.c.l.b16 %v4299
        %v4471 = vunpack.c.l.b16 %v4300
        %v4472 = vunpack.c.l.b16 %v4301
        %v4473 = vunpack.c.l.b16 %v4302
        %v4474 = vunpack.c.l.b16 %v4303
        %v4475 = vunpack.c.l.b16 %v4304
        %v4476 = vunpack.c.l.b16 %v4305
        %v4477 = vunpack.c.l.b16 %v4306
        %v4478 = vunpack.c.l.b16 %v4307
        %v4479 = vunpack.c.l.b16 %v4308
        %v4480 = vunpack.c.l.b16 %v4309
        %v4481 = vunpack.c.l.b16 %v4310
        %v4482 = vunpack.c.l.b16 %v4311
        %v4483 = vpack.c.b16 %v4452, %v4451
        %v4484 = vpack.c.b16 %v4454, %v4453
        %v4485 = vpack.c.b16 %v4456, %v4455
        %v4486 = vpack.c.b16 %v4458, %v4457
        %v4487 = vpack.c.b16 %v4460, %v4459
        %v4488 = vpack.c.b16 %v4462, %v4461
        %v4489 = vpack.c.b16 %v4464, %v4463
        %v4490 = vpack.c.b16 %v4466, %v4465
        %v4491 = vpack.c.b16 %v4468, %v4467
        %v4492 = vpack.c.b16 %v4470, %v4469
        %v4493 = vpack.c.b16 %v4472, %v4471
        %v4494 = vpack.c.b16 %v4474, %v4473
        %v4495 = vpack.c.b16 %v4476, %v4475
        %v4496 = vpack.c.b16 %v4478, %v4477
        %v4497 = vpack.c.b16 %v4480, %v4479
        %v4498 = vpack.c.b16 %v4482, %v4481
        %4515 = vmatprep.subr.bf16.mxu0 0
        %4516 = vmatpush1.bf16.msra.mxu0 %v4483
        %4517 = vmatprep.subr.bf16.mxu0 0
        %4518 = vmatpush1.bf16.msra.mxu0 %v4484
        %4519 = vmatprep.subr.bf16.mxu0 0
        %4520 = vmatpush1.bf16.msra.mxu0 %v4485
        %4521 = vmatprep.subr.bf16.mxu0 0
        %4522 = vmatpush1.bf16.msra.mxu0 %v4486
        %4523 = vmatprep.subr.bf16.mxu0 0
        %4524 = vmatpush1.bf16.msra.mxu0 %v4487
        %4525 = vmatprep.subr.bf16.mxu0 0
        %4526 = vmatpush1.bf16.msra.mxu0 %v4488
        %4527 = vmatprep.subr.bf16.mxu0 0
        %4528 = vmatpush1.bf16.msra.mxu0 %v4489
        %4529 = vmatprep.subr.bf16.mxu0 0
        %4530 = vmatpush1.bf16.msra.mxu0 %v4490
        %4531 = vmatprep.subr.bf16.mxu0 0
        %4532 = vmatpush1.bf16.msra.mxu0 %v4491
        %4533 = vmatprep.subr.bf16.mxu0 0
        %4534 = vmatpush1.bf16.msra.mxu0 %v4492
        %4535 = vmatprep.subr.bf16.mxu0 0
        %4536 = vmatpush1.bf16.msra.mxu0 %v4493
        %4537 = vmatprep.subr.bf16.mxu0 0
        %4538 = vmatpush1.bf16.msra.mxu0 %v4494
        %4539 = vmatprep.subr.bf16.mxu0 0
        %4540 = vmatpush1.bf16.msra.mxu0 %v4495
        %4541 = vmatprep.subr.bf16.mxu0 0
        %4542 = vmatpush1.bf16.msra.mxu0 %v4496
        %4543 = vmatprep.subr.bf16.mxu0 0
        %4544 = vmatpush1.bf16.msra.mxu0 %v4497
        %4545 = vmatprep.subr.bf16.mxu0 0
        %4546 = vmatpush1.bf16.msra.mxu0 %v4498
        %4547 = vmatprep.mubr.bf16.mxu0 %v4336
        %4548 = vmatmul.mubr.bf16.gmra.mrb[0].mxu0 %v4324
        %v4549 = vpop.f32.mrb[0].mxu0
        %v4550 = vadd.f32 0.0, %v4549
        %v4551 = vpop.f32.mrb[0].mxu0
        %v4552 = vpop.f32.mrb[0].mxu0
        %v4553 = vadd.f32 0.0, %v4552
        %v4554 = vpop.f32.mrb[0].mxu0
        %4555 = vmatprep.mubr.bf16.mxu0 %v4344
        %4556 = vmatmul.mubr.bf16.gmra.mrb[0].mxu0 %v4340
        %v4557 = vpop.f32.mrb[0].mxu0
        %v4558 = vadd.f32 0.0, %v4557
        %v4559 = vpop.f32.mrb[0].mxu0
        %v4560 = vpop.f32.mrb[0].mxu0
        %v4561 = vadd.f32 0.0, %v4560
        %v4562 = vpop.f32.mrb[0].mxu0
        %4563 = vmatprep.mubr.bf16.mxu0 %v4352
        %4564 = vmatmul.mubr.bf16.gmra.mrb[0].mxu0 %v4348
        %v4565 = vpop.f32.mrb[0].mxu0
        %v4566 = vadd.f32 0.0, %v4565
        %v4567 = vpop.f32.mrb[0].mxu0
        %v4568 = vpop.f32.mrb[0].mxu0
        %v4569 = vadd.f32 0.0, %v4568
        %v4570 = vpop.f32.mrb[0].mxu0
        %4571 = vmatprep.mubr.bf16.mxu0 %v4360
        %4572 = vmatmul.mubr.bf16.gmra.mrb[0].mxu0 %v4356
        %v4573 = vpop.f32.mrb[0].mxu0
        %v4574 = vadd.f32 0.0, %v4573
        %v4575 = vpop.f32.mrb[0].mxu0
        %v4576 = vpop.f32.mrb[0].mxu0
        %v4577 = vadd.f32 0.0, %v4576
        %v4578 = vpop.f32.mrb[0].mxu0
        %4579 = vmatprep.mubr.bf16.mxu0 %v4368
        %4580 = vmatmul.mubr.bf16.gmra.mrb[0].mxu0 %v4364
        %v4581 = vpop.f32.mrb[0].mxu0
        %v4582 = vadd.f32 0.0, %v4581
        %v4583 = vpop.f32.mrb[0].mxu0
        %v4584 = vpop.f32.mrb[0].mxu0
        %v4585 = vadd.f32 0.0, %v4584
        %v4586 = vpop.f32.mrb[0].mxu0
        %4587 = vmatprep.mubr.bf16.mxu0 %v4376
        %4588 = vmatmul.mubr.bf16.gmra.mrb[0].mxu0 %v4372
        %v4589 = vpop.f32.mrb[0].mxu0
        %v4590 = vadd.f32 0.0, %v4589
        %v4591 = vpop.f32.mrb[0].mxu0
        %v4592 = vpop.f32.mrb[0].mxu0
        %v4593 = vadd.f32 0.0, %v4592
        %v4594 = vpop.f32.mrb[0].mxu0
        %4595 = vmatprep.mubr.bf16.mxu0 %v4384
        %4596 = vmatmul.mubr.bf16.gmra.mrb[0].mxu0 %v4380
        %v4597 = vpop.f32.mrb[0].mxu0
        %v4598 = vadd.f32 0.0, %v4597
        %v4599 = vpop.f32.mrb[0].mxu0
        %v4600 = vpop.f32.mrb[0].mxu0
        %v4601 = vadd.f32 0.0, %v4600
        %v4602 = vpop.f32.mrb[0].mxu0
        %4603 = vmatprep.mubr.bf16.mxu0 %v4402
        %4604 = vmatmul.mubr.bf16.gmra.mrb[0].mxu0 %v4393
        %v4605 = vpop.f32.mrb[0].mxu0
        %v4606 = vadd.f32 0.0, %v4605
        %v4607 = vpop.f32.mrb[0].mxu0
        %v4608 = vpop.f32.mrb[0].mxu0
        %v4609 = vadd.f32 0.0, %v4608
        %v4610 = vpop.f32.mrb[0].mxu0
        %4611 = vdwg.mxu0
        %v4612 = vadd.f32 %v4261, %v4550
        %v4613 = vadd.f32 %v4262, %v4553
        %v4614 = vadd.f32 %v4263, %v4558
        %v4615 = vadd.f32 %v4264, %v4561
        %v4616 = vadd.f32 %v4265, %v4566
        %v4617 = vadd.f32 %v4266, %v4569
        %v4618 = vadd.f32 %v4267, %v4574
        %v4619 = vadd.f32 %v4268, %v4577
        %v4620 = vadd.f32 %v4269, %v4582
        %v4621 = vadd.f32 %v4270, %v4585
        %v4622 = vadd.f32 %v4271, %v4590
        %v4623 = vadd.f32 %v4272, %v4593
        %v4624 = vadd.f32 %v4273, %v4598
        %v4625 = vadd.f32 %v4274, %v4601
        %v4626 = vadd.f32 %v4275, %v4606
        %v4627 = vadd.f32 %v4276, %v4609
        %v4628 = vld [vmem:[#allocation2] sm:$0xc0]
        %v4629 = vld [vmem:[#allocation2 + $0x8] sm:$0xc0]
        %s4630 = scalar_lea.vmem [#allocation6], 1536
        %v4631 = vld [vmem:[%s4630] sm:$0xf]
        %v4632 = vld [vmem:[%s4630 + $0x4] sm:$0xf]
        %v4633 = vld [vmem:[%s4630 + $0x8] sm:$0xf]
        %v4634 = vld [vmem:[%s4630 + $0xc] sm:$0xf]
        %v4635 = vld [vmem:[%s4630 + $0x10] sm:$0xf]
        %v4636 = vld [vmem:[%s4630 + $0x14] sm:$0xf]
        %v4637 = vld [vmem:[%s4630 + $0x18] sm:$0xf]
        %v4638 = vld [vmem:[%s4630 + $0x1c] sm:$0xf]
        %v4639 = vld [vmem:[%s4630 + $0x20] sm:$0xf]
        %v4640 = vld [vmem:[%s4630 + $0x24] sm:$0xf]
        %v4641 = vld [vmem:[%s4630 + $0x28] sm:$0xf]
        %v4642 = vld [vmem:[%s4630 + $0x2c] sm:$0xf]
        %v4643 = vld [vmem:[%s4630 + $0x30] sm:$0xf]
        %v4644 = vld [vmem:[%s4630 + $0x34] sm:$0xf]
        %v4645 = vld [vmem:[%s4630 + $0x38] sm:$0xf]
        %v4646 = vld [vmem:[%s4630 + $0x3c] sm:$0xf]
        %v4647 = vld [vmem:[%s4630 + $0x40] sm:$0xf]
        %v4648 = vld [vmem:[%s4630 + $0x44] sm:$0xf]
        %v4649 = vld [vmem:[%s4630 + $0x48] sm:$0xf]
        %v4650 = vld [vmem:[%s4630 + $0x4c] sm:$0xf]
        %v4651 = vld [vmem:[%s4630 + $0x50] sm:$0xf]
        %v4652 = vld [vmem:[%s4630 + $0x54] sm:$0xf]
        %v4653 = vld [vmem:[%s4630 + $0x58] sm:$0xf]
        %v4654 = vld [vmem:[%s4630 + $0x5c] sm:$0xf]
        %v4655 = vld [vmem:[%s4630 + $0x60] sm:$0xf]
        %v4656 = vld [vmem:[%s4630 + $0x64] sm:$0xf]
        %v4657 = vld [vmem:[%s4630 + $0x68] sm:$0xf]
        %v4658 = vld [vmem:[%s4630 + $0x6c] sm:$0xf]
        %v4659 = vld [vmem:[%s4630 + $0x70] sm:$0xf]
        %v4660 = vld [vmem:[%s4630 + $0x74] sm:$0xf]
        %v4661 = vld [vmem:[%s4630 + $0x78] sm:$0xf]
        %v4662 = vld [vmem:[%s4630 + $0x7c] sm:$0xf]
        %vm4667 = vcmask 1041408
        %v4668 = vrot.slane %v4628, 6
        %v4669 = vrot.slane %v744, 6
        %v4670 = vsel %vm4667, %v4668, %v4669
        %v4671 = vrot.slane %v4629, 6
        %v4672 = vrot.slane %v745, 6
        %v4673 = vsel %vm4667, %v4671, %v4672
        %v4674 = vrot.slane %v746, 6
        %v4675 = vsel %vm4667, %v4669, %v4674
        %v4676 = vrot.slane %v747, 6
        %v4677 = vsel %vm4667, %v4672, %v4676
        %v4678 = vrot.slane %v748, 6
        %v4679 = vsel %vm4667, %v4674, %v4678
        %v4680 = vrot.slane %v749, 6
        %v4681 = vsel %vm4667, %v4676, %v4680
        %v4682 = vrot.slane %v750, 6
        %v4683 = vsel %vm4667, %v4678, %v4682
        %v4684 = vrot.slane %v751, 6
        %v4685 = vsel %vm4667, %v4680, %v4684
        %v4686 = vrot.slane %v752, 6
        %v4687 = vsel %vm4667, %v4682, %v4686
        %v4688 = vrot.slane %v753, 6
        %v4689 = vsel %vm4667, %v4684, %v4688
        %v4690 = vrot.slane %v754, 6
        %v4691 = vsel %vm4667, %v4686, %v4690
        %v4692 = vrot.slane %v755, 6
        %v4693 = vsel %vm4667, %v4688, %v4692
        %v4694 = vrot.slane %v756, 6
        %v4695 = vsel %vm4667, %v4690, %v4694
        %v4696 = vrot.slane %v757, 6
        %v4697 = vsel %vm4667, %v4692, %v4696
        %v4698 = vrot.slane %v4277, 6
        %v4699 = vsel %vm4667, %v4694, %v4698
        %v4700 = vrot.slane %v4278, 6
        %v4701 = vsel %vm4667, %v4696, %v4700
        %v4750 = vunpack.c.l.b16 %v4631
        %v4751 = vunpack.c.l.b16 %v4632
        %v4752 = vunpack.c.l.b16 %v4633
        %v4753 = vunpack.c.l.b16 %v4634
        %v4754 = vunpack.c.l.b16 %v4635
        %v4755 = vunpack.c.l.b16 %v4636
        %v4756 = vunpack.c.l.b16 %v4637
        %v4757 = vunpack.c.l.b16 %v4638
        %v4758 = vunpack.c.l.b16 %v4639
        %v4759 = vunpack.c.l.b16 %v4640
        %v4760 = vunpack.c.l.b16 %v4641
        %v4761 = vunpack.c.l.b16 %v4642
        %v4762 = vunpack.c.l.b16 %v4643
        %v4763 = vunpack.c.l.b16 %v4644
        %v4764 = vunpack.c.l.b16 %v4645
        %v4765 = vunpack.c.l.b16 %v4646
        %v4766 = vunpack.c.l.b16 %v4647
        %v4767 = vunpack.c.l.b16 %v4648
        %v4768 = vunpack.c.l.b16 %v4649
        %v4769 = vunpack.c.l.b16 %v4650
        %v4770 = vunpack.c.l.b16 %v4651
        %v4771 = vunpack.c.l.b16 %v4652
        %v4772 = vunpack.c.l.b16 %v4653
        %v4773 = vunpack.c.l.b16 %v4654
        %v4774 = vunpack.c.l.b16 %v4655
        %v4775 = vunpack.c.l.b16 %v4656
        %v4776 = vunpack.c.l.b16 %v4657
        %v4777 = vunpack.c.l.b16 %v4658
        %v4778 = vunpack.c.l.b16 %v4659
        %v4779 = vunpack.c.l.b16 %v4660
        %v4780 = vunpack.c.l.b16 %v4661
        %v4781 = vunpack.c.l.b16 %v4662
        %v4782 = vpack.c.b16 %v4751, %v4750
        %v4783 = vpack.c.b16 %v4753, %v4752
        %v4784 = vpack.c.b16 %v4755, %v4754
        %v4785 = vpack.c.b16 %v4757, %v4756
        %v4786 = vpack.c.b16 %v4759, %v4758
        %v4787 = vpack.c.b16 %v4761, %v4760
        %v4788 = vpack.c.b16 %v4763, %v4762
        %v4789 = vpack.c.b16 %v4765, %v4764
        %v4790 = vpack.c.b16 %v4767, %v4766
        %v4791 = vpack.c.b16 %v4769, %v4768
        %v4792 = vpack.c.b16 %v4771, %v4770
        %v4793 = vpack.c.b16 %v4773, %v4772
        %v4794 = vpack.c.b16 %v4775, %v4774
        %v4795 = vpack.c.b16 %v4777, %v4776
        %v4796 = vpack.c.b16 %v4779, %v4778
        %v4797 = vpack.c.b16 %v4781, %v4780
        %4814 = vmatprep.subr.bf16.mxu0 0
        %4815 = vmatpush1.bf16.msra.mxu0 %v4782
        %4816 = vmatprep.subr.bf16.mxu0 0
        %4817 = vmatpush1.bf16.msra.mxu0 %v4783
        %4818 = vmatprep.subr.bf16.mxu0 0
        %4819 = vmatpush1.bf16.msra.mxu0 %v4784
        %4820 = vmatprep.subr.bf16.mxu0 0
        %4821 = vmatpush1.bf16.msra.mxu0 %v4785
        %4822 = vmatprep.subr.bf16.mxu0 0
        %4823 = vmatpush1.bf16.msra.mxu0 %v4786
        %4824 = vmatprep.subr.bf16.mxu0 0
        %4825 = vmatpush1.bf16.msra.mxu0 %v4787
        %4826 = vmatprep.subr.bf16.mxu0 0
        %4827 = vmatpush1.bf16.msra.mxu0 %v4788
        %4828 = vmatprep.subr.bf16.mxu0 0
        %4829 = vmatpush1.bf16.msra.mxu0 %v4789
        %4830 = vmatprep.subr.bf16.mxu0 0
        %4831 = vmatpush1.bf16.msra.mxu0 %v4790
        %4832 = vmatprep.subr.bf16.mxu0 0
        %4833 = vmatpush1.bf16.msra.mxu0 %v4791
        %4834 = vmatprep.subr.bf16.mxu0 0
        %4835 = vmatpush1.bf16.msra.mxu0 %v4792
        %4836 = vmatprep.subr.bf16.mxu0 0
        %4837 = vmatpush1.bf16.msra.mxu0 %v4793
        %4838 = vmatprep.subr.bf16.mxu0 0
        %4839 = vmatpush1.bf16.msra.mxu0 %v4794
        %4840 = vmatprep.subr.bf16.mxu0 0
        %4841 = vmatpush1.bf16.msra.mxu0 %v4795
        %4842 = vmatprep.subr.bf16.mxu0 0
        %4843 = vmatpush1.bf16.msra.mxu0 %v4796
        %4844 = vmatprep.subr.bf16.mxu0 0
        %4845 = vmatpush1.bf16.msra.mxu0 %v4797
        %4846 = vmatprep.mubr.bf16.mxu0 %v4673
        %4847 = vmatmul.mubr.bf16.gmra.mrb[0].mxu0 %v4670
        %v4848 = vpop.f32.mrb[0].mxu0
        %v4849 = vadd.f32 0.0, %v4848
        %v4850 = vpop.f32.mrb[0].mxu0
        %v4851 = vpop.f32.mrb[0].mxu0
        %v4852 = vadd.f32 0.0, %v4851
        %v4853 = vpop.f32.mrb[0].mxu0
        %4854 = vmatprep.mubr.bf16.mxu0 %v4677
        %4855 = vmatmul.mubr.bf16.gmra.mrb[0].mxu0 %v4675
        %v4856 = vpop.f32.mrb[0].mxu0
        %v4857 = vadd.f32 0.0, %v4856
        %v4858 = vpop.f32.mrb[0].mxu0
        %v4859 = vpop.f32.mrb[0].mxu0
        %v4860 = vadd.f32 0.0, %v4859
        %v4861 = vpop.f32.mrb[0].mxu0
        %4862 = vmatprep.mubr.bf16.mxu0 %v4681
        %4863 = vmatmul.mubr.bf16.gmra.mrb[0].mxu0 %v4679
        %v4864 = vpop.f32.mrb[0].mxu0
        %v4865 = vadd.f32 0.0, %v4864
        %v4866 = vpop.f32.mrb[0].mxu0
        %v4867 = vpop.f32.mrb[0].mxu0
        %v4868 = vadd.f32 0.0, %v4867
        %v4869 = vpop.f32.mrb[0].mxu0
        %4870 = vmatprep.mubr.bf16.mxu0 %v4685
        %4871 = vmatmul.mubr.bf16.gmra.mrb[0].mxu0 %v4683
        %v4872 = vpop.f32.mrb[0].mxu0
        %v4873 = vadd.f32 0.0, %v4872
        %v4874 = vpop.f32.mrb[0].mxu0
        %v4875 = vpop.f32.mrb[0].mxu0
        %v4876 = vadd.f32 0.0, %v4875
        %v4877 = vpop.f32.mrb[0].mxu0
        %4878 = vmatprep.mubr.bf16.mxu0 %v4689
        %4879 = vmatmul.mubr.bf16.gmra.mrb[0].mxu0 %v4687
        %v4880 = vpop.f32.mrb[0].mxu0
        %v4881 = vadd.f32 0.0, %v4880
        %v4882 = vpop.f32.mrb[0].mxu0
        %v4883 = vpop.f32.mrb[0].mxu0
        %v4884 = vadd.f32 0.0, %v4883
        %v4885 = vpop.f32.mrb[0].mxu0
        %4886 = vmatprep.mubr.bf16.mxu0 %v4693
        %4887 = vmatmul.mubr.bf16.gmra.mrb[0].mxu0 %v4691
        %v4888 = vpop.f32.mrb[0].mxu0
        %v4889 = vadd.f32 0.0, %v4888
        %v4890 = vpop.f32.mrb[0].mxu0
        %v4891 = vpop.f32.mrb[0].mxu0
        %v4892 = vadd.f32 0.0, %v4891
        %v4893 = vpop.f32.mrb[0].mxu0
        %4894 = vmatprep.mubr.bf16.mxu0 %v4697
        %4895 = vmatmul.mubr.bf16.gmra.mrb[0].mxu0 %v4695
        %v4896 = vpop.f32.mrb[0].mxu0
        %v4897 = vadd.f32 0.0, %v4896
        %v4898 = vpop.f32.mrb[0].mxu0
        %v4899 = vpop.f32.mrb[0].mxu0
        %v4900 = vadd.f32 0.0, %v4899
        %v4901 = vpop.f32.mrb[0].mxu0
        %4902 = vmatprep.mubr.bf16.mxu0 %v4701
        %4903 = vmatmul.mubr.bf16.gmra.mrb[0].mxu0 %v4699
        %v4904 = vpop.f32.mrb[0].mxu0
        %v4905 = vadd.f32 0.0, %v4904
        %v4906 = vpop.f32.mrb[0].mxu0
        %v4907 = vpop.f32.mrb[0].mxu0
        %v4908 = vadd.f32 0.0, %v4907
        %v4909 = vpop.f32.mrb[0].mxu0
        %4910 = vdwg.mxu0
        %v4911 = vadd.f32 %v4612, %v4849
        %v4912 = vadd.f32 %v4613, %v4852
        %v4913 = vadd.f32 %v4614, %v4857
        %v4914 = vadd.f32 %v4615, %v4860
        %v4915 = vadd.f32 %v4616, %v4865
        %v4916 = vadd.f32 %v4617, %v4868
        %v4917 = vadd.f32 %v4618, %v4873
        %v4918 = vadd.f32 %v4619, %v4876
        %v4919 = vadd.f32 %v4620, %v4881
        %v4920 = vadd.f32 %v4621, %v4884
        %v4921 = vadd.f32 %v4622, %v4889
        %v4922 = vadd.f32 %v4623, %v4892
        %v4923 = vadd.f32 %v4624, %v4897
        %v4924 = vadd.f32 %v4625, %v4900
        %v4925 = vadd.f32 %v4626, %v4905
        %v4926 = vadd.f32 %v4627, %v4908
        %v4927 = vld [vmem:[#allocation2 + $0x80] sm:$0x7f]
        %v4928 = vld [vmem:[#allocation2 + $0x88] sm:$0x7f]
        %s4929 = scalar_lea.vmem [#allocation6], 1664
        %v4930 = vld [vmem:[%s4929] sm:$0xf]
        %v4931 = vld [vmem:[%s4929 + $0x4] sm:$0xf]
        %v4932 = vld [vmem:[%s4929 + $0x8] sm:$0xf]
        %v4933 = vld [vmem:[%s4929 + $0xc] sm:$0xf]
        %v4934 = vld [vmem:[%s4929 + $0x10] sm:$0xf]
        %v4935 = vld [vmem:[%s4929 + $0x14] sm:$0xf]
        %v4936 = vld [vmem:[%s4929 + $0x18] sm:$0xf]
        %v4937 = vld [vmem:[%s4929 + $0x1c] sm:$0xf]
        %v4938 = vld [vmem:[%s4929 + $0x20] sm:$0xf]
        %v4939 = vld [vmem:[%s4929 + $0x24] sm:$0xf]
        %v4940 = vld [vmem:[%s4929 + $0x28] sm:$0xf]
        %v4941 = vld [vmem:[%s4929 + $0x2c] sm:$0xf]
        %v4942 = vld [vmem:[%s4929 + $0x30] sm:$0xf]
        %v4943 = vld [vmem:[%s4929 + $0x34] sm:$0xf]
        %v4944 = vld [vmem:[%s4929 + $0x38] sm:$0xf]
        %v4945 = vld [vmem:[%s4929 + $0x3c] sm:$0xf]
        %v4946 = vld [vmem:[%s4929 + $0x40] sm:$0xf]
        %v4947 = vld [vmem:[%s4929 + $0x44] sm:$0xf]
        %v4948 = vld [vmem:[%s4929 + $0x48] sm:$0xf]
        %v4949 = vld [vmem:[%s4929 + $0x4c] sm:$0xf]
        %v4950 = vld [vmem:[%s4929 + $0x50] sm:$0xf]
        %v4951 = vld [vmem:[%s4929 + $0x54] sm:$0xf]
        %v4952 = vld [vmem:[%s4929 + $0x58] sm:$0xf]
        %v4953 = vld [vmem:[%s4929 + $0x5c] sm:$0xf]
        %v4954 = vld [vmem:[%s4929 + $0x60] sm:$0xf]
        %v4955 = vld [vmem:[%s4929 + $0x64] sm:$0xf]
        %v4956 = vld [vmem:[%s4929 + $0x68] sm:$0xf]
        %v4957 = vld [vmem:[%s4929 + $0x6c] sm:$0xf]
        %v4958 = vld [vmem:[%s4929 + $0x70] sm:$0xf]
        %v4959 = vld [vmem:[%s4929 + $0x74] sm:$0xf]
        %v4960 = vld [vmem:[%s4929 + $0x78] sm:$0xf]
        %v4961 = vld [vmem:[%s4929 + $0x7c] sm:$0xf]
        %vm4962 = vsmask.f32 1280
        %v4964 = vshrl.u32 %v4628, 16
        %v4966 = vrot.slane %v4964, 6
        %v4967 = vshll.u32 %v4628, 16
        %v4969 = vrot.slane %v4967, 7
        %v4970 = vor.u32 %v4966, %v4969
        %v4971 = vrot.slane %v850, 6
        %v4972 = vrot.slane %v834, 7
        %v4973 = vor.u32 %v4971, %v4972
        %v4974 = vsel %vm4962, %v4970, %v4973
        %v4976 = vshrl.u32 %v4629, 16
        %v4978 = vrot.slane %v4976, 6
        %v4979 = vshll.u32 %v4629, 16
        %v4981 = vrot.slane %v4979, 7
        %v4982 = vor.u32 %v4978, %v4981
        %v4983 = vrot.slane %v858, 6
        %v4984 = vrot.slane %v846, 7
        %v4985 = vor.u32 %v4983, %v4984
        %v4986 = vsel %vm4962, %v4982, %v4985
        %v4987 = vrot.slane %v866, 6
        %v4988 = vrot.slane %v854, 7
        %v4989 = vor.u32 %v4987, %v4988
        %v4990 = vsel %vm4962, %v4973, %v4989
        %v4991 = vrot.slane %v874, 6
        %v4992 = vrot.slane %v862, 7
        %v4993 = vor.u32 %v4991, %v4992
        %v4994 = vsel %vm4962, %v4985, %v4993
        %v4995 = vrot.slane %v882, 6
        %v4996 = vrot.slane %v870, 7
        %v4997 = vor.u32 %v4995, %v4996
        %v4998 = vsel %vm4962, %v4989, %v4997
        %v4999 = vrot.slane %v890, 6
        %v5000 = vrot.slane %v878, 7
        %v5001 = vor.u32 %v4999, %v5000
        %v5002 = vsel %vm4962, %v4993, %v5001
        %v5003 = vrot.slane %v898, 6
        %v5004 = vrot.slane %v886, 7
        %v5005 = vor.u32 %v5003, %v5004
        %v5006 = vsel %vm4962, %v4997, %v5005
        %v5007 = vrot.slane %v906, 6
        %v5008 = vrot.slane %v894, 7
        %v5009 = vor.u32 %v5007, %v5008
        %v5010 = vsel %vm4962, %v5001, %v5009
        %v5011 = vrot.slane %v914, 6
        %v5012 = vrot.slane %v902, 7
        %v5013 = vor.u32 %v5011, %v5012
        %v5014 = vsel %vm4962, %v5005, %v5013
        %v5015 = vrot.slane %v922, 6
        %v5016 = vrot.slane %v910, 7
        %v5017 = vor.u32 %v5015, %v5016
        %v5018 = vsel %vm4962, %v5009, %v5017
        %v5019 = vrot.slane %v930, 6
        %v5020 = vrot.slane %v918, 7
        %v5021 = vor.u32 %v5019, %v5020
        %v5022 = vsel %vm4962, %v5013, %v5021
        %v5023 = vrot.slane %v938, 6
        %v5024 = vrot.slane %v926, 7
        %v5025 = vor.u32 %v5023, %v5024
        %v5026 = vsel %vm4962, %v5017, %v5025
        %v5027 = vrot.slane %v946, 6
        %v5028 = vrot.slane %v934, 7
        %v5029 = vor.u32 %v5027, %v5028
        %v5030 = vsel %vm4962, %v5021, %v5029
        %v5031 = vrot.slane %v954, 6
        %v5032 = vrot.slane %v942, 7
        %v5033 = vor.u32 %v5031, %v5032
        %v5034 = vsel %vm4962, %v5025, %v5033
        %v5036 = vshrl.u32 %v4927, 16
        %v5038 = vrot.slane %v5036, 6
        %v5039 = vshll.u32 %v4927, 16
        %v5041 = vrot.slane %v5039, 7
        %v5042 = vor.u32 %v5038, %v5041
        %v5043 = vsel %vm4962, %v5029, %v5042
        %v5045 = vshrl.u32 %v4928, 16
        %v5047 = vrot.slane %v5045, 6
        %v5048 = vshll.u32 %v4928, 16
        %v5050 = vrot.slane %v5048, 7
        %v5051 = vor.u32 %v5047, %v5050
        %v5052 = vsel %vm4962, %v5033, %v5051
        %v5101 = vunpack.c.l.b16 %v4930
        %v5102 = vunpack.c.l.b16 %v4931
        %v5103 = vunpack.c.l.b16 %v4932
        %v5104 = vunpack.c.l.b16 %v4933
        %v5105 = vunpack.c.l.b16 %v4934
        %v5106 = vunpack.c.l.b16 %v4935
        %v5107 = vunpack.c.l.b16 %v4936
        %v5108 = vunpack.c.l.b16 %v4937
        %v5109 = vunpack.c.l.b16 %v4938
        %v5110 = vunpack.c.l.b16 %v4939
        %v5111 = vunpack.c.l.b16 %v4940
        %v5112 = vunpack.c.l.b16 %v4941
        %v5113 = vunpack.c.l.b16 %v4942
        %v5114 = vunpack.c.l.b16 %v4943
        %v5115 = vunpack.c.l.b16 %v4944
        %v5116 = vunpack.c.l.b16 %v4945
        %v5117 = vunpack.c.l.b16 %v4946
        %v5118 = vunpack.c.l.b16 %v4947
        %v5119 = vunpack.c.l.b16 %v4948
        %v5120 = vunpack.c.l.b16 %v4949
        %v5121 = vunpack.c.l.b16 %v4950
        %v5122 = vunpack.c.l.b16 %v4951
        %v5123 = vunpack.c.l.b16 %v4952
        %v5124 = vunpack.c.l.b16 %v4953
        %v5125 = vunpack.c.l.b16 %v4954
        %v5126 = vunpack.c.l.b16 %v4955
        %v5127 = vunpack.c.l.b16 %v4956
        %v5128 = vunpack.c.l.b16 %v4957
        %v5129 = vunpack.c.l.b16 %v4958
        %v5130 = vunpack.c.l.b16 %v4959
        %v5131 = vunpack.c.l.b16 %v4960
        %v5132 = vunpack.c.l.b16 %v4961
        %v5133 = vpack.c.b16 %v5102, %v5101
        %v5134 = vpack.c.b16 %v5104, %v5103
        %v5135 = vpack.c.b16 %v5106, %v5105
        %v5136 = vpack.c.b16 %v5108, %v5107
        %v5137 = vpack.c.b16 %v5110, %v5109
        %v5138 = vpack.c.b16 %v5112, %v5111
        %v5139 = vpack.c.b16 %v5114, %v5113
        %v5140 = vpack.c.b16 %v5116, %v5115
        %v5141 = vpack.c.b16 %v5118, %v5117
        %v5142 = vpack.c.b16 %v5120, %v5119
        %v5143 = vpack.c.b16 %v5122, %v5121
        %v5144 = vpack.c.b16 %v5124, %v5123
        %v5145 = vpack.c.b16 %v5126, %v5125
        %v5146 = vpack.c.b16 %v5128, %v5127
        %v5147 = vpack.c.b16 %v5130, %v5129
        %v5148 = vpack.c.b16 %v5132, %v5131
        %5165 = vmatprep.subr.bf16.mxu0 0
        %5166 = vmatpush1.bf16.msra.mxu0 %v5133
        %5167 = vmatprep.subr.bf16.mxu0 0
        %5168 = vmatpush1.bf16.msra.mxu0 %v5134
        %5169 = vmatprep.subr.bf16.mxu0 0
        %5170 = vmatpush1.bf16.msra.mxu0 %v5135
        %5171 = vmatprep.subr.bf16.mxu0 0
        %5172 = vmatpush1.bf16.msra.mxu0 %v5136
        %5173 = vmatprep.subr.bf16.mxu0 0
        %5174 = vmatpush1.bf16.msra.mxu0 %v5137
        %5175 = vmatprep.subr.bf16.mxu0 0
        %5176 = vmatpush1.bf16.msra.mxu0 %v5138
        %5177 = vmatprep.subr.bf16.mxu0 0
        %5178 = vmatpush1.bf16.msra.mxu0 %v5139
        %5179 = vmatprep.subr.bf16.mxu0 0
        %5180 = vmatpush1.bf16.msra.mxu0 %v5140
        %5181 = vmatprep.subr.bf16.mxu0 0
        %5182 = vmatpush1.bf16.msra.mxu0 %v5141
        %5183 = vmatprep.subr.bf16.mxu0 0
        %5184 = vmatpush1.bf16.msra.mxu0 %v5142
        %5185 = vmatprep.subr.bf16.mxu0 0
        %5186 = vmatpush1.bf16.msra.mxu0 %v5143
        %5187 = vmatprep.subr.bf16.mxu0 0
        %5188 = vmatpush1.bf16.msra.mxu0 %v5144
        %5189 = vmatprep.subr.bf16.mxu0 0
        %5190 = vmatpush1.bf16.msra.mxu0 %v5145
        %5191 = vmatprep.subr.bf16.mxu0 0
        %5192 = vmatpush1.bf16.msra.mxu0 %v5146
        %5193 = vmatprep.subr.bf16.mxu0 0
        %5194 = vmatpush1.bf16.msra.mxu0 %v5147
        %5195 = vmatprep.subr.bf16.mxu0 0
        %5196 = vmatpush1.bf16.msra.mxu0 %v5148
        %5197 = vmatprep.mubr.bf16.mxu0 %v4986
        %5198 = vmatmul.mubr.bf16.gmra.mrb[0].mxu0 %v4974
        %v5199 = vpop.f32.mrb[0].mxu0
        %v5200 = vadd.f32 0.0, %v5199
        %v5201 = vpop.f32.mrb[0].mxu0
        %v5202 = vpop.f32.mrb[0].mxu0
        %v5203 = vadd.f32 0.0, %v5202
        %v5204 = vpop.f32.mrb[0].mxu0
        %5205 = vmatprep.mubr.bf16.mxu0 %v4994
        %5206 = vmatmul.mubr.bf16.gmra.mrb[0].mxu0 %v4990
        %v5207 = vpop.f32.mrb[0].mxu0
        %v5208 = vadd.f32 0.0, %v5207
        %v5209 = vpop.f32.mrb[0].mxu0
        %v5210 = vpop.f32.mrb[0].mxu0
        %v5211 = vadd.f32 0.0, %v5210
        %v5212 = vpop.f32.mrb[0].mxu0
        %5213 = vmatprep.mubr.bf16.mxu0 %v5002
        %5214 = vmatmul.mubr.bf16.gmra.mrb[0].mxu0 %v4998
        %v5215 = vpop.f32.mrb[0].mxu0
        %v5216 = vadd.f32 0.0, %v5215
        %v5217 = vpop.f32.mrb[0].mxu0
        %v5218 = vpop.f32.mrb[0].mxu0
        %v5219 = vadd.f32 0.0, %v5218
        %v5220 = vpop.f32.mrb[0].mxu0
        %5221 = vmatprep.mubr.bf16.mxu0 %v5010
        %5222 = vmatmul.mubr.bf16.gmra.mrb[0].mxu0 %v5006
        %v5223 = vpop.f32.mrb[0].mxu0
        %v5224 = vadd.f32 0.0, %v5223
        %v5225 = vpop.f32.mrb[0].mxu0
        %v5226 = vpop.f32.mrb[0].mxu0
        %v5227 = vadd.f32 0.0, %v5226
        %v5228 = vpop.f32.mrb[0].mxu0
        %5229 = vmatprep.mubr.bf16.mxu0 %v5018
        %5230 = vmatmul.mubr.bf16.gmra.mrb[0].mxu0 %v5014
        %v5231 = vpop.f32.mrb[0].mxu0
        %v5232 = vadd.f32 0.0, %v5231
        %v5233 = vpop.f32.mrb[0].mxu0
        %v5234 = vpop.f32.mrb[0].mxu0
        %v5235 = vadd.f32 0.0, %v5234
        %v5236 = vpop.f32.mrb[0].mxu0
        %5237 = vmatprep.mubr.bf16.mxu0 %v5026
        %5238 = vmatmul.mubr.bf16.gmra.mrb[0].mxu0 %v5022
        %v5239 = vpop.f32.mrb[0].mxu0
        %v5240 = vadd.f32 0.0, %v5239
        %v5241 = vpop.f32.mrb[0].mxu0
        %v5242 = vpop.f32.mrb[0].mxu0
        %v5243 = vadd.f32 0.0, %v5242
        %v5244 = vpop.f32.mrb[0].mxu0
        %5245 = vmatprep.mubr.bf16.mxu0 %v5034
        %5246 = vmatmul.mubr.bf16.gmra.mrb[0].mxu0 %v5030
        %v5247 = vpop.f32.mrb[0].mxu0
        %v5248 = vadd.f32 0.0, %v5247
        %v5249 = vpop.f32.mrb[0].mxu0
        %v5250 = vpop.f32.mrb[0].mxu0
        %v5251 = vadd.f32 0.0, %v5250
        %v5252 = vpop.f32.mrb[0].mxu0
        %5253 = vmatprep.mubr.bf16.mxu0 %v5052
        %5254 = vmatmul.mubr.bf16.gmra.mrb[0].mxu0 %v5043
        %v5255 = vpop.f32.mrb[0].mxu0
        %v5256 = vadd.f32 0.0, %v5255
        %v5257 = vpop.f32.mrb[0].mxu0
        %v5258 = vpop.f32.mrb[0].mxu0
        %v5259 = vadd.f32 0.0, %v5258
        %v5260 = vpop.f32.mrb[0].mxu0
        %5261 = vdwg.mxu0
        %v5262 = vadd.f32 %v4911, %v5200
        %v5263 = vadd.f32 %v4912, %v5203
        %v5264 = vadd.f32 %v4913, %v5208
        %v5265 = vadd.f32 %v4914, %v5211
        %v5266 = vadd.f32 %v4915, %v5216
        %v5267 = vadd.f32 %v4916, %v5219
        %v5268 = vadd.f32 %v4917, %v5224
        %v5269 = vadd.f32 %v4918, %v5227
        %v5270 = vadd.f32 %v4919, %v5232
        %v5271 = vadd.f32 %v4920, %v5235
        %v5272 = vadd.f32 %v4921, %v5240
        %v5273 = vadd.f32 %v4922, %v5243
        %v5274 = vadd.f32 %v4923, %v5248
        %v5275 = vadd.f32 %v4924, %v5251
        %v5276 = vadd.f32 %v4925, %v5256
        %v5277 = vadd.f32 %v4926, %v5259
        %v5278 = vld [vmem:[#allocation2] sm:$0x80]
        %v5279 = vld [vmem:[#allocation2 + $0x8] sm:$0x80]
        %s5280 = scalar_lea.vmem [#allocation6], 1792
        %v5281 = vld [vmem:[%s5280] sm:$0xf]
        %v5282 = vld [vmem:[%s5280 + $0x4] sm:$0xf]
        %v5283 = vld [vmem:[%s5280 + $0x8] sm:$0xf]
        %v5284 = vld [vmem:[%s5280 + $0xc] sm:$0xf]
        %v5285 = vld [vmem:[%s5280 + $0x10] sm:$0xf]
        %v5286 = vld [vmem:[%s5280 + $0x14] sm:$0xf]
        %v5287 = vld [vmem:[%s5280 + $0x18] sm:$0xf]
        %v5288 = vld [vmem:[%s5280 + $0x1c] sm:$0xf]
        %v5289 = vld [vmem:[%s5280 + $0x20] sm:$0xf]
        %v5290 = vld [vmem:[%s5280 + $0x24] sm:$0xf]
        %v5291 = vld [vmem:[%s5280 + $0x28] sm:$0xf]
        %v5292 = vld [vmem:[%s5280 + $0x2c] sm:$0xf]
        %v5293 = vld [vmem:[%s5280 + $0x30] sm:$0xf]
        %v5294 = vld [vmem:[%s5280 + $0x34] sm:$0xf]
        %v5295 = vld [vmem:[%s5280 + $0x38] sm:$0xf]
        %v5296 = vld [vmem:[%s5280 + $0x3c] sm:$0xf]
        %v5297 = vld [vmem:[%s5280 + $0x40] sm:$0xf]
        %v5298 = vld [vmem:[%s5280 + $0x44] sm:$0xf]
        %v5299 = vld [vmem:[%s5280 + $0x48] sm:$0xf]
        %v5300 = vld [vmem:[%s5280 + $0x4c] sm:$0xf]
        %v5301 = vld [vmem:[%s5280 + $0x50] sm:$0xf]
        %v5302 = vld [vmem:[%s5280 + $0x54] sm:$0xf]
        %v5303 = vld [vmem:[%s5280 + $0x58] sm:$0xf]
        %v5304 = vld [vmem:[%s5280 + $0x5c] sm:$0xf]
        %v5305 = vld [vmem:[%s5280 + $0x60] sm:$0xf]
        %v5306 = vld [vmem:[%s5280 + $0x64] sm:$0xf]
        %v5307 = vld [vmem:[%s5280 + $0x68] sm:$0xf]
        %v5308 = vld [vmem:[%s5280 + $0x6c] sm:$0xf]
        %v5309 = vld [vmem:[%s5280 + $0x70] sm:$0xf]
        %v5310 = vld [vmem:[%s5280 + $0x74] sm:$0xf]
        %v5311 = vld [vmem:[%s5280 + $0x78] sm:$0xf]
        %v5312 = vld [vmem:[%s5280 + $0x7c] sm:$0xf]
        %vm5317 = vcmask 1040384
        %v5318 = vrot.slane %v5278, 7
        %v5319 = vrot.slane %v744, 7
        %v5320 = vsel %vm5317, %v5318, %v5319
        %v5321 = vrot.slane %v5279, 7
        %v5322 = vrot.slane %v745, 7
        %v5323 = vsel %vm5317, %v5321, %v5322
        %v5324 = vrot.slane %v746, 7
        %v5325 = vsel %vm5317, %v5319, %v5324
        %v5326 = vrot.slane %v747, 7
        %v5327 = vsel %vm5317, %v5322, %v5326
        %v5328 = vrot.slane %v748, 7
        %v5329 = vsel %vm5317, %v5324, %v5328
        %v5330 = vrot.slane %v749, 7
        %v5331 = vsel %vm5317, %v5326, %v5330
        %v5332 = vrot.slane %v750, 7
        %v5333 = vsel %vm5317, %v5328, %v5332
        %v5334 = vrot.slane %v751, 7
        %v5335 = vsel %vm5317, %v5330, %v5334
        %v5336 = vrot.slane %v752, 7
        %v5337 = vsel %vm5317, %v5332, %v5336
        %v5338 = vrot.slane %v753, 7
        %v5339 = vsel %vm5317, %v5334, %v5338
        %v5340 = vrot.slane %v754, 7
        %v5341 = vsel %vm5317, %v5336, %v5340
        %v5342 = vrot.slane %v755, 7
        %v5343 = vsel %vm5317, %v5338, %v5342
        %v5344 = vrot.slane %v756, 7
        %v5345 = vsel %vm5317, %v5340, %v5344
        %v5346 = vrot.slane %v757, 7
        %v5347 = vsel %vm5317, %v5342, %v5346
        %v5348 = vrot.slane %v4927, 7
        %v5349 = vsel %vm5317, %v5344, %v5348
        %v5350 = vrot.slane %v4928, 7
        %v5351 = vsel %vm5317, %v5346, %v5350
        %v5400 = vunpack.c.l.b16 %v5281
        %v5401 = vunpack.c.l.b16 %v5282
        %v5402 = vunpack.c.l.b16 %v5283
        %v5403 = vunpack.c.l.b16 %v5284
        %v5404 = vunpack.c.l.b16 %v5285
        %v5405 = vunpack.c.l.b16 %v5286
        %v5406 = vunpack.c.l.b16 %v5287
        %v5407 = vunpack.c.l.b16 %v5288
        %v5408 = vunpack.c.l.b16 %v5289
        %v5409 = vunpack.c.l.b16 %v5290
        %v5410 = vunpack.c.l.b16 %v5291
        %v5411 = vunpack.c.l.b16 %v5292
        %v5412 = vunpack.c.l.b16 %v5293
        %v5413 = vunpack.c.l.b16 %v5294
        %v5414 = vunpack.c.l.b16 %v5295
        %v5415 = vunpack.c.l.b16 %v5296
        %v5416 = vunpack.c.l.b16 %v5297
        %v5417 = vunpack.c.l.b16 %v5298
        %v5418 = vunpack.c.l.b16 %v5299
        %v5419 = vunpack.c.l.b16 %v5300
        %v5420 = vunpack.c.l.b16 %v5301
        %v5421 = vunpack.c.l.b16 %v5302
        %v5422 = vunpack.c.l.b16 %v5303
        %v5423 = vunpack.c.l.b16 %v5304
        %v5424 = vunpack.c.l.b16 %v5305
        %v5425 = vunpack.c.l.b16 %v5306
        %v5426 = vunpack.c.l.b16 %v5307
        %v5427 = vunpack.c.l.b16 %v5308
        %v5428 = vunpack.c.l.b16 %v5309
        %v5429 = vunpack.c.l.b16 %v5310
        %v5430 = vunpack.c.l.b16 %v5311
        %v5431 = vunpack.c.l.b16 %v5312
        %v5432 = vpack.c.b16 %v5401, %v5400
        %v5433 = vpack.c.b16 %v5403, %v5402
        %v5434 = vpack.c.b16 %v5405, %v5404
        %v5435 = vpack.c.b16 %v5407, %v5406
        %v5436 = vpack.c.b16 %v5409, %v5408
        %v5437 = vpack.c.b16 %v5411, %v5410
        %v5438 = vpack.c.b16 %v5413, %v5412
        %v5439 = vpack.c.b16 %v5415, %v5414
        %v5440 = vpack.c.b16 %v5417, %v5416
        %v5441 = vpack.c.b16 %v5419, %v5418
        %v5442 = vpack.c.b16 %v5421, %v5420
        %v5443 = vpack.c.b16 %v5423, %v5422
        %v5444 = vpack.c.b16 %v5425, %v5424
        %v5445 = vpack.c.b16 %v5427, %v5426
        %v5446 = vpack.c.b16 %v5429, %v5428
        %v5447 = vpack.c.b16 %v5431, %v5430
        %5464 = vmatprep.subr.bf16.mxu0 0
        %5465 = vmatpush1.bf16.msra.mxu0 %v5432
        %5466 = vmatprep.subr.bf16.mxu0 0
        %5467 = vmatpush1.bf16.msra.mxu0 %v5433
        %5468 = vmatprep.subr.bf16.mxu0 0
        %5469 = vmatpush1.bf16.msra.mxu0 %v5434
        %5470 = vmatprep.subr.bf16.mxu0 0
        %5471 = vmatpush1.bf16.msra.mxu0 %v5435
        %5472 = vmatprep.subr.bf16.mxu0 0
        %5473 = vmatpush1.bf16.msra.mxu0 %v5436
        %5474 = vmatprep.subr.bf16.mxu0 0
        %5475 = vmatpush1.bf16.msra.mxu0 %v5437
        %5476 = vmatprep.subr.bf16.mxu0 0
        %5477 = vmatpush1.bf16.msra.mxu0 %v5438
        %5478 = vmatprep.subr.bf16.mxu0 0
        %5479 = vmatpush1.bf16.msra.mxu0 %v5439
        %5480 = vmatprep.subr.bf16.mxu0 0
        %5481 = vmatpush1.bf16.msra.mxu0 %v5440
        %5482 = vmatprep.subr.bf16.mxu0 0
        %5483 = vmatpush1.bf16.msra.mxu0 %v5441
        %5484 = vmatprep.subr.bf16.mxu0 0
        %5485 = vmatpush1.bf16.msra.mxu0 %v5442
        %5486 = vmatprep.subr.bf16.mxu0 0
        %5487 = vmatpush1.bf16.msra.mxu0 %v5443
        %5488 = vmatprep.subr.bf16.mxu0 0
        %5489 = vmatpush1.bf16.msra.mxu0 %v5444
        %5490 = vmatprep.subr.bf16.mxu0 0
        %5491 = vmatpush1.bf16.msra.mxu0 %v5445
        %5492 = vmatprep.subr.bf16.mxu0 0
        %5493 = vmatpush1.bf16.msra.mxu0 %v5446
        %5494 = vmatprep.subr.bf16.mxu0 0
        %5495 = vmatpush1.bf16.msra.mxu0 %v5447
        %5496 = vmatprep.mubr.bf16.mxu0 %v5323
        %5497 = vmatmul.mubr.bf16.gmra.mrb[0].mxu0 %v5320
        %v5498 = vpop.f32.mrb[0].mxu0
        %v5499 = vadd.f32 0.0, %v5498
        %v5500 = vpop.f32.mrb[0].mxu0
        %v5501 = vpop.f32.mrb[0].mxu0
        %v5502 = vadd.f32 0.0, %v5501
        %v5503 = vpop.f32.mrb[0].mxu0
        %5504 = vmatprep.mubr.bf16.mxu0 %v5327
        %5505 = vmatmul.mubr.bf16.gmra.mrb[0].mxu0 %v5325
        %v5506 = vpop.f32.mrb[0].mxu0
        %v5507 = vadd.f32 0.0, %v5506
        %v5508 = vpop.f32.mrb[0].mxu0
        %v5509 = vpop.f32.mrb[0].mxu0
        %v5510 = vadd.f32 0.0, %v5509
        %v5511 = vpop.f32.mrb[0].mxu0
        %5512 = vmatprep.mubr.bf16.mxu0 %v5331
        %5513 = vmatmul.mubr.bf16.gmra.mrb[0].mxu0 %v5329
        %v5514 = vpop.f32.mrb[0].mxu0
        %v5515 = vadd.f32 0.0, %v5514
        %v5516 = vpop.f32.mrb[0].mxu0
        %v5517 = vpop.f32.mrb[0].mxu0
        %v5518 = vadd.f32 0.0, %v5517
        %v5519 = vpop.f32.mrb[0].mxu0
        %5520 = vmatprep.mubr.bf16.mxu0 %v5335
        %5521 = vmatmul.mubr.bf16.gmra.mrb[0].mxu0 %v5333
        %v5522 = vpop.f32.mrb[0].mxu0
        %v5523 = vadd.f32 0.0, %v5522
        %v5524 = vpop.f32.mrb[0].mxu0
        %v5525 = vpop.f32.mrb[0].mxu0
        %v5526 = vadd.f32 0.0, %v5525
        %v5527 = vpop.f32.mrb[0].mxu0
        %5528 = vmatprep.mubr.bf16.mxu0 %v5339
        %5529 = vmatmul.mubr.bf16.gmra.mrb[0].mxu0 %v5337
        %v5530 = vpop.f32.mrb[0].mxu0
        %v5531 = vadd.f32 0.0, %v5530
        %v5532 = vpop.f32.mrb[0].mxu0
        %v5533 = vpop.f32.mrb[0].mxu0
        %v5534 = vadd.f32 0.0, %v5533
        %v5535 = vpop.f32.mrb[0].mxu0
        %5536 = vmatprep.mubr.bf16.mxu0 %v5343
        %5537 = vmatmul.mubr.bf16.gmra.mrb[0].mxu0 %v5341
        %v5538 = vpop.f32.mrb[0].mxu0
        %v5539 = vadd.f32 0.0, %v5538
        %v5540 = vpop.f32.mrb[0].mxu0
        %v5541 = vpop.f32.mrb[0].mxu0
        %v5542 = vadd.f32 0.0, %v5541
        %v5543 = vpop.f32.mrb[0].mxu0
        %5544 = vmatprep.mubr.bf16.mxu0 %v5347
        %5545 = vmatmul.mubr.bf16.gmra.mrb[0].mxu0 %v5345
        %v5546 = vpop.f32.mrb[0].mxu0
        %v5547 = vadd.f32 0.0, %v5546
        %v5548 = vpop.f32.mrb[0].mxu0
        %v5549 = vpop.f32.mrb[0].mxu0
        %v5550 = vadd.f32 0.0, %v5549
        %v5551 = vpop.f32.mrb[0].mxu0
        %5552 = vmatprep.mubr.bf16.mxu0 %v5351
        %5553 = vmatmul.mubr.bf16.gmra.mrb[0].mxu0 %v5349
        %v5554 = vpop.f32.mrb[0].mxu0
        %v5555 = vadd.f32 0.0, %v5554
        %v5556 = vpop.f32.mrb[0].mxu0
        %v5557 = vpop.f32.mrb[0].mxu0
        %v5558 = vadd.f32 0.0, %v5557
        %v5559 = vpop.f32.mrb[0].mxu0
        %5560 = vdwg.mxu0
        %v5561 = vadd.f32 %v5262, %v5499
        %v5562 = vadd.f32 %v5263, %v5502
        %v5563 = vadd.f32 %v5264, %v5507
        %v5564 = vadd.f32 %v5265, %v5510
        %v5565 = vadd.f32 %v5266, %v5515
        %v5566 = vadd.f32 %v5267, %v5518
        %v5567 = vadd.f32 %v5268, %v5523
        %v5568 = vadd.f32 %v5269, %v5526
        %v5569 = vadd.f32 %v5270, %v5531
        %v5570 = vadd.f32 %v5271, %v5534
        %v5571 = vadd.f32 %v5272, %v5539
        %v5572 = vadd.f32 %v5273, %v5542
        %v5573 = vadd.f32 %v5274, %v5547
        %v5574 = vadd.f32 %v5275, %v5550
        %v5575 = vadd.f32 %v5276, %v5555
        %v5576 = vadd.f32 %v5277, %v5558
        %v5577 = vld [vmem:[#allocation2 + $0x80] sm:$0xff]
        %v5578 = vld [vmem:[#allocation2 + $0x88] sm:$0xff]
        %s5579 = scalar_lea.vmem [#allocation6], 1920
        %v5580 = vld [vmem:[%s5579] sm:$0xf]
        %v5581 = vld [vmem:[%s5579 + $0x4] sm:$0xf]
        %v5582 = vld [vmem:[%s5579 + $0x8] sm:$0xf]
        %v5583 = vld [vmem:[%s5579 + $0xc] sm:$0xf]
        %v5584 = vld [vmem:[%s5579 + $0x10] sm:$0xf]
        %v5585 = vld [vmem:[%s5579 + $0x14] sm:$0xf]
        %v5586 = vld [vmem:[%s5579 + $0x18] sm:$0xf]
        %v5587 = vld [vmem:[%s5579 + $0x1c] sm:$0xf]
        %v5588 = vld [vmem:[%s5579 + $0x20] sm:$0xf]
        %v5589 = vld [vmem:[%s5579 + $0x24] sm:$0xf]
        %v5590 = vld [vmem:[%s5579 + $0x28] sm:$0xf]
        %v5591 = vld [vmem:[%s5579 + $0x2c] sm:$0xf]
        %v5592 = vld [vmem:[%s5579 + $0x30] sm:$0xf]
        %v5593 = vld [vmem:[%s5579 + $0x34] sm:$0xf]
        %v5594 = vld [vmem:[%s5579 + $0x38] sm:$0xf]
        %v5595 = vld [vmem:[%s5579 + $0x3c] sm:$0xf]
        %v5596 = vld [vmem:[%s5579 + $0x40] sm:$0xf]
        %v5597 = vld [vmem:[%s5579 + $0x44] sm:$0xf]
        %v5598 = vld [vmem:[%s5579 + $0x48] sm:$0xf]
        %v5599 = vld [vmem:[%s5579 + $0x4c] sm:$0xf]
        %v5600 = vld [vmem:[%s5579 + $0x50] sm:$0xf]
        %v5601 = vld [vmem:[%s5579 + $0x54] sm:$0xf]
        %v5602 = vld [vmem:[%s5579 + $0x58] sm:$0xf]
        %v5603 = vld [vmem:[%s5579 + $0x5c] sm:$0xf]
        %v5604 = vld [vmem:[%s5579 + $0x60] sm:$0xf]
        %v5605 = vld [vmem:[%s5579 + $0x64] sm:$0xf]
        %v5606 = vld [vmem:[%s5579 + $0x68] sm:$0xf]
        %v5607 = vld [vmem:[%s5579 + $0x6c] sm:$0xf]
        %v5608 = vld [vmem:[%s5579 + $0x70] sm:$0xf]
        %v5609 = vld [vmem:[%s5579 + $0x74] sm:$0xf]
        %v5610 = vld [vmem:[%s5579 + $0x78] sm:$0xf]
        %v5611 = vld [vmem:[%s5579 + $0x7c] sm:$0xf]
        %vm5612 = vsmask.f32 256
        %v5614 = vshrl.u32 %v5278, 16
        %v5616 = vrot.slane %v5614, 7
        %v5617 = vrot.slane %v850, 7
        %v5618 = vor.u32 %v5617, %v834
        %v5619 = vsel %vm5612, %v5616, %v5618
        %v5621 = vshrl.u32 %v5279, 16
        %v5623 = vrot.slane %v5621, 7
        %v5624 = vrot.slane %v858, 7
        %v5625 = vor.u32 %v5624, %v846
        %v5626 = vsel %vm5612, %v5623, %v5625
        %v5627 = vrot.slane %v866, 7
        %v5628 = vor.u32 %v5627, %v854
        %v5629 = vsel %vm5612, %v5617, %v5628
        %v5630 = vrot.slane %v874, 7
        %v5631 = vor.u32 %v5630, %v862
        %v5632 = vsel %vm5612, %v5624, %v5631
        %v5633 = vrot.slane %v882, 7
        %v5634 = vor.u32 %v5633, %v870
        %v5635 = vsel %vm5612, %v5627, %v5634
        %v5636 = vrot.slane %v890, 7
        %v5637 = vor.u32 %v5636, %v878
        %v5638 = vsel %vm5612, %v5630, %v5637
        %v5639 = vrot.slane %v898, 7
        %v5640 = vor.u32 %v5639, %v886
        %v5641 = vsel %vm5612, %v5633, %v5640
        %v5642 = vrot.slane %v906, 7
        %v5643 = vor.u32 %v5642, %v894
        %v5644 = vsel %vm5612, %v5636, %v5643
        %v5645 = vrot.slane %v914, 7
        %v5646 = vor.u32 %v5645, %v902
        %v5647 = vsel %vm5612, %v5639, %v5646
        %v5648 = vrot.slane %v922, 7
        %v5649 = vor.u32 %v5648, %v910
        %v5650 = vsel %vm5612, %v5642, %v5649
        %v5651 = vrot.slane %v930, 7
        %v5652 = vor.u32 %v5651, %v918
        %v5653 = vsel %vm5612, %v5645, %v5652
        %v5654 = vrot.slane %v938, 7
        %v5655 = vor.u32 %v5654, %v926
        %v5656 = vsel %vm5612, %v5648, %v5655
        %v5657 = vrot.slane %v946, 7
        %v5658 = vor.u32 %v5657, %v934
        %v5659 = vsel %vm5612, %v5651, %v5658
        %v5660 = vrot.slane %v954, 7
        %v5661 = vor.u32 %v5660, %v942
        %v5662 = vsel %vm5612, %v5654, %v5661
        %v5664 = vshrl.u32 %v5577, 16
        %v5666 = vrot.slane %v5664, 7
        %v5667 = vshll.u32 %v5577, 16
        %v5669 = vor.u32 %v5666, %v5667
        %v5670 = vsel %vm5612, %v5657, %v5669
        %v5672 = vshrl.u32 %v5578, 16
        %v5674 = vrot.slane %v5672, 7
        %v5675 = vshll.u32 %v5578, 16
        %v5677 = vor.u32 %v5674, %v5675
        %v5678 = vsel %vm5612, %v5660, %v5677
        %v5727 = vunpack.c.l.b16 %v5580
        %v5728 = vunpack.c.l.b16 %v5581
        %v5729 = vunpack.c.l.b16 %v5582
        %v5730 = vunpack.c.l.b16 %v5583
        %v5731 = vunpack.c.l.b16 %v5584
        %v5732 = vunpack.c.l.b16 %v5585
        %v5733 = vunpack.c.l.b16 %v5586
        %v5734 = vunpack.c.l.b16 %v5587
        %v5735 = vunpack.c.l.b16 %v5588
        %v5736 = vunpack.c.l.b16 %v5589
        %v5737 = vunpack.c.l.b16 %v5590
        %v5738 = vunpack.c.l.b16 %v5591
        %v5739 = vunpack.c.l.b16 %v5592
        %v5740 = vunpack.c.l.b16 %v5593
        %v5741 = vunpack.c.l.b16 %v5594
        %v5742 = vunpack.c.l.b16 %v5595
        %v5743 = vunpack.c.l.b16 %v5596
        %v5744 = vunpack.c.l.b16 %v5597
        %v5745 = vunpack.c.l.b16 %v5598
        %v5746 = vunpack.c.l.b16 %v5599
        %v5747 = vunpack.c.l.b16 %v5600
        %v5748 = vunpack.c.l.b16 %v5601
        %v5749 = vunpack.c.l.b16 %v5602
        %v5750 = vunpack.c.l.b16 %v5603
        %v5751 = vunpack.c.l.b16 %v5604
        %v5752 = vunpack.c.l.b16 %v5605
        %v5753 = vunpack.c.l.b16 %v5606
        %v5754 = vunpack.c.l.b16 %v5607
        %v5755 = vunpack.c.l.b16 %v5608
        %v5756 = vunpack.c.l.b16 %v5609
        %v5757 = vunpack.c.l.b16 %v5610
        %v5758 = vunpack.c.l.b16 %v5611
        %v5759 = vpack.c.b16 %v5728, %v5727
        %v5760 = vpack.c.b16 %v5730, %v5729
        %v5761 = vpack.c.b16 %v5732, %v5731
        %v5762 = vpack.c.b16 %v5734, %v5733
        %v5763 = vpack.c.b16 %v5736, %v5735
        %v5764 = vpack.c.b16 %v5738, %v5737
        %v5765 = vpack.c.b16 %v5740, %v5739
        %v5766 = vpack.c.b16 %v5742, %v5741
        %v5767 = vpack.c.b16 %v5744, %v5743
        %v5768 = vpack.c.b16 %v5746, %v5745
        %v5769 = vpack.c.b16 %v5748, %v5747
        %v5770 = vpack.c.b16 %v5750, %v5749
        %v5771 = vpack.c.b16 %v5752, %v5751
        %v5772 = vpack.c.b16 %v5754, %v5753
        %v5773 = vpack.c.b16 %v5756, %v5755
        %v5774 = vpack.c.b16 %v5758, %v5757
        %5791 = vmatprep.subr.bf16.mxu0 0
        %5792 = vmatpush1.bf16.msra.mxu0 %v5759
        %5793 = vmatprep.subr.bf16.mxu0 0
        %5794 = vmatpush1.bf16.msra.mxu0 %v5760
        %5795 = vmatprep.subr.bf16.mxu0 0
        %5796 = vmatpush1.bf16.msra.mxu0 %v5761
        %5797 = vmatprep.subr.bf16.mxu0 0
        %5798 = vmatpush1.bf16.msra.mxu0 %v5762
        %5799 = vmatprep.subr.bf16.mxu0 0
        %5800 = vmatpush1.bf16.msra.mxu0 %v5763
        %5801 = vmatprep.subr.bf16.mxu0 0
        %5802 = vmatpush1.bf16.msra.mxu0 %v5764
        %5803 = vmatprep.subr.bf16.mxu0 0
        %5804 = vmatpush1.bf16.msra.mxu0 %v5765
        %5805 = vmatprep.subr.bf16.mxu0 0
        %5806 = vmatpush1.bf16.msra.mxu0 %v5766
        %5807 = vmatprep.subr.bf16.mxu0 0
        %5808 = vmatpush1.bf16.msra.mxu0 %v5767
        %5809 = vmatprep.subr.bf16.mxu0 0
        %5810 = vmatpush1.bf16.msra.mxu0 %v5768
        %5811 = vmatprep.subr.bf16.mxu0 0
        %5812 = vmatpush1.bf16.msra.mxu0 %v5769
        %5813 = vmatprep.subr.bf16.mxu0 0
        %5814 = vmatpush1.bf16.msra.mxu0 %v5770
        %5815 = vmatprep.subr.bf16.mxu0 0
        %5816 = vmatpush1.bf16.msra.mxu0 %v5771
        %5817 = vmatprep.subr.bf16.mxu0 0
        %5818 = vmatpush1.bf16.msra.mxu0 %v5772
        %5819 = vmatprep.subr.bf16.mxu0 0
        %5820 = vmatpush1.bf16.msra.mxu0 %v5773
        %5821 = vmatprep.subr.bf16.mxu0 0
        %5822 = vmatpush1.bf16.msra.mxu0 %v5774
        %5823 = vmatprep.mubr.bf16.mxu0 %v5626
        %5824 = vmatmul.mubr.bf16.gmra.mrb[0].mxu0 %v5619
        %v5825 = vpop.f32.mrb[0].mxu0
        %v5826 = vadd.f32 0.0, %v5825
        %v5827 = vpop.f32.mrb[0].mxu0
        %v5828 = vpop.f32.mrb[0].mxu0
        %v5829 = vadd.f32 0.0, %v5828
        %v5830 = vpop.f32.mrb[0].mxu0
        %5831 = vmatprep.mubr.bf16.mxu0 %v5632
        %5832 = vmatmul.mubr.bf16.gmra.mrb[0].mxu0 %v5629
        %v5833 = vpop.f32.mrb[0].mxu0
        %v5834 = vadd.f32 0.0, %v5833
        %v5835 = vpop.f32.mrb[0].mxu0
        %v5836 = vpop.f32.mrb[0].mxu0
        %v5837 = vadd.f32 0.0, %v5836
        %v5838 = vpop.f32.mrb[0].mxu0
        %5839 = vmatprep.mubr.bf16.mxu0 %v5638
        %5840 = vmatmul.mubr.bf16.gmra.mrb[0].mxu0 %v5635
        %v5841 = vpop.f32.mrb[0].mxu0
        %v5842 = vadd.f32 0.0, %v5841
        %v5843 = vpop.f32.mrb[0].mxu0
        %v5844 = vpop.f32.mrb[0].mxu0
        %v5845 = vadd.f32 0.0, %v5844
        %v5846 = vpop.f32.mrb[0].mxu0
        %5847 = vmatprep.mubr.bf16.mxu0 %v5644
        %5848 = vmatmul.mubr.bf16.gmra.mrb[0].mxu0 %v5641
        %v5849 = vpop.f32.mrb[0].mxu0
        %v5850 = vadd.f32 0.0, %v5849
        %v5851 = vpop.f32.mrb[0].mxu0
        %v5852 = vpop.f32.mrb[0].mxu0
        %v5853 = vadd.f32 0.0, %v5852
        %v5854 = vpop.f32.mrb[0].mxu0
        %5855 = vmatprep.mubr.bf16.mxu0 %v5650
        %5856 = vmatmul.mubr.bf16.gmra.mrb[0].mxu0 %v5647
        %v5857 = vpop.f32.mrb[0].mxu0
        %v5858 = vadd.f32 0.0, %v5857
        %v5859 = vpop.f32.mrb[0].mxu0
        %v5860 = vpop.f32.mrb[0].mxu0
        %v5861 = vadd.f32 0.0, %v5860
        %v5862 = vpop.f32.mrb[0].mxu0
        %5863 = vmatprep.mubr.bf16.mxu0 %v5656
        %5864 = vmatmul.mubr.bf16.gmra.mrb[0].mxu0 %v5653
        %v5865 = vpop.f32.mrb[0].mxu0
        %v5866 = vadd.f32 0.0, %v5865
        %v5867 = vpop.f32.mrb[0].mxu0
        %v5868 = vpop.f32.mrb[0].mxu0
        %v5869 = vadd.f32 0.0, %v5868
        %v5870 = vpop.f32.mrb[0].mxu0
        %5871 = vmatprep.mubr.bf16.mxu0 %v5662
        %5872 = vmatmul.mubr.bf16.gmra.mrb[0].mxu0 %v5659
        %v5873 = vpop.f32.mrb[0].mxu0
        %v5874 = vadd.f32 0.0, %v5873
        %v5875 = vpop.f32.mrb[0].mxu0
        %v5876 = vpop.f32.mrb[0].mxu0
        %v5877 = vadd.f32 0.0, %v5876
        %v5878 = vpop.f32.mrb[0].mxu0
        %5879 = vmatprep.mubr.bf16.mxu0 %v5678
        %5880 = vmatmul.mubr.bf16.gmra.mrb[0].mxu0 %v5670
        %v5881 = vpop.f32.mrb[0].mxu0
        %v5882 = vadd.f32 0.0, %v5881
        %v5883 = vpop.f32.mrb[0].mxu0
        %v5884 = vpop.f32.mrb[0].mxu0
        %v5885 = vadd.f32 0.0, %v5884
        %v5886 = vpop.f32.mrb[0].mxu0
        %5887 = vdwg.mxu0
        %v5888 = vadd.f32 %v5561, %v5826
        %v5889 = vadd.f32 %v5562, %v5829
        %v5890 = vadd.f32 %v5563, %v5834
        %v5891 = vadd.f32 %v5564, %v5837
        %v5892 = vadd.f32 %v5565, %v5842
        %v5893 = vadd.f32 %v5566, %v5845
        %v5894 = vadd.f32 %v5567, %v5850
        %v5895 = vadd.f32 %v5568, %v5853
        %v5896 = vadd.f32 %v5569, %v5858
        %v5897 = vadd.f32 %v5570, %v5861
        %v5898 = vadd.f32 %v5571, %v5866
        %v5899 = vadd.f32 %v5572, %v5869
        %v5900 = vadd.f32 %v5573, %v5874
        %v5901 = vadd.f32 %v5574, %v5877
        %v5902 = vadd.f32 %v5575, %v5882
        %v5903 = vadd.f32 %v5576, %v5885
        %s5904 = scalar_lea.vmem [#allocation6], 2048
        %v5905 = vld [vmem:[%s5904] sm:$0xf]
        %v5906 = vld [vmem:[%s5904 + $0x4] sm:$0xf]
        %v5907 = vld [vmem:[%s5904 + $0x8] sm:$0xf]
        %v5908 = vld [vmem:[%s5904 + $0xc] sm:$0xf]
        %v5909 = vld [vmem:[%s5904 + $0x10] sm:$0xf]
        %v5910 = vld [vmem:[%s5904 + $0x14] sm:$0xf]
        %v5911 = vld [vmem:[%s5904 + $0x18] sm:$0xf]
        %v5912 = vld [vmem:[%s5904 + $0x1c] sm:$0xf]
        %v5913 = vld [vmem:[%s5904 + $0x20] sm:$0xf]
        %v5914 = vld [vmem:[%s5904 + $0x24] sm:$0xf]
        %v5915 = vld [vmem:[%s5904 + $0x28] sm:$0xf]
        %v5916 = vld [vmem:[%s5904 + $0x2c] sm:$0xf]
        %v5917 = vld [vmem:[%s5904 + $0x30] sm:$0xf]
        %v5918 = vld [vmem:[%s5904 + $0x34] sm:$0xf]
        %v5919 = vld [vmem:[%s5904 + $0x38] sm:$0xf]
        %v5920 = vld [vmem:[%s5904 + $0x3c] sm:$0xf]
        %v5921 = vld [vmem:[%s5904 + $0x40] sm:$0xf]
        %v5922 = vld [vmem:[%s5904 + $0x44] sm:$0xf]
        %v5923 = vld [vmem:[%s5904 + $0x48] sm:$0xf]
        %v5924 = vld [vmem:[%s5904 + $0x4c] sm:$0xf]
        %v5925 = vld [vmem:[%s5904 + $0x50] sm:$0xf]
        %v5926 = vld [vmem:[%s5904 + $0x54] sm:$0xf]
        %v5927 = vld [vmem:[%s5904 + $0x58] sm:$0xf]
        %v5928 = vld [vmem:[%s5904 + $0x5c] sm:$0xf]
        %v5929 = vld [vmem:[%s5904 + $0x60] sm:$0xf]
        %v5930 = vld [vmem:[%s5904 + $0x64] sm:$0xf]
        %v5931 = vld [vmem:[%s5904 + $0x68] sm:$0xf]
        %v5932 = vld [vmem:[%s5904 + $0x6c] sm:$0xf]
        %v5933 = vld [vmem:[%s5904 + $0x70] sm:$0xf]
        %v5934 = vld [vmem:[%s5904 + $0x74] sm:$0xf]
        %v5935 = vld [vmem:[%s5904 + $0x78] sm:$0xf]
        %v5936 = vld [vmem:[%s5904 + $0x7c] sm:$0xf]
        %v5969 = vunpack.c.l.b16 %v5905
        %v5970 = vunpack.c.l.b16 %v5906
        %v5971 = vunpack.c.l.b16 %v5907
        %v5972 = vunpack.c.l.b16 %v5908
        %v5973 = vunpack.c.l.b16 %v5909
        %v5974 = vunpack.c.l.b16 %v5910
        %v5975 = vunpack.c.l.b16 %v5911
        %v5976 = vunpack.c.l.b16 %v5912
        %v5977 = vunpack.c.l.b16 %v5913
        %v5978 = vunpack.c.l.b16 %v5914
        %v5979 = vunpack.c.l.b16 %v5915
        %v5980 = vunpack.c.l.b16 %v5916
        %v5981 = vunpack.c.l.b16 %v5917
        %v5982 = vunpack.c.l.b16 %v5918
        %v5983 = vunpack.c.l.b16 %v5919
        %v5984 = vunpack.c.l.b16 %v5920
        %v5985 = vunpack.c.l.b16 %v5921
        %v5986 = vunpack.c.l.b16 %v5922
        %v5987 = vunpack.c.l.b16 %v5923
        %v5988 = vunpack.c.l.b16 %v5924
        %v5989 = vunpack.c.l.b16 %v5925
        %v5990 = vunpack.c.l.b16 %v5926
        %v5991 = vunpack.c.l.b16 %v5927
        %v5992 = vunpack.c.l.b16 %v5928
        %v5993 = vunpack.c.l.b16 %v5929
        %v5994 = vunpack.c.l.b16 %v5930
        %v5995 = vunpack.c.l.b16 %v5931
        %v5996 = vunpack.c.l.b16 %v5932
        %v5997 = vunpack.c.l.b16 %v5933
        %v5998 = vunpack.c.l.b16 %v5934
        %v5999 = vunpack.c.l.b16 %v5935
        %v6000 = vunpack.c.l.b16 %v5936
        %v6001 = vpack.c.b16 %v5970, %v5969
        %v6002 = vpack.c.b16 %v5972, %v5971
        %v6003 = vpack.c.b16 %v5974, %v5973
        %v6004 = vpack.c.b16 %v5976, %v5975
        %v6005 = vpack.c.b16 %v5978, %v5977
        %v6006 = vpack.c.b16 %v5980, %v5979
        %v6007 = vpack.c.b16 %v5982, %v5981
        %v6008 = vpack.c.b16 %v5984, %v5983
        %v6009 = vpack.c.b16 %v5986, %v5985
        %v6010 = vpack.c.b16 %v5988, %v5987
        %v6011 = vpack.c.b16 %v5990, %v5989
        %v6012 = vpack.c.b16 %v5992, %v5991
        %v6013 = vpack.c.b16 %v5994, %v5993
        %v6014 = vpack.c.b16 %v5996, %v5995
        %v6015 = vpack.c.b16 %v5998, %v5997
        %v6016 = vpack.c.b16 %v6000, %v5999
        %6033 = vmatprep.subr.bf16.mxu0 0
        %6034 = vmatpush1.bf16.msra.mxu0 %v6001
        %6035 = vmatprep.subr.bf16.mxu0 0
        %6036 = vmatpush1.bf16.msra.mxu0 %v6002
        %6037 = vmatprep.subr.bf16.mxu0 0
        %6038 = vmatpush1.bf16.msra.mxu0 %v6003
        %6039 = vmatprep.subr.bf16.mxu0 0
        %6040 = vmatpush1.bf16.msra.mxu0 %v6004
        %6041 = vmatprep.subr.bf16.mxu0 0
        %6042 = vmatpush1.bf16.msra.mxu0 %v6005
        %6043 = vmatprep.subr.bf16.mxu0 0
        %6044 = vmatpush1.bf16.msra.mxu0 %v6006
        %6045 = vmatprep.subr.bf16.mxu0 0
        %6046 = vmatpush1.bf16.msra.mxu0 %v6007
        %6047 = vmatprep.subr.bf16.mxu0 0
        %6048 = vmatpush1.bf16.msra.mxu0 %v6008
        %6049 = vmatprep.subr.bf16.mxu0 0
        %6050 = vmatpush1.bf16.msra.mxu0 %v6009
        %6051 = vmatprep.subr.bf16.mxu0 0
        %6052 = vmatpush1.bf16.msra.mxu0 %v6010
        %6053 = vmatprep.subr.bf16.mxu0 0
        %6054 = vmatpush1.bf16.msra.mxu0 %v6011
        %6055 = vmatprep.subr.bf16.mxu0 0
        %6056 = vmatpush1.bf16.msra.mxu0 %v6012
        %6057 = vmatprep.subr.bf16.mxu0 0
        %6058 = vmatpush1.bf16.msra.mxu0 %v6013
        %6059 = vmatprep.subr.bf16.mxu0 0
        %6060 = vmatpush1.bf16.msra.mxu0 %v6014
        %6061 = vmatprep.subr.bf16.mxu0 0
        %6062 = vmatpush1.bf16.msra.mxu0 %v6015
        %6063 = vmatprep.subr.bf16.mxu0 0
        %6064 = vmatpush1.bf16.msra.mxu0 %v6016
        %6065 = vmatprep.mubr.bf16.mxu0 %v745
        %6066 = vmatmul.mubr.bf16.gmra.mrb[0].mxu0 %v744
        %v6067 = vpop.f32.mrb[0].mxu0
        %v6068 = vadd.f32 0.0, %v6067
        %v6069 = vpop.f32.mrb[0].mxu0
        %v6070 = vpop.f32.mrb[0].mxu0
        %v6071 = vadd.f32 0.0, %v6070
        %v6072 = vpop.f32.mrb[0].mxu0
        %6073 = vmatprep.mubr.bf16.mxu0 %v747
        %6074 = vmatmul.mubr.bf16.gmra.mrb[0].mxu0 %v746
        %v6075 = vpop.f32.mrb[0].mxu0
        %v6076 = vadd.f32 0.0, %v6075
        %v6077 = vpop.f32.mrb[0].mxu0
        %v6078 = vpop.f32.mrb[0].mxu0
        %v6079 = vadd.f32 0.0, %v6078
        %v6080 = vpop.f32.mrb[0].mxu0
        %6081 = vmatprep.mubr.bf16.mxu0 %v749
        %6082 = vmatmul.mubr.bf16.gmra.mrb[0].mxu0 %v748
        %v6083 = vpop.f32.mrb[0].mxu0
        %v6084 = vadd.f32 0.0, %v6083
        %v6085 = vpop.f32.mrb[0].mxu0
        %v6086 = vpop.f32.mrb[0].mxu0
        %v6087 = vadd.f32 0.0, %v6086
        %v6088 = vpop.f32.mrb[0].mxu0
        %6089 = vmatprep.mubr.bf16.mxu0 %v751
        %6090 = vmatmul.mubr.bf16.gmra.mrb[0].mxu0 %v750
        %v6091 = vpop.f32.mrb[0].mxu0
        %v6092 = vadd.f32 0.0, %v6091
        %v6093 = vpop.f32.mrb[0].mxu0
        %v6094 = vpop.f32.mrb[0].mxu0
        %v6095 = vadd.f32 0.0, %v6094
        %v6096 = vpop.f32.mrb[0].mxu0
        %6097 = vmatprep.mubr.bf16.mxu0 %v753
        %6098 = vmatmul.mubr.bf16.gmra.mrb[0].mxu0 %v752
        %v6099 = vpop.f32.mrb[0].mxu0
        %v6100 = vadd.f32 0.0, %v6099
        %v6101 = vpop.f32.mrb[0].mxu0
        %v6102 = vpop.f32.mrb[0].mxu0
        %v6103 = vadd.f32 0.0, %v6102
        %v6104 = vpop.f32.mrb[0].mxu0
        %6105 = vmatprep.mubr.bf16.mxu0 %v755
        %6106 = vmatmul.mubr.bf16.gmra.mrb[0].mxu0 %v754
        %v6107 = vpop.f32.mrb[0].mxu0
        %v6108 = vadd.f32 0.0, %v6107
        %v6109 = vpop.f32.mrb[0].mxu0
        %v6110 = vpop.f32.mrb[0].mxu0
        %v6111 = vadd.f32 0.0, %v6110
        %v6112 = vpop.f32.mrb[0].mxu0
        %6113 = vmatprep.mubr.bf16.mxu0 %v757
        %6114 = vmatmul.mubr.bf16.gmra.mrb[0].mxu0 %v756
        %v6115 = vpop.f32.mrb[0].mxu0
        %v6116 = vadd.f32 0.0, %v6115
        %v6117 = vpop.f32.mrb[0].mxu0
        %v6118 = vpop.f32.mrb[0].mxu0
        %v6119 = vadd.f32 0.0, %v6118
        %v6120 = vpop.f32.mrb[0].mxu0
        %6121 = vmatprep.mubr.bf16.mxu0 %v5578
        %6122 = vmatmul.mubr.bf16.gmra.mrb[0].mxu0 %v5577
        %v6123 = vpop.f32.mrb[0].mxu0
        %v6124 = vadd.f32 0.0, %v6123
        %v6125 = vpop.f32.mrb[0].mxu0
        %v6126 = vpop.f32.mrb[0].mxu0
        %v6127 = vadd.f32 0.0, %v6126
        %v6128 = vpop.f32.mrb[0].mxu0
        %6129 = vdwg.mxu0
        %v6130 = vadd.f32 %v5888, %v6068
        %v6131 = vadd.f32 %v5889, %v6071
        %v6132 = vadd.f32 %v5890, %v6076
        %v6133 = vadd.f32 %v5891, %v6079
        %v6134 = vadd.f32 %v5892, %v6084
        %v6135 = vadd.f32 %v5893, %v6087
        %v6136 = vadd.f32 %v5894, %v6092
        %v6137 = vadd.f32 %v5895, %v6095
        %v6138 = vadd.f32 %v5896, %v6100
        %v6139 = vadd.f32 %v5897, %v6103
        %v6140 = vadd.f32 %v5898, %v6108
        %v6141 = vadd.f32 %v5899, %v6111
        %v6142 = vadd.f32 %v5900, %v6116
        %v6143 = vadd.f32 %v5901, %v6119
        %v6144 = vadd.f32 %v5902, %v6124
        %v6145 = vadd.f32 %v5903, %v6127
        %v6146 = vld [vmem:[#allocation2 + $0x10] sm:$0xff]
        %v6147 = vld [vmem:[#allocation2 + $0x18] sm:$0xff]
        %v6148 = vld [vmem:[#allocation2 + $0x20] sm:$0xff]
        %v6149 = vld [vmem:[#allocation2 + $0x28] sm:$0xff]
        %v6150 = vld [vmem:[#allocation2 + $0x30] sm:$0xff]
        %v6151 = vld [vmem:[#allocation2 + $0x38] sm:$0xff]
        %v6152 = vld [vmem:[#allocation2 + $0x40] sm:$0xff]
        %v6153 = vld [vmem:[#allocation2 + $0x48] sm:$0xff]
        %v6154 = vld [vmem:[#allocation2 + $0x50] sm:$0xff]
        %v6155 = vld [vmem:[#allocation2 + $0x58] sm:$0xff]
        %v6156 = vld [vmem:[#allocation2 + $0x60] sm:$0xff]
        %v6157 = vld [vmem:[#allocation2 + $0x68] sm:$0xff]
        %v6158 = vld [vmem:[#allocation2 + $0x70] sm:$0xff]
        %v6159 = vld [vmem:[#allocation2 + $0x78] sm:$0xff]
        %v6160 = vld [vmem:[#allocation2 + $0x80] sm:$0xff]
        %v6161 = vld [vmem:[#allocation2 + $0x88] sm:$0xff]
        %v6162 = vld [vmem:[#allocation2 + $0x90] sm:$0x1]
        %v6163 = vld [vmem:[#allocation2 + $0x98] sm:$0x1]
        %s6164 = scalar_lea.vmem [#allocation6], 2176
        %v6165 = vld [vmem:[%s6164] sm:$0xf]
        %v6166 = vld [vmem:[%s6164 + $0x4] sm:$0xf]
        %v6167 = vld [vmem:[%s6164 + $0x8] sm:$0xf]
        %v6168 = vld [vmem:[%s6164 + $0xc] sm:$0xf]
        %v6169 = vld [vmem:[%s6164 + $0x10] sm:$0xf]
        %v6170 = vld [vmem:[%s6164 + $0x14] sm:$0xf]
        %v6171 = vld [vmem:[%s6164 + $0x18] sm:$0xf]
        %v6172 = vld [vmem:[%s6164 + $0x1c] sm:$0xf]
        %v6173 = vld [vmem:[%s6164 + $0x20] sm:$0xf]
        %v6174 = vld [vmem:[%s6164 + $0x24] sm:$0xf]
        %v6175 = vld [vmem:[%s6164 + $0x28] sm:$0xf]
        %v6176 = vld [vmem:[%s6164 + $0x2c] sm:$0xf]
        %v6177 = vld [vmem:[%s6164 + $0x30] sm:$0xf]
        %v6178 = vld [vmem:[%s6164 + $0x34] sm:$0xf]
        %v6179 = vld [vmem:[%s6164 + $0x38] sm:$0xf]
        %v6180 = vld [vmem:[%s6164 + $0x3c] sm:$0xf]
        %v6181 = vld [vmem:[%s6164 + $0x40] sm:$0xf]
        %v6182 = vld [vmem:[%s6164 + $0x44] sm:$0xf]
        %v6183 = vld [vmem:[%s6164 + $0x48] sm:$0xf]
        %v6184 = vld [vmem:[%s6164 + $0x4c] sm:$0xf]
        %v6185 = vld [vmem:[%s6164 + $0x50] sm:$0xf]
        %v6186 = vld [vmem:[%s6164 + $0x54] sm:$0xf]
        %v6187 = vld [vmem:[%s6164 + $0x58] sm:$0xf]
        %v6188 = vld [vmem:[%s6164 + $0x5c] sm:$0xf]
        %v6189 = vld [vmem:[%s6164 + $0x60] sm:$0xf]
        %v6190 = vld [vmem:[%s6164 + $0x64] sm:$0xf]
        %v6191 = vld [vmem:[%s6164 + $0x68] sm:$0xf]
        %v6192 = vld [vmem:[%s6164 + $0x6c] sm:$0xf]
        %v6193 = vld [vmem:[%s6164 + $0x70] sm:$0xf]
        %v6194 = vld [vmem:[%s6164 + $0x74] sm:$0xf]
        %v6195 = vld [vmem:[%s6164 + $0x78] sm:$0xf]
        %v6196 = vld [vmem:[%s6164 + $0x7c] sm:$0xf]
        %v6198 = vshrl.u32 %v6146, 16
        %v6200 = vshll.u32 %v6146, 16
        %v6202 = vrot.slane %v6200, 1
        %v6203 = vor.u32 %v6198, %v6202
        %v6205 = vshll.u32 %v6148, 16
        %v6207 = vrot.slane %v6205, 1
        %v6208 = vsel %vm825, %v6203, %v6207
        %v6210 = vshrl.u32 %v6147, 16
        %v6212 = vshll.u32 %v6147, 16
        %v6214 = vrot.slane %v6212, 1
        %v6215 = vor.u32 %v6210, %v6214
        %v6217 = vshll.u32 %v6149, 16
        %v6219 = vrot.slane %v6217, 1
        %v6220 = vsel %vm825, %v6215, %v6219
        %v6221 = vshrl.u32 %v6148, 16
        %v6223 = vor.u32 %v6221, %v6207
        %v6225 = vshll.u32 %v6150, 16
        %v6227 = vrot.slane %v6225, 1
        %v6228 = vsel %vm825, %v6223, %v6227
        %v6229 = vshrl.u32 %v6149, 16
        %v6231 = vor.u32 %v6229, %v6219
        %v6233 = vshll.u32 %v6151, 16
        %v6235 = vrot.slane %v6233, 1
        %v6236 = vsel %vm825, %v6231, %v6235
        %v6237 = vshrl.u32 %v6150, 16
        %v6239 = vor.u32 %v6237, %v6227
        %v6241 = vshll.u32 %v6152, 16
        %v6243 = vrot.slane %v6241, 1
        %v6244 = vsel %vm825, %v6239, %v6243
        %v6245 = vshrl.u32 %v6151, 16
        %v6247 = vor.u32 %v6245, %v6235
        %v6249 = vshll.u32 %v6153, 16
        %v6251 = vrot.slane %v6249, 1
        %v6252 = vsel %vm825, %v6247, %v6251
        %v6253 = vshrl.u32 %v6152, 16
        %v6255 = vor.u32 %v6253, %v6243
        %v6257 = vshll.u32 %v6154, 16
        %v6259 = vrot.slane %v6257, 1
        %v6260 = vsel %vm825, %v6255, %v6259
        %v6261 = vshrl.u32 %v6153, 16
        %v6263 = vor.u32 %v6261, %v6251
        %v6265 = vshll.u32 %v6155, 16
        %v6267 = vrot.slane %v6265, 1
        %v6268 = vsel %vm825, %v6263, %v6267
        %v6269 = vshrl.u32 %v6154, 16
        %v6271 = vor.u32 %v6269, %v6259
        %v6273 = vshll.u32 %v6156, 16
        %v6275 = vrot.slane %v6273, 1
        %v6276 = vsel %vm825, %v6271, %v6275
        %v6277 = vshrl.u32 %v6155, 16
        %v6279 = vor.u32 %v6277, %v6267
        %v6281 = vshll.u32 %v6157, 16
        %v6283 = vrot.slane %v6281, 1
        %v6284 = vsel %vm825, %v6279, %v6283
        %v6285 = vshrl.u32 %v6156, 16
        %v6287 = vor.u32 %v6285, %v6275
        %v6289 = vshll.u32 %v6158, 16
        %v6291 = vrot.slane %v6289, 1
        %v6292 = vsel %vm825, %v6287, %v6291
        %v6293 = vshrl.u32 %v6157, 16
        %v6295 = vor.u32 %v6293, %v6283
        %v6297 = vshll.u32 %v6159, 16
        %v6299 = vrot.slane %v6297, 1
        %v6300 = vsel %vm825, %v6295, %v6299
        %v6301 = vshrl.u32 %v6158, 16
        %v6303 = vor.u32 %v6301, %v6291
        %v6305 = vshll.u32 %v6160, 16
        %v6307 = vrot.slane %v6305, 1
        %v6308 = vsel %vm825, %v6303, %v6307
        %v6309 = vshrl.u32 %v6159, 16
        %v6311 = vor.u32 %v6309, %v6299
        %v6313 = vshll.u32 %v6161, 16
        %v6315 = vrot.slane %v6313, 1
        %v6316 = vsel %vm825, %v6311, %v6315
        %v6317 = vshrl.u32 %v6160, 16
        %v6319 = vor.u32 %v6317, %v6307
        %v6321 = vshll.u32 %v6162, 16
        %v6323 = vrot.slane %v6321, 1
        %v6324 = vsel %vm825, %v6319, %v6323
        %v6325 = vshrl.u32 %v6161, 16
        %v6327 = vor.u32 %v6325, %v6315
        %v6329 = vshll.u32 %v6163, 16
        %v6331 = vrot.slane %v6329, 1
        %v6332 = vsel %vm825, %v6327, %v6331
        %v6381 = vunpack.c.l.b16 %v6165
        %v6382 = vunpack.c.l.b16 %v6166
        %v6383 = vunpack.c.l.b16 %v6167
        %v6384 = vunpack.c.l.b16 %v6168
        %v6385 = vunpack.c.l.b16 %v6169
        %v6386 = vunpack.c.l.b16 %v6170
        %v6387 = vunpack.c.l.b16 %v6171
        %v6388 = vunpack.c.l.b16 %v6172
        %v6389 = vunpack.c.l.b16 %v6173
        %v6390 = vunpack.c.l.b16 %v6174
        %v6391 = vunpack.c.l.b16 %v6175
        %v6392 = vunpack.c.l.b16 %v6176
        %v6393 = vunpack.c.l.b16 %v6177
        %v6394 = vunpack.c.l.b16 %v6178
        %v6395 = vunpack.c.l.b16 %v6179
        %v6396 = vunpack.c.l.b16 %v6180
        %v6397 = vunpack.c.l.b16 %v6181
        %v6398 = vunpack.c.l.b16 %v6182
        %v6399 = vunpack.c.l.b16 %v6183
        %v6400 = vunpack.c.l.b16 %v6184
        %v6401 = vunpack.c.l.b16 %v6185
        %v6402 = vunpack.c.l.b16 %v6186
        %v6403 = vunpack.c.l.b16 %v6187
        %v6404 = vunpack.c.l.b16 %v6188
        %v6405 = vunpack.c.l.b16 %v6189
        %v6406 = vunpack.c.l.b16 %v6190
        %v6407 = vunpack.c.l.b16 %v6191
        %v6408 = vunpack.c.l.b16 %v6192
        %v6409 = vunpack.c.l.b16 %v6193
        %v6410 = vunpack.c.l.b16 %v6194
        %v6411 = vunpack.c.l.b16 %v6195
        %v6412 = vunpack.c.l.b16 %v6196
        %v6413 = vpack.c.b16 %v6382, %v6381
        %v6414 = vpack.c.b16 %v6384, %v6383
        %v6415 = vpack.c.b16 %v6386, %v6385
        %v6416 = vpack.c.b16 %v6388, %v6387
        %v6417 = vpack.c.b16 %v6390, %v6389
        %v6418 = vpack.c.b16 %v6392, %v6391
        %v6419 = vpack.c.b16 %v6394, %v6393
        %v6420 = vpack.c.b16 %v6396, %v6395
        %v6421 = vpack.c.b16 %v6398, %v6397
        %v6422 = vpack.c.b16 %v6400, %v6399
        %v6423 = vpack.c.b16 %v6402, %v6401
        %v6424 = vpack.c.b16 %v6404, %v6403
        %v6425 = vpack.c.b16 %v6406, %v6405
        %v6426 = vpack.c.b16 %v6408, %v6407
        %v6427 = vpack.c.b16 %v6410, %v6409
        %v6428 = vpack.c.b16 %v6412, %v6411
        %6445 = vmatprep.subr.bf16.mxu0 0
        %6446 = vmatpush1.bf16.msra.mxu0 %v6413
        %6447 = vmatprep.subr.bf16.mxu0 0
        %6448 = vmatpush1.bf16.msra.mxu0 %v6414
        %6449 = vmatprep.subr.bf16.mxu0 0
        %6450 = vmatpush1.bf16.msra.mxu0 %v6415
        %6451 = vmatprep.subr.bf16.mxu0 0
        %6452 = vmatpush1.bf16.msra.mxu0 %v6416
        %6453 = vmatprep.subr.bf16.mxu0 0
        %6454 = vmatpush1.bf16.msra.mxu0 %v6417
        %6455 = vmatprep.subr.bf16.mxu0 0
        %6456 = vmatpush1.bf16.msra.mxu0 %v6418
        %6457 = vmatprep.subr.bf16.mxu0 0
        %6458 = vmatpush1.bf16.msra.mxu0 %v6419
        %6459 = vmatprep.subr.bf16.mxu0 0
        %6460 = vmatpush1.bf16.msra.mxu0 %v6420
        %6461 = vmatprep.subr.bf16.mxu0 0
        %6462 = vmatpush1.bf16.msra.mxu0 %v6421
        %6463 = vmatprep.subr.bf16.mxu0 0
        %6464 = vmatpush1.bf16.msra.mxu0 %v6422
        %6465 = vmatprep.subr.bf16.mxu0 0
        %6466 = vmatpush1.bf16.msra.mxu0 %v6423
        %6467 = vmatprep.subr.bf16.mxu0 0
        %6468 = vmatpush1.bf16.msra.mxu0 %v6424
        %6469 = vmatprep.subr.bf16.mxu0 0
        %6470 = vmatpush1.bf16.msra.mxu0 %v6425
        %6471 = vmatprep.subr.bf16.mxu0 0
        %6472 = vmatpush1.bf16.msra.mxu0 %v6426
        %6473 = vmatprep.subr.bf16.mxu0 0
        %6474 = vmatpush1.bf16.msra.mxu0 %v6427
        %6475 = vmatprep.subr.bf16.mxu0 0
        %6476 = vmatpush1.bf16.msra.mxu0 %v6428
        %6477 = vmatprep.mubr.bf16.mxu0 %v6220
        %6478 = vmatmul.mubr.bf16.gmra.mrb[0].mxu0 %v6208
        %v6479 = vpop.f32.mrb[0].mxu0
        %v6480 = vadd.f32 0.0, %v6479
        %v6481 = vpop.f32.mrb[0].mxu0
        %v6482 = vpop.f32.mrb[0].mxu0
        %v6483 = vadd.f32 0.0, %v6482
        %v6484 = vpop.f32.mrb[0].mxu0
        %6485 = vmatprep.mubr.bf16.mxu0 %v6236
        %6486 = vmatmul.mubr.bf16.gmra.mrb[0].mxu0 %v6228
        %v6487 = vpop.f32.mrb[0].mxu0
        %v6488 = vadd.f32 0.0, %v6487
        %v6489 = vpop.f32.mrb[0].mxu0
        %v6490 = vpop.f32.mrb[0].mxu0
        %v6491 = vadd.f32 0.0, %v6490
        %v6492 = vpop.f32.mrb[0].mxu0
        %6493 = vmatprep.mubr.bf16.mxu0 %v6252
        %6494 = vmatmul.mubr.bf16.gmra.mrb[0].mxu0 %v6244
        %v6495 = vpop.f32.mrb[0].mxu0
        %v6496 = vadd.f32 0.0, %v6495
        %v6497 = vpop.f32.mrb[0].mxu0
        %v6498 = vpop.f32.mrb[0].mxu0
        %v6499 = vadd.f32 0.0, %v6498
        %v6500 = vpop.f32.mrb[0].mxu0
        %6501 = vmatprep.mubr.bf16.mxu0 %v6268
        %6502 = vmatmul.mubr.bf16.gmra.mrb[0].mxu0 %v6260
        %v6503 = vpop.f32.mrb[0].mxu0
        %v6504 = vadd.f32 0.0, %v6503
        %v6505 = vpop.f32.mrb[0].mxu0
        %v6506 = vpop.f32.mrb[0].mxu0
        %v6507 = vadd.f32 0.0, %v6506
        %v6508 = vpop.f32.mrb[0].mxu0
        %6509 = vmatprep.mubr.bf16.mxu0 %v6284
        %6510 = vmatmul.mubr.bf16.gmra.mrb[0].mxu0 %v6276
        %v6511 = vpop.f32.mrb[0].mxu0
        %v6512 = vadd.f32 0.0, %v6511
        %v6513 = vpop.f32.mrb[0].mxu0
        %v6514 = vpop.f32.mrb[0].mxu0
        %v6515 = vadd.f32 0.0, %v6514
        %v6516 = vpop.f32.mrb[0].mxu0
        %6517 = vmatprep.mubr.bf16.mxu0 %v6300
        %6518 = vmatmul.mubr.bf16.gmra.mrb[0].mxu0 %v6292
        %v6519 = vpop.f32.mrb[0].mxu0
        %v6520 = vadd.f32 0.0, %v6519
        %v6521 = vpop.f32.mrb[0].mxu0
        %v6522 = vpop.f32.mrb[0].mxu0
        %v6523 = vadd.f32 0.0, %v6522
        %v6524 = vpop.f32.mrb[0].mxu0
        %6525 = vmatprep.mubr.bf16.mxu0 %v6316
        %6526 = vmatmul.mubr.bf16.gmra.mrb[0].mxu0 %v6308
        %v6527 = vpop.f32.mrb[0].mxu0
        %v6528 = vadd.f32 0.0, %v6527
        %v6529 = vpop.f32.mrb[0].mxu0
        %v6530 = vpop.f32.mrb[0].mxu0
        %v6531 = vadd.f32 0.0, %v6530
        %v6532 = vpop.f32.mrb[0].mxu0
        %6533 = vmatprep.mubr.bf16.mxu0 %v6332
        %6534 = vmatmul.mubr.bf16.gmra.mrb[0].mxu0 %v6324
        %v6535 = vpop.f32.mrb[0].mxu0
        %v6536 = vadd.f32 0.0, %v6535
        %v6537 = vpop.f32.mrb[0].mxu0
        %v6538 = vpop.f32.mrb[0].mxu0
        %v6539 = vadd.f32 0.0, %v6538
        %v6540 = vpop.f32.mrb[0].mxu0
        %6541 = vdwg.mxu0
        %v6542 = vadd.f32 %v6130, %v6480
        %v6543 = vadd.f32 %v6131, %v6483
        %v6544 = vadd.f32 %v6132, %v6488
        %v6545 = vadd.f32 %v6133, %v6491
        %v6546 = vadd.f32 %v6134, %v6496
        %v6547 = vadd.f32 %v6135, %v6499
        %v6548 = vadd.f32 %v6136, %v6504
        %v6549 = vadd.f32 %v6137, %v6507
        %v6550 = vadd.f32 %v6138, %v6512
        %v6551 = vadd.f32 %v6139, %v6515
        %v6552 = vadd.f32 %v6140, %v6520
        %v6553 = vadd.f32 %v6141, %v6523
        %v6554 = vadd.f32 %v6142, %v6528
        %v6555 = vadd.f32 %v6143, %v6531
        %v6556 = vadd.f32 %v6144, %v6536
        %v6557 = vadd.f32 %v6145, %v6539
        %v6558 = vld [vmem:[#allocation2 + $0x10] sm:$0xfe]
        %v6559 = vld [vmem:[#allocation2 + $0x18] sm:$0xfe]
        %s6560 = scalar_lea.vmem [#allocation6], 2304
        %v6561 = vld [vmem:[%s6560] sm:$0xf]
        %v6562 = vld [vmem:[%s6560 + $0x4] sm:$0xf]
        %v6563 = vld [vmem:[%s6560 + $0x8] sm:$0xf]
        %v6564 = vld [vmem:[%s6560 + $0xc] sm:$0xf]
        %v6565 = vld [vmem:[%s6560 + $0x10] sm:$0xf]
        %v6566 = vld [vmem:[%s6560 + $0x14] sm:$0xf]
        %v6567 = vld [vmem:[%s6560 + $0x18] sm:$0xf]
        %v6568 = vld [vmem:[%s6560 + $0x1c] sm:$0xf]
        %v6569 = vld [vmem:[%s6560 + $0x20] sm:$0xf]
        %v6570 = vld [vmem:[%s6560 + $0x24] sm:$0xf]
        %v6571 = vld [vmem:[%s6560 + $0x28] sm:$0xf]
        %v6572 = vld [vmem:[%s6560 + $0x2c] sm:$0xf]
        %v6573 = vld [vmem:[%s6560 + $0x30] sm:$0xf]
        %v6574 = vld [vmem:[%s6560 + $0x34] sm:$0xf]
        %v6575 = vld [vmem:[%s6560 + $0x38] sm:$0xf]
        %v6576 = vld [vmem:[%s6560 + $0x3c] sm:$0xf]
        %v6577 = vld [vmem:[%s6560 + $0x40] sm:$0xf]
        %v6578 = vld [vmem:[%s6560 + $0x44] sm:$0xf]
        %v6579 = vld [vmem:[%s6560 + $0x48] sm:$0xf]
        %v6580 = vld [vmem:[%s6560 + $0x4c] sm:$0xf]
        %v6581 = vld [vmem:[%s6560 + $0x50] sm:$0xf]
        %v6582 = vld [vmem:[%s6560 + $0x54] sm:$0xf]
        %v6583 = vld [vmem:[%s6560 + $0x58] sm:$0xf]
        %v6584 = vld [vmem:[%s6560 + $0x5c] sm:$0xf]
        %v6585 = vld [vmem:[%s6560 + $0x60] sm:$0xf]
        %v6586 = vld [vmem:[%s6560 + $0x64] sm:$0xf]
        %v6587 = vld [vmem:[%s6560 + $0x68] sm:$0xf]
        %v6588 = vld [vmem:[%s6560 + $0x6c] sm:$0xf]
        %v6589 = vld [vmem:[%s6560 + $0x70] sm:$0xf]
        %v6590 = vld [vmem:[%s6560 + $0x74] sm:$0xf]
        %v6591 = vld [vmem:[%s6560 + $0x78] sm:$0xf]
        %v6592 = vld [vmem:[%s6560 + $0x7c] sm:$0xf]
        %v6611 = vrot.slane %v6558, 1
        %v6612 = vrot.slane %v6148, 1
        %v6613 = vsel %vm1417, %v6611, %v6612
        %v6614 = vrot.slane %v6559, 1
        %v6615 = vrot.slane %v6149, 1
        %v6616 = vsel %vm1417, %v6614, %v6615
        %v6617 = vrot.slane %v6150, 1
        %v6618 = vsel %vm1417, %v6612, %v6617
        %v6619 = vrot.slane %v6151, 1
        %v6620 = vsel %vm1417, %v6615, %v6619
        %v6621 = vrot.slane %v6152, 1
        %v6622 = vsel %vm1417, %v6617, %v6621
        %v6623 = vrot.slane %v6153, 1
        %v6624 = vsel %vm1417, %v6619, %v6623
        %v6625 = vrot.slane %v6154, 1
        %v6626 = vsel %vm1417, %v6621, %v6625
        %v6627 = vrot.slane %v6155, 1
        %v6628 = vsel %vm1417, %v6623, %v6627
        %v6629 = vrot.slane %v6156, 1
        %v6630 = vsel %vm1417, %v6625, %v6629
        %v6631 = vrot.slane %v6157, 1
        %v6632 = vsel %vm1417, %v6627, %v6631
        %v6633 = vrot.slane %v6158, 1
        %v6634 = vsel %vm1417, %v6629, %v6633
        %v6635 = vrot.slane %v6159, 1
        %v6636 = vsel %vm1417, %v6631, %v6635
        %v6637 = vrot.slane %v6160, 1
        %v6638 = vsel %vm1417, %v6633, %v6637
        %v6639 = vrot.slane %v6161, 1
        %v6640 = vsel %vm1417, %v6635, %v6639
        %v6641 = vrot.slane %v6162, 1
        %v6642 = vsel %vm1417, %v6637, %v6641
        %v6643 = vrot.slane %v6163, 1
        %v6644 = vsel %vm1417, %v6639, %v6643
        %v6693 = vunpack.c.l.b16 %v6561
        %v6694 = vunpack.c.l.b16 %v6562
        %v6695 = vunpack.c.l.b16 %v6563
        %v6696 = vunpack.c.l.b16 %v6564
        %v6697 = vunpack.c.l.b16 %v6565
        %v6698 = vunpack.c.l.b16 %v6566
        %v6699 = vunpack.c.l.b16 %v6567
        %v6700 = vunpack.c.l.b16 %v6568
        %v6701 = vunpack.c.l.b16 %v6569
        %v6702 = vunpack.c.l.b16 %v6570
        %v6703 = vunpack.c.l.b16 %v6571
        %v6704 = vunpack.c.l.b16 %v6572
        %v6705 = vunpack.c.l.b16 %v6573
        %v6706 = vunpack.c.l.b16 %v6574
        %v6707 = vunpack.c.l.b16 %v6575
        %v6708 = vunpack.c.l.b16 %v6576
        %v6709 = vunpack.c.l.b16 %v6577
        %v6710 = vunpack.c.l.b16 %v6578
        %v6711 = vunpack.c.l.b16 %v6579
        %v6712 = vunpack.c.l.b16 %v6580
        %v6713 = vunpack.c.l.b16 %v6581
        %v6714 = vunpack.c.l.b16 %v6582
        %v6715 = vunpack.c.l.b16 %v6583
        %v6716 = vunpack.c.l.b16 %v6584
        %v6717 = vunpack.c.l.b16 %v6585
        %v6718 = vunpack.c.l.b16 %v6586
        %v6719 = vunpack.c.l.b16 %v6587
        %v6720 = vunpack.c.l.b16 %v6588
        %v6721 = vunpack.c.l.b16 %v6589
        %v6722 = vunpack.c.l.b16 %v6590
        %v6723 = vunpack.c.l.b16 %v6591
        %v6724 = vunpack.c.l.b16 %v6592
        %v6725 = vpack.c.b16 %v6694, %v6693
        %v6726 = vpack.c.b16 %v6696, %v6695
        %v6727 = vpack.c.b16 %v6698, %v6697
        %v6728 = vpack.c.b16 %v6700, %v6699
        %v6729 = vpack.c.b16 %v6702, %v6701
        %v6730 = vpack.c.b16 %v6704, %v6703
        %v6731 = vpack.c.b16 %v6706, %v6705
        %v6732 = vpack.c.b16 %v6708, %v6707
        %v6733 = vpack.c.b16 %v6710, %v6709
        %v6734 = vpack.c.b16 %v6712, %v6711
        %v6735 = vpack.c.b16 %v6714, %v6713
        %v6736 = vpack.c.b16 %v6716, %v6715
        %v6737 = vpack.c.b16 %v6718, %v6717
        %v6738 = vpack.c.b16 %v6720, %v6719
        %v6739 = vpack.c.b16 %v6722, %v6721
        %v6740 = vpack.c.b16 %v6724, %v6723
        %6757 = vmatprep.subr.bf16.mxu0 0
        %6758 = vmatpush1.bf16.msra.mxu0 %v6725
        %6759 = vmatprep.subr.bf16.mxu0 0
        %6760 = vmatpush1.bf16.msra.mxu0 %v6726
        %6761 = vmatprep.subr.bf16.mxu0 0
        %6762 = vmatpush1.bf16.msra.mxu0 %v6727
        %6763 = vmatprep.subr.bf16.mxu0 0
        %6764 = vmatpush1.bf16.msra.mxu0 %v6728
        %6765 = vmatprep.subr.bf16.mxu0 0
        %6766 = vmatpush1.bf16.msra.mxu0 %v6729
        %6767 = vmatprep.subr.bf16.mxu0 0
        %6768 = vmatpush1.bf16.msra.mxu0 %v6730
        %6769 = vmatprep.subr.bf16.mxu0 0
        %6770 = vmatpush1.bf16.msra.mxu0 %v6731
        %6771 = vmatprep.subr.bf16.mxu0 0
        %6772 = vmatpush1.bf16.msra.mxu0 %v6732
        %6773 = vmatprep.subr.bf16.mxu0 0
        %6774 = vmatpush1.bf16.msra.mxu0 %v6733
        %6775 = vmatprep.subr.bf16.mxu0 0
        %6776 = vmatpush1.bf16.msra.mxu0 %v6734
        %6777 = vmatprep.subr.bf16.mxu0 0
        %6778 = vmatpush1.bf16.msra.mxu0 %v6735
        %6779 = vmatprep.subr.bf16.mxu0 0
        %6780 = vmatpush1.bf16.msra.mxu0 %v6736
        %6781 = vmatprep.subr.bf16.mxu0 0
        %6782 = vmatpush1.bf16.msra.mxu0 %v6737
        %6783 = vmatprep.subr.bf16.mxu0 0
        %6784 = vmatpush1.bf16.msra.mxu0 %v6738
        %6785 = vmatprep.subr.bf16.mxu0 0
        %6786 = vmatpush1.bf16.msra.mxu0 %v6739
        %6787 = vmatprep.subr.bf16.mxu0 0
        %6788 = vmatpush1.bf16.msra.mxu0 %v6740
        %6789 = vmatprep.mubr.bf16.mxu0 %v6616
        %6790 = vmatmul.mubr.bf16.gmra.mrb[0].mxu0 %v6613
        %v6791 = vpop.f32.mrb[0].mxu0
        %v6792 = vadd.f32 0.0, %v6791
        %v6793 = vpop.f32.mrb[0].mxu0
        %v6794 = vpop.f32.mrb[0].mxu0
        %v6795 = vadd.f32 0.0, %v6794
        %v6796 = vpop.f32.mrb[0].mxu0
        %6797 = vmatprep.mubr.bf16.mxu0 %v6620
        %6798 = vmatmul.mubr.bf16.gmra.mrb[0].mxu0 %v6618
        %v6799 = vpop.f32.mrb[0].mxu0
        %v6800 = vadd.f32 0.0, %v6799
        %v6801 = vpop.f32.mrb[0].mxu0
        %v6802 = vpop.f32.mrb[0].mxu0
        %v6803 = vadd.f32 0.0, %v6802
        %v6804 = vpop.f32.mrb[0].mxu0
        %6805 = vmatprep.mubr.bf16.mxu0 %v6624
        %6806 = vmatmul.mubr.bf16.gmra.mrb[0].mxu0 %v6622
        %v6807 = vpop.f32.mrb[0].mxu0
        %v6808 = vadd.f32 0.0, %v6807
        %v6809 = vpop.f32.mrb[0].mxu0
        %v6810 = vpop.f32.mrb[0].mxu0
        %v6811 = vadd.f32 0.0, %v6810
        %v6812 = vpop.f32.mrb[0].mxu0
        %6813 = vmatprep.mubr.bf16.mxu0 %v6628
        %6814 = vmatmul.mubr.bf16.gmra.mrb[0].mxu0 %v6626
        %v6815 = vpop.f32.mrb[0].mxu0
        %v6816 = vadd.f32 0.0, %v6815
        %v6817 = vpop.f32.mrb[0].mxu0
        %v6818 = vpop.f32.mrb[0].mxu0
        %v6819 = vadd.f32 0.0, %v6818
        %v6820 = vpop.f32.mrb[0].mxu0
        %6821 = vmatprep.mubr.bf16.mxu0 %v6632
        %6822 = vmatmul.mubr.bf16.gmra.mrb[0].mxu0 %v6630
        %v6823 = vpop.f32.mrb[0].mxu0
        %v6824 = vadd.f32 0.0, %v6823
        %v6825 = vpop.f32.mrb[0].mxu0
        %v6826 = vpop.f32.mrb[0].mxu0
        %v6827 = vadd.f32 0.0, %v6826
        %v6828 = vpop.f32.mrb[0].mxu0
        %6829 = vmatprep.mubr.bf16.mxu0 %v6636
        %6830 = vmatmul.mubr.bf16.gmra.mrb[0].mxu0 %v6634
        %v6831 = vpop.f32.mrb[0].mxu0
        %v6832 = vadd.f32 0.0, %v6831
        %v6833 = vpop.f32.mrb[0].mxu0
        %v6834 = vpop.f32.mrb[0].mxu0
        %v6835 = vadd.f32 0.0, %v6834
        %v6836 = vpop.f32.mrb[0].mxu0
        %6837 = vmatprep.mubr.bf16.mxu0 %v6640
        %6838 = vmatmul.mubr.bf16.gmra.mrb[0].mxu0 %v6638
        %v6839 = vpop.f32.mrb[0].mxu0
        %v6840 = vadd.f32 0.0, %v6839
        %v6841 = vpop.f32.mrb[0].mxu0
        %v6842 = vpop.f32.mrb[0].mxu0
        %v6843 = vadd.f32 0.0, %v6842
        %v6844 = vpop.f32.mrb[0].mxu0
        %6845 = vmatprep.mubr.bf16.mxu0 %v6644
        %6846 = vmatmul.mubr.bf16.gmra.mrb[0].mxu0 %v6642
        %v6847 = vpop.f32.mrb[0].mxu0
        %v6848 = vadd.f32 0.0, %v6847
        %v6849 = vpop.f32.mrb[0].mxu0
        %v6850 = vpop.f32.mrb[0].mxu0
        %v6851 = vadd.f32 0.0, %v6850
        %v6852 = vpop.f32.mrb[0].mxu0
        %6853 = vdwg.mxu0
        %v6854 = vadd.f32 %v6542, %v6792
        %v6855 = vadd.f32 %v6543, %v6795
        %v6856 = vadd.f32 %v6544, %v6800
        %v6857 = vadd.f32 %v6545, %v6803
        %v6858 = vadd.f32 %v6546, %v6808
        %v6859 = vadd.f32 %v6547, %v6811
        %v6860 = vadd.f32 %v6548, %v6816
        %v6861 = vadd.f32 %v6549, %v6819
        %v6862 = vadd.f32 %v6550, %v6824
        %v6863 = vadd.f32 %v6551, %v6827
        %v6864 = vadd.f32 %v6552, %v6832
        %v6865 = vadd.f32 %v6553, %v6835
        %v6866 = vadd.f32 %v6554, %v6840
        %v6867 = vadd.f32 %v6555, %v6843
        %v6868 = vadd.f32 %v6556, %v6848
        %v6869 = vadd.f32 %v6557, %v6851
        %v6870 = vld [vmem:[#allocation2 + $0x90] sm:$0x3]
        %v6871 = vld [vmem:[#allocation2 + $0x98] sm:$0x3]
        %s6872 = scalar_lea.vmem [#allocation6], 2432
        %v6873 = vld [vmem:[%s6872] sm:$0xf]
        %v6874 = vld [vmem:[%s6872 + $0x4] sm:$0xf]
        %v6875 = vld [vmem:[%s6872 + $0x8] sm:$0xf]
        %v6876 = vld [vmem:[%s6872 + $0xc] sm:$0xf]
        %v6877 = vld [vmem:[%s6872 + $0x10] sm:$0xf]
        %v6878 = vld [vmem:[%s6872 + $0x14] sm:$0xf]
        %v6879 = vld [vmem:[%s6872 + $0x18] sm:$0xf]
        %v6880 = vld [vmem:[%s6872 + $0x1c] sm:$0xf]
        %v6881 = vld [vmem:[%s6872 + $0x20] sm:$0xf]
        %v6882 = vld [vmem:[%s6872 + $0x24] sm:$0xf]
        %v6883 = vld [vmem:[%s6872 + $0x28] sm:$0xf]
        %v6884 = vld [vmem:[%s6872 + $0x2c] sm:$0xf]
        %v6885 = vld [vmem:[%s6872 + $0x30] sm:$0xf]
        %v6886 = vld [vmem:[%s6872 + $0x34] sm:$0xf]
        %v6887 = vld [vmem:[%s6872 + $0x38] sm:$0xf]
        %v6888 = vld [vmem:[%s6872 + $0x3c] sm:$0xf]
        %v6889 = vld [vmem:[%s6872 + $0x40] sm:$0xf]
        %v6890 = vld [vmem:[%s6872 + $0x44] sm:$0xf]
        %v6891 = vld [vmem:[%s6872 + $0x48] sm:$0xf]
        %v6892 = vld [vmem:[%s6872 + $0x4c] sm:$0xf]
        %v6893 = vld [vmem:[%s6872 + $0x50] sm:$0xf]
        %v6894 = vld [vmem:[%s6872 + $0x54] sm:$0xf]
        %v6895 = vld [vmem:[%s6872 + $0x58] sm:$0xf]
        %v6896 = vld [vmem:[%s6872 + $0x5c] sm:$0xf]
        %v6897 = vld [vmem:[%s6872 + $0x60] sm:$0xf]
        %v6898 = vld [vmem:[%s6872 + $0x64] sm:$0xf]
        %v6899 = vld [vmem:[%s6872 + $0x68] sm:$0xf]
        %v6900 = vld [vmem:[%s6872 + $0x6c] sm:$0xf]
        %v6901 = vld [vmem:[%s6872 + $0x70] sm:$0xf]
        %v6902 = vld [vmem:[%s6872 + $0x74] sm:$0xf]
        %v6903 = vld [vmem:[%s6872 + $0x78] sm:$0xf]
        %v6904 = vld [vmem:[%s6872 + $0x7c] sm:$0xf]
        %v6906 = vshrl.u32 %v6558, 16
        %v6908 = vrot.slane %v6906, 1
        %v6909 = vshll.u32 %v6558, 16
        %v6911 = vrot.slane %v6909, 2
        %v6912 = vor.u32 %v6908, %v6911
        %v6913 = vrot.slane %v6221, 1
        %v6914 = vrot.slane %v6205, 2
        %v6915 = vor.u32 %v6913, %v6914
        %v6916 = vsel %vm1712, %v6912, %v6915
        %v6918 = vshrl.u32 %v6559, 16
        %v6920 = vrot.slane %v6918, 1
        %v6921 = vshll.u32 %v6559, 16
        %v6923 = vrot.slane %v6921, 2
        %v6924 = vor.u32 %v6920, %v6923
        %v6925 = vrot.slane %v6229, 1
        %v6926 = vrot.slane %v6217, 2
        %v6927 = vor.u32 %v6925, %v6926
        %v6928 = vsel %vm1712, %v6924, %v6927
        %v6929 = vrot.slane %v6237, 1
        %v6930 = vrot.slane %v6225, 2
        %v6931 = vor.u32 %v6929, %v6930
        %v6932 = vsel %vm1712, %v6915, %v6931
        %v6933 = vrot.slane %v6245, 1
        %v6934 = vrot.slane %v6233, 2
        %v6935 = vor.u32 %v6933, %v6934
        %v6936 = vsel %vm1712, %v6927, %v6935
        %v6937 = vrot.slane %v6253, 1
        %v6938 = vrot.slane %v6241, 2
        %v6939 = vor.u32 %v6937, %v6938
        %v6940 = vsel %vm1712, %v6931, %v6939
        %v6941 = vrot.slane %v6261, 1
        %v6942 = vrot.slane %v6249, 2
        %v6943 = vor.u32 %v6941, %v6942
        %v6944 = vsel %vm1712, %v6935, %v6943
        %v6945 = vrot.slane %v6269, 1
        %v6946 = vrot.slane %v6257, 2
        %v6947 = vor.u32 %v6945, %v6946
        %v6948 = vsel %vm1712, %v6939, %v6947
        %v6949 = vrot.slane %v6277, 1
        %v6950 = vrot.slane %v6265, 2
        %v6951 = vor.u32 %v6949, %v6950
        %v6952 = vsel %vm1712, %v6943, %v6951
        %v6953 = vrot.slane %v6285, 1
        %v6954 = vrot.slane %v6273, 2
        %v6955 = vor.u32 %v6953, %v6954
        %v6956 = vsel %vm1712, %v6947, %v6955
        %v6957 = vrot.slane %v6293, 1
        %v6958 = vrot.slane %v6281, 2
        %v6959 = vor.u32 %v6957, %v6958
        %v6960 = vsel %vm1712, %v6951, %v6959
        %v6961 = vrot.slane %v6301, 1
        %v6962 = vrot.slane %v6289, 2
        %v6963 = vor.u32 %v6961, %v6962
        %v6964 = vsel %vm1712, %v6955, %v6963
        %v6965 = vrot.slane %v6309, 1
        %v6966 = vrot.slane %v6297, 2
        %v6967 = vor.u32 %v6965, %v6966
        %v6968 = vsel %vm1712, %v6959, %v6967
        %v6969 = vrot.slane %v6317, 1
        %v6970 = vrot.slane %v6305, 2
        %v6971 = vor.u32 %v6969, %v6970
        %v6972 = vsel %vm1712, %v6963, %v6971
        %v6973 = vrot.slane %v6325, 1
        %v6974 = vrot.slane %v6313, 2
        %v6975 = vor.u32 %v6973, %v6974
        %v6976 = vsel %vm1712, %v6967, %v6975
        %v6978 = vshrl.u32 %v6870, 16
        %v6980 = vrot.slane %v6978, 1
        %v6981 = vshll.u32 %v6870, 16
        %v6983 = vrot.slane %v6981, 2
        %v6984 = vor.u32 %v6980, %v6983
        %v6985 = vsel %vm1712, %v6971, %v6984
        %v6987 = vshrl.u32 %v6871, 16
        %v6989 = vrot.slane %v6987, 1
        %v6990 = vshll.u32 %v6871, 16
        %v6992 = vrot.slane %v6990, 2
        %v6993 = vor.u32 %v6989, %v6992
        %v6994 = vsel %vm1712, %v6975, %v6993
        %v7043 = vunpack.c.l.b16 %v6873
        %v7044 = vunpack.c.l.b16 %v6874
        %v7045 = vunpack.c.l.b16 %v6875
        %v7046 = vunpack.c.l.b16 %v6876
        %v7047 = vunpack.c.l.b16 %v6877
        %v7048 = vunpack.c.l.b16 %v6878
        %v7049 = vunpack.c.l.b16 %v6879
        %v7050 = vunpack.c.l.b16 %v6880
        %v7051 = vunpack.c.l.b16 %v6881
        %v7052 = vunpack.c.l.b16 %v6882
        %v7053 = vunpack.c.l.b16 %v6883
        %v7054 = vunpack.c.l.b16 %v6884
        %v7055 = vunpack.c.l.b16 %v6885
        %v7056 = vunpack.c.l.b16 %v6886
        %v7057 = vunpack.c.l.b16 %v6887
        %v7058 = vunpack.c.l.b16 %v6888
        %v7059 = vunpack.c.l.b16 %v6889
        %v7060 = vunpack.c.l.b16 %v6890
        %v7061 = vunpack.c.l.b16 %v6891
        %v7062 = vunpack.c.l.b16 %v6892
        %v7063 = vunpack.c.l.b16 %v6893
        %v7064 = vunpack.c.l.b16 %v6894
        %v7065 = vunpack.c.l.b16 %v6895
        %v7066 = vunpack.c.l.b16 %v6896
        %v7067 = vunpack.c.l.b16 %v6897
        %v7068 = vunpack.c.l.b16 %v6898
        %v7069 = vunpack.c.l.b16 %v6899
        %v7070 = vunpack.c.l.b16 %v6900
        %v7071 = vunpack.c.l.b16 %v6901
        %v7072 = vunpack.c.l.b16 %v6902
        %v7073 = vunpack.c.l.b16 %v6903
        %v7074 = vunpack.c.l.b16 %v6904
        %v7075 = vpack.c.b16 %v7044, %v7043
        %v7076 = vpack.c.b16 %v7046, %v7045
        %v7077 = vpack.c.b16 %v7048, %v7047
        %v7078 = vpack.c.b16 %v7050, %v7049
        %v7079 = vpack.c.b16 %v7052, %v7051
        %v7080 = vpack.c.b16 %v7054, %v7053
        %v7081 = vpack.c.b16 %v7056, %v7055
        %v7082 = vpack.c.b16 %v7058, %v7057
        %v7083 = vpack.c.b16 %v7060, %v7059
        %v7084 = vpack.c.b16 %v7062, %v7061
        %v7085 = vpack.c.b16 %v7064, %v7063
        %v7086 = vpack.c.b16 %v7066, %v7065
        %v7087 = vpack.c.b16 %v7068, %v7067
        %v7088 = vpack.c.b16 %v7070, %v7069
        %v7089 = vpack.c.b16 %v7072, %v7071
        %v7090 = vpack.c.b16 %v7074, %v7073
        %7107 = vmatprep.subr.bf16.mxu0 0
        %7108 = vmatpush1.bf16.msra.mxu0 %v7075
        %7109 = vmatprep.subr.bf16.mxu0 0
        %7110 = vmatpush1.bf16.msra.mxu0 %v7076
        %7111 = vmatprep.subr.bf16.mxu0 0
        %7112 = vmatpush1.bf16.msra.mxu0 %v7077
        %7113 = vmatprep.subr.bf16.mxu0 0
        %7114 = vmatpush1.bf16.msra.mxu0 %v7078
        %7115 = vmatprep.subr.bf16.mxu0 0
        %7116 = vmatpush1.bf16.msra.mxu0 %v7079
        %7117 = vmatprep.subr.bf16.mxu0 0
        %7118 = vmatpush1.bf16.msra.mxu0 %v7080
        %7119 = vmatprep.subr.bf16.mxu0 0
        %7120 = vmatpush1.bf16.msra.mxu0 %v7081
        %7121 = vmatprep.subr.bf16.mxu0 0
        %7122 = vmatpush1.bf16.msra.mxu0 %v7082
        %7123 = vmatprep.subr.bf16.mxu0 0
        %7124 = vmatpush1.bf16.msra.mxu0 %v7083
        %7125 = vmatprep.subr.bf16.mxu0 0
        %7126 = vmatpush1.bf16.msra.mxu0 %v7084
        %7127 = vmatprep.subr.bf16.mxu0 0
        %7128 = vmatpush1.bf16.msra.mxu0 %v7085
        %7129 = vmatprep.subr.bf16.mxu0 0
        %7130 = vmatpush1.bf16.msra.mxu0 %v7086
        %7131 = vmatprep.subr.bf16.mxu0 0
        %7132 = vmatpush1.bf16.msra.mxu0 %v7087
        %7133 = vmatprep.subr.bf16.mxu0 0
        %7134 = vmatpush1.bf16.msra.mxu0 %v7088
        %7135 = vmatprep.subr.bf16.mxu0 0
        %7136 = vmatpush1.bf16.msra.mxu0 %v7089
        %7137 = vmatprep.subr.bf16.mxu0 0
        %7138 = vmatpush1.bf16.msra.mxu0 %v7090
        %7139 = vmatprep.mubr.bf16.mxu0 %v6928
        %7140 = vmatmul.mubr.bf16.gmra.mrb[0].mxu0 %v6916
        %v7141 = vpop.f32.mrb[0].mxu0
        %v7142 = vadd.f32 0.0, %v7141
        %v7143 = vpop.f32.mrb[0].mxu0
        %v7144 = vpop.f32.mrb[0].mxu0
        %v7145 = vadd.f32 0.0, %v7144
        %v7146 = vpop.f32.mrb[0].mxu0
        %7147 = vmatprep.mubr.bf16.mxu0 %v6936
        %7148 = vmatmul.mubr.bf16.gmra.mrb[0].mxu0 %v6932
        %v7149 = vpop.f32.mrb[0].mxu0
        %v7150 = vadd.f32 0.0, %v7149
        %v7151 = vpop.f32.mrb[0].mxu0
        %v7152 = vpop.f32.mrb[0].mxu0
        %v7153 = vadd.f32 0.0, %v7152
        %v7154 = vpop.f32.mrb[0].mxu0
        %7155 = vmatprep.mubr.bf16.mxu0 %v6944
        %7156 = vmatmul.mubr.bf16.gmra.mrb[0].mxu0 %v6940
        %v7157 = vpop.f32.mrb[0].mxu0
        %v7158 = vadd.f32 0.0, %v7157
        %v7159 = vpop.f32.mrb[0].mxu0
        %v7160 = vpop.f32.mrb[0].mxu0
        %v7161 = vadd.f32 0.0, %v7160
        %v7162 = vpop.f32.mrb[0].mxu0
        %7163 = vmatprep.mubr.bf16.mxu0 %v6952
        %7164 = vmatmul.mubr.bf16.gmra.mrb[0].mxu0 %v6948
        %v7165 = vpop.f32.mrb[0].mxu0
        %v7166 = vadd.f32 0.0, %v7165
        %v7167 = vpop.f32.mrb[0].mxu0
        %v7168 = vpop.f32.mrb[0].mxu0
        %v7169 = vadd.f32 0.0, %v7168
        %v7170 = vpop.f32.mrb[0].mxu0
        %7171 = vmatprep.mubr.bf16.mxu0 %v6960
        %7172 = vmatmul.mubr.bf16.gmra.mrb[0].mxu0 %v6956
        %v7173 = vpop.f32.mrb[0].mxu0
        %v7174 = vadd.f32 0.0, %v7173
        %v7175 = vpop.f32.mrb[0].mxu0
        %v7176 = vpop.f32.mrb[0].mxu0
        %v7177 = vadd.f32 0.0, %v7176
        %v7178 = vpop.f32.mrb[0].mxu0
        %7179 = vmatprep.mubr.bf16.mxu0 %v6968
        %7180 = vmatmul.mubr.bf16.gmra.mrb[0].mxu0 %v6964
        %v7181 = vpop.f32.mrb[0].mxu0
        %v7182 = vadd.f32 0.0, %v7181
        %v7183 = vpop.f32.mrb[0].mxu0
        %v7184 = vpop.f32.mrb[0].mxu0
        %v7185 = vadd.f32 0.0, %v7184
        %v7186 = vpop.f32.mrb[0].mxu0
        %7187 = vmatprep.mubr.bf16.mxu0 %v6976
        %7188 = vmatmul.mubr.bf16.gmra.mrb[0].mxu0 %v6972
        %v7189 = vpop.f32.mrb[0].mxu0
        %v7190 = vadd.f32 0.0, %v7189
        %v7191 = vpop.f32.mrb[0].mxu0
        %v7192 = vpop.f32.mrb[0].mxu0
        %v7193 = vadd.f32 0.0, %v7192
        %v7194 = vpop.f32.mrb[0].mxu0
        %7195 = vmatprep.mubr.bf16.mxu0 %v6994
        %7196 = vmatmul.mubr.bf16.gmra.mrb[0].mxu0 %v6985
        %v7197 = vpop.f32.mrb[0].mxu0
        %v7198 = vadd.f32 0.0, %v7197
        %v7199 = vpop.f32.mrb[0].mxu0
        %v7200 = vpop.f32.mrb[0].mxu0
        %v7201 = vadd.f32 0.0, %v7200
        %v7202 = vpop.f32.mrb[0].mxu0
        %7203 = vdwg.mxu0
        %v7204 = vadd.f32 %v6854, %v7142
        %v7205 = vadd.f32 %v6855, %v7145
        %v7206 = vadd.f32 %v6856, %v7150
        %v7207 = vadd.f32 %v6857, %v7153
        %v7208 = vadd.f32 %v6858, %v7158
        %v7209 = vadd.f32 %v6859, %v7161
        %v7210 = vadd.f32 %v6860, %v7166
        %v7211 = vadd.f32 %v6861, %v7169
        %v7212 = vadd.f32 %v6862, %v7174
        %v7213 = vadd.f32 %v6863, %v7177
        %v7214 = vadd.f32 %v6864, %v7182
        %v7215 = vadd.f32 %v6865, %v7185
        %v7216 = vadd.f32 %v6866, %v7190
        %v7217 = vadd.f32 %v6867, %v7193
        %v7218 = vadd.f32 %v6868, %v7198
        %v7219 = vadd.f32 %v6869, %v7201
        %v7220 = vld [vmem:[#allocation2 + $0x10] sm:$0xfc]
        %v7221 = vld [vmem:[#allocation2 + $0x18] sm:$0xfc]
        %s7222 = scalar_lea.vmem [#allocation6], 2560
        %v7223 = vld [vmem:[%s7222] sm:$0xf]
        %v7224 = vld [vmem:[%s7222 + $0x4] sm:$0xf]
        %v7225 = vld [vmem:[%s7222 + $0x8] sm:$0xf]
        %v7226 = vld [vmem:[%s7222 + $0xc] sm:$0xf]
        %v7227 = vld [vmem:[%s7222 + $0x10] sm:$0xf]
        %v7228 = vld [vmem:[%s7222 + $0x14] sm:$0xf]
        %v7229 = vld [vmem:[%s7222 + $0x18] sm:$0xf]
        %v7230 = vld [vmem:[%s7222 + $0x1c] sm:$0xf]
        %v7231 = vld [vmem:[%s7222 + $0x20] sm:$0xf]
        %v7232 = vld [vmem:[%s7222 + $0x24] sm:$0xf]
        %v7233 = vld [vmem:[%s7222 + $0x28] sm:$0xf]
        %v7234 = vld [vmem:[%s7222 + $0x2c] sm:$0xf]
        %v7235 = vld [vmem:[%s7222 + $0x30] sm:$0xf]
        %v7236 = vld [vmem:[%s7222 + $0x34] sm:$0xf]
        %v7237 = vld [vmem:[%s7222 + $0x38] sm:$0xf]
        %v7238 = vld [vmem:[%s7222 + $0x3c] sm:$0xf]
        %v7239 = vld [vmem:[%s7222 + $0x40] sm:$0xf]
        %v7240 = vld [vmem:[%s7222 + $0x44] sm:$0xf]
        %v7241 = vld [vmem:[%s7222 + $0x48] sm:$0xf]
        %v7242 = vld [vmem:[%s7222 + $0x4c] sm:$0xf]
        %v7243 = vld [vmem:[%s7222 + $0x50] sm:$0xf]
        %v7244 = vld [vmem:[%s7222 + $0x54] sm:$0xf]
        %v7245 = vld [vmem:[%s7222 + $0x58] sm:$0xf]
        %v7246 = vld [vmem:[%s7222 + $0x5c] sm:$0xf]
        %v7247 = vld [vmem:[%s7222 + $0x60] sm:$0xf]
        %v7248 = vld [vmem:[%s7222 + $0x64] sm:$0xf]
        %v7249 = vld [vmem:[%s7222 + $0x68] sm:$0xf]
        %v7250 = vld [vmem:[%s7222 + $0x6c] sm:$0xf]
        %v7251 = vld [vmem:[%s7222 + $0x70] sm:$0xf]
        %v7252 = vld [vmem:[%s7222 + $0x74] sm:$0xf]
        %v7253 = vld [vmem:[%s7222 + $0x78] sm:$0xf]
        %v7254 = vld [vmem:[%s7222 + $0x7c] sm:$0xf]
        %v7259 = vrot.slane %v7220, 2
        %v7260 = vrot.slane %v6148, 2
        %v7261 = vsel %vm2067, %v7259, %v7260
        %v7262 = vrot.slane %v7221, 2
        %v7263 = vrot.slane %v6149, 2
        %v7264 = vsel %vm2067, %v7262, %v7263
        %v7265 = vrot.slane %v6150, 2
        %v7266 = vsel %vm2067, %v7260, %v7265
        %v7267 = vrot.slane %v6151, 2
        %v7268 = vsel %vm2067, %v7263, %v7267
        %v7269 = vrot.slane %v6152, 2
        %v7270 = vsel %vm2067, %v7265, %v7269
        %v7271 = vrot.slane %v6153, 2
        %v7272 = vsel %vm2067, %v7267, %v7271
        %v7273 = vrot.slane %v6154, 2
        %v7274 = vsel %vm2067, %v7269, %v7273
        %v7275 = vrot.slane %v6155, 2
        %v7276 = vsel %vm2067, %v7271, %v7275
        %v7277 = vrot.slane %v6156, 2
        %v7278 = vsel %vm2067, %v7273, %v7277
        %v7279 = vrot.slane %v6157, 2
        %v7280 = vsel %vm2067, %v7275, %v7279
        %v7281 = vrot.slane %v6158, 2
        %v7282 = vsel %vm2067, %v7277, %v7281
        %v7283 = vrot.slane %v6159, 2
        %v7284 = vsel %vm2067, %v7279, %v7283
        %v7285 = vrot.slane %v6160, 2
        %v7286 = vsel %vm2067, %v7281, %v7285
        %v7287 = vrot.slane %v6161, 2
        %v7288 = vsel %vm2067, %v7283, %v7287
        %v7289 = vrot.slane %v6870, 2
        %v7290 = vsel %vm2067, %v7285, %v7289
        %v7291 = vrot.slane %v6871, 2
        %v7292 = vsel %vm2067, %v7287, %v7291
        %v7341 = vunpack.c.l.b16 %v7223
        %v7342 = vunpack.c.l.b16 %v7224
        %v7343 = vunpack.c.l.b16 %v7225
        %v7344 = vunpack.c.l.b16 %v7226
        %v7345 = vunpack.c.l.b16 %v7227
        %v7346 = vunpack.c.l.b16 %v7228
        %v7347 = vunpack.c.l.b16 %v7229
        %v7348 = vunpack.c.l.b16 %v7230
        %v7349 = vunpack.c.l.b16 %v7231
        %v7350 = vunpack.c.l.b16 %v7232
        %v7351 = vunpack.c.l.b16 %v7233
        %v7352 = vunpack.c.l.b16 %v7234
        %v7353 = vunpack.c.l.b16 %v7235
        %v7354 = vunpack.c.l.b16 %v7236
        %v7355 = vunpack.c.l.b16 %v7237
        %v7356 = vunpack.c.l.b16 %v7238
        %v7357 = vunpack.c.l.b16 %v7239
        %v7358 = vunpack.c.l.b16 %v7240
        %v7359 = vunpack.c.l.b16 %v7241
        %v7360 = vunpack.c.l.b16 %v7242
        %v7361 = vunpack.c.l.b16 %v7243
        %v7362 = vunpack.c.l.b16 %v7244
        %v7363 = vunpack.c.l.b16 %v7245
        %v7364 = vunpack.c.l.b16 %v7246
        %v7365 = vunpack.c.l.b16 %v7247
        %v7366 = vunpack.c.l.b16 %v7248
        %v7367 = vunpack.c.l.b16 %v7249
        %v7368 = vunpack.c.l.b16 %v7250
        %v7369 = vunpack.c.l.b16 %v7251
        %v7370 = vunpack.c.l.b16 %v7252
        %v7371 = vunpack.c.l.b16 %v7253
        %v7372 = vunpack.c.l.b16 %v7254
        %v7373 = vpack.c.b16 %v7342, %v7341
        %v7374 = vpack.c.b16 %v7344, %v7343
        %v7375 = vpack.c.b16 %v7346, %v7345
        %v7376 = vpack.c.b16 %v7348, %v7347
        %v7377 = vpack.c.b16 %v7350, %v7349
        %v7378 = vpack.c.b16 %v7352, %v7351
        %v7379 = vpack.c.b16 %v7354, %v7353
        %v7380 = vpack.c.b16 %v7356, %v7355
        %v7381 = vpack.c.b16 %v7358, %v7357
        %v7382 = vpack.c.b16 %v7360, %v7359
        %v7383 = vpack.c.b16 %v7362, %v7361
        %v7384 = vpack.c.b16 %v7364, %v7363
        %v7385 = vpack.c.b16 %v7366, %v7365
        %v7386 = vpack.c.b16 %v7368, %v7367
        %v7387 = vpack.c.b16 %v7370, %v7369
        %v7388 = vpack.c.b16 %v7372, %v7371
        %7405 = vmatprep.subr.bf16.mxu0 0
        %7406 = vmatpush1.bf16.msra.mxu0 %v7373
        %7407 = vmatprep.subr.bf16.mxu0 0
        %7408 = vmatpush1.bf16.msra.mxu0 %v7374
        %7409 = vmatprep.subr.bf16.mxu0 0
        %7410 = vmatpush1.bf16.msra.mxu0 %v7375
        %7411 = vmatprep.subr.bf16.mxu0 0
        %7412 = vmatpush1.bf16.msra.mxu0 %v7376
        %7413 = vmatprep.subr.bf16.mxu0 0
        %7414 = vmatpush1.bf16.msra.mxu0 %v7377
        %7415 = vmatprep.subr.bf16.mxu0 0
        %7416 = vmatpush1.bf16.msra.mxu0 %v7378
        %7417 = vmatprep.subr.bf16.mxu0 0
        %7418 = vmatpush1.bf16.msra.mxu0 %v7379
        %7419 = vmatprep.subr.bf16.mxu0 0
        %7420 = vmatpush1.bf16.msra.mxu0 %v7380
        %7421 = vmatprep.subr.bf16.mxu0 0
        %7422 = vmatpush1.bf16.msra.mxu0 %v7381
        %7423 = vmatprep.subr.bf16.mxu0 0
        %7424 = vmatpush1.bf16.msra.mxu0 %v7382
        %7425 = vmatprep.subr.bf16.mxu0 0
        %7426 = vmatpush1.bf16.msra.mxu0 %v7383
        %7427 = vmatprep.subr.bf16.mxu0 0
        %7428 = vmatpush1.bf16.msra.mxu0 %v7384
        %7429 = vmatprep.subr.bf16.mxu0 0
        %7430 = vmatpush1.bf16.msra.mxu0 %v7385
        %7431 = vmatprep.subr.bf16.mxu0 0
        %7432 = vmatpush1.bf16.msra.mxu0 %v7386
        %7433 = vmatprep.subr.bf16.mxu0 0
        %7434 = vmatpush1.bf16.msra.mxu0 %v7387
        %7435 = vmatprep.subr.bf16.mxu0 0
        %7436 = vmatpush1.bf16.msra.mxu0 %v7388
        %7437 = vmatprep.mubr.bf16.mxu0 %v7264
        %7438 = vmatmul.mubr.bf16.gmra.mrb[0].mxu0 %v7261
        %v7439 = vpop.f32.mrb[0].mxu0
        %v7440 = vadd.f32 0.0, %v7439
        %v7441 = vpop.f32.mrb[0].mxu0
        %v7442 = vpop.f32.mrb[0].mxu0
        %v7443 = vadd.f32 0.0, %v7442
        %v7444 = vpop.f32.mrb[0].mxu0
        %7445 = vmatprep.mubr.bf16.mxu0 %v7268
        %7446 = vmatmul.mubr.bf16.gmra.mrb[0].mxu0 %v7266
        %v7447 = vpop.f32.mrb[0].mxu0
        %v7448 = vadd.f32 0.0, %v7447
        %v7449 = vpop.f32.mrb[0].mxu0
        %v7450 = vpop.f32.mrb[0].mxu0
        %v7451 = vadd.f32 0.0, %v7450
        %v7452 = vpop.f32.mrb[0].mxu0
        %7453 = vmatprep.mubr.bf16.mxu0 %v7272
        %7454 = vmatmul.mubr.bf16.gmra.mrb[0].mxu0 %v7270
        %v7455 = vpop.f32.mrb[0].mxu0
        %v7456 = vadd.f32 0.0, %v7455
        %v7457 = vpop.f32.mrb[0].mxu0
        %v7458 = vpop.f32.mrb[0].mxu0
        %v7459 = vadd.f32 0.0, %v7458
        %v7460 = vpop.f32.mrb[0].mxu0
        %7461 = vmatprep.mubr.bf16.mxu0 %v7276
        %7462 = vmatmul.mubr.bf16.gmra.mrb[0].mxu0 %v7274
        %v7463 = vpop.f32.mrb[0].mxu0
        %v7464 = vadd.f32 0.0, %v7463
        %v7465 = vpop.f32.mrb[0].mxu0
        %v7466 = vpop.f32.mrb[0].mxu0
        %v7467 = vadd.f32 0.0, %v7466
        %v7468 = vpop.f32.mrb[0].mxu0
        %7469 = vmatprep.mubr.bf16.mxu0 %v7280
        %7470 = vmatmul.mubr.bf16.gmra.mrb[0].mxu0 %v7278
        %v7471 = vpop.f32.mrb[0].mxu0
        %v7472 = vadd.f32 0.0, %v7471
        %v7473 = vpop.f32.mrb[0].mxu0
        %v7474 = vpop.f32.mrb[0].mxu0
        %v7475 = vadd.f32 0.0, %v7474
        %v7476 = vpop.f32.mrb[0].mxu0
        %7477 = vmatprep.mubr.bf16.mxu0 %v7284
        %7478 = vmatmul.mubr.bf16.gmra.mrb[0].mxu0 %v7282
        %v7479 = vpop.f32.mrb[0].mxu0
        %v7480 = vadd.f32 0.0, %v7479
        %v7481 = vpop.f32.mrb[0].mxu0
        %v7482 = vpop.f32.mrb[0].mxu0
        %v7483 = vadd.f32 0.0, %v7482
        %v7484 = vpop.f32.mrb[0].mxu0
        %7485 = vmatprep.mubr.bf16.mxu0 %v7288
        %7486 = vmatmul.mubr.bf16.gmra.mrb[0].mxu0 %v7286
        %v7487 = vpop.f32.mrb[0].mxu0
        %v7488 = vadd.f32 0.0, %v7487
        %v7489 = vpop.f32.mrb[0].mxu0
        %v7490 = vpop.f32.mrb[0].mxu0
        %v7491 = vadd.f32 0.0, %v7490
        %v7492 = vpop.f32.mrb[0].mxu0
        %7493 = vmatprep.mubr.bf16.mxu0 %v7292
        %7494 = vmatmul.mubr.bf16.gmra.mrb[0].mxu0 %v7290
        %v7495 = vpop.f32.mrb[0].mxu0
        %v7496 = vadd.f32 0.0, %v7495
        %v7497 = vpop.f32.mrb[0].mxu0
        %v7498 = vpop.f32.mrb[0].mxu0
        %v7499 = vadd.f32 0.0, %v7498
        %v7500 = vpop.f32.mrb[0].mxu0
        %7501 = vdwg.mxu0
        %v7502 = vadd.f32 %v7204, %v7440
        %v7503 = vadd.f32 %v7205, %v7443
        %v7504 = vadd.f32 %v7206, %v7448
        %v7505 = vadd.f32 %v7207, %v7451
        %v7506 = vadd.f32 %v7208, %v7456
        %v7507 = vadd.f32 %v7209, %v7459
        %v7508 = vadd.f32 %v7210, %v7464
        %v7509 = vadd.f32 %v7211, %v7467
        %v7510 = vadd.f32 %v7212, %v7472
        %v7511 = vadd.f32 %v7213, %v7475
        %v7512 = vadd.f32 %v7214, %v7480
        %v7513 = vadd.f32 %v7215, %v7483
        %v7514 = vadd.f32 %v7216, %v7488
        %v7515 = vadd.f32 %v7217, %v7491
        %v7516 = vadd.f32 %v7218, %v7496
        %v7517 = vadd.f32 %v7219, %v7499
        %v7518 = vld [vmem:[#allocation8] sm:$0x1]
        %v7520 = vlaneseq
        %v7521 = vshrl.u32 %v7520, 7
        %v7522 = vsub.s32 0, %v7521
        %v7523 = vrot.slane %v7518, %v7522
        %v7525 = vadd.f32 %v7502, %v7523
        %v7526 = vadd.f32 %v7503, %v7523
        %v7527 = vadd.f32 %v7504, %v7523
        %v7528 = vadd.f32 %v7505, %v7523
        %v7529 = vadd.f32 %v7506, %v7523
        %v7530 = vadd.f32 %v7507, %v7523
        %v7531 = vadd.f32 %v7508, %v7523
        %v7532 = vadd.f32 %v7509, %v7523
        %v7533 = vadd.f32 %v7510, %v7523
        %v7534 = vadd.f32 %v7511, %v7523
        %v7535 = vadd.f32 %v7512, %v7523
        %v7536 = vadd.f32 %v7513, %v7523
        %v7537 = vadd.f32 %v7514, %v7523
        %v7538 = vadd.f32 %v7515, %v7523
        %v7539 = vadd.f32 %v7516, %v7523
        %v7540 = vadd.f32 %v7517, %v7523
        %vm7541 = vcmp.gt.f32.partialorder %v7525, 0.0
        %vm7542 = vcmp.gt.f32.partialorder %v7526, 0.0
        %vm7543 = vcmp.gt.f32.partialorder %v7527, 0.0
        %vm7544 = vcmp.gt.f32.partialorder %v7528, 0.0
        %vm7545 = vcmp.gt.f32.partialorder %v7529, 0.0
        %vm7546 = vcmp.gt.f32.partialorder %v7530, 0.0
        %vm7547 = vcmp.gt.f32.partialorder %v7531, 0.0
        %vm7548 = vcmp.gt.f32.partialorder %v7532, 0.0
        %vm7549 = vcmp.gt.f32.partialorder %v7533, 0.0
        %vm7550 = vcmp.gt.f32.partialorder %v7534, 0.0
        %vm7551 = vcmp.gt.f32.partialorder %v7535, 0.0
        %vm7552 = vcmp.gt.f32.partialorder %v7536, 0.0
        %vm7553 = vcmp.gt.f32.partialorder %v7537, 0.0
        %vm7554 = vcmp.gt.f32.partialorder %v7538, 0.0
        %vm7555 = vcmp.gt.f32.partialorder %v7539, 0.0
        %vm7556 = vcmp.gt.f32.partialorder %v7540, 0.0
        %v7557 = vmul.f32 %v7525, 0.2
        %v7558 = vmul.f32 %v7526, 0.2
        %v7559 = vmul.f32 %v7527, 0.2
        %v7560 = vmul.f32 %v7528, 0.2
        %v7561 = vmul.f32 %v7529, 0.2
        %v7562 = vmul.f32 %v7530, 0.2
        %v7563 = vmul.f32 %v7531, 0.2
        %v7564 = vmul.f32 %v7532, 0.2
        %v7565 = vmul.f32 %v7533, 0.2
        %v7566 = vmul.f32 %v7534, 0.2
        %v7567 = vmul.f32 %v7535, 0.2
        %v7568 = vmul.f32 %v7536, 0.2
        %v7569 = vmul.f32 %v7537, 0.2
        %v7570 = vmul.f32 %v7538, 0.2
        %v7571 = vmul.f32 %v7539, 0.2
        %v7572 = vmul.f32 %v7540, 0.2
        %v7573 = vsel %vm7541, %v7525, %v7557
        %v7574 = vsel %vm7542, %v7526, %v7558
        %v7575 = vsel %vm7543, %v7527, %v7559
        %v7576 = vsel %vm7544, %v7528, %v7560
        %v7577 = vsel %vm7545, %v7529, %v7561
        %v7578 = vsel %vm7546, %v7530, %v7562
        %v7579 = vsel %vm7547, %v7531, %v7563
        %v7580 = vsel %vm7548, %v7532, %v7564
        %v7581 = vsel %vm7549, %v7533, %v7565
        %v7582 = vsel %vm7550, %v7534, %v7566
        %v7583 = vsel %vm7551, %v7535, %v7567
        %v7584 = vsel %vm7552, %v7536, %v7568
        %v7585 = vsel %vm7553, %v7537, %v7569
        %v7586 = vsel %vm7554, %v7538, %v7570
        %v7587 = vsel %vm7555, %v7539, %v7571
        %v7588 = vsel %vm7556, %v7540, %v7572
        %7589 = vxpose.xlu0.b32.start [1/16] %v7573, 128
        %7590 = vxpose.xlu0.b32.cont [2/16] %v7574, 128
        %7591 = vxpose.xlu0.b32.cont [3/16] %v7575, 128
        %7592 = vxpose.xlu0.b32.cont [4/16] %v7576, 128
        %7593 = vxpose.xlu0.b32.cont [5/16] %v7577, 128
        %7594 = vxpose.xlu0.b32.cont [6/16] %v7578, 128
        %7595 = vxpose.xlu0.b32.cont [7/16] %v7579, 128
        %7596 = vxpose.xlu0.b32.cont [8/16] %v7580, 128
        %7597 = vxpose.xlu0.b32.cont [9/16] %v7581, 128
        %7598 = vxpose.xlu0.b32.cont [10/16] %v7582, 128
        %7599 = vxpose.xlu0.b32.cont [11/16] %v7583, 128
        %7600 = vxpose.xlu0.b32.cont [12/16] %v7584, 128
        %7601 = vxpose.xlu0.b32.cont [13/16] %v7585, 128
        %7602 = vxpose.xlu0.b32.cont [14/16] %v7586, 128
        %7603 = vxpose.xlu0.b32.cont [15/16] %v7587, 128
        %7604 = vxpose.xlu0.b32.end [16/16] %v7588, 128
        %v7605 = vpop.trf.xlu0
        %v7606 = vpop.trf.xlu0
        %v7607 = vpop.trf.xlu0
        %v7608 = vpop.trf.xlu0
        %v7609 = vpop.trf.xlu0
        %v7610 = vpop.trf.xlu0
        %v7611 = vpop.trf.xlu0
        %v7612 = vpop.trf.xlu0
        %v7613 = vpop.trf.xlu0
        %v7614 = vpop.trf.xlu0
        %v7615 = vpop.trf.xlu0
        %v7616 = vpop.trf.xlu0
        %v7617 = vpop.trf.xlu0
        %v7618 = vpop.trf.xlu0
        %v7619 = vpop.trf.xlu0
        %v7620 = vpop.trf.xlu0
        %7621 = vst [vmem:[%s256] sm:$0xff] %v7605
        %7622 = vst [vmem:[%s256 + $0x8] sm:$0xff] %v7606
        %7623 = vst [vmem:[%s256 + $0x10] sm:$0xff] %v7607
        %7624 = vst [vmem:[%s256 + $0x18] sm:$0xff] %v7608
        %7625 = vst [vmem:[%s256 + $0x20] sm:$0xff] %v7609
        %7626 = vst [vmem:[%s256 + $0x28] sm:$0xff] %v7610
        %7627 = vst [vmem:[%s256 + $0x30] sm:$0xff] %v7611
        %7628 = vst [vmem:[%s256 + $0x38] sm:$0xff] %v7612
        %7629 = vst [vmem:[%s256 + $0x40] sm:$0xff] %v7613
        %7630 = vst [vmem:[%s256 + $0x48] sm:$0xff] %v7614
        %7631 = vst [vmem:[%s256 + $0x50] sm:$0xff] %v7615
        %7632 = vst [vmem:[%s256 + $0x58] sm:$0xff] %v7616
        %7633 = vst [vmem:[%s256 + $0x60] sm:$0xff] %v7617
        %7634 = vst [vmem:[%s256 + $0x68] sm:$0xff] %v7618
        %7635 = vst [vmem:[%s256 + $0x70] sm:$0xff] %v7619
        %7636 = vst [vmem:[%s256 + $0x78] sm:$0xff] %v7620
        %s7637 = sand.u32 %s133, 1
        %s7638 = scalar_lea.sflag [#allocation5], %s7637
        %s7639 = sand.u32 %s133, 1
        %s7640 = smul.addr %s7639, 128
        %s7641 = scalar_lea.vmem [#allocation9], %s7640
        // Predicated region
        $region49: #{tpu_custom_call.1} parent=35 // pred_check
          %p7642 = pneg %p143
        $region50: #{tpu_custom_call.1} parent=35 // pred_check_branch
          %7644 = sbr.rel (%p7642) target = $region52
        $region51: #{tpu_custom_call.1} parent=35 // pred_region
          %s7646 = ssub.s32 2048, 2048
          %7647 = vsyncadd %s7638, %s7646
          %s7648 = smul.addr %s24, 16
          %s7649 = sadd.s32 %s25, %s7648
          %s7650 = smul.addr %s7649, 128
          %s7651 = scalar_lea.hbm %s4, %s7650
          %s7652 = sshll.u32 %s7641, 4
          %s7653 = int_to_ptr.vmem [resolvable:$true] %s7652
          %7658 = dma.vmem_to_hbm [thread:$0]  %s7653, 2048, %s7651, %s7638, 128, 128, 8
        $region52: #{tpu_custom_call.1} parent=35 // pred_fallthru
          _
      $region36: #{tpu_custom_call.1} parent=5 // pred_fallthru
        _
      %p7659 = scmp.le.s32.totalorder 2, %s15
      // Predicated region
      $region53: #{tpu_custom_call.1} parent=5 // pred_check
        %p7660 = pneg %p7659
      $region54: #{tpu_custom_call.1} parent=5 // pred_check_branch
        %7662 = sbr.rel (%p7660) target = $region56
      $region55: #{tpu_custom_call.1} parent=5 // pred_region
        %s7663 = ssub.s32 %s15, 2
        // Predicated region
        $region57: #{tpu_custom_call.1} parent=55 // pred_check
          %p7664 = pneg %p149
        $region58: #{tpu_custom_call.1} parent=55 // pred_check_branch
          %7666 = sbr.rel (%p7664) target = $region60
        $region59: #{tpu_custom_call.1} parent=55 // pred_region
          %s7667 = sand.u32 %s134, 1
          %s7668 = scalar_lea.sflag [#allocation5], %s7667
          %s7669 = sand.u32 %s134, 1
          %s7670 = smul.addr %s7669, 128
          %s7671 = scalar_lea.vmem [#allocation9], %s7670
          %7672 = dma.done %s7668, 2048
        $region60: #{tpu_custom_call.1} parent=55 // pred_fallthru
          _
      $region56: #{tpu_custom_call.1} parent=5 // pred_fallthru
        _
    $region6: #{tpu_custom_call.1} parent=1 // loop_footer
      %s19 = sadd.s32 1, %s15
    $region7: #{tpu_custom_call.1} parent=1 // loop_footer_branch
      %14 = sbr.rel target = $region3
    $region8: #{tpu_custom_call.1} parent=1 // loop_exit
      _
    %7673 = vsyncpa [#allocation4], 1
    %s7674 = scalar_lea.sflag [#allocation4], 1
    %7675 = vsyncpa %s7674, 1
    %7676 = vsyncpa [#allocation7], 1
    %7677 = vsyncpa [#allocation5], 1
    %s7678 = scalar_lea.sflag [#allocation5], 1
    %7679 = vsyncpa %s7678, 1

</llo_original>
